<compile_context>
chip_gen: v6e
topology: v6e:2x2x1
jax: 0.10.0
libtpu: 0.0.40
codegen_flags: <defaults>
</compile_context>

<pallas_src>
import functools

import jax
import jax.numpy as jnp
from jax.experimental import pallas as pl
from jax.experimental.pallas import tpu as pltpu

CHN = 64


def _cdiv(a, b):
    return -(-a // b)


def _round_up(x, m):
    return (x + m - 1) // m * m


# ----------------------------------------------------------------------------
# In-kernel helpers (traced; all shapes/offsets are static Python ints)
# ----------------------------------------------------------------------------
def _same_max_pool(pool_ref, y, pool):
    """TF-SAME max pool (kernel=stride=pool) on non-negative y: (T, 128) f32.

    One dense store into scratch, then `pool` strided pl.ds loads reduced with
    jnp.maximum (no per-row masked stores)."""
    T = y.shape[0]
    T_out = _cdiv(T, pool)
    total = T_out * pool
    pad_l = (total - T) // 2
    if pad_l:
        pool_ref[pl.ds(0, pad_l), :] = jnp.zeros((pad_l, 128), jnp.float32)
    pool_ref[pl.ds(pad_l, T), :] = y
    trail = total - pad_l - T
    if trail:
        pool_ref[pl.ds(pad_l + T, trail), :] = jnp.zeros((trail, 128), jnp.float32)
    m = pool_ref[pl.ds(0, T_out, stride=pool), :]
    for j in range(1, pool):
        m = jnp.maximum(m, pool_ref[pl.ds(j, T_out, stride=pool), :])
    return m


def _run_path(xr_ref, sw_ref, ss_ref, sb_ref, tw_ref, ts_ref, tb_ref,
              pool_ref, act_ref, *, T_conv, ndeep, pool1, pool_last):
    """One DeepSleepNet conv path, fully VMEM-resident.  Returns (T_final,128)."""
    # --- stem: Conv1d(1, 64, k, stride, SAME, bias=False) + BN + ReLU ---------
    # xr_ref holds the zero-padded signal folded to (rows, stride); tap d of the
    # strided conv is a (T_conv, stride) x (stride, 128) matmul.
    acc = jnp.zeros((T_conv, 128), jnp.float32)
    for d in range(ndeep):
        xs = xr_ref[0, pl.ds(d, T_conv), :].astype(jnp.bfloat16)
        acc = acc + jnp.dot(xs, sw_ref[d], preferred_element_type=jnp.float32)
    h = jnp.maximum(acc * ss_ref[...] + sb_ref[...], 0.0)
    # --- MaxPool1d(pool1, SAME) ----------------------------------------------
    h = _same_max_pool(pool_ref, h, pool1)
    T = h.shape[0]
    # nn.Dropout -> identity (inference)
    # --- 3 x [Conv1d(k=8, stride=1, SAME, bias=False) + BN + ReLU] ------------
    # SAME pad for k=8: (3 left, 4 right); zero the border rows once per path.
    act_ref[pl.ds(0, 3), :] = jnp.zeros((3, 128), jnp.float32)
    act_ref[pl.ds(3 + T, 4), :] = jnp.zeros((4, 128), jnp.float32)
    for stage in range(3):
        act_ref[pl.ds(3, T), :] = h
        acc = jnp.zeros((T, 128), jnp.float32)
        for t in range(8):
            xs = act_ref[pl.ds(t, T), :].astype(jnp.bfloat16)
            acc = acc + jnp.dot(xs, tw_ref[stage * 8 + t],
                                preferred_element_type=jnp.float32)
        h = jnp.maximum(acc * ts_ref[stage] + tb_ref[stage], 0.0)
    # --- final MaxPool1d(pool_last, SAME) -------------------------------------
    return _same_max_pool(pool_ref, h, pool_last)


def _dsn_kernel(xr1_ref, xr2_ref,
                p1sw, p1ss, p1sb, p1tw, p1ts, p1tb,
                p2sw, p2ss, p2sb, p2tw, p2ts, p2tb,
                wc_ref, bc_ref, ws_ref, bs_ref, w5_ref, b5_ref,
                o_ref, pool_ref, act_ref, *, cfg1, cfg2, src_idx):
    x1 = _run_path(xr1_ref, p1sw, p1ss, p1sb, p1tw, p1ts, p1tb,
                   pool_ref, act_ref, **cfg1)                   # (T1, 128)
    x2 = _run_path(xr2_ref, p2sw, p2ss, p2sb, p2tw, p2ts, p2tb,
                   pool_ref, act_ref, **cfg2)                   # (T2, 128)

    # F.interpolate(x2, size=T1, mode='nearest'): static row duplication.
    x2i = jnp.concatenate([x2[i:i + 1, :] for i in src_idx], axis=0)

    # compress: Conv1d(256, 128, 1) + bias over concat([x1, x2i]) -> two dots.
    c = (jnp.dot(x1.astype(jnp.bfloat16), wc_ref[0],
                 preferred_element_type=jnp.float32)
         + jnp.dot(x2i.astype(jnp.bfloat16), wc_ref[1],
                   preferred_element_type=jnp.float32)
         + bc_ref[...])

    # smooth: Conv1d(128, 128, 3, padding=1) + bias.  Edges handled in-register
    # with shifted partial products (no scratch memset / offset store needed).
    cb = c.astype(jnp.bfloat16)
    m0 = jnp.dot(cb, ws_ref[0], preferred_element_type=jnp.float32)
    m1 = jnp.dot(cb, ws_ref[1], preferred_element_type=jnp.float32)
    m2 = jnp.dot(cb, ws_ref[2], preferred_element_type=jnp.float32)
    T1 = c.shape[0]
    zrow = jnp.zeros((1, 128), jnp.float32)
    c5 = m1 + bs_ref[...]
    c5 = c5 + jnp.concatenate([zrow, m0[:T1 - 1, :]], axis=0)   # c[i-1] @ w[0]
    c5 = c5 + jnp.concatenate([m2[1:, :], zrow], axis=0)        # c[i+1] @ w[2]

    # conv_c5: Conv1d(128, 128, 1) + bias -> single lane-dense store.
    p5 = jnp.dot(c5.astype(jnp.bfloat16), w5_ref[...],
                 preferred_element_type=jnp.float32) + b5_ref[...]
    o_ref[0] = p5


# ----------------------------------------------------------------------------
# Host-side prep (pad + reshape only; no gathers, no im2col in HBM)
# ----------------------------------------------------------------------------
def _stem_input(x_flat, k, stride):
    """SAME-pad and fold the raw signal to (B, rows, stride_pad) so the strided
    stem conv becomes `ndeep` tap matmuls inside the kernel."""
    B, L = x_flat.shape
    T_conv = _cdiv(L, stride)
    pad_total = max((T_conv - 1) * stride + k - L, 0)
    pad_l = pad_total // 2
    ndeep = _cdiv(k, stride)
    rows = T_conv + ndeep - 1
    xp = jnp.pad(x_flat, ((0, 0), (pad_l, rows * stride - L - pad_l)))
    xr = xp.reshape(B, rows, stride)
    sp = _round_up(stride, 8)
    if sp != stride:
        xr = jnp.pad(xr, ((0, 0), (0, 0), (0, sp - stride)))
    return xr, T_conv, ndeep


def _bn_fold(gamma, beta, mean, var, eps=1e-5):
    scale = gamma / jnp.sqrt(var + eps)
    return scale, beta - mean * scale


def init_params(key):
    keys = iter(jax.random.split(key, 64))

    def nk():
        return next(keys)

    def conv_w(cout, cin, k):
        return 0.05 * jax.random.normal(nk(), (cout, cin, k), jnp.float32)

    def bn(c):
        gamma = 1.0 + 0.1 * jax.random.normal(nk(), (c,), jnp.float32)
        beta = 0.1 * jax.random.normal(nk(), (c,), jnp.float32)
        mean = 0.1 * jax.random.normal(nk(), (c,), jnp.float32)
        var = 0.5 + 0.1 * jnp.abs(jax.random.normal(nk(), (c,), jnp.float32))
        return _bn_fold(gamma, beta, mean, var)

    def pad_vec(v):  # zero-padded channels stay exactly zero after BN+ReLU
        return jnp.pad(v, (0, 128 - v.shape[0])).reshape(1, 128)

    def prep_stem(k, stride):
        w = conv_w(CHN, 1, k)                                   # (64, 1, k)
        s, b = bn(CHN)
        ndeep = _cdiv(k, stride)
        sp = _round_up(stride, 8)
        wk = jnp.pad(w[:, 0, :].T, ((0, ndeep * stride - k), (0, 128 - CHN)))
        wst = wk.reshape(ndeep, stride, 128)
        if sp != stride:
            wst = jnp.pad(wst, ((0, 0), (0, sp - stride), (0, 0)))
        return dict(stem_w=wst.astype(jnp.bfloat16),
                    stem_scale=pad_vec(s), stem_bias=pad_vec(b))

    def prep_taps():
        ws, ss, bs = [], [], []
        for cin in (CHN, 2 * CHN, 2 * CHN):
            w = conv_w(2 * CHN, cin, 8)                         # (128, cin, 8)
            s, b = bn(2 * CHN)
            w3 = jnp.pad(jnp.transpose(w, (2, 1, 0)),
                         ((0, 0), (0, 128 - cin), (0, 0)))      # (8, 128, 128)
            ws.append(w3)
            ss.append(s.reshape(1, 128))
            bs.append(b.reshape(1, 128))
        return dict(tap_w=jnp.concatenate(ws, 0).astype(jnp.bfloat16),  # (24,128,128)
                    tap_scale=jnp.stack(ss), tap_bias=jnp.stack(bs))    # (3,1,128)

    def biased(cout, cin, k):
        w = conv_w(cout, cin, k)
        b = 0.05 * jax.random.normal(nk(), (cout,), jnp.float32)
        return w, b

    p1 = {**prep_stem(50, 6), **prep_taps()}
    p2 = {**prep_stem(400, 50), **prep_taps()}

    wc, bc = biased(128, 4 * CHN, 1)                            # compress
    ws_, bs_ = biased(128, 128, 3)                              # smooth
    w5, b5 = biased(128, 128, 1)                                # conv_c5
    head = dict(
        wc=wc[:, :, 0].T.reshape(2, 128, 128).astype(jnp.bfloat16),
        bc=bc.reshape(1, 128),
        ws=jnp.transpose(ws_, (2, 1, 0)).astype(jnp.bfloat16),  # (3, 128, 128)
        bs=bs_.reshape(1, 128),
        w5=w5[:, :, 0].T.astype(jnp.bfloat16),
        b5=b5.reshape(1, 128))
    return {"p1": p1, "p2": p2, "head": head}


# ----------------------------------------------------------------------------
# Forward pass (mirrors DeepSleepNetFeature.forward) -- ONE pallas_call
# ----------------------------------------------------------------------------
def deepsleepnet_feature(x, p):
    B, _, L = x.shape
    x_flat = x[:, 0, :].astype(jnp.float32)

    xr1, Tc1, nd1 = _stem_input(x_flat, 50, 6)
    xr2, Tc2, nd2 = _stem_input(x_flat, 400, 50)
    Tp1, Tp2 = _cdiv(Tc1, 8), _cdiv(Tc2, 4)
    T1, T2 = _cdiv(Tp1, 4), _cdiv(Tp2, 2)
    src_idx = tuple(min(i * T2 // T1, T2 - 1) for i in range(T1))

    # Scratch sizing (max over every pool / padded-activation use, both paths).
    Prows = _round_up(max(_cdiv(Tc1, 8) * 8, _cdiv(Tp1, 4) * 4,
                          _cdiv(Tc2, 4) * 4, _cdiv(Tp2, 2) * 2), 8)
    Arows = _round_up(max(Tp1, Tp2) + 7, 8)

    cfg1 = dict(T_conv=Tc1, ndeep=nd1, pool1=8, pool_last=4)
    cfg2 = dict(T_conv=Tc2, ndeep=nd2, pool1=4, pool_last=2)

    weights = (p["p1"]["stem_w"], p["p1"]["stem_scale"], p["p1"]["stem_bias"],
               p["p1"]["tap_w"], p["p1"]["tap_scale"], p["p1"]["tap_bias"],
               p["p2"]["stem_w"], p["p2"]["stem_scale"], p["p2"]["stem_bias"],
               p["p2"]["tap_w"], p["p2"]["tap_scale"], p["p2"]["tap_bias"],
               p["head"]["wc"], p["head"]["bc"], p["head"]["ws"],
               p["head"]["bs"], p["head"]["w5"], p["head"]["b5"])

    # VMEM budget from actual per-step block sizes (double-buffered) + headroom.
    def nbytes(a):
        return int(a.size) * a.dtype.itemsize
    blk = nbytes(xr1) // B + nbytes(xr2) // B + T1 * 128 * 4
    wgt = sum(nbytes(w) for w in weights)
    scratch_bytes = (Prows + Arows) * 128 * 4
    vmem_limit = int(2 * (blk + wgt) + scratch_bytes + (2 << 20))

    def full_spec(a):
        return pl.BlockSpec(a.shape, lambda b, _n=a.ndim: (0,) * _n)

    out = pl.pallas_call(
        functools.partial(_dsn_kernel, cfg1=cfg1, cfg2=cfg2, src_idx=src_idx),
        out_shape=jax.ShapeDtypeStruct((B, T1, 128), jnp.float32),
        grid=(B,),
        in_specs=[
            pl.BlockSpec((1,) + xr1.shape[1:], lambda b: (b, 0, 0)),
            pl.BlockSpec((1,) + xr2.shape[1:], lambda b: (b, 0, 0)),
        ] + [full_spec(w) for w in weights],
        out_specs=pl.BlockSpec((1, T1, 128), lambda b: (b, 0, 0)),
        scratch_shapes=[pltpu.VMEM((Prows, 128), jnp.float32),   # pool buffer
                        pltpu.VMEM((Arows, 128), jnp.float32)],  # SAME-pad acts
        compiler_params=pltpu.CompilerParams(
            dimension_semantics=("parallel",),   # v7x: one batch element per TC
            vmem_limit_bytes=vmem_limit),
    )(xr1, xr2, *weights)

    return [jnp.transpose(out, (0, 2, 1))]       # PyTorch (B, C, T) layout


# ----------------------------------------------------------------------------
if __name__ == "__main__":
    key = jax.random.PRNGKey(0)
    kx, kp = jax.random.split(key)

    B, L = 2, 1200                    # small stand-in for the 3000-sample EEG epoch
    x = jax.random.normal(kx, (B, 1, L), jnp.float32)
    params = init_params(kp)

    fwd = jax.jit(deepsleepnet_feature)
    out = fwd(x, params)
    p5 = jax.block_until_ready(out[0])

    # path1: 1200 -> 200 -> 25 -> 7 ; path2: 1200 -> 24 -> 6 -> 3 -> interp to 7
    assert p5.shape == (B, 128, 7), p5.shape
    assert bool(jnp.all(jnp.isfinite(p5)))
    print("KERNEL_OK")
</pallas_src>

<mosaic_0001>
module attributes {stable_mosaic.version = 11 : i64} {
  func.func @_dsn_kernel(%arg0: i32, %arg1: memref<1x208x8xf32, #tpu.memory_space<vmem>>, %arg2: memref<1x31x56xf32, #tpu.memory_space<vmem>>, %arg3: memref<9x8x128xbf16, #tpu.memory_space<vmem>>, %arg4: memref<1x128xf32, #tpu.memory_space<vmem>>, %arg5: memref<1x128xf32, #tpu.memory_space<vmem>>, %arg6: memref<24x128x128xbf16, #tpu.memory_space<vmem>>, %arg7: memref<3x1x128xf32, #tpu.memory_space<vmem>>, %arg8: memref<3x1x128xf32, #tpu.memory_space<vmem>>, %arg9: memref<8x56x128xbf16, #tpu.memory_space<vmem>>, %arg10: memref<1x128xf32, #tpu.memory_space<vmem>>, %arg11: memref<1x128xf32, #tpu.memory_space<vmem>>, %arg12: memref<24x128x128xbf16, #tpu.memory_space<vmem>>, %arg13: memref<3x1x128xf32, #tpu.memory_space<vmem>>, %arg14: memref<3x1x128xf32, #tpu.memory_space<vmem>>, %arg15: memref<2x128x128xbf16, #tpu.memory_space<vmem>>, %arg16: memref<1x128xf32, #tpu.memory_space<vmem>>, %arg17: memref<3x128x128xbf16, #tpu.memory_space<vmem>>, %arg18: memref<1x128xf32, #tpu.memory_space<vmem>>, %arg19: memref<128x128xbf16, #tpu.memory_space<vmem>>, %arg20: memref<1x128xf32, #tpu.memory_space<vmem>>, %arg21: memref<1x7x128xf32, #tpu.memory_space<vmem>>, %arg22: memref<200x128xf32, #tpu.memory_space<vmem>>, %arg23: memref<32x128xf32, #tpu.memory_space<vmem>>) attributes {dimension_semantics = [#tpu.dimension_semantics<parallel>], iteration_bounds = array<i64: 2>, scalar_prefetch = 0 : i64, scratch_operands = 2 : i64, tpu.core_type = #tpu.core_type<tc>, window_params = [{transform_indices = @transform_0, window_bounds = array<i64: 1, 208, 8>}, {transform_indices = @transform_1, window_bounds = array<i64: 1, 31, 56>}, {pipeline_mode = #tpu.pipeline_mode<synchronous>, transform_indices = @transform_2, window_bounds = array<i64: 9, 8, 128>}, {pipeline_mode = #tpu.pipeline_mode<synchronous>, transform_indices = @transform_3, window_bounds = array<i64: 1, 128>}, {pipeline_mode = #tpu.pipeline_mode<synchronous>, transform_indices = @transform_4, window_bounds = array<i64: 1, 128>}, {pipeline_mode = #tpu.pipeline_mode<synchronous>, transform_indices = @transform_5, window_bounds = array<i64: 24, 128, 128>}, {pipeline_mode = #tpu.pipeline_mode<synchronous>, transform_indices = @transform_6, window_bounds = array<i64: 3, 1, 128>}, {pipeline_mode = #tpu.pipeline_mode<synchronous>, transform_indices = @transform_7, window_bounds = array<i64: 3, 1, 128>}, {pipeline_mode = #tpu.pipeline_mode<synchronous>, transform_indices = @transform_8, window_bounds = array<i64: 8, 56, 128>}, {pipeline_mode = #tpu.pipeline_mode<synchronous>, transform_indices = @transform_9, window_bounds = array<i64: 1, 128>}, {pipeline_mode = #tpu.pipeline_mode<synchronous>, transform_indices = @transform_10, window_bounds = array<i64: 1, 128>}, {pipeline_mode = #tpu.pipeline_mode<synchronous>, transform_indices = @transform_11, window_bounds = array<i64: 24, 128, 128>}, {pipeline_mode = #tpu.pipeline_mode<synchronous>, transform_indices = @transform_12, window_bounds = array<i64: 3, 1, 128>}, {pipeline_mode = #tpu.pipeline_mode<synchronous>, transform_indices = @transform_13, window_bounds = array<i64: 3, 1, 128>}, {pipeline_mode = #tpu.pipeline_mode<synchronous>, transform_indices = @transform_14, window_bounds = array<i64: 2, 128, 128>}, {pipeline_mode = #tpu.pipeline_mode<synchronous>, transform_indices = @transform_15, window_bounds = array<i64: 1, 128>}, {pipeline_mode = #tpu.pipeline_mode<synchronous>, transform_indices = @transform_16, window_bounds = array<i64: 3, 128, 128>}, {pipeline_mode = #tpu.pipeline_mode<synchronous>, transform_indices = @transform_17, window_bounds = array<i64: 1, 128>}, {pipeline_mode = #tpu.pipeline_mode<synchronous>, transform_indices = @transform_18, window_bounds = array<i64: 128, 128>}, {pipeline_mode = #tpu.pipeline_mode<synchronous>, transform_indices = @transform_19, window_bounds = array<i64: 1, 128>}, {transform_indices = @transform_20, window_bounds = array<i64: 1, 7, 128>}]} {
    %cst = arith.constant 0.000000e+00 : f32
    %0 = vector.broadcast %cst : f32 to vector<200x128xf32>
    %c0 = arith.constant 0 : index
    %c0_0 = arith.constant 0 : index
    %c0_1 = arith.constant 0 : index
    %1 = vector.load %arg1[%c0, %c0_0, %c0_1] : memref<1x208x8xf32, #tpu.memory_space<vmem>>, vector<1x200x8xf32>
    %2 = vector.shape_cast %1 : vector<1x200x8xf32> to vector<200x8xf32>
    %3 = arith.truncf %2 : vector<200x8xf32> to vector<200x8xbf16>
    %c0_2 = arith.constant 0 : index
    %c0_3 = arith.constant 0 : index
    %c0_4 = arith.constant 0 : index
    %4 = vector.load %arg3[%c0_2, %c0_3, %c0_4] : memref<9x8x128xbf16, #tpu.memory_space<vmem>>, vector<1x8x128xbf16>
    %5 = vector.shape_cast %4 : vector<1x8x128xbf16> to vector<8x128xbf16>
    %cst_5 = arith.constant dense<0.000000e+00> : vector<200x128xf32>
    %6 = tpu.matmul %3, %5, %cst_5 {dimension_numbers = #tpu.dot_dimension_numbers<[1], [0], [0], [1], [0, 0, 1, 1], [], []>} : vector<200x8xbf16>, vector<8x128xbf16>, vector<200x128xf32> -> vector<200x128xf32>
    %7 = arith.addf %0, %6 : vector<200x128xf32>
    %c0_6 = arith.constant 0 : index
    %c1 = arith.constant 1 : index
    %c0_7 = arith.constant 0 : index
    %8 = vector.load %arg1[%c0_6, %c1, %c0_7] : memref<1x208x8xf32, #tpu.memory_space<vmem>>, vector<1x200x8xf32>
    %9 = vector.shape_cast %8 : vector<1x200x8xf32> to vector<200x8xf32>
    %10 = arith.truncf %9 : vector<200x8xf32> to vector<200x8xbf16>
    %c1_8 = arith.constant 1 : index
    %c0_9 = arith.constant 0 : index
    %c0_10 = arith.constant 0 : index
    %11 = vector.load %arg3[%c1_8, %c0_9, %c0_10] : memref<9x8x128xbf16, #tpu.memory_space<vmem>>, vector<1x8x128xbf16>
    %12 = vector.shape_cast %11 : vector<1x8x128xbf16> to vector<8x128xbf16>
    %cst_11 = arith.constant dense<0.000000e+00> : vector<200x128xf32>
    %13 = tpu.matmul %10, %12, %cst_11 {dimension_numbers = #tpu.dot_dimension_numbers<[1], [0], [0], [1], [0, 0, 1, 1], [], []>} : vector<200x8xbf16>, vector<8x128xbf16>, vector<200x128xf32> -> vector<200x128xf32>
    %14 = arith.addf %7, %13 : vector<200x128xf32>
    %c0_12 = arith.constant 0 : index
    %c2 = arith.constant 2 : index
    %c0_13 = arith.constant 0 : index
    %15 = vector.load %arg1[%c0_12, %c2, %c0_13] : memref<1x208x8xf32, #tpu.memory_space<vmem>>, vector<1x200x8xf32>
    %16 = vector.shape_cast %15 : vector<1x200x8xf32> to vector<200x8xf32>
    %17 = arith.truncf %16 : vector<200x8xf32> to vector<200x8xbf16>
    %c2_14 = arith.constant 2 : index
    %c0_15 = arith.constant 0 : index
    %c0_16 = arith.constant 0 : index
    %18 = vector.load %arg3[%c2_14, %c0_15, %c0_16] : memref<9x8x128xbf16, #tpu.memory_space<vmem>>, vector<1x8x128xbf16>
    %19 = vector.shape_cast %18 : vector<1x8x128xbf16> to vector<8x128xbf16>
    %cst_17 = arith.constant dense<0.000000e+00> : vector<200x128xf32>
    %20 = tpu.matmul %17, %19, %cst_17 {dimension_numbers = #tpu.dot_dimension_numbers<[1], [0], [0], [1], [0, 0, 1, 1], [], []>} : vector<200x8xbf16>, vector<8x128xbf16>, vector<200x128xf32> -> vector<200x128xf32>
    %21 = arith.addf %14, %20 : vector<200x128xf32>
    %c0_18 = arith.constant 0 : index
    %c3 = arith.constant 3 : index
    %c0_19 = arith.constant 0 : index
    %22 = vector.load %arg1[%c0_18, %c3, %c0_19] : memref<1x208x8xf32, #tpu.memory_space<vmem>>, vector<1x200x8xf32>
    %23 = vector.shape_cast %22 : vector<1x200x8xf32> to vector<200x8xf32>
    %24 = arith.truncf %23 : vector<200x8xf32> to vector<200x8xbf16>
    %c3_20 = arith.constant 3 : index
    %c0_21 = arith.constant 0 : index
    %c0_22 = arith.constant 0 : index
    %25 = vector.load %arg3[%c3_20, %c0_21, %c0_22] : memref<9x8x128xbf16, #tpu.memory_space<vmem>>, vector<1x8x128xbf16>
    %26 = vector.shape_cast %25 : vector<1x8x128xbf16> to vector<8x128xbf16>
    %cst_23 = arith.constant dense<0.000000e+00> : vector<200x128xf32>
    %27 = tpu.matmul %24, %26, %cst_23 {dimension_numbers = #tpu.dot_dimension_numbers<[1], [0], [0], [1], [0, 0, 1, 1], [], []>} : vector<200x8xbf16>, vector<8x128xbf16>, vector<200x128xf32> -> vector<200x128xf32>
    %28 = arith.addf %21, %27 : vector<200x128xf32>
    %c0_24 = arith.constant 0 : index
    %c4 = arith.constant 4 : index
    %c0_25 = arith.constant 0 : index
    %29 = vector.load %arg1[%c0_24, %c4, %c0_25] : memref<1x208x8xf32, #tpu.memory_space<vmem>>, vector<1x200x8xf32>
    %30 = vector.shape_cast %29 : vector<1x200x8xf32> to vector<200x8xf32>
    %31 = arith.truncf %30 : vector<200x8xf32> to vector<200x8xbf16>
    %c4_26 = arith.constant 4 : index
    %c0_27 = arith.constant 0 : index
    %c0_28 = arith.constant 0 : index
    %32 = vector.load %arg3[%c4_26, %c0_27, %c0_28] : memref<9x8x128xbf16, #tpu.memory_space<vmem>>, vector<1x8x128xbf16>
    %33 = vector.shape_cast %32 : vector<1x8x128xbf16> to vector<8x128xbf16>
    %cst_29 = arith.constant dense<0.000000e+00> : vector<200x128xf32>
    %34 = tpu.matmul %31, %33, %cst_29 {dimension_numbers = #tpu.dot_dimension_numbers<[1], [0], [0], [1], [0, 0, 1, 1], [], []>} : vector<200x8xbf16>, vector<8x128xbf16>, vector<200x128xf32> -> vector<200x128xf32>
    %35 = arith.addf %28, %34 : vector<200x128xf32>
    %c0_30 = arith.constant 0 : index
    %c5 = arith.constant 5 : index
    %c0_31 = arith.constant 0 : index
    %36 = vector.load %arg1[%c0_30, %c5, %c0_31] : memref<1x208x8xf32, #tpu.memory_space<vmem>>, vector<1x200x8xf32>
    %37 = vector.shape_cast %36 : vector<1x200x8xf32> to vector<200x8xf32>
    %38 = arith.truncf %37 : vector<200x8xf32> to vector<200x8xbf16>
    %c5_32 = arith.constant 5 : index
    %c0_33 = arith.constant 0 : index
    %c0_34 = arith.constant 0 : index
    %39 = vector.load %arg3[%c5_32, %c0_33, %c0_34] : memref<9x8x128xbf16, #tpu.memory_space<vmem>>, vector<1x8x128xbf16>
    %40 = vector.shape_cast %39 : vector<1x8x128xbf16> to vector<8x128xbf16>
    %cst_35 = arith.constant dense<0.000000e+00> : vector<200x128xf32>
    %41 = tpu.matmul %38, %40, %cst_35 {dimension_numbers = #tpu.dot_dimension_numbers<[1], [0], [0], [1], [0, 0, 1, 1], [], []>} : vector<200x8xbf16>, vector<8x128xbf16>, vector<200x128xf32> -> vector<200x128xf32>
    %42 = arith.addf %35, %41 : vector<200x128xf32>
    %c0_36 = arith.constant 0 : index
    %c6 = arith.constant 6 : index
    %c0_37 = arith.constant 0 : index
    %43 = vector.load %arg1[%c0_36, %c6, %c0_37] : memref<1x208x8xf32, #tpu.memory_space<vmem>>, vector<1x200x8xf32>
    %44 = vector.shape_cast %43 : vector<1x200x8xf32> to vector<200x8xf32>
    %45 = arith.truncf %44 : vector<200x8xf32> to vector<200x8xbf16>
    %c6_38 = arith.constant 6 : index
    %c0_39 = arith.constant 0 : index
    %c0_40 = arith.constant 0 : index
    %46 = vector.load %arg3[%c6_38, %c0_39, %c0_40] : memref<9x8x128xbf16, #tpu.memory_space<vmem>>, vector<1x8x128xbf16>
    %47 = vector.shape_cast %46 : vector<1x8x128xbf16> to vector<8x128xbf16>
    %cst_41 = arith.constant dense<0.000000e+00> : vector<200x128xf32>
    %48 = tpu.matmul %45, %47, %cst_41 {dimension_numbers = #tpu.dot_dimension_numbers<[1], [0], [0], [1], [0, 0, 1, 1], [], []>} : vector<200x8xbf16>, vector<8x128xbf16>, vector<200x128xf32> -> vector<200x128xf32>
    %49 = arith.addf %42, %48 : vector<200x128xf32>
    %c0_42 = arith.constant 0 : index
    %c7 = arith.constant 7 : index
    %c0_43 = arith.constant 0 : index
    %50 = vector.load %arg1[%c0_42, %c7, %c0_43] : memref<1x208x8xf32, #tpu.memory_space<vmem>>, vector<1x200x8xf32>
    %51 = vector.shape_cast %50 : vector<1x200x8xf32> to vector<200x8xf32>
    %52 = arith.truncf %51 : vector<200x8xf32> to vector<200x8xbf16>
    %c7_44 = arith.constant 7 : index
    %c0_45 = arith.constant 0 : index
    %c0_46 = arith.constant 0 : index
    %53 = vector.load %arg3[%c7_44, %c0_45, %c0_46] : memref<9x8x128xbf16, #tpu.memory_space<vmem>>, vector<1x8x128xbf16>
    %54 = vector.shape_cast %53 : vector<1x8x128xbf16> to vector<8x128xbf16>
    %cst_47 = arith.constant dense<0.000000e+00> : vector<200x128xf32>
    %55 = tpu.matmul %52, %54, %cst_47 {dimension_numbers = #tpu.dot_dimension_numbers<[1], [0], [0], [1], [0, 0, 1, 1], [], []>} : vector<200x8xbf16>, vector<8x128xbf16>, vector<200x128xf32> -> vector<200x128xf32>
    %56 = arith.addf %49, %55 : vector<200x128xf32>
    %c0_48 = arith.constant 0 : index
    %c8 = arith.constant 8 : index
    %c0_49 = arith.constant 0 : index
    %57 = vector.load %arg1[%c0_48, %c8, %c0_49] : memref<1x208x8xf32, #tpu.memory_space<vmem>>, vector<1x200x8xf32>
    %58 = vector.shape_cast %57 : vector<1x200x8xf32> to vector<200x8xf32>
    %59 = arith.truncf %58 : vector<200x8xf32> to vector<200x8xbf16>
    %c8_50 = arith.constant 8 : index
    %c0_51 = arith.constant 0 : index
    %c0_52 = arith.constant 0 : index
    %60 = vector.load %arg3[%c8_50, %c0_51, %c0_52] : memref<9x8x128xbf16, #tpu.memory_space<vmem>>, vector<1x8x128xbf16>
    %61 = vector.shape_cast %60 : vector<1x8x128xbf16> to vector<8x128xbf16>
    %cst_53 = arith.constant dense<0.000000e+00> : vector<200x128xf32>
    %62 = tpu.matmul %59, %61, %cst_53 {dimension_numbers = #tpu.dot_dimension_numbers<[1], [0], [0], [1], [0, 0, 1, 1], [], []>} : vector<200x8xbf16>, vector<8x128xbf16>, vector<200x128xf32> -> vector<200x128xf32>
    %63 = arith.addf %56, %62 : vector<200x128xf32>
    %c0_54 = arith.constant 0 : index
    %c0_55 = arith.constant 0 : index
    %64 = vector.load %arg4[%c0_54, %c0_55] : memref<1x128xf32, #tpu.memory_space<vmem>>, vector<1x128xf32>
    %65 = vector.broadcast %64 : vector<1x128xf32> to vector<200x128xf32>
    %66 = arith.mulf %63, %65 : vector<200x128xf32>
    %c0_56 = arith.constant 0 : index
    %c0_57 = arith.constant 0 : index
    %67 = vector.load %arg5[%c0_56, %c0_57] : memref<1x128xf32, #tpu.memory_space<vmem>>, vector<1x128xf32>
    %68 = vector.broadcast %67 : vector<1x128xf32> to vector<200x128xf32>
    %69 = arith.addf %66, %68 : vector<200x128xf32>
    %cst_58 = arith.constant 0.000000e+00 : f32
    %70 = vector.broadcast %cst_58 : f32 to vector<200x128xf32>
    %71 = arith.maximumf %69, %70 : vector<200x128xf32>
    %c0_59 = arith.constant 0 : index
    %c0_60 = arith.constant 0 : index
    %72 = vector.load %arg22[%c0_59, %c0_60] : memref<200x128xf32, #tpu.memory_space<vmem>>, vector<200x128xf32>
    tpu.vector_store %arg22[%c0_59, %c0_60], %71 {strides = array<i32>} : memref<200x128xf32, #tpu.memory_space<vmem>>, vector<200x128xf32>,
    %c0_61 = arith.constant 0 : index
    %c0_62 = arith.constant 0 : index
    %73 = tpu.strided_load %arg22[%c0_61, %c0_62] {strides = array<i32: 8, 1>} : memref<200x128xf32, #tpu.memory_space<vmem>>, vector<25x128xf32>
    %c1_63 = arith.constant 1 : index
    %c0_64 = arith.constant 0 : index
    %74 = tpu.strided_load %arg22[%c1_63, %c0_64] {strides = array<i32: 8, 1>} : memref<200x128xf32, #tpu.memory_space<vmem>>, vector<25x128xf32>
    %75 = arith.maximumf %73, %74 : vector<25x128xf32>
    %c2_65 = arith.constant 2 : index
    %c0_66 = arith.constant 0 : index
    %76 = tpu.strided_load %arg22[%c2_65, %c0_66] {strides = array<i32: 8, 1>} : memref<200x128xf32, #tpu.memory_space<vmem>>, vector<25x128xf32>
    %77 = arith.maximumf %75, %76 : vector<25x128xf32>
    %c3_67 = arith.constant 3 : index
    %c0_68 = arith.constant 0 : index
    %78 = tpu.strided_load %arg22[%c3_67, %c0_68] {strides = array<i32: 8, 1>} : memref<200x128xf32, #tpu.memory_space<vmem>>, vector<25x128xf32>
    %79 = arith.maximumf %77, %78 : vector<25x128xf32>
    %c4_69 = arith.constant 4 : index
    %c0_70 = arith.constant 0 : index
    %80 = tpu.strided_load %arg22[%c4_69, %c0_70] {strides = array<i32: 8, 1>} : memref<200x128xf32, #tpu.memory_space<vmem>>, vector<25x128xf32>
    %81 = arith.maximumf %79, %80 : vector<25x128xf32>
    %c5_71 = arith.constant 5 : index
    %c0_72 = arith.constant 0 : index
    %82 = tpu.strided_load %arg22[%c5_71, %c0_72] {strides = array<i32: 8, 1>} : memref<200x128xf32, #tpu.memory_space<vmem>>, vector<25x128xf32>
    %83 = arith.maximumf %81, %82 : vector<25x128xf32>
    %c6_73 = arith.constant 6 : index
    %c0_74 = arith.constant 0 : index
    %84 = tpu.strided_load %arg22[%c6_73, %c0_74] {strides = array<i32: 8, 1>} : memref<200x128xf32, #tpu.memory_space<vmem>>, vector<25x128xf32>
    %85 = arith.maximumf %83, %84 : vector<25x128xf32>
    %c7_75 = arith.constant 7 : index
    %c0_76 = arith.constant 0 : index
    %86 = tpu.strided_load %arg22[%c7_75, %c0_76] {strides = array<i32: 8, 1>} : memref<200x128xf32, #tpu.memory_space<vmem>>, vector<25x128xf32>
    %87 = arith.maximumf %85, %86 : vector<25x128xf32>
    %cst_77 = arith.constant 0.000000e+00 : f32
    %88 = vector.broadcast %cst_77 : f32 to vector<3x128xf32>
    %c0_78 = arith.constant 0 : index
    %c0_79 = arith.constant 0 : index
    %89 = vector.load %arg23[%c0_78, %c0_79] : memref<32x128xf32, #tpu.memory_space<vmem>>, vector<3x128xf32>
    tpu.vector_store %arg23[%c0_78, %c0_79], %88 {strides = array<i32>} : memref<32x128xf32, #tpu.memory_space<vmem>>, vector<3x128xf32>,
    %cst_80 = arith.constant 0.000000e+00 : f32
    %90 = vector.broadcast %cst_80 : f32 to vector<4x128xf32>
    %c28 = arith.constant 28 : index
    %c0_81 = arith.constant 0 : index
    %91 = vector.load %arg23[%c28, %c0_81] : memref<32x128xf32, #tpu.memory_space<vmem>>, vector<4x128xf32>
    tpu.vector_store %arg23[%c28, %c0_81], %90 {strides = array<i32>} : memref<32x128xf32, #tpu.memory_space<vmem>>, vector<4x128xf32>,
    %c3_82 = arith.constant 3 : index
    %c0_83 = arith.constant 0 : index
    %92 = vector.load %arg23[%c3_82, %c0_83] : memref<32x128xf32, #tpu.memory_space<vmem>>, vector<25x128xf32>
    tpu.vector_store %arg23[%c3_82, %c0_83], %87 {strides = array<i32>} : memref<32x128xf32, #tpu.memory_space<vmem>>, vector<25x128xf32>,
    %cst_84 = arith.constant 0.000000e+00 : f32
    %93 = vector.broadcast %cst_84 : f32 to vector<25x128xf32>
    %c0_85 = arith.constant 0 : index
    %c0_86 = arith.constant 0 : index
    %94 = vector.load %arg23[%c0_85, %c0_86] : memref<32x128xf32, #tpu.memory_space<vmem>>, vector<25x128xf32>
    %95 = arith.truncf %94 : vector<25x128xf32> to vector<25x128xbf16>
    %c0_87 = arith.constant 0 : index
    %c0_88 = arith.constant 0 : index
    %c0_89 = arith.constant 0 : index
    %96 = vector.load %arg6[%c0_87, %c0_88, %c0_89] : memref<24x128x128xbf16, #tpu.memory_space<vmem>>, vector<1x128x128xbf16>
    %97 = vector.shape_cast %96 : vector<1x128x128xbf16> to vector<128x128xbf16>
    %cst_90 = arith.constant dense<0.000000e+00> : vector<25x128xf32>
    %98 = tpu.matmul %95, %97, %cst_90 {dimension_numbers = #tpu.dot_dimension_numbers<[1], [0], [0], [1], [0, 0, 1, 1], [], []>} : vector<25x128xbf16>, vector<128x128xbf16>, vector<25x128xf32> -> vector<25x128xf32>
    %99 = arith.addf %93, %98 : vector<25x128xf32>
    %c1_91 = arith.constant 1 : index
    %c0_92 = arith.constant 0 : index
    %100 = vector.load %arg23[%c1_91, %c0_92] : memref<32x128xf32, #tpu.memory_space<vmem>>, vector<25x128xf32>
    %101 = arith.truncf %100 : vector<25x128xf32> to vector<25x128xbf16>
    %c1_93 = arith.constant 1 : index
    %c0_94 = arith.constant 0 : index
    %c0_95 = arith.constant 0 : index
    %102 = vector.load %arg6[%c1_93, %c0_94, %c0_95] : memref<24x128x128xbf16, #tpu.memory_space<vmem>>, vector<1x128x128xbf16>
    %103 = vector.shape_cast %102 : vector<1x128x128xbf16> to vector<128x128xbf16>
    %cst_96 = arith.constant dense<0.000000e+00> : vector<25x128xf32>
    %104 = tpu.matmul %101, %103, %cst_96 {dimension_numbers = #tpu.dot_dimension_numbers<[1], [0], [0], [1], [0, 0, 1, 1], [], []>} : vector<25x128xbf16>, vector<128x128xbf16>, vector<25x128xf32> -> vector<25x128xf32>
    %105 = arith.addf %99, %104 : vector<25x128xf32>
    %c2_97 = arith.constant 2 : index
    %c0_98 = arith.constant 0 : index
    %106 = vector.load %arg23[%c2_97, %c0_98] : memref<32x128xf32, #tpu.memory_space<vmem>>, vector<25x128xf32>
    %107 = arith.truncf %106 : vector<25x128xf32> to vector<25x128xbf16>
    %c2_99 = arith.constant 2 : index
    %c0_100 = arith.constant 0 : index
    %c0_101 = arith.constant 0 : index
    %108 = vector.load %arg6[%c2_99, %c0_100, %c0_101] : memref<24x128x128xbf16, #tpu.memory_space<vmem>>, vector<1x128x128xbf16>
    %109 = vector.shape_cast %108 : vector<1x128x128xbf16> to vector<128x128xbf16>
    %cst_102 = arith.constant dense<0.000000e+00> : vector<25x128xf32>
    %110 = tpu.matmul %107, %109, %cst_102 {dimension_numbers = #tpu.dot_dimension_numbers<[1], [0], [0], [1], [0, 0, 1, 1], [], []>} : vector<25x128xbf16>, vector<128x128xbf16>, vector<25x128xf32> -> vector<25x128xf32>
    %111 = arith.addf %105, %110 : vector<25x128xf32>
    %c3_103 = arith.constant 3 : index
    %c0_104 = arith.constant 0 : index
    %112 = vector.load %arg23[%c3_103, %c0_104] : memref<32x128xf32, #tpu.memory_space<vmem>>, vector<25x128xf32>
    %113 = arith.truncf %112 : vector<25x128xf32> to vector<25x128xbf16>
    %c3_105 = arith.constant 3 : index
    %c0_106 = arith.constant 0 : index
    %c0_107 = arith.constant 0 : index
    %114 = vector.load %arg6[%c3_105, %c0_106, %c0_107] : memref<24x128x128xbf16, #tpu.memory_space<vmem>>, vector<1x128x128xbf16>
    %115 = vector.shape_cast %114 : vector<1x128x128xbf16> to vector<128x128xbf16>
    %cst_108 = arith.constant dense<0.000000e+00> : vector<25x128xf32>
    %116 = tpu.matmul %113, %115, %cst_108 {dimension_numbers = #tpu.dot_dimension_numbers<[1], [0], [0], [1], [0, 0, 1, 1], [], []>} : vector<25x128xbf16>, vector<128x128xbf16>, vector<25x128xf32> -> vector<25x128xf32>
    %117 = arith.addf %111, %116 : vector<25x128xf32>
    %c4_109 = arith.constant 4 : index
    %c0_110 = arith.constant 0 : index
    %118 = vector.load %arg23[%c4_109, %c0_110] : memref<32x128xf32, #tpu.memory_space<vmem>>, vector<25x128xf32>
    %119 = arith.truncf %118 : vector<25x128xf32> to vector<25x128xbf16>
    %c4_111 = arith.constant 4 : index
    %c0_112 = arith.constant 0 : index
    %c0_113 = arith.constant 0 : index
    %120 = vector.load %arg6[%c4_111, %c0_112, %c0_113] : memref<24x128x128xbf16, #tpu.memory_space<vmem>>, vector<1x128x128xbf16>
    %121 = vector.shape_cast %120 : vector<1x128x128xbf16> to vector<128x128xbf16>
    %cst_114 = arith.constant dense<0.000000e+00> : vector<25x128xf32>
    %122 = tpu.matmul %119, %121, %cst_114 {dimension_numbers = #tpu.dot_dimension_numbers<[1], [0], [0], [1], [0, 0, 1, 1], [], []>} : vector<25x128xbf16>, vector<128x128xbf16>, vector<25x128xf32> -> vector<25x128xf32>
    %123 = arith.addf %117, %122 : vector<25x128xf32>
    %c5_115 = arith.constant 5 : index
    %c0_116 = arith.constant 0 : index
    %124 = vector.load %arg23[%c5_115, %c0_116] : memref<32x128xf32, #tpu.memory_space<vmem>>, vector<25x128xf32>
    %125 = arith.truncf %124 : vector<25x128xf32> to vector<25x128xbf16>
    %c5_117 = arith.constant 5 : index
    %c0_118 = arith.constant 0 : index
    %c0_119 = arith.constant 0 : index
    %126 = vector.load %arg6[%c5_117, %c0_118, %c0_119] : memref<24x128x128xbf16, #tpu.memory_space<vmem>>, vector<1x128x128xbf16>
    %127 = vector.shape_cast %126 : vector<1x128x128xbf16> to vector<128x128xbf16>
    %cst_120 = arith.constant dense<0.000000e+00> : vector<25x128xf32>
    %128 = tpu.matmul %125, %127, %cst_120 {dimension_numbers = #tpu.dot_dimension_numbers<[1], [0], [0], [1], [0, 0, 1, 1], [], []>} : vector<25x128xbf16>, vector<128x128xbf16>, vector<25x128xf32> -> vector<25x128xf32>
    %129 = arith.addf %123, %128 : vector<25x128xf32>
    %c6_121 = arith.constant 6 : index
    %c0_122 = arith.constant 0 : index
    %130 = vector.load %arg23[%c6_121, %c0_122] : memref<32x128xf32, #tpu.memory_space<vmem>>, vector<25x128xf32>
    %131 = arith.truncf %130 : vector<25x128xf32> to vector<25x128xbf16>
    %c6_123 = arith.constant 6 : index
    %c0_124 = arith.constant 0 : index
    %c0_125 = arith.constant 0 : index
    %132 = vector.load %arg6[%c6_123, %c0_124, %c0_125] : memref<24x128x128xbf16, #tpu.memory_space<vmem>>, vector<1x128x128xbf16>
    %133 = vector.shape_cast %132 : vector<1x128x128xbf16> to vector<128x128xbf16>
    %cst_126 = arith.constant dense<0.000000e+00> : vector<25x128xf32>
    %134 = tpu.matmul %131, %133, %cst_126 {dimension_numbers = #tpu.dot_dimension_numbers<[1], [0], [0], [1], [0, 0, 1, 1], [], []>} : vector<25x128xbf16>, vector<128x128xbf16>, vector<25x128xf32> -> vector<25x128xf32>
    %135 = arith.addf %129, %134 : vector<25x128xf32>
    %c7_127 = arith.constant 7 : index
    %c0_128 = arith.constant 0 : index
    %136 = vector.load %arg23[%c7_127, %c0_128] : memref<32x128xf32, #tpu.memory_space<vmem>>, vector<25x128xf32>
    %137 = arith.truncf %136 : vector<25x128xf32> to vector<25x128xbf16>
    %c7_129 = arith.constant 7 : index
    %c0_130 = arith.constant 0 : index
    %c0_131 = arith.constant 0 : index
    %138 = vector.load %arg6[%c7_129, %c0_130, %c0_131] : memref<24x128x128xbf16, #tpu.memory_space<vmem>>, vector<1x128x128xbf16>
    %139 = vector.shape_cast %138 : vector<1x128x128xbf16> to vector<128x128xbf16>
    %cst_132 = arith.constant dense<0.000000e+00> : vector<25x128xf32>
    %140 = tpu.matmul %137, %139, %cst_132 {dimension_numbers = #tpu.dot_dimension_numbers<[1], [0], [0], [1], [0, 0, 1, 1], [], []>} : vector<25x128xbf16>, vector<128x128xbf16>, vector<25x128xf32> -> vector<25x128xf32>
    %141 = arith.addf %135, %140 : vector<25x128xf32>
    %c0_133 = arith.constant 0 : index
    %c0_134 = arith.constant 0 : index
    %c0_135 = arith.constant 0 : index
    %142 = vector.load %arg7[%c0_133, %c0_134, %c0_135] : memref<3x1x128xf32, #tpu.memory_space<vmem>>, vector<1x1x128xf32>
    %143 = vector.shape_cast %142 : vector<1x1x128xf32> to vector<1x128xf32>
    %144 = vector.broadcast %143 : vector<1x128xf32> to vector<25x128xf32>
    %145 = arith.mulf %141, %144 : vector<25x128xf32>
    %c0_136 = arith.constant 0 : index
    %c0_137 = arith.constant 0 : index
    %c0_138 = arith.constant 0 : index
    %146 = vector.load %arg8[%c0_136, %c0_137, %c0_138] : memref<3x1x128xf32, #tpu.memory_space<vmem>>, vector<1x1x128xf32>
    %147 = vector.shape_cast %146 : vector<1x1x128xf32> to vector<1x128xf32>
    %148 = vector.broadcast %147 : vector<1x128xf32> to vector<25x128xf32>
    %149 = arith.addf %145, %148 : vector<25x128xf32>
    %cst_139 = arith.constant 0.000000e+00 : f32
    %150 = vector.broadcast %cst_139 : f32 to vector<25x128xf32>
    %151 = arith.maximumf %149, %150 : vector<25x128xf32>
    %c3_140 = arith.constant 3 : index
    %c0_141 = arith.constant 0 : index
    %152 = vector.load %arg23[%c3_140, %c0_141] : memref<32x128xf32, #tpu.memory_space<vmem>>, vector<25x128xf32>
    tpu.vector_store %arg23[%c3_140, %c0_141], %151 {strides = array<i32>} : memref<32x128xf32, #tpu.memory_space<vmem>>, vector<25x128xf32>,
    %cst_142 = arith.constant 0.000000e+00 : f32
    %153 = vector.broadcast %cst_142 : f32 to vector<25x128xf32>
    %c0_143 = arith.constant 0 : index
    %c0_144 = arith.constant 0 : index
    %154 = vector.load %arg23[%c0_143, %c0_144] : memref<32x128xf32, #tpu.memory_space<vmem>>, vector<25x128xf32>
    %155 = arith.truncf %154 : vector<25x128xf32> to vector<25x128xbf16>
    %c8_145 = arith.constant 8 : index
    %c0_146 = arith.constant 0 : index
    %c0_147 = arith.constant 0 : index
    %156 = vector.load %arg6[%c8_145, %c0_146, %c0_147] : memref<24x128x128xbf16, #tpu.memory_space<vmem>>, vector<1x128x128xbf16>
    %157 = vector.shape_cast %156 : vector<1x128x128xbf16> to vector<128x128xbf16>
    %cst_148 = arith.constant dense<0.000000e+00> : vector<25x128xf32>
    %158 = tpu.matmul %155, %157, %cst_148 {dimension_numbers = #tpu.dot_dimension_numbers<[1], [0], [0], [1], [0, 0, 1, 1], [], []>} : vector<25x128xbf16>, vector<128x128xbf16>, vector<25x128xf32> -> vector<25x128xf32>
    %159 = arith.addf %153, %158 : vector<25x128xf32>
    %c1_149 = arith.constant 1 : index
    %c0_150 = arith.constant 0 : index
    %160 = vector.load %arg23[%c1_149, %c0_150] : memref<32x128xf32, #tpu.memory_space<vmem>>, vector<25x128xf32>
    %161 = arith.truncf %160 : vector<25x128xf32> to vector<25x128xbf16>
    %c9 = arith.constant 9 : index
    %c0_151 = arith.constant 0 : index
    %c0_152 = arith.constant 0 : index
    %162 = vector.load %arg6[%c9, %c0_151, %c0_152] : memref<24x128x128xbf16, #tpu.memory_space<vmem>>, vector<1x128x128xbf16>
    %163 = vector.shape_cast %162 : vector<1x128x128xbf16> to vector<128x128xbf16>
    %cst_153 = arith.constant dense<0.000000e+00> : vector<25x128xf32>
    %164 = tpu.matmul %161, %163, %cst_153 {dimension_numbers = #tpu.dot_dimension_numbers<[1], [0], [0], [1], [0, 0, 1, 1], [], []>} : vector<25x128xbf16>, vector<128x128xbf16>, vector<25x128xf32> -> vector<25x128xf32>
    %165 = arith.addf %159, %164 : vector<25x128xf32>
    %c2_154 = arith.constant 2 : index
    %c0_155 = arith.constant 0 : index
    %166 = vector.load %arg23[%c2_154, %c0_155] : memref<32x128xf32, #tpu.memory_space<vmem>>, vector<25x128xf32>
    %167 = arith.truncf %166 : vector<25x128xf32> to vector<25x128xbf16>
    %c10 = arith.constant 10 : index
    %c0_156 = arith.constant 0 : index
    %c0_157 = arith.constant 0 : index
    %168 = vector.load %arg6[%c10, %c0_156, %c0_157] : memref<24x128x128xbf16, #tpu.memory_space<vmem>>, vector<1x128x128xbf16>
    %169 = vector.shape_cast %168 : vector<1x128x128xbf16> to vector<128x128xbf16>
    %cst_158 = arith.constant dense<0.000000e+00> : vector<25x128xf32>
    %170 = tpu.matmul %167, %169, %cst_158 {dimension_numbers = #tpu.dot_dimension_numbers<[1], [0], [0], [1], [0, 0, 1, 1], [], []>} : vector<25x128xbf16>, vector<128x128xbf16>, vector<25x128xf32> -> vector<25x128xf32>
    %171 = arith.addf %165, %170 : vector<25x128xf32>
    %c3_159 = arith.constant 3 : index
    %c0_160 = arith.constant 0 : index
    %172 = vector.load %arg23[%c3_159, %c0_160] : memref<32x128xf32, #tpu.memory_space<vmem>>, vector<25x128xf32>
    %173 = arith.truncf %172 : vector<25x128xf32> to vector<25x128xbf16>
    %c11 = arith.constant 11 : index
    %c0_161 = arith.constant 0 : index
    %c0_162 = arith.constant 0 : index
    %174 = vector.load %arg6[%c11, %c0_161, %c0_162] : memref<24x128x128xbf16, #tpu.memory_space<vmem>>, vector<1x128x128xbf16>
    %175 = vector.shape_cast %174 : vector<1x128x128xbf16> to vector<128x128xbf16>
    %cst_163 = arith.constant dense<0.000000e+00> : vector<25x128xf32>
    %176 = tpu.matmul %173, %175, %cst_163 {dimension_numbers = #tpu.dot_dimension_numbers<[1], [0], [0], [1], [0, 0, 1, 1], [], []>} : vector<25x128xbf16>, vector<128x128xbf16>, vector<25x128xf32> -> vector<25x128xf32>
    %177 = arith.addf %171, %176 : vector<25x128xf32>
    %c4_164 = arith.constant 4 : index
    %c0_165 = arith.constant 0 : index
    %178 = vector.load %arg23[%c4_164, %c0_165] : memref<32x128xf32, #tpu.memory_space<vmem>>, vector<25x128xf32>
    %179 = arith.truncf %178 : vector<25x128xf32> to vector<25x128xbf16>
    %c12 = arith.constant 12 : index
    %c0_166 = arith.constant 0 : index
    %c0_167 = arith.constant 0 : index
    %180 = vector.load %arg6[%c12, %c0_166, %c0_167] : memref<24x128x128xbf16, #tpu.memory_space<vmem>>, vector<1x128x128xbf16>
    %181 = vector.shape_cast %180 : vector<1x128x128xbf16> to vector<128x128xbf16>
    %cst_168 = arith.constant dense<0.000000e+00> : vector<25x128xf32>
    %182 = tpu.matmul %179, %181, %cst_168 {dimension_numbers = #tpu.dot_dimension_numbers<[1], [0], [0], [1], [0, 0, 1, 1], [], []>} : vector<25x128xbf16>, vector<128x128xbf16>, vector<25x128xf32> -> vector<25x128xf32>
    %183 = arith.addf %177, %182 : vector<25x128xf32>
    %c5_169 = arith.constant 5 : index
    %c0_170 = arith.constant 0 : index
    %184 = vector.load %arg23[%c5_169, %c0_170] : memref<32x128xf32, #tpu.memory_space<vmem>>, vector<25x128xf32>
    %185 = arith.truncf %184 : vector<25x128xf32> to vector<25x128xbf16>
    %c13 = arith.constant 13 : index
    %c0_171 = arith.constant 0 : index
    %c0_172 = arith.constant 0 : index
    %186 = vector.load %arg6[%c13, %c0_171, %c0_172] : memref<24x128x128xbf16, #tpu.memory_space<vmem>>, vector<1x128x128xbf16>
    %187 = vector.shape_cast %186 : vector<1x128x128xbf16> to vector<128x128xbf16>
    %cst_173 = arith.constant dense<0.000000e+00> : vector<25x128xf32>
    %188 = tpu.matmul %185, %187, %cst_173 {dimension_numbers = #tpu.dot_dimension_numbers<[1], [0], [0], [1], [0, 0, 1, 1], [], []>} : vector<25x128xbf16>, vector<128x128xbf16>, vector<25x128xf32> -> vector<25x128xf32>
    %189 = arith.addf %183, %188 : vector<25x128xf32>
    %c6_174 = arith.constant 6 : index
    %c0_175 = arith.constant 0 : index
    %190 = vector.load %arg23[%c6_174, %c0_175] : memref<32x128xf32, #tpu.memory_space<vmem>>, vector<25x128xf32>
    %191 = arith.truncf %190 : vector<25x128xf32> to vector<25x128xbf16>
    %c14 = arith.constant 14 : index
    %c0_176 = arith.constant 0 : index
    %c0_177 = arith.constant 0 : index
    %192 = vector.load %arg6[%c14, %c0_176, %c0_177] : memref<24x128x128xbf16, #tpu.memory_space<vmem>>, vector<1x128x128xbf16>
    %193 = vector.shape_cast %192 : vector<1x128x128xbf16> to vector<128x128xbf16>
    %cst_178 = arith.constant dense<0.000000e+00> : vector<25x128xf32>
    %194 = tpu.matmul %191, %193, %cst_178 {dimension_numbers = #tpu.dot_dimension_numbers<[1], [0], [0], [1], [0, 0, 1, 1], [], []>} : vector<25x128xbf16>, vector<128x128xbf16>, vector<25x128xf32> -> vector<25x128xf32>
    %195 = arith.addf %189, %194 : vector<25x128xf32>
    %c7_179 = arith.constant 7 : index
    %c0_180 = arith.constant 0 : index
    %196 = vector.load %arg23[%c7_179, %c0_180] : memref<32x128xf32, #tpu.memory_space<vmem>>, vector<25x128xf32>
    %197 = arith.truncf %196 : vector<25x128xf32> to vector<25x128xbf16>
    %c15 = arith.constant 15 : index
    %c0_181 = arith.constant 0 : index
    %c0_182 = arith.constant 0 : index
    %198 = vector.load %arg6[%c15, %c0_181, %c0_182] : memref<24x128x128xbf16, #tpu.memory_space<vmem>>, vector<1x128x128xbf16>
    %199 = vector.shape_cast %198 : vector<1x128x128xbf16> to vector<128x128xbf16>
    %cst_183 = arith.constant dense<0.000000e+00> : vector<25x128xf32>
    %200 = tpu.matmul %197, %199, %cst_183 {dimension_numbers = #tpu.dot_dimension_numbers<[1], [0], [0], [1], [0, 0, 1, 1], [], []>} : vector<25x128xbf16>, vector<128x128xbf16>, vector<25x128xf32> -> vector<25x128xf32>
    %201 = arith.addf %195, %200 : vector<25x128xf32>
    %c1_184 = arith.constant 1 : index
    %c0_185 = arith.constant 0 : index
    %c0_186 = arith.constant 0 : index
    %202 = vector.load %arg7[%c1_184, %c0_185, %c0_186] : memref<3x1x128xf32, #tpu.memory_space<vmem>>, vector<1x1x128xf32>
    %203 = vector.shape_cast %202 : vector<1x1x128xf32> to vector<1x128xf32>
    %204 = vector.broadcast %203 : vector<1x128xf32> to vector<25x128xf32>
    %205 = arith.mulf %201, %204 : vector<25x128xf32>
    %c1_187 = arith.constant 1 : index
    %c0_188 = arith.constant 0 : index
    %c0_189 = arith.constant 0 : index
    %206 = vector.load %arg8[%c1_187, %c0_188, %c0_189] : memref<3x1x128xf32, #tpu.memory_space<vmem>>, vector<1x1x128xf32>
    %207 = vector.shape_cast %206 : vector<1x1x128xf32> to vector<1x128xf32>
    %208 = vector.broadcast %207 : vector<1x128xf32> to vector<25x128xf32>
    %209 = arith.addf %205, %208 : vector<25x128xf32>
    %cst_190 = arith.constant 0.000000e+00 : f32
    %210 = vector.broadcast %cst_190 : f32 to vector<25x128xf32>
    %211 = arith.maximumf %209, %210 : vector<25x128xf32>
    %c3_191 = arith.constant 3 : index
    %c0_192 = arith.constant 0 : index
    %212 = vector.load %arg23[%c3_191, %c0_192] : memref<32x128xf32, #tpu.memory_space<vmem>>, vector<25x128xf32>
    tpu.vector_store %arg23[%c3_191, %c0_192], %211 {strides = array<i32>} : memref<32x128xf32, #tpu.memory_space<vmem>>, vector<25x128xf32>,
    %cst_193 = arith.constant 0.000000e+00 : f32
    %213 = vector.broadcast %cst_193 : f32 to vector<25x128xf32>
    %c0_194 = arith.constant 0 : index
    %c0_195 = arith.constant 0 : index
    %214 = vector.load %arg23[%c0_194, %c0_195] : memref<32x128xf32, #tpu.memory_space<vmem>>, vector<25x128xf32>
    %215 = arith.truncf %214 : vector<25x128xf32> to vector<25x128xbf16>
    %c16 = arith.constant 16 : index
    %c0_196 = arith.constant 0 : index
    %c0_197 = arith.constant 0 : index
    %216 = vector.load %arg6[%c16, %c0_196, %c0_197] : memref<24x128x128xbf16, #tpu.memory_space<vmem>>, vector<1x128x128xbf16>
    %217 = vector.shape_cast %216 : vector<1x128x128xbf16> to vector<128x128xbf16>
    %cst_198 = arith.constant dense<0.000000e+00> : vector<25x128xf32>
    %218 = tpu.matmul %215, %217, %cst_198 {dimension_numbers = #tpu.dot_dimension_numbers<[1], [0], [0], [1], [0, 0, 1, 1], [], []>} : vector<25x128xbf16>, vector<128x128xbf16>, vector<25x128xf32> -> vector<25x128xf32>
    %219 = arith.addf %213, %218 : vector<25x128xf32>
    %c1_199 = arith.constant 1 : index
    %c0_200 = arith.constant 0 : index
    %220 = vector.load %arg23[%c1_199, %c0_200] : memref<32x128xf32, #tpu.memory_space<vmem>>, vector<25x128xf32>
    %221 = arith.truncf %220 : vector<25x128xf32> to vector<25x128xbf16>
    %c17 = arith.constant 17 : index
    %c0_201 = arith.constant 0 : index
    %c0_202 = arith.constant 0 : index
    %222 = vector.load %arg6[%c17, %c0_201, %c0_202] : memref<24x128x128xbf16, #tpu.memory_space<vmem>>, vector<1x128x128xbf16>
    %223 = vector.shape_cast %222 : vector<1x128x128xbf16> to vector<128x128xbf16>
    %cst_203 = arith.constant dense<0.000000e+00> : vector<25x128xf32>
    %224 = tpu.matmul %221, %223, %cst_203 {dimension_numbers = #tpu.dot_dimension_numbers<[1], [0], [0], [1], [0, 0, 1, 1], [], []>} : vector<25x128xbf16>, vector<128x128xbf16>, vector<25x128xf32> -> vector<25x128xf32>
    %225 = arith.addf %219, %224 : vector<25x128xf32>
    %c2_204 = arith.constant 2 : index
    %c0_205 = arith.constant 0 : index
    %226 = vector.load %arg23[%c2_204, %c0_205] : memref<32x128xf32, #tpu.memory_space<vmem>>, vector<25x128xf32>
    %227 = arith.truncf %226 : vector<25x128xf32> to vector<25x128xbf16>
    %c18 = arith.constant 18 : index
    %c0_206 = arith.constant 0 : index
    %c0_207 = arith.constant 0 : index
    %228 = vector.load %arg6[%c18, %c0_206, %c0_207] : memref<24x128x128xbf16, #tpu.memory_space<vmem>>, vector<1x128x128xbf16>
    %229 = vector.shape_cast %228 : vector<1x128x128xbf16> to vector<128x128xbf16>
    %cst_208 = arith.constant dense<0.000000e+00> : vector<25x128xf32>
    %230 = tpu.matmul %227, %229, %cst_208 {dimension_numbers = #tpu.dot_dimension_numbers<[1], [0], [0], [1], [0, 0, 1, 1], [], []>} : vector<25x128xbf16>, vector<128x128xbf16>, vector<25x128xf32> -> vector<25x128xf32>
    %231 = arith.addf %225, %230 : vector<25x128xf32>
    %c3_209 = arith.constant 3 : index
    %c0_210 = arith.constant 0 : index
    %232 = vector.load %arg23[%c3_209, %c0_210] : memref<32x128xf32, #tpu.memory_space<vmem>>, vector<25x128xf32>
    %233 = arith.truncf %232 : vector<25x128xf32> to vector<25x128xbf16>
    %c19 = arith.constant 19 : index
    %c0_211 = arith.constant 0 : index
    %c0_212 = arith.constant 0 : index
    %234 = vector.load %arg6[%c19, %c0_211, %c0_212] : memref<24x128x128xbf16, #tpu.memory_space<vmem>>, vector<1x128x128xbf16>
    %235 = vector.shape_cast %234 : vector<1x128x128xbf16> to vector<128x128xbf16>
    %cst_213 = arith.constant dense<0.000000e+00> : vector<25x128xf32>
    %236 = tpu.matmul %233, %235, %cst_213 {dimension_numbers = #tpu.dot_dimension_numbers<[1], [0], [0], [1], [0, 0, 1, 1], [], []>} : vector<25x128xbf16>, vector<128x128xbf16>, vector<25x128xf32> -> vector<25x128xf32>
    %237 = arith.addf %231, %236 : vector<25x128xf32>
    %c4_214 = arith.constant 4 : index
    %c0_215 = arith.constant 0 : index
    %238 = vector.load %arg23[%c4_214, %c0_215] : memref<32x128xf32, #tpu.memory_space<vmem>>, vector<25x128xf32>
    %239 = arith.truncf %238 : vector<25x128xf32> to vector<25x128xbf16>
    %c20 = arith.constant 20 : index
    %c0_216 = arith.constant 0 : index
    %c0_217 = arith.constant 0 : index
    %240 = vector.load %arg6[%c20, %c0_216, %c0_217] : memref<24x128x128xbf16, #tpu.memory_space<vmem>>, vector<1x128x128xbf16>
    %241 = vector.shape_cast %240 : vector<1x128x128xbf16> to vector<128x128xbf16>
    %cst_218 = arith.constant dense<0.000000e+00> : vector<25x128xf32>
    %242 = tpu.matmul %239, %241, %cst_218 {dimension_numbers = #tpu.dot_dimension_numbers<[1], [0], [0], [1], [0, 0, 1, 1], [], []>} : vector<25x128xbf16>, vector<128x128xbf16>, vector<25x128xf32> -> vector<25x128xf32>
    %243 = arith.addf %237, %242 : vector<25x128xf32>
    %c5_219 = arith.constant 5 : index
    %c0_220 = arith.constant 0 : index
    %244 = vector.load %arg23[%c5_219, %c0_220] : memref<32x128xf32, #tpu.memory_space<vmem>>, vector<25x128xf32>
    %245 = arith.truncf %244 : vector<25x128xf32> to vector<25x128xbf16>
    %c21 = arith.constant 21 : index
    %c0_221 = arith.constant 0 : index
    %c0_222 = arith.constant 0 : index
    %246 = vector.load %arg6[%c21, %c0_221, %c0_222] : memref<24x128x128xbf16, #tpu.memory_space<vmem>>, vector<1x128x128xbf16>
    %247 = vector.shape_cast %246 : vector<1x128x128xbf16> to vector<128x128xbf16>
    %cst_223 = arith.constant dense<0.000000e+00> : vector<25x128xf32>
    %248 = tpu.matmul %245, %247, %cst_223 {dimension_numbers = #tpu.dot_dimension_numbers<[1], [0], [0], [1], [0, 0, 1, 1], [], []>} : vector<25x128xbf16>, vector<128x128xbf16>, vector<25x128xf32> -> vector<25x128xf32>
    %249 = arith.addf %243, %248 : vector<25x128xf32>
    %c6_224 = arith.constant 6 : index
    %c0_225 = arith.constant 0 : index
    %250 = vector.load %arg23[%c6_224, %c0_225] : memref<32x128xf32, #tpu.memory_space<vmem>>, vector<25x128xf32>
    %251 = arith.truncf %250 : vector<25x128xf32> to vector<25x128xbf16>
    %c22 = arith.constant 22 : index
    %c0_226 = arith.constant 0 : index
    %c0_227 = arith.constant 0 : index
    %252 = vector.load %arg6[%c22, %c0_226, %c0_227] : memref<24x128x128xbf16, #tpu.memory_space<vmem>>, vector<1x128x128xbf16>
    %253 = vector.shape_cast %252 : vector<1x128x128xbf16> to vector<128x128xbf16>
    %cst_228 = arith.constant dense<0.000000e+00> : vector<25x128xf32>
    %254 = tpu.matmul %251, %253, %cst_228 {dimension_numbers = #tpu.dot_dimension_numbers<[1], [0], [0], [1], [0, 0, 1, 1], [], []>} : vector<25x128xbf16>, vector<128x128xbf16>, vector<25x128xf32> -> vector<25x128xf32>
    %255 = arith.addf %249, %254 : vector<25x128xf32>
    %c7_229 = arith.constant 7 : index
    %c0_230 = arith.constant 0 : index
    %256 = vector.load %arg23[%c7_229, %c0_230] : memref<32x128xf32, #tpu.memory_space<vmem>>, vector<25x128xf32>
    %257 = arith.truncf %256 : vector<25x128xf32> to vector<25x128xbf16>
    %c23 = arith.constant 23 : index
    %c0_231 = arith.constant 0 : index
    %c0_232 = arith.constant 0 : index
    %258 = vector.load %arg6[%c23, %c0_231, %c0_232] : memref<24x128x128xbf16, #tpu.memory_space<vmem>>, vector<1x128x128xbf16>
    %259 = vector.shape_cast %258 : vector<1x128x128xbf16> to vector<128x128xbf16>
    %cst_233 = arith.constant dense<0.000000e+00> : vector<25x128xf32>
    %260 = tpu.matmul %257, %259, %cst_233 {dimension_numbers = #tpu.dot_dimension_numbers<[1], [0], [0], [1], [0, 0, 1, 1], [], []>} : vector<25x128xbf16>, vector<128x128xbf16>, vector<25x128xf32> -> vector<25x128xf32>
    %261 = arith.addf %255, %260 : vector<25x128xf32>
    %c2_234 = arith.constant 2 : index
    %c0_235 = arith.constant 0 : index
    %c0_236 = arith.constant 0 : index
    %262 = vector.load %arg7[%c2_234, %c0_235, %c0_236] : memref<3x1x128xf32, #tpu.memory_space<vmem>>, vector<1x1x128xf32>
    %263 = vector.shape_cast %262 : vector<1x1x128xf32> to vector<1x128xf32>
    %264 = vector.broadcast %263 : vector<1x128xf32> to vector<25x128xf32>
    %265 = arith.mulf %261, %264 : vector<25x128xf32>
    %c2_237 = arith.constant 2 : index
    %c0_238 = arith.constant 0 : index
    %c0_239 = arith.constant 0 : index
    %266 = vector.load %arg8[%c2_237, %c0_238, %c0_239] : memref<3x1x128xf32, #tpu.memory_space<vmem>>, vector<1x1x128xf32>
    %267 = vector.shape_cast %266 : vector<1x1x128xf32> to vector<1x128xf32>
    %268 = vector.broadcast %267 : vector<1x128xf32> to vector<25x128xf32>
    %269 = arith.addf %265, %268 : vector<25x128xf32>
    %cst_240 = arith.constant 0.000000e+00 : f32
    %270 = vector.broadcast %cst_240 : f32 to vector<25x128xf32>
    %271 = arith.maximumf %269, %270 : vector<25x128xf32>
    %cst_241 = arith.constant 0.000000e+00 : f32
    %272 = vector.broadcast %cst_241 : f32 to vector<1x128xf32>
    %c0_242 = arith.constant 0 : index
    %c0_243 = arith.constant 0 : index
    %273 = vector.load %arg22[%c0_242, %c0_243] : memref<200x128xf32, #tpu.memory_space<vmem>>, vector<1x128xf32>
    tpu.vector_store %arg22[%c0_242, %c0_243], %272 {strides = array<i32>} : memref<200x128xf32, #tpu.memory_space<vmem>>, vector<1x128xf32>,
    %c1_244 = arith.constant 1 : index
    %c0_245 = arith.constant 0 : index
    %274 = vector.load %arg22[%c1_244, %c0_245] : memref<200x128xf32, #tpu.memory_space<vmem>>, vector<25x128xf32>
    tpu.vector_store %arg22[%c1_244, %c0_245], %271 {strides = array<i32>} : memref<200x128xf32, #tpu.memory_space<vmem>>, vector<25x128xf32>,
    %cst_246 = arith.constant 0.000000e+00 : f32
    %275 = vector.broadcast %cst_246 : f32 to vector<2x128xf32>
    %c26 = arith.constant 26 : index
    %c0_247 = arith.constant 0 : index
    %276 = vector.load %arg22[%c26, %c0_247] : memref<200x128xf32, #tpu.memory_space<vmem>>, vector<2x128xf32>
    tpu.vector_store %arg22[%c26, %c0_247], %275 {strides = array<i32>} : memref<200x128xf32, #tpu.memory_space<vmem>>, vector<2x128xf32>,
    %c0_248 = arith.constant 0 : index
    %c0_249 = arith.constant 0 : index
    %277 = tpu.strided_load %arg22[%c0_248, %c0_249] {strides = array<i32: 4, 1>} : memref<200x128xf32, #tpu.memory_space<vmem>>, vector<7x128xf32>
    %c1_250 = arith.constant 1 : index
    %c0_251 = arith.constant 0 : index
    %278 = tpu.strided_load %arg22[%c1_250, %c0_251] {strides = array<i32: 4, 1>} : memref<200x128xf32, #tpu.memory_space<vmem>>, vector<7x128xf32>
    %279 = arith.maximumf %277, %278 : vector<7x128xf32>
    %c2_252 = arith.constant 2 : index
    %c0_253 = arith.constant 0 : index
    %280 = tpu.strided_load %arg22[%c2_252, %c0_253] {strides = array<i32: 4, 1>} : memref<200x128xf32, #tpu.memory_space<vmem>>, vector<7x128xf32>
    %281 = arith.maximumf %279, %280 : vector<7x128xf32>
    %c3_254 = arith.constant 3 : index
    %c0_255 = arith.constant 0 : index
    %282 = tpu.strided_load %arg22[%c3_254, %c0_255] {strides = array<i32: 4, 1>} : memref<200x128xf32, #tpu.memory_space<vmem>>, vector<7x128xf32>
    %283 = arith.maximumf %281, %282 : vector<7x128xf32>
    %cst_256 = arith.constant 0.000000e+00 : f32
    %284 = vector.broadcast %cst_256 : f32 to vector<24x128xf32>
    %c0_257 = arith.constant 0 : index
    %c0_258 = arith.constant 0 : index
    %c0_259 = arith.constant 0 : index
    %285 = vector.load %arg2[%c0_257, %c0_258, %c0_259] : memref<1x31x56xf32, #tpu.memory_space<vmem>>, vector<1x24x56xf32>
    %286 = vector.shape_cast %285 : vector<1x24x56xf32> to vector<24x56xf32>
    %287 = arith.truncf %286 : vector<24x56xf32> to vector<24x56xbf16>
    %c0_260 = arith.constant 0 : index
    %c0_261 = arith.constant 0 : index
    %c0_262 = arith.constant 0 : index
    %288 = vector.load %arg9[%c0_260, %c0_261, %c0_262] : memref<8x56x128xbf16, #tpu.memory_space<vmem>>, vector<1x56x128xbf16>
    %289 = vector.shape_cast %288 : vector<1x56x128xbf16> to vector<56x128xbf16>
    %cst_263 = arith.constant dense<0.000000e+00> : vector<24x128xf32>
    %290 = tpu.matmul %287, %289, %cst_263 {dimension_numbers = #tpu.dot_dimension_numbers<[1], [0], [0], [1], [0, 0, 1, 1], [], []>} : vector<24x56xbf16>, vector<56x128xbf16>, vector<24x128xf32> -> vector<24x128xf32>
    %291 = arith.addf %284, %290 : vector<24x128xf32>
    %c0_264 = arith.constant 0 : index
    %c1_265 = arith.constant 1 : index
    %c0_266 = arith.constant 0 : index
    %292 = vector.load %arg2[%c0_264, %c1_265, %c0_266] : memref<1x31x56xf32, #tpu.memory_space<vmem>>, vector<1x24x56xf32>
    %293 = vector.shape_cast %292 : vector<1x24x56xf32> to vector<24x56xf32>
    %294 = arith.truncf %293 : vector<24x56xf32> to vector<24x56xbf16>
    %c1_267 = arith.constant 1 : index
    %c0_268 = arith.constant 0 : index
    %c0_269 = arith.constant 0 : index
    %295 = vector.load %arg9[%c1_267, %c0_268, %c0_269] : memref<8x56x128xbf16, #tpu.memory_space<vmem>>, vector<1x56x128xbf16>
    %296 = vector.shape_cast %295 : vector<1x56x128xbf16> to vector<56x128xbf16>
    %cst_270 = arith.constant dense<0.000000e+00> : vector<24x128xf32>
    %297 = tpu.matmul %294, %296, %cst_270 {dimension_numbers = #tpu.dot_dimension_numbers<[1], [0], [0], [1], [0, 0, 1, 1], [], []>} : vector<24x56xbf16>, vector<56x128xbf16>, vector<24x128xf32> -> vector<24x128xf32>
    %298 = arith.addf %291, %297 : vector<24x128xf32>
    %c0_271 = arith.constant 0 : index
    %c2_272 = arith.constant 2 : index
    %c0_273 = arith.constant 0 : index
    %299 = vector.load %arg2[%c0_271, %c2_272, %c0_273] : memref<1x31x56xf32, #tpu.memory_space<vmem>>, vector<1x24x56xf32>
    %300 = vector.shape_cast %299 : vector<1x24x56xf32> to vector<24x56xf32>
    %301 = arith.truncf %300 : vector<24x56xf32> to vector<24x56xbf16>
    %c2_274 = arith.constant 2 : index
    %c0_275 = arith.constant 0 : index
    %c0_276 = arith.constant 0 : index
    %302 = vector.load %arg9[%c2_274, %c0_275, %c0_276] : memref<8x56x128xbf16, #tpu.memory_space<vmem>>, vector<1x56x128xbf16>
    %303 = vector.shape_cast %302 : vector<1x56x128xbf16> to vector<56x128xbf16>
    %cst_277 = arith.constant dense<0.000000e+00> : vector<24x128xf32>
    %304 = tpu.matmul %301, %303, %cst_277 {dimension_numbers = #tpu.dot_dimension_numbers<[1], [0], [0], [1], [0, 0, 1, 1], [], []>} : vector<24x56xbf16>, vector<56x128xbf16>, vector<24x128xf32> -> vector<24x128xf32>
    %305 = arith.addf %298, %304 : vector<24x128xf32>
    %c0_278 = arith.constant 0 : index
    %c3_279 = arith.constant 3 : index
    %c0_280 = arith.constant 0 : index
    %306 = vector.load %arg2[%c0_278, %c3_279, %c0_280] : memref<1x31x56xf32, #tpu.memory_space<vmem>>, vector<1x24x56xf32>
    %307 = vector.shape_cast %306 : vector<1x24x56xf32> to vector<24x56xf32>
    %308 = arith.truncf %307 : vector<24x56xf32> to vector<24x56xbf16>
    %c3_281 = arith.constant 3 : index
    %c0_282 = arith.constant 0 : index
    %c0_283 = arith.constant 0 : index
    %309 = vector.load %arg9[%c3_281, %c0_282, %c0_283] : memref<8x56x128xbf16, #tpu.memory_space<vmem>>, vector<1x56x128xbf16>
    %310 = vector.shape_cast %309 : vector<1x56x128xbf16> to vector<56x128xbf16>
    %cst_284 = arith.constant dense<0.000000e+00> : vector<24x128xf32>
    %311 = tpu.matmul %308, %310, %cst_284 {dimension_numbers = #tpu.dot_dimension_numbers<[1], [0], [0], [1], [0, 0, 1, 1], [], []>} : vector<24x56xbf16>, vector<56x128xbf16>, vector<24x128xf32> -> vector<24x128xf32>
    %312 = arith.addf %305, %311 : vector<24x128xf32>
    %c0_285 = arith.constant 0 : index
    %c4_286 = arith.constant 4 : index
    %c0_287 = arith.constant 0 : index
    %313 = vector.load %arg2[%c0_285, %c4_286, %c0_287] : memref<1x31x56xf32, #tpu.memory_space<vmem>>, vector<1x24x56xf32>
    %314 = vector.shape_cast %313 : vector<1x24x56xf32> to vector<24x56xf32>
    %315 = arith.truncf %314 : vector<24x56xf32> to vector<24x56xbf16>
    %c4_288 = arith.constant 4 : index
    %c0_289 = arith.constant 0 : index
    %c0_290 = arith.constant 0 : index
    %316 = vector.load %arg9[%c4_288, %c0_289, %c0_290] : memref<8x56x128xbf16, #tpu.memory_space<vmem>>, vector<1x56x128xbf16>
    %317 = vector.shape_cast %316 : vector<1x56x128xbf16> to vector<56x128xbf16>
    %cst_291 = arith.constant dense<0.000000e+00> : vector<24x128xf32>
    %318 = tpu.matmul %315, %317, %cst_291 {dimension_numbers = #tpu.dot_dimension_numbers<[1], [0], [0], [1], [0, 0, 1, 1], [], []>} : vector<24x56xbf16>, vector<56x128xbf16>, vector<24x128xf32> -> vector<24x128xf32>
    %319 = arith.addf %312, %318 : vector<24x128xf32>
    %c0_292 = arith.constant 0 : index
    %c5_293 = arith.constant 5 : index
    %c0_294 = arith.constant 0 : index
    %320 = vector.load %arg2[%c0_292, %c5_293, %c0_294] : memref<1x31x56xf32, #tpu.memory_space<vmem>>, vector<1x24x56xf32>
    %321 = vector.shape_cast %320 : vector<1x24x56xf32> to vector<24x56xf32>
    %322 = arith.truncf %321 : vector<24x56xf32> to vector<24x56xbf16>
    %c5_295 = arith.constant 5 : index
    %c0_296 = arith.constant 0 : index
    %c0_297 = arith.constant 0 : index
    %323 = vector.load %arg9[%c5_295, %c0_296, %c0_297] : memref<8x56x128xbf16, #tpu.memory_space<vmem>>, vector<1x56x128xbf16>
    %324 = vector.shape_cast %323 : vector<1x56x128xbf16> to vector<56x128xbf16>
    %cst_298 = arith.constant dense<0.000000e+00> : vector<24x128xf32>
    %325 = tpu.matmul %322, %324, %cst_298 {dimension_numbers = #tpu.dot_dimension_numbers<[1], [0], [0], [1], [0, 0, 1, 1], [], []>} : vector<24x56xbf16>, vector<56x128xbf16>, vector<24x128xf32> -> vector<24x128xf32>
    %326 = arith.addf %319, %325 : vector<24x128xf32>
    %c0_299 = arith.constant 0 : index
    %c6_300 = arith.constant 6 : index
    %c0_301 = arith.constant 0 : index
    %327 = vector.load %arg2[%c0_299, %c6_300, %c0_301] : memref<1x31x56xf32, #tpu.memory_space<vmem>>, vector<1x24x56xf32>
    %328 = vector.shape_cast %327 : vector<1x24x56xf32> to vector<24x56xf32>
    %329 = arith.truncf %328 : vector<24x56xf32> to vector<24x56xbf16>
    %c6_302 = arith.constant 6 : index
    %c0_303 = arith.constant 0 : index
    %c0_304 = arith.constant 0 : index
    %330 = vector.load %arg9[%c6_302, %c0_303, %c0_304] : memref<8x56x128xbf16, #tpu.memory_space<vmem>>, vector<1x56x128xbf16>
    %331 = vector.shape_cast %330 : vector<1x56x128xbf16> to vector<56x128xbf16>
    %cst_305 = arith.constant dense<0.000000e+00> : vector<24x128xf32>
    %332 = tpu.matmul %329, %331, %cst_305 {dimension_numbers = #tpu.dot_dimension_numbers<[1], [0], [0], [1], [0, 0, 1, 1], [], []>} : vector<24x56xbf16>, vector<56x128xbf16>, vector<24x128xf32> -> vector<24x128xf32>
    %333 = arith.addf %326, %332 : vector<24x128xf32>
    %c0_306 = arith.constant 0 : index
    %c7_307 = arith.constant 7 : index
    %c0_308 = arith.constant 0 : index
    %334 = vector.load %arg2[%c0_306, %c7_307, %c0_308] : memref<1x31x56xf32, #tpu.memory_space<vmem>>, vector<1x24x56xf32>
    %335 = vector.shape_cast %334 : vector<1x24x56xf32> to vector<24x56xf32>
    %336 = arith.truncf %335 : vector<24x56xf32> to vector<24x56xbf16>
    %c7_309 = arith.constant 7 : index
    %c0_310 = arith.constant 0 : index
    %c0_311 = arith.constant 0 : index
    %337 = vector.load %arg9[%c7_309, %c0_310, %c0_311] : memref<8x56x128xbf16, #tpu.memory_space<vmem>>, vector<1x56x128xbf16>
    %338 = vector.shape_cast %337 : vector<1x56x128xbf16> to vector<56x128xbf16>
    %cst_312 = arith.constant dense<0.000000e+00> : vector<24x128xf32>
    %339 = tpu.matmul %336, %338, %cst_312 {dimension_numbers = #tpu.dot_dimension_numbers<[1], [0], [0], [1], [0, 0, 1, 1], [], []>} : vector<24x56xbf16>, vector<56x128xbf16>, vector<24x128xf32> -> vector<24x128xf32>
    %340 = arith.addf %333, %339 : vector<24x128xf32>
    %c0_313 = arith.constant 0 : index
    %c0_314 = arith.constant 0 : index
    %341 = vector.load %arg10[%c0_313, %c0_314] : memref<1x128xf32, #tpu.memory_space<vmem>>, vector<1x128xf32>
    %342 = vector.broadcast %341 : vector<1x128xf32> to vector<24x128xf32>
    %343 = arith.mulf %340, %342 : vector<24x128xf32>
    %c0_315 = arith.constant 0 : index
    %c0_316 = arith.constant 0 : index
    %344 = vector.load %arg11[%c0_315, %c0_316] : memref<1x128xf32, #tpu.memory_space<vmem>>, vector<1x128xf32>
    %345 = vector.broadcast %344 : vector<1x128xf32> to vector<24x128xf32>
    %346 = arith.addf %343, %345 : vector<24x128xf32>
    %cst_317 = arith.constant 0.000000e+00 : f32
    %347 = vector.broadcast %cst_317 : f32 to vector<24x128xf32>
    %348 = arith.maximumf %346, %347 : vector<24x128xf32>
    %c0_318 = arith.constant 0 : index
    %c0_319 = arith.constant 0 : index
    %349 = vector.load %arg22[%c0_318, %c0_319] : memref<200x128xf32, #tpu.memory_space<vmem>>, vector<24x128xf32>
    tpu.vector_store %arg22[%c0_318, %c0_319], %348 {strides = array<i32>} : memref<200x128xf32, #tpu.memory_space<vmem>>, vector<24x128xf32>,
    %c0_320 = arith.constant 0 : index
    %c0_321 = arith.constant 0 : index
    %350 = tpu.strided_load %arg22[%c0_320, %c0_321] {strides = array<i32: 4, 1>} : memref<200x128xf32, #tpu.memory_space<vmem>>, vector<6x128xf32>
    %c1_322 = arith.constant 1 : index
    %c0_323 = arith.constant 0 : index
    %351 = tpu.strided_load %arg22[%c1_322, %c0_323] {strides = array<i32: 4, 1>} : memref<200x128xf32, #tpu.memory_space<vmem>>, vector<6x128xf32>
    %352 = arith.maximumf %350, %351 : vector<6x128xf32>
    %c2_324 = arith.constant 2 : index
    %c0_325 = arith.constant 0 : index
    %353 = tpu.strided_load %arg22[%c2_324, %c0_325] {strides = array<i32: 4, 1>} : memref<200x128xf32, #tpu.memory_space<vmem>>, vector<6x128xf32>
    %354 = arith.maximumf %352, %353 : vector<6x128xf32>
    %c3_326 = arith.constant 3 : index
    %c0_327 = arith.constant 0 : index
    %355 = tpu.strided_load %arg22[%c3_326, %c0_327] {strides = array<i32: 4, 1>} : memref<200x128xf32, #tpu.memory_space<vmem>>, vector<6x128xf32>
    %356 = arith.maximumf %354, %355 : vector<6x128xf32>
    %cst_328 = arith.constant 0.000000e+00 : f32
    %357 = vector.broadcast %cst_328 : f32 to vector<3x128xf32>
    %c0_329 = arith.constant 0 : index
    %c0_330 = arith.constant 0 : index
    %358 = vector.load %arg23[%c0_329, %c0_330] : memref<32x128xf32, #tpu.memory_space<vmem>>, vector<3x128xf32>
    tpu.vector_store %arg23[%c0_329, %c0_330], %357 {strides = array<i32>} : memref<32x128xf32, #tpu.memory_space<vmem>>, vector<3x128xf32>,
    %cst_331 = arith.constant 0.000000e+00 : f32
    %359 = vector.broadcast %cst_331 : f32 to vector<4x128xf32>
    %c9_332 = arith.constant 9 : index
    %c0_333 = arith.constant 0 : index
    %360 = vector.load %arg23[%c9_332, %c0_333] : memref<32x128xf32, #tpu.memory_space<vmem>>, vector<4x128xf32>
    tpu.vector_store %arg23[%c9_332, %c0_333], %359 {strides = array<i32>} : memref<32x128xf32, #tpu.memory_space<vmem>>, vector<4x128xf32>,
    %c3_334 = arith.constant 3 : index
    %c0_335 = arith.constant 0 : index
    %361 = vector.load %arg23[%c3_334, %c0_335] : memref<32x128xf32, #tpu.memory_space<vmem>>, vector<6x128xf32>
    tpu.vector_store %arg23[%c3_334, %c0_335], %356 {strides = array<i32>} : memref<32x128xf32, #tpu.memory_space<vmem>>, vector<6x128xf32>,
    %cst_336 = arith.constant 0.000000e+00 : f32
    %362 = vector.broadcast %cst_336 : f32 to vector<6x128xf32>
    %c0_337 = arith.constant 0 : index
    %c0_338 = arith.constant 0 : index
    %363 = vector.load %arg23[%c0_337, %c0_338] : memref<32x128xf32, #tpu.memory_space<vmem>>, vector<6x128xf32>
    %364 = arith.truncf %363 : vector<6x128xf32> to vector<6x128xbf16>
    %c0_339 = arith.constant 0 : index
    %c0_340 = arith.constant 0 : index
    %c0_341 = arith.constant 0 : index
    %365 = vector.load %arg12[%c0_339, %c0_340, %c0_341] : memref<24x128x128xbf16, #tpu.memory_space<vmem>>, vector<1x128x128xbf16>
    %366 = vector.shape_cast %365 : vector<1x128x128xbf16> to vector<128x128xbf16>
    %cst_342 = arith.constant dense<0.000000e+00> : vector<6x128xf32>
    %367 = tpu.matmul %364, %366, %cst_342 {dimension_numbers = #tpu.dot_dimension_numbers<[1], [0], [0], [1], [0, 0, 1, 1], [], []>} : vector<6x128xbf16>, vector<128x128xbf16>, vector<6x128xf32> -> vector<6x128xf32>
    %368 = arith.addf %362, %367 : vector<6x128xf32>
    %c1_343 = arith.constant 1 : index
    %c0_344 = arith.constant 0 : index
    %369 = vector.load %arg23[%c1_343, %c0_344] : memref<32x128xf32, #tpu.memory_space<vmem>>, vector<6x128xf32>
    %370 = arith.truncf %369 : vector<6x128xf32> to vector<6x128xbf16>
    %c1_345 = arith.constant 1 : index
    %c0_346 = arith.constant 0 : index
    %c0_347 = arith.constant 0 : index
    %371 = vector.load %arg12[%c1_345, %c0_346, %c0_347] : memref<24x128x128xbf16, #tpu.memory_space<vmem>>, vector<1x128x128xbf16>
    %372 = vector.shape_cast %371 : vector<1x128x128xbf16> to vector<128x128xbf16>
    %cst_348 = arith.constant dense<0.000000e+00> : vector<6x128xf32>
    %373 = tpu.matmul %370, %372, %cst_348 {dimension_numbers = #tpu.dot_dimension_numbers<[1], [0], [0], [1], [0, 0, 1, 1], [], []>} : vector<6x128xbf16>, vector<128x128xbf16>, vector<6x128xf32> -> vector<6x128xf32>
    %374 = arith.addf %368, %373 : vector<6x128xf32>
    %c2_349 = arith.constant 2 : index
    %c0_350 = arith.constant 0 : index
    %375 = vector.load %arg23[%c2_349, %c0_350] : memref<32x128xf32, #tpu.memory_space<vmem>>, vector<6x128xf32>
    %376 = arith.truncf %375 : vector<6x128xf32> to vector<6x128xbf16>
    %c2_351 = arith.constant 2 : index
    %c0_352 = arith.constant 0 : index
    %c0_353 = arith.constant 0 : index
    %377 = vector.load %arg12[%c2_351, %c0_352, %c0_353] : memref<24x128x128xbf16, #tpu.memory_space<vmem>>, vector<1x128x128xbf16>
    %378 = vector.shape_cast %377 : vector<1x128x128xbf16> to vector<128x128xbf16>
    %cst_354 = arith.constant dense<0.000000e+00> : vector<6x128xf32>
    %379 = tpu.matmul %376, %378, %cst_354 {dimension_numbers = #tpu.dot_dimension_numbers<[1], [0], [0], [1], [0, 0, 1, 1], [], []>} : vector<6x128xbf16>, vector<128x128xbf16>, vector<6x128xf32> -> vector<6x128xf32>
    %380 = arith.addf %374, %379 : vector<6x128xf32>
    %c3_355 = arith.constant 3 : index
    %c0_356 = arith.constant 0 : index
    %381 = vector.load %arg23[%c3_355, %c0_356] : memref<32x128xf32, #tpu.memory_space<vmem>>, vector<6x128xf32>
    %382 = arith.truncf %381 : vector<6x128xf32> to vector<6x128xbf16>
    %c3_357 = arith.constant 3 : index
    %c0_358 = arith.constant 0 : index
    %c0_359 = arith.constant 0 : index
    %383 = vector.load %arg12[%c3_357, %c0_358, %c0_359] : memref<24x128x128xbf16, #tpu.memory_space<vmem>>, vector<1x128x128xbf16>
    %384 = vector.shape_cast %383 : vector<1x128x128xbf16> to vector<128x128xbf16>
    %cst_360 = arith.constant dense<0.000000e+00> : vector<6x128xf32>
    %385 = tpu.matmul %382, %384, %cst_360 {dimension_numbers = #tpu.dot_dimension_numbers<[1], [0], [0], [1], [0, 0, 1, 1], [], []>} : vector<6x128xbf16>, vector<128x128xbf16>, vector<6x128xf32> -> vector<6x128xf32>
    %386 = arith.addf %380, %385 : vector<6x128xf32>
    %c4_361 = arith.constant 4 : index
    %c0_362 = arith.constant 0 : index
    %387 = vector.load %arg23[%c4_361, %c0_362] : memref<32x128xf32, #tpu.memory_space<vmem>>, vector<6x128xf32>
    %388 = arith.truncf %387 : vector<6x128xf32> to vector<6x128xbf16>
    %c4_363 = arith.constant 4 : index
    %c0_364 = arith.constant 0 : index
    %c0_365 = arith.constant 0 : index
    %389 = vector.load %arg12[%c4_363, %c0_364, %c0_365] : memref<24x128x128xbf16, #tpu.memory_space<vmem>>, vector<1x128x128xbf16>
    %390 = vector.shape_cast %389 : vector<1x128x128xbf16> to vector<128x128xbf16>
    %cst_366 = arith.constant dense<0.000000e+00> : vector<6x128xf32>
    %391 = tpu.matmul %388, %390, %cst_366 {dimension_numbers = #tpu.dot_dimension_numbers<[1], [0], [0], [1], [0, 0, 1, 1], [], []>} : vector<6x128xbf16>, vector<128x128xbf16>, vector<6x128xf32> -> vector<6x128xf32>
    %392 = arith.addf %386, %391 : vector<6x128xf32>
    %c5_367 = arith.constant 5 : index
    %c0_368 = arith.constant 0 : index
    %393 = vector.load %arg23[%c5_367, %c0_368] : memref<32x128xf32, #tpu.memory_space<vmem>>, vector<6x128xf32>
    %394 = arith.truncf %393 : vector<6x128xf32> to vector<6x128xbf16>
    %c5_369 = arith.constant 5 : index
    %c0_370 = arith.constant 0 : index
    %c0_371 = arith.constant 0 : index
    %395 = vector.load %arg12[%c5_369, %c0_370, %c0_371] : memref<24x128x128xbf16, #tpu.memory_space<vmem>>, vector<1x128x128xbf16>
    %396 = vector.shape_cast %395 : vector<1x128x128xbf16> to vector<128x128xbf16>
    %cst_372 = arith.constant dense<0.000000e+00> : vector<6x128xf32>
    %397 = tpu.matmul %394, %396, %cst_372 {dimension_numbers = #tpu.dot_dimension_numbers<[1], [0], [0], [1], [0, 0, 1, 1], [], []>} : vector<6x128xbf16>, vector<128x128xbf16>, vector<6x128xf32> -> vector<6x128xf32>
    %398 = arith.addf %392, %397 : vector<6x128xf32>
    %c6_373 = arith.constant 6 : index
    %c0_374 = arith.constant 0 : index
    %399 = vector.load %arg23[%c6_373, %c0_374] : memref<32x128xf32, #tpu.memory_space<vmem>>, vector<6x128xf32>
    %400 = arith.truncf %399 : vector<6x128xf32> to vector<6x128xbf16>
    %c6_375 = arith.constant 6 : index
    %c0_376 = arith.constant 0 : index
    %c0_377 = arith.constant 0 : index
    %401 = vector.load %arg12[%c6_375, %c0_376, %c0_377] : memref<24x128x128xbf16, #tpu.memory_space<vmem>>, vector<1x128x128xbf16>
    %402 = vector.shape_cast %401 : vector<1x128x128xbf16> to vector<128x128xbf16>
    %cst_378 = arith.constant dense<0.000000e+00> : vector<6x128xf32>
    %403 = tpu.matmul %400, %402, %cst_378 {dimension_numbers = #tpu.dot_dimension_numbers<[1], [0], [0], [1], [0, 0, 1, 1], [], []>} : vector<6x128xbf16>, vector<128x128xbf16>, vector<6x128xf32> -> vector<6x128xf32>
    %404 = arith.addf %398, %403 : vector<6x128xf32>
    %c7_379 = arith.constant 7 : index
    %c0_380 = arith.constant 0 : index
    %405 = vector.load %arg23[%c7_379, %c0_380] : memref<32x128xf32, #tpu.memory_space<vmem>>, vector<6x128xf32>
    %406 = arith.truncf %405 : vector<6x128xf32> to vector<6x128xbf16>
    %c7_381 = arith.constant 7 : index
    %c0_382 = arith.constant 0 : index
    %c0_383 = arith.constant 0 : index
    %407 = vector.load %arg12[%c7_381, %c0_382, %c0_383] : memref<24x128x128xbf16, #tpu.memory_space<vmem>>, vector<1x128x128xbf16>
    %408 = vector.shape_cast %407 : vector<1x128x128xbf16> to vector<128x128xbf16>
    %cst_384 = arith.constant dense<0.000000e+00> : vector<6x128xf32>
    %409 = tpu.matmul %406, %408, %cst_384 {dimension_numbers = #tpu.dot_dimension_numbers<[1], [0], [0], [1], [0, 0, 1, 1], [], []>} : vector<6x128xbf16>, vector<128x128xbf16>, vector<6x128xf32> -> vector<6x128xf32>
    %410 = arith.addf %404, %409 : vector<6x128xf32>
    %c0_385 = arith.constant 0 : index
    %c0_386 = arith.constant 0 : index
    %c0_387 = arith.constant 0 : index
    %411 = vector.load %arg13[%c0_385, %c0_386, %c0_387] : memref<3x1x128xf32, #tpu.memory_space<vmem>>, vector<1x1x128xf32>
    %412 = vector.shape_cast %411 : vector<1x1x128xf32> to vector<1x128xf32>
    %413 = vector.broadcast %412 : vector<1x128xf32> to vector<6x128xf32>
    %414 = arith.mulf %410, %413 : vector<6x128xf32>
    %c0_388 = arith.constant 0 : index
    %c0_389 = arith.constant 0 : index
    %c0_390 = arith.constant 0 : index
    %415 = vector.load %arg14[%c0_388, %c0_389, %c0_390] : memref<3x1x128xf32, #tpu.memory_space<vmem>>, vector<1x1x128xf32>
    %416 = vector.shape_cast %415 : vector<1x1x128xf32> to vector<1x128xf32>
    %417 = vector.broadcast %416 : vector<1x128xf32> to vector<6x128xf32>
    %418 = arith.addf %414, %417 : vector<6x128xf32>
    %cst_391 = arith.constant 0.000000e+00 : f32
    %419 = vector.broadcast %cst_391 : f32 to vector<6x128xf32>
    %420 = arith.maximumf %418, %419 : vector<6x128xf32>
    %c3_392 = arith.constant 3 : index
    %c0_393 = arith.constant 0 : index
    %421 = vector.load %arg23[%c3_392, %c0_393] : memref<32x128xf32, #tpu.memory_space<vmem>>, vector<6x128xf32>
    tpu.vector_store %arg23[%c3_392, %c0_393], %420 {strides = array<i32>} : memref<32x128xf32, #tpu.memory_space<vmem>>, vector<6x128xf32>,
    %cst_394 = arith.constant 0.000000e+00 : f32
    %422 = vector.broadcast %cst_394 : f32 to vector<6x128xf32>
    %c0_395 = arith.constant 0 : index
    %c0_396 = arith.constant 0 : index
    %423 = vector.load %arg23[%c0_395, %c0_396] : memref<32x128xf32, #tpu.memory_space<vmem>>, vector<6x128xf32>
    %424 = arith.truncf %423 : vector<6x128xf32> to vector<6x128xbf16>
    %c8_397 = arith.constant 8 : index
    %c0_398 = arith.constant 0 : index
    %c0_399 = arith.constant 0 : index
    %425 = vector.load %arg12[%c8_397, %c0_398, %c0_399] : memref<24x128x128xbf16, #tpu.memory_space<vmem>>, vector<1x128x128xbf16>
    %426 = vector.shape_cast %425 : vector<1x128x128xbf16> to vector<128x128xbf16>
    %cst_400 = arith.constant dense<0.000000e+00> : vector<6x128xf32>
    %427 = tpu.matmul %424, %426, %cst_400 {dimension_numbers = #tpu.dot_dimension_numbers<[1], [0], [0], [1], [0, 0, 1, 1], [], []>} : vector<6x128xbf16>, vector<128x128xbf16>, vector<6x128xf32> -> vector<6x128xf32>
    %428 = arith.addf %422, %427 : vector<6x128xf32>
    %c1_401 = arith.constant 1 : index
    %c0_402 = arith.constant 0 : index
    %429 = vector.load %arg23[%c1_401, %c0_402] : memref<32x128xf32, #tpu.memory_space<vmem>>, vector<6x128xf32>
    %430 = arith.truncf %429 : vector<6x128xf32> to vector<6x128xbf16>
    %c9_403 = arith.constant 9 : index
    %c0_404 = arith.constant 0 : index
    %c0_405 = arith.constant 0 : index
    %431 = vector.load %arg12[%c9_403, %c0_404, %c0_405] : memref<24x128x128xbf16, #tpu.memory_space<vmem>>, vector<1x128x128xbf16>
    %432 = vector.shape_cast %431 : vector<1x128x128xbf16> to vector<128x128xbf16>
    %cst_406 = arith.constant dense<0.000000e+00> : vector<6x128xf32>
    %433 = tpu.matmul %430, %432, %cst_406 {dimension_numbers = #tpu.dot_dimension_numbers<[1], [0], [0], [1], [0, 0, 1, 1], [], []>} : vector<6x128xbf16>, vector<128x128xbf16>, vector<6x128xf32> -> vector<6x128xf32>
    %434 = arith.addf %428, %433 : vector<6x128xf32>
    %c2_407 = arith.constant 2 : index
    %c0_408 = arith.constant 0 : index
    %435 = vector.load %arg23[%c2_407, %c0_408] : memref<32x128xf32, #tpu.memory_space<vmem>>, vector<6x128xf32>
    %436 = arith.truncf %435 : vector<6x128xf32> to vector<6x128xbf16>
    %c10_409 = arith.constant 10 : index
    %c0_410 = arith.constant 0 : index
    %c0_411 = arith.constant 0 : index
    %437 = vector.load %arg12[%c10_409, %c0_410, %c0_411] : memref<24x128x128xbf16, #tpu.memory_space<vmem>>, vector<1x128x128xbf16>
    %438 = vector.shape_cast %437 : vector<1x128x128xbf16> to vector<128x128xbf16>
    %cst_412 = arith.constant dense<0.000000e+00> : vector<6x128xf32>
    %439 = tpu.matmul %436, %438, %cst_412 {dimension_numbers = #tpu.dot_dimension_numbers<[1], [0], [0], [1], [0, 0, 1, 1], [], []>} : vector<6x128xbf16>, vector<128x128xbf16>, vector<6x128xf32> -> vector<6x128xf32>
    %440 = arith.addf %434, %439 : vector<6x128xf32>
    %c3_413 = arith.constant 3 : index
    %c0_414 = arith.constant 0 : index
    %441 = vector.load %arg23[%c3_413, %c0_414] : memref<32x128xf32, #tpu.memory_space<vmem>>, vector<6x128xf32>
    %442 = arith.truncf %441 : vector<6x128xf32> to vector<6x128xbf16>
    %c11_415 = arith.constant 11 : index
    %c0_416 = arith.constant 0 : index
    %c0_417 = arith.constant 0 : index
    %443 = vector.load %arg12[%c11_415, %c0_416, %c0_417] : memref<24x128x128xbf16, #tpu.memory_space<vmem>>, vector<1x128x128xbf16>
    %444 = vector.shape_cast %443 : vector<1x128x128xbf16> to vector<128x128xbf16>
    %cst_418 = arith.constant dense<0.000000e+00> : vector<6x128xf32>
    %445 = tpu.matmul %442, %444, %cst_418 {dimension_numbers = #tpu.dot_dimension_numbers<[1], [0], [0], [1], [0, 0, 1, 1], [], []>} : vector<6x128xbf16>, vector<128x128xbf16>, vector<6x128xf32> -> vector<6x128xf32>
    %446 = arith.addf %440, %445 : vector<6x128xf32>
    %c4_419 = arith.constant 4 : index
    %c0_420 = arith.constant 0 : index
    %447 = vector.load %arg23[%c4_419, %c0_420] : memref<32x128xf32, #tpu.memory_space<vmem>>, vector<6x128xf32>
    %448 = arith.truncf %447 : vector<6x128xf32> to vector<6x128xbf16>
    %c12_421 = arith.constant 12 : index
    %c0_422 = arith.constant 0 : index
    %c0_423 = arith.constant 0 : index
    %449 = vector.load %arg12[%c12_421, %c0_422, %c0_423] : memref<24x128x128xbf16, #tpu.memory_space<vmem>>, vector<1x128x128xbf16>
    %450 = vector.shape_cast %449 : vector<1x128x128xbf16> to vector<128x128xbf16>
    %cst_424 = arith.constant dense<0.000000e+00> : vector<6x128xf32>
    %451 = tpu.matmul %448, %450, %cst_424 {dimension_numbers = #tpu.dot_dimension_numbers<[1], [0], [0], [1], [0, 0, 1, 1], [], []>} : vector<6x128xbf16>, vector<128x128xbf16>, vector<6x128xf32> -> vector<6x128xf32>
    %452 = arith.addf %446, %451 : vector<6x128xf32>
    %c5_425 = arith.constant 5 : index
    %c0_426 = arith.constant 0 : index
    %453 = vector.load %arg23[%c5_425, %c0_426] : memref<32x128xf32, #tpu.memory_space<vmem>>, vector<6x128xf32>
    %454 = arith.truncf %453 : vector<6x128xf32> to vector<6x128xbf16>
    %c13_427 = arith.constant 13 : index
    %c0_428 = arith.constant 0 : index
    %c0_429 = arith.constant 0 : index
    %455 = vector.load %arg12[%c13_427, %c0_428, %c0_429] : memref<24x128x128xbf16, #tpu.memory_space<vmem>>, vector<1x128x128xbf16>
    %456 = vector.shape_cast %455 : vector<1x128x128xbf16> to vector<128x128xbf16>
    %cst_430 = arith.constant dense<0.000000e+00> : vector<6x128xf32>
    %457 = tpu.matmul %454, %456, %cst_430 {dimension_numbers = #tpu.dot_dimension_numbers<[1], [0], [0], [1], [0, 0, 1, 1], [], []>} : vector<6x128xbf16>, vector<128x128xbf16>, vector<6x128xf32> -> vector<6x128xf32>
    %458 = arith.addf %452, %457 : vector<6x128xf32>
    %c6_431 = arith.constant 6 : index
    %c0_432 = arith.constant 0 : index
    %459 = vector.load %arg23[%c6_431, %c0_432] : memref<32x128xf32, #tpu.memory_space<vmem>>, vector<6x128xf32>
    %460 = arith.truncf %459 : vector<6x128xf32> to vector<6x128xbf16>
    %c14_433 = arith.constant 14 : index
    %c0_434 = arith.constant 0 : index
    %c0_435 = arith.constant 0 : index
    %461 = vector.load %arg12[%c14_433, %c0_434, %c0_435] : memref<24x128x128xbf16, #tpu.memory_space<vmem>>, vector<1x128x128xbf16>
    %462 = vector.shape_cast %461 : vector<1x128x128xbf16> to vector<128x128xbf16>
    %cst_436 = arith.constant dense<0.000000e+00> : vector<6x128xf32>
    %463 = tpu.matmul %460, %462, %cst_436 {dimension_numbers = #tpu.dot_dimension_numbers<[1], [0], [0], [1], [0, 0, 1, 1], [], []>} : vector<6x128xbf16>, vector<128x128xbf16>, vector<6x128xf32> -> vector<6x128xf32>
    %464 = arith.addf %458, %463 : vector<6x128xf32>
    %c7_437 = arith.constant 7 : index
    %c0_438 = arith.constant 0 : index
    %465 = vector.load %arg23[%c7_437, %c0_438] : memref<32x128xf32, #tpu.memory_space<vmem>>, vector<6x128xf32>
    %466 = arith.truncf %465 : vector<6x128xf32> to vector<6x128xbf16>
    %c15_439 = arith.constant 15 : index
    %c0_440 = arith.constant 0 : index
    %c0_441 = arith.constant 0 : index
    %467 = vector.load %arg12[%c15_439, %c0_440, %c0_441] : memref<24x128x128xbf16, #tpu.memory_space<vmem>>, vector<1x128x128xbf16>
    %468 = vector.shape_cast %467 : vector<1x128x128xbf16> to vector<128x128xbf16>
    %cst_442 = arith.constant dense<0.000000e+00> : vector<6x128xf32>
    %469 = tpu.matmul %466, %468, %cst_442 {dimension_numbers = #tpu.dot_dimension_numbers<[1], [0], [0], [1], [0, 0, 1, 1], [], []>} : vector<6x128xbf16>, vector<128x128xbf16>, vector<6x128xf32> -> vector<6x128xf32>
    %470 = arith.addf %464, %469 : vector<6x128xf32>
    %c1_443 = arith.constant 1 : index
    %c0_444 = arith.constant 0 : index
    %c0_445 = arith.constant 0 : index
    %471 = vector.load %arg13[%c1_443, %c0_444, %c0_445] : memref<3x1x128xf32, #tpu.memory_space<vmem>>, vector<1x1x128xf32>
    %472 = vector.shape_cast %471 : vector<1x1x128xf32> to vector<1x128xf32>
    %473 = vector.broadcast %472 : vector<1x128xf32> to vector<6x128xf32>
    %474 = arith.mulf %470, %473 : vector<6x128xf32>
    %c1_446 = arith.constant 1 : index
    %c0_447 = arith.constant 0 : index
    %c0_448 = arith.constant 0 : index
    %475 = vector.load %arg14[%c1_446, %c0_447, %c0_448] : memref<3x1x128xf32, #tpu.memory_space<vmem>>, vector<1x1x128xf32>
    %476 = vector.shape_cast %475 : vector<1x1x128xf32> to vector<1x128xf32>
    %477 = vector.broadcast %476 : vector<1x128xf32> to vector<6x128xf32>
    %478 = arith.addf %474, %477 : vector<6x128xf32>
    %cst_449 = arith.constant 0.000000e+00 : f32
    %479 = vector.broadcast %cst_449 : f32 to vector<6x128xf32>
    %480 = arith.maximumf %478, %479 : vector<6x128xf32>
    %c3_450 = arith.constant 3 : index
    %c0_451 = arith.constant 0 : index
    %481 = vector.load %arg23[%c3_450, %c0_451] : memref<32x128xf32, #tpu.memory_space<vmem>>, vector<6x128xf32>
    tpu.vector_store %arg23[%c3_450, %c0_451], %480 {strides = array<i32>} : memref<32x128xf32, #tpu.memory_space<vmem>>, vector<6x128xf32>,
    %cst_452 = arith.constant 0.000000e+00 : f32
    %482 = vector.broadcast %cst_452 : f32 to vector<6x128xf32>
    %c0_453 = arith.constant 0 : index
    %c0_454 = arith.constant 0 : index
    %483 = vector.load %arg23[%c0_453, %c0_454] : memref<32x128xf32, #tpu.memory_space<vmem>>, vector<6x128xf32>
    %484 = arith.truncf %483 : vector<6x128xf32> to vector<6x128xbf16>
    %c16_455 = arith.constant 16 : index
    %c0_456 = arith.constant 0 : index
    %c0_457 = arith.constant 0 : index
    %485 = vector.load %arg12[%c16_455, %c0_456, %c0_457] : memref<24x128x128xbf16, #tpu.memory_space<vmem>>, vector<1x128x128xbf16>
    %486 = vector.shape_cast %485 : vector<1x128x128xbf16> to vector<128x128xbf16>
    %cst_458 = arith.constant dense<0.000000e+00> : vector<6x128xf32>
    %487 = tpu.matmul %484, %486, %cst_458 {dimension_numbers = #tpu.dot_dimension_numbers<[1], [0], [0], [1], [0, 0, 1, 1], [], []>} : vector<6x128xbf16>, vector<128x128xbf16>, vector<6x128xf32> -> vector<6x128xf32>
    %488 = arith.addf %482, %487 : vector<6x128xf32>
    %c1_459 = arith.constant 1 : index
    %c0_460 = arith.constant 0 : index
    %489 = vector.load %arg23[%c1_459, %c0_460] : memref<32x128xf32, #tpu.memory_space<vmem>>, vector<6x128xf32>
    %490 = arith.truncf %489 : vector<6x128xf32> to vector<6x128xbf16>
    %c17_461 = arith.constant 17 : index
    %c0_462 = arith.constant 0 : index
    %c0_463 = arith.constant 0 : index
    %491 = vector.load %arg12[%c17_461, %c0_462, %c0_463] : memref<24x128x128xbf16, #tpu.memory_space<vmem>>, vector<1x128x128xbf16>
    %492 = vector.shape_cast %491 : vector<1x128x128xbf16> to vector<128x128xbf16>
    %cst_464 = arith.constant dense<0.000000e+00> : vector<6x128xf32>
    %493 = tpu.matmul %490, %492, %cst_464 {dimension_numbers = #tpu.dot_dimension_numbers<[1], [0], [0], [1], [0, 0, 1, 1], [], []>} : vector<6x128xbf16>, vector<128x128xbf16>, vector<6x128xf32> -> vector<6x128xf32>
    %494 = arith.addf %488, %493 : vector<6x128xf32>
    %c2_465 = arith.constant 2 : index
    %c0_466 = arith.constant 0 : index
    %495 = vector.load %arg23[%c2_465, %c0_466] : memref<32x128xf32, #tpu.memory_space<vmem>>, vector<6x128xf32>
    %496 = arith.truncf %495 : vector<6x128xf32> to vector<6x128xbf16>
    %c18_467 = arith.constant 18 : index
    %c0_468 = arith.constant 0 : index
    %c0_469 = arith.constant 0 : index
    %497 = vector.load %arg12[%c18_467, %c0_468, %c0_469] : memref<24x128x128xbf16, #tpu.memory_space<vmem>>, vector<1x128x128xbf16>
    %498 = vector.shape_cast %497 : vector<1x128x128xbf16> to vector<128x128xbf16>
    %cst_470 = arith.constant dense<0.000000e+00> : vector<6x128xf32>
    %499 = tpu.matmul %496, %498, %cst_470 {dimension_numbers = #tpu.dot_dimension_numbers<[1], [0], [0], [1], [0, 0, 1, 1], [], []>} : vector<6x128xbf16>, vector<128x128xbf16>, vector<6x128xf32> -> vector<6x128xf32>
    %500 = arith.addf %494, %499 : vector<6x128xf32>
    %c3_471 = arith.constant 3 : index
    %c0_472 = arith.constant 0 : index
    %501 = vector.load %arg23[%c3_471, %c0_472] : memref<32x128xf32, #tpu.memory_space<vmem>>, vector<6x128xf32>
    %502 = arith.truncf %501 : vector<6x128xf32> to vector<6x128xbf16>
    %c19_473 = arith.constant 19 : index
    %c0_474 = arith.constant 0 : index
    %c0_475 = arith.constant 0 : index
    %503 = vector.load %arg12[%c19_473, %c0_474, %c0_475] : memref<24x128x128xbf16, #tpu.memory_space<vmem>>, vector<1x128x128xbf16>
    %504 = vector.shape_cast %503 : vector<1x128x128xbf16> to vector<128x128xbf16>
    %cst_476 = arith.constant dense<0.000000e+00> : vector<6x128xf32>
    %505 = tpu.matmul %502, %504, %cst_476 {dimension_numbers = #tpu.dot_dimension_numbers<[1], [0], [0], [1], [0, 0, 1, 1], [], []>} : vector<6x128xbf16>, vector<128x128xbf16>, vector<6x128xf32> -> vector<6x128xf32>
    %506 = arith.addf %500, %505 : vector<6x128xf32>
    %c4_477 = arith.constant 4 : index
    %c0_478 = arith.constant 0 : index
    %507 = vector.load %arg23[%c4_477, %c0_478] : memref<32x128xf32, #tpu.memory_space<vmem>>, vector<6x128xf32>
    %508 = arith.truncf %507 : vector<6x128xf32> to vector<6x128xbf16>
    %c20_479 = arith.constant 20 : index
    %c0_480 = arith.constant 0 : index
    %c0_481 = arith.constant 0 : index
    %509 = vector.load %arg12[%c20_479, %c0_480, %c0_481] : memref<24x128x128xbf16, #tpu.memory_space<vmem>>, vector<1x128x128xbf16>
    %510 = vector.shape_cast %509 : vector<1x128x128xbf16> to vector<128x128xbf16>
    %cst_482 = arith.constant dense<0.000000e+00> : vector<6x128xf32>
    %511 = tpu.matmul %508, %510, %cst_482 {dimension_numbers = #tpu.dot_dimension_numbers<[1], [0], [0], [1], [0, 0, 1, 1], [], []>} : vector<6x128xbf16>, vector<128x128xbf16>, vector<6x128xf32> -> vector<6x128xf32>
    %512 = arith.addf %506, %511 : vector<6x128xf32>
    %c5_483 = arith.constant 5 : index
    %c0_484 = arith.constant 0 : index
    %513 = vector.load %arg23[%c5_483, %c0_484] : memref<32x128xf32, #tpu.memory_space<vmem>>, vector<6x128xf32>
    %514 = arith.truncf %513 : vector<6x128xf32> to vector<6x128xbf16>
    %c21_485 = arith.constant 21 : index
    %c0_486 = arith.constant 0 : index
    %c0_487 = arith.constant 0 : index
    %515 = vector.load %arg12[%c21_485, %c0_486, %c0_487] : memref<24x128x128xbf16, #tpu.memory_space<vmem>>, vector<1x128x128xbf16>
    %516 = vector.shape_cast %515 : vector<1x128x128xbf16> to vector<128x128xbf16>
    %cst_488 = arith.constant dense<0.000000e+00> : vector<6x128xf32>
    %517 = tpu.matmul %514, %516, %cst_488 {dimension_numbers = #tpu.dot_dimension_numbers<[1], [0], [0], [1], [0, 0, 1, 1], [], []>} : vector<6x128xbf16>, vector<128x128xbf16>, vector<6x128xf32> -> vector<6x128xf32>
    %518 = arith.addf %512, %517 : vector<6x128xf32>
    %c6_489 = arith.constant 6 : index
    %c0_490 = arith.constant 0 : index
    %519 = vector.load %arg23[%c6_489, %c0_490] : memref<32x128xf32, #tpu.memory_space<vmem>>, vector<6x128xf32>
    %520 = arith.truncf %519 : vector<6x128xf32> to vector<6x128xbf16>
    %c22_491 = arith.constant 22 : index
    %c0_492 = arith.constant 0 : index
    %c0_493 = arith.constant 0 : index
    %521 = vector.load %arg12[%c22_491, %c0_492, %c0_493] : memref<24x128x128xbf16, #tpu.memory_space<vmem>>, vector<1x128x128xbf16>
    %522 = vector.shape_cast %521 : vector<1x128x128xbf16> to vector<128x128xbf16>
    %cst_494 = arith.constant dense<0.000000e+00> : vector<6x128xf32>
    %523 = tpu.matmul %520, %522, %cst_494 {dimension_numbers = #tpu.dot_dimension_numbers<[1], [0], [0], [1], [0, 0, 1, 1], [], []>} : vector<6x128xbf16>, vector<128x128xbf16>, vector<6x128xf32> -> vector<6x128xf32>
    %524 = arith.addf %518, %523 : vector<6x128xf32>
    %c7_495 = arith.constant 7 : index
    %c0_496 = arith.constant 0 : index
    %525 = vector.load %arg23[%c7_495, %c0_496] : memref<32x128xf32, #tpu.memory_space<vmem>>, vector<6x128xf32>
    %526 = arith.truncf %525 : vector<6x128xf32> to vector<6x128xbf16>
    %c23_497 = arith.constant 23 : index
    %c0_498 = arith.constant 0 : index
    %c0_499 = arith.constant 0 : index
    %527 = vector.load %arg12[%c23_497, %c0_498, %c0_499] : memref<24x128x128xbf16, #tpu.memory_space<vmem>>, vector<1x128x128xbf16>
    %528 = vector.shape_cast %527 : vector<1x128x128xbf16> to vector<128x128xbf16>
    %cst_500 = arith.constant dense<0.000000e+00> : vector<6x128xf32>
    %529 = tpu.matmul %526, %528, %cst_500 {dimension_numbers = #tpu.dot_dimension_numbers<[1], [0], [0], [1], [0, 0, 1, 1], [], []>} : vector<6x128xbf16>, vector<128x128xbf16>, vector<6x128xf32> -> vector<6x128xf32>
    %530 = arith.addf %524, %529 : vector<6x128xf32>
    %c2_501 = arith.constant 2 : index
    %c0_502 = arith.constant 0 : index
    %c0_503 = arith.constant 0 : index
    %531 = vector.load %arg13[%c2_501, %c0_502, %c0_503] : memref<3x1x128xf32, #tpu.memory_space<vmem>>, vector<1x1x128xf32>
    %532 = vector.shape_cast %531 : vector<1x1x128xf32> to vector<1x128xf32>
    %533 = vector.broadcast %532 : vector<1x128xf32> to vector<6x128xf32>
    %534 = arith.mulf %530, %533 : vector<6x128xf32>
    %c2_504 = arith.constant 2 : index
    %c0_505 = arith.constant 0 : index
    %c0_506 = arith.constant 0 : index
    %535 = vector.load %arg14[%c2_504, %c0_505, %c0_506] : memref<3x1x128xf32, #tpu.memory_space<vmem>>, vector<1x1x128xf32>
    %536 = vector.shape_cast %535 : vector<1x1x128xf32> to vector<1x128xf32>
    %537 = vector.broadcast %536 : vector<1x128xf32> to vector<6x128xf32>
    %538 = arith.addf %534, %537 : vector<6x128xf32>
    %cst_507 = arith.constant 0.000000e+00 : f32
    %539 = vector.broadcast %cst_507 : f32 to vector<6x128xf32>
    %540 = arith.maximumf %538, %539 : vector<6x128xf32>
    %c0_508 = arith.constant 0 : index
    %c0_509 = arith.constant 0 : index
    %541 = vector.load %arg22[%c0_508, %c0_509] : memref<200x128xf32, #tpu.memory_space<vmem>>, vector<6x128xf32>
    tpu.vector_store %arg22[%c0_508, %c0_509], %540 {strides = array<i32>} : memref<200x128xf32, #tpu.memory_space<vmem>>, vector<6x128xf32>,
    %c0_510 = arith.constant 0 : index
    %c0_511 = arith.constant 0 : index
    %542 = tpu.strided_load %arg22[%c0_510, %c0_511] {strides = array<i32: 2, 1>} : memref<200x128xf32, #tpu.memory_space<vmem>>, vector<3x128xf32>
    %c1_512 = arith.constant 1 : index
    %c0_513 = arith.constant 0 : index
    %543 = tpu.strided_load %arg22[%c1_512, %c0_513] {strides = array<i32: 2, 1>} : memref<200x128xf32, #tpu.memory_space<vmem>>, vector<3x128xf32>
    %544 = arith.maximumf %542, %543 : vector<3x128xf32>
    %545 = vector.extract_strided_slice %544 {offsets = [0, 0], sizes = [1, 128], strides = [1, 1]} : vector<3x128xf32> to vector<1x128xf32>
    %546 = vector.extract_strided_slice %544 {offsets = [0, 0], sizes = [1, 128], strides = [1, 1]} : vector<3x128xf32> to vector<1x128xf32>
    %547 = vector.extract_strided_slice %544 {offsets = [0, 0], sizes = [1, 128], strides = [1, 1]} : vector<3x128xf32> to vector<1x128xf32>
    %548 = vector.extract_strided_slice %544 {offsets = [1, 0], sizes = [1, 128], strides = [1, 1]} : vector<3x128xf32> to vector<1x128xf32>
    %549 = vector.extract_strided_slice %544 {offsets = [1, 0], sizes = [1, 128], strides = [1, 1]} : vector<3x128xf32> to vector<1x128xf32>
    %550 = vector.extract_strided_slice %544 {offsets = [2, 0], sizes = [1, 128], strides = [1, 1]} : vector<3x128xf32> to vector<1x128xf32>
    %551 = vector.extract_strided_slice %544 {offsets = [2, 0], sizes = [1, 128], strides = [1, 1]} : vector<3x128xf32> to vector<1x128xf32>
    %552 = tpu.concatenate %545, %546, %547, %548, %549, %550, %551 in 0 : vector<1x128xf32>, vector<1x128xf32>, vector<1x128xf32>, vector<1x128xf32>, vector<1x128xf32>, vector<1x128xf32>, vector<1x128xf32> -> vector<7x128xf32>
    %553 = arith.truncf %283 : vector<7x128xf32> to vector<7x128xbf16>
    %c0_514 = arith.constant 0 : index
    %c0_515 = arith.constant 0 : index
    %c0_516 = arith.constant 0 : index
    %554 = vector.load %arg15[%c0_514, %c0_515, %c0_516] : memref<2x128x128xbf16, #tpu.memory_space<vmem>>, vector<1x128x128xbf16>
    %555 = vector.shape_cast %554 : vector<1x128x128xbf16> to vector<128x128xbf16>
    %cst_517 = arith.constant dense<0.000000e+00> : vector<7x128xf32>
    %556 = tpu.matmul %553, %555, %cst_517 {dimension_numbers = #tpu.dot_dimension_numbers<[1], [0], [0], [1], [0, 0, 1, 1], [], []>} : vector<7x128xbf16>, vector<128x128xbf16>, vector<7x128xf32> -> vector<7x128xf32>
    %557 = arith.truncf %552 : vector<7x128xf32> to vector<7x128xbf16>
    %c1_518 = arith.constant 1 : index
    %c0_519 = arith.constant 0 : index
    %c0_520 = arith.constant 0 : index
    %558 = vector.load %arg15[%c1_518, %c0_519, %c0_520] : memref<2x128x128xbf16, #tpu.memory_space<vmem>>, vector<1x128x128xbf16>
    %559 = vector.shape_cast %558 : vector<1x128x128xbf16> to vector<128x128xbf16>
    %cst_521 = arith.constant dense<0.000000e+00> : vector<7x128xf32>
    %560 = tpu.matmul %557, %559, %cst_521 {dimension_numbers = #tpu.dot_dimension_numbers<[1], [0], [0], [1], [0, 0, 1, 1], [], []>} : vector<7x128xbf16>, vector<128x128xbf16>, vector<7x128xf32> -> vector<7x128xf32>
    %561 = arith.addf %556, %560 : vector<7x128xf32>
    %c0_522 = arith.constant 0 : index
    %c0_523 = arith.constant 0 : index
    %562 = vector.load %arg16[%c0_522, %c0_523] : memref<1x128xf32, #tpu.memory_space<vmem>>, vector<1x128xf32>
    %563 = vector.broadcast %562 : vector<1x128xf32> to vector<7x128xf32>
    %564 = arith.addf %561, %563 : vector<7x128xf32>
    %565 = arith.truncf %564 : vector<7x128xf32> to vector<7x128xbf16>
    %c0_524 = arith.constant 0 : index
    %c0_525 = arith.constant 0 : index
    %c0_526 = arith.constant 0 : index
    %566 = vector.load %arg17[%c0_524, %c0_525, %c0_526] : memref<3x128x128xbf16, #tpu.memory_space<vmem>>, vector<1x128x128xbf16>
    %567 = vector.shape_cast %566 : vector<1x128x128xbf16> to vector<128x128xbf16>
    %cst_527 = arith.constant dense<0.000000e+00> : vector<7x128xf32>
    %568 = tpu.matmul %565, %567, %cst_527 {dimension_numbers = #tpu.dot_dimension_numbers<[1], [0], [0], [1], [0, 0, 1, 1], [], []>} : vector<7x128xbf16>, vector<128x128xbf16>, vector<7x128xf32> -> vector<7x128xf32>
    %c1_528 = arith.constant 1 : index
    %c0_529 = arith.constant 0 : index
    %c0_530 = arith.constant 0 : index
    %569 = vector.load %arg17[%c1_528, %c0_529, %c0_530] : memref<3x128x128xbf16, #tpu.memory_space<vmem>>, vector<1x128x128xbf16>
    %570 = vector.shape_cast %569 : vector<1x128x128xbf16> to vector<128x128xbf16>
    %cst_531 = arith.constant dense<0.000000e+00> : vector<7x128xf32>
    %571 = tpu.matmul %565, %570, %cst_531 {dimension_numbers = #tpu.dot_dimension_numbers<[1], [0], [0], [1], [0, 0, 1, 1], [], []>} : vector<7x128xbf16>, vector<128x128xbf16>, vector<7x128xf32> -> vector<7x128xf32>
    %c2_532 = arith.constant 2 : index
    %c0_533 = arith.constant 0 : index
    %c0_534 = arith.constant 0 : index
    %572 = vector.load %arg17[%c2_532, %c0_533, %c0_534] : memref<3x128x128xbf16, #tpu.memory_space<vmem>>, vector<1x128x128xbf16>
    %573 = vector.shape_cast %572 : vector<1x128x128xbf16> to vector<128x128xbf16>
    %cst_535 = arith.constant dense<0.000000e+00> : vector<7x128xf32>
    %574 = tpu.matmul %565, %573, %cst_535 {dimension_numbers = #tpu.dot_dimension_numbers<[1], [0], [0], [1], [0, 0, 1, 1], [], []>} : vector<7x128xbf16>, vector<128x128xbf16>, vector<7x128xf32> -> vector<7x128xf32>
    %cst_536 = arith.constant 0.000000e+00 : f32
    %575 = vector.broadcast %cst_536 : f32 to vector<1x128xf32>
    %c0_537 = arith.constant 0 : index
    %c0_538 = arith.constant 0 : index
    %576 = vector.load %arg18[%c0_537, %c0_538] : memref<1x128xf32, #tpu.memory_space<vmem>>, vector<1x128xf32>
    %577 = vector.broadcast %576 : vector<1x128xf32> to vector<7x128xf32>
    %578 = arith.addf %571, %577 : vector<7x128xf32>
    %579 = vector.extract_strided_slice %568 {offsets = [0, 0], sizes = [6, 128], strides = [1, 1]} : vector<7x128xf32> to vector<6x128xf32>
    %580 = tpu.concatenate %575, %579 in 0 : vector<1x128xf32>, vector<6x128xf32> -> vector<7x128xf32>
    %581 = arith.addf %578, %580 : vector<7x128xf32>
    %582 = vector.extract_strided_slice %574 {offsets = [1, 0], sizes = [6, 128], strides = [1, 1]} : vector<7x128xf32> to vector<6x128xf32>
    %583 = tpu.concatenate %582, %575 in 0 : vector<6x128xf32>, vector<1x128xf32> -> vector<7x128xf32>
    %584 = arith.addf %581, %583 : vector<7x128xf32>
    %585 = arith.truncf %584 : vector<7x128xf32> to vector<7x128xbf16>
    %c0_539 = arith.constant 0 : index
    %c0_540 = arith.constant 0 : index
    %586 = vector.load %arg19[%c0_539, %c0_540] : memref<128x128xbf16, #tpu.memory_space<vmem>>, vector<128x128xbf16>
    %cst_541 = arith.constant dense<0.000000e+00> : vector<7x128xf32>
    %587 = tpu.matmul %585, %586, %cst_541 {dimension_numbers = #tpu.dot_dimension_numbers<[1], [0], [0], [1], [0, 0, 1, 1], [], []>} : vector<7x128xbf16>, vector<128x128xbf16>, vector<7x128xf32> -> vector<7x128xf32>
    %c0_542 = arith.constant 0 : index
    %c0_543 = arith.constant 0 : index
    %588 = vector.load %arg20[%c0_542, %c0_543] : memref<1x128xf32, #tpu.memory_space<vmem>>, vector<1x128xf32>
    %589 = vector.broadcast %588 : vector<1x128xf32> to vector<7x128xf32>
    %590 = arith.addf %587, %589 : vector<7x128xf32>
    %c0_544 = arith.constant 0 : index
    %c0_545 = arith.constant 0 : index
    %c0_546 = arith.constant 0 : index
    %591 = vector.load %arg21[%c0_544, %c0_545, %c0_546] : memref<1x7x128xf32, #tpu.memory_space<vmem>>, vector<1x7x128xf32>
    %592 = vector.shape_cast %591 : vector<1x7x128xf32> to vector<7x128xf32>
    %593 = vector.shape_cast %590 : vector<7x128xf32> to vector<1x7x128xf32>
    tpu.vector_store %arg21[%c0_544, %c0_545, %c0_546], %593 {strides = array<i32>} : memref<1x7x128xf32, #tpu.memory_space<vmem>>, vector<1x7x128xf32>,
    return
  }
  func.func @transform_0(%arg0: i32) -> (i32, i32, i32) {
    %c0_i32 = arith.constant 0 : i32
    %c0_i32_0 = arith.constant 0 : i32
    %c0_i32_1 = arith.constant 0 : i32
    return %arg0, %c0_i32, %c0_i32_0 : i32, i32, i32
  }
  func.func @transform_1(%arg0: i32) -> (i32, i32, i32) {
    %c0_i32 = arith.constant 0 : i32
    %c0_i32_0 = arith.constant 0 : i32
    %c0_i32_1 = arith.constant 0 : i32
    return %arg0, %c0_i32, %c0_i32_0 : i32, i32, i32
  }
  func.func @transform_2(%arg0: i32) -> (i32, i32, i32) {
    %c0_i32 = arith.constant 0 : i32
    %c0_i32_0 = arith.constant 0 : i32
    %c0_i32_1 = arith.constant 0 : i32
    %c0_i32_2 = arith.constant 0 : i32
    return %c0_i32, %c0_i32_0, %c0_i32_1 : i32, i32, i32
  }
  func.func @transform_3(%arg0: i32) -> (i32, i32) {
    %c0_i32 = arith.constant 0 : i32
    %c0_i32_0 = arith.constant 0 : i32
    %c0_i32_1 = arith.constant 0 : i32
    return %c0_i32, %c0_i32_0 : i32, i32
  }
  func.func @transform_4(%arg0: i32) -> (i32, i32) {
    %c0_i32 = arith.constant 0 : i32
    %c0_i32_0 = arith.constant 0 : i32
    %c0_i32_1 = arith.constant 0 : i32
    return %c0_i32, %c0_i32_0 : i32, i32
  }
  func.func @transform_5(%arg0: i32) -> (i32, i32, i32) {
    %c0_i32 = arith.constant 0 : i32
    %c0_i32_0 = arith.constant 0 : i32
    %c0_i32_1 = arith.constant 0 : i32
    %c0_i32_2 = arith.constant 0 : i32
    return %c0_i32, %c0_i32_0, %c0_i32_1 : i32, i32, i32
  }
  func.func @transform_6(%arg0: i32) -> (i32, i32, i32) {
    %c0_i32 = arith.constant 0 : i32
    %c0_i32_0 = arith.constant 0 : i32
    %c0_i32_1 = arith.constant 0 : i32
    %c0_i32_2 = arith.constant 0 : i32
    return %c0_i32, %c0_i32_0, %c0_i32_1 : i32, i32, i32
  }
  func.func @transform_7(%arg0: i32) -> (i32, i32, i32) {
    %c0_i32 = arith.constant 0 : i32
    %c0_i32_0 = arith.constant 0 : i32
    %c0_i32_1 = arith.constant 0 : i32
    %c0_i32_2 = arith.constant 0 : i32
    return %c0_i32, %c0_i32_0, %c0_i32_1 : i32, i32, i32
  }
  func.func @transform_8(%arg0: i32) -> (i32, i32, i32) {
    %c0_i32 = arith.constant 0 : i32
    %c0_i32_0 = arith.constant 0 : i32
    %c0_i32_1 = arith.constant 0 : i32
    %c0_i32_2 = arith.constant 0 : i32
    return %c0_i32, %c0_i32_0, %c0_i32_1 : i32, i32, i32
  }
  func.func @transform_9(%arg0: i32) -> (i32, i32) {
    %c0_i32 = arith.constant 0 : i32
    %c0_i32_0 = arith.constant 0 : i32
    %c0_i32_1 = arith.constant 0 : i32
    return %c0_i32, %c0_i32_0 : i32, i32
  }
  func.func @transform_10(%arg0: i32) -> (i32, i32) {
    %c0_i32 = arith.constant 0 : i32
    %c0_i32_0 = arith.constant 0 : i32
    %c0_i32_1 = arith.constant 0 : i32
    return %c0_i32, %c0_i32_0 : i32, i32
  }
  func.func @transform_11(%arg0: i32) -> (i32, i32, i32) {
    %c0_i32 = arith.constant 0 : i32
    %c0_i32_0 = arith.constant 0 : i32
    %c0_i32_1 = arith.constant 0 : i32
    %c0_i32_2 = arith.constant 0 : i32
    return %c0_i32, %c0_i32_0, %c0_i32_1 : i32, i32, i32
  }
  func.func @transform_12(%arg0: i32) -> (i32, i32, i32) {
    %c0_i32 = arith.constant 0 : i32
    %c0_i32_0 = arith.constant 0 : i32
    %c0_i32_1 = arith.constant 0 : i32
    %c0_i32_2 = arith.constant 0 : i32
    return %c0_i32, %c0_i32_0, %c0_i32_1 : i32, i32, i32
  }
  func.func @transform_13(%arg0: i32) -> (i32, i32, i32) {
    %c0_i32 = arith.constant 0 : i32
    %c0_i32_0 = arith.constant 0 : i32
    %c0_i32_1 = arith.constant 0 : i32
    %c0_i32_2 = arith.constant 0 : i32
    return %c0_i32, %c0_i32_0, %c0_i32_1 : i32, i32, i32
  }
  func.func @transform_14(%arg0: i32) -> (i32, i32, i32) {
    %c0_i32 = arith.constant 0 : i32
    %c0_i32_0 = arith.constant 0 : i32
    %c0_i32_1 = arith.constant 0 : i32
    %c0_i32_2 = arith.constant 0 : i32
    return %c0_i32, %c0_i32_0, %c0_i32_1 : i32, i32, i32
  }
  func.func @transform_15(%arg0: i32) -> (i32, i32) {
    %c0_i32 = arith.constant 0 : i32
    %c0_i32_0 = arith.constant 0 : i32
    %c0_i32_1 = arith.constant 0 : i32
    return %c0_i32, %c0_i32_0 : i32, i32
  }
  func.func @transform_16(%arg0: i32) -> (i32, i32, i32) {
    %c0_i32 = arith.constant 0 : i32
    %c0_i32_0 = arith.constant 0 : i32
    %c0_i32_1 = arith.constant 0 : i32
    %c0_i32_2 = arith.constant 0 : i32
    return %c0_i32, %c0_i32_0, %c0_i32_1 : i32, i32, i32
  }
  func.func @transform_17(%arg0: i32) -> (i32, i32) {
    %c0_i32 = arith.constant 0 : i32
    %c0_i32_0 = arith.constant 0 : i32
    %c0_i32_1 = arith.constant 0 : i32
    return %c0_i32, %c0_i32_0 : i32, i32
  }
  func.func @transform_18(%arg0: i32) -> (i32, i32) {
    %c0_i32 = arith.constant 0 : i32
    %c0_i32_0 = arith.constant 0 : i32
    %c0_i32_1 = arith.constant 0 : i32
    return %c0_i32, %c0_i32_0 : i32, i32
  }
  func.func @transform_19(%arg0: i32) -> (i32, i32) {
    %c0_i32 = arith.constant 0 : i32
    %c0_i32_0 = arith.constant 0 : i32
    %c0_i32_1 = arith.constant 0 : i32
    return %c0_i32, %c0_i32_0 : i32, i32
  }
  func.func @transform_20(%arg0: i32) -> (i32, i32, i32) {
    %c0_i32 = arith.constant 0 : i32
    %c0_i32_0 = arith.constant 0 : i32
    %c0_i32_1 = arith.constant 0 : i32
    return %arg0, %c0_i32, %c0_i32_0 : i32, i32, i32
  }
}

</mosaic_0001>

<llo_original>
// kernel: deepsleepnet_feature.1
$region0: #{deepsleepnet_feature.1}
  #allocation0 [shape = 'u32[]', space=smem, size = 0x4, offset = 0x4, fixed_abs, tag = 'smem constant byte address 0x4 - core index']
  #allocation1 [shape = 'u32[144,128]{1,0:T(1,128)}', space=vmem, size = 0x12000, scoped, tag = 'internal scratch']
  #allocation2 [shape = 'f32[200,128]{1,0:T(8,128)}', space=vmem, size = 0x19000, scoped, tag = 'scratch operand']
  #allocation3 [shape = 'f32[32,128]{1,0:T(8,128)}', space=vmem, size = 0x4000, scoped, tag = 'scratch operand']
  %s0 = inlined_call_operand.vmem [shape: f32[2,208,8], index: 0, kind: input, shape index: {}]
  %s1 = inlined_call_operand.vmem [shape: f32[2,31,56], index: 1, kind: input, shape index: {}]
  %s2 = inlined_call_operand.hbm [shape: bf16[9,8,128], index: 2, kind: input, shape index: {}]
  %s3 = inlined_call_operand.vmem [shape: f32[1,128], index: 3, kind: input, shape index: {}]
  %s4 = inlined_call_operand.vmem [shape: f32[1,128], index: 4, kind: input, shape index: {}]
  %s5 = inlined_call_operand.vmem [shape: bf16[24,128,128], index: 5, kind: input, shape index: {}]
  %s6 = inlined_call_operand.vmem [shape: f32[3,1,128], index: 6, kind: input, shape index: {}]
  %s7 = inlined_call_operand.vmem [shape: f32[3,1,128], index: 7, kind: input, shape index: {}]
  %s8 = inlined_call_operand.hbm [shape: bf16[8,56,128], index: 8, kind: input, shape index: {}]
  %s9 = inlined_call_operand.vmem [shape: f32[1,128], index: 9, kind: input, shape index: {}]
  %s10 = inlined_call_operand.vmem [shape: f32[1,128], index: 10, kind: input, shape index: {}]
  %s11 = inlined_call_operand.hbm [shape: bf16[24,128,128], index: 11, kind: input, shape index: {}]
  %s12 = inlined_call_operand.vmem [shape: f32[3,1,128], index: 12, kind: input, shape index: {}]
  %s13 = inlined_call_operand.vmem [shape: f32[3,1,128], index: 13, kind: input, shape index: {}]
  %s14 = inlined_call_operand.hbm [shape: bf16[2,128,128], index: 14, kind: input, shape index: {}]
  %s15 = inlined_call_operand.vmem [shape: f32[1,128], index: 15, kind: input, shape index: {}]
  %s16 = inlined_call_operand.hbm [shape: bf16[3,128,128], index: 16, kind: input, shape index: {}]
  %s17 = inlined_call_operand.vmem [shape: f32[1,128], index: 17, kind: input, shape index: {}]
  %s18 = inlined_call_operand.vmem [shape: bf16[128,128], index: 18, kind: input, shape index: {}]
  %s19 = inlined_call_operand.vmem [shape: f32[1,128], index: 19, kind: input, shape index: {}]
  %s20 = inlined_call_operand.vmem [shape: f32[2,7,128], index: 20, kind: output, shape index: {}]
  %s21 = sld [smem:[#allocation0]]
  $region133: #{deepsleepnet_feature.1} parent=0
    _
  %s23 = ssub.s32 1, %s21
  %s24 = scalar_select 0, %s23, %s21
  $region1: #{deepsleepnet_feature.1} parent=0
    #allocation4 [shape = 'u8[18432]{0}', space=vmem, size = 0x4800, scoped, tag = 'input window, operand 2, single buffered']
    #allocation5 [shape = 's32[2]{0}', space=sflag, size = 0x8, scoped, tag = 'scoped memory for deepsleepnet_feature.1']
    #allocation6 [shape = 'u8[114688]{0}', space=vmem, size = 0x1c000, scoped, tag = 'input window, operand 8, single buffered']
    #allocation7 [shape = 's32[1]{0}', space=sflag, size = 0x4, scoped, tag = 'scoped memory for deepsleepnet_feature.1']
    #allocation8 [shape = 'u8[786432]{0}', space=vmem, size = 0xc0000, scoped, tag = 'input window, operand 11, single buffered']
    #allocation9 [shape = 'u8[65536]{0}', space=vmem, size = 0x10000, scoped, tag = 'input window, operand 14, single buffered']
    #allocation10 [shape = 's32[1]{0}', space=sflag, size = 0x4, scoped, tag = 'scoped memory for deepsleepnet_feature.1']
    #allocation11 [shape = 'u8[98304]{0}', space=vmem, size = 0x18000, scoped, tag = 'input window, operand 16, single buffered']
    %25 = vsyncpa [#allocation5], 0
    %26 = vsyncpa [#allocation7], 0
    %27 = vsyncpa [#allocation10], 0
    loop: start=0, step=1, limit=4
    $region2: #{deepsleepnet_feature.1} parent=1 // loop_pre_header
      _
    $region3: #{deepsleepnet_feature.1} parent=1 // loop_header
      %s29 = sphi 0, %s33
      %p30 = scmp.ge.s32.totalorder %s29, 4
      %s39 = sphi 0, %s41
      %s42 = sphi 0, %s39
      %s43 = sphi 0, %s42
      %s59 = sphi 0, %s43
      %s65 = sphi 0, %s67
      %s68 = sphi 0, %s65
      %s69 = sphi 0, %s68
      %s85 = sphi 0, %s69
      %s89 = sphi 0, %s89
      %s91 = sphi 0, %s89
      %s92 = sphi 0, %s91
      %s106 = sphi 0, %s92
      %s110 = sphi 0, %s110
      %s112 = sphi 0, %s110
      %s113 = sphi 0, %s112
      %s127 = sphi 0, %s113
      %s131 = sphi 0, %s131
      %s133 = sphi 0, %s131
      %s134 = sphi 0, %s133
      %s148 = sphi 0, %s134
      %s152 = sphi 0, %s152
      %s154 = sphi 0, %s152
      %s155 = sphi 0, %s154
      %s169 = sphi 0, %s155
      %s173 = sphi 0, %s173
      %s175 = sphi 0, %s173
      %s176 = sphi 0, %s175
      %s190 = sphi 0, %s176
      %s194 = sphi 0, %s194
      %s196 = sphi 0, %s194
      %s197 = sphi 0, %s196
      %s211 = sphi 0, %s197
      %s215 = sphi 0, %s215
      %s217 = sphi 0, %s215
      %s218 = sphi 0, %s217
      %s232 = sphi 0, %s218
      %s236 = sphi 0, %s236
      %s238 = sphi 0, %s236
      %s239 = sphi 0, %s238
      %s253 = sphi 0, %s239
      %s257 = sphi 0, %s257
      %s259 = sphi 0, %s257
      %s260 = sphi 0, %s259
      %s274 = sphi 0, %s260
      %s278 = sphi 0, %s278
      %s280 = sphi 0, %s278
      %s281 = sphi 0, %s280
      %s295 = sphi 0, %s281
      %s299 = sphi 0, %s299
      %s301 = sphi 0, %s299
      %s302 = sphi 0, %s301
      %s316 = sphi 0, %s302
      %s320 = sphi 0, %s320
      %s322 = sphi 0, %s320
      %s323 = sphi 0, %s322
      %s337 = sphi 0, %s323
      %s341 = sphi 0, %s341
      %s343 = sphi 0, %s341
      %s344 = sphi 0, %s343
      %s358 = sphi 0, %s344
      %s362 = sphi 0, %s362
      %s364 = sphi 0, %s362
      %s365 = sphi 0, %s364
      %s379 = sphi 0, %s365
      %s383 = sphi 0, %s383
      %s385 = sphi 0, %s383
      %s386 = sphi 0, %s385
      %s400 = sphi 0, %s386
      %s404 = sphi 0, %s404
      %s406 = sphi 0, %s404
      %s407 = sphi 0, %s406
      %s421 = sphi 0, %s407
      %s425 = sphi 0, %s425
      %s427 = sphi 0, %s425
      %s428 = sphi 0, %s427
      %s442 = sphi 0, %s428
      %s446 = sphi 0, %s446
      %s448 = sphi 0, %s446
      %s449 = sphi 0, %s448
      %s463 = sphi 0, %s449
      %s469 = sphi 0, %s471
      %s472 = sphi 0, %s469
      %s473 = sphi 0, %s472
      %s489 = sphi 0, %s473
    $region4: #{deepsleepnet_feature.1} parent=1 // loop_header_branch
      %32 = sbr.rel (%p30) target = $region8
    $region5: #{deepsleepnet_feature.1} parent=1 // loop_body
      %s34 = ssub.s32 %s29, 1
      %s35 = ssub.s32 %s29, 2
      %s36 = sadd.s32 %s29, 1
      %s37 = ssub.s32 %s29, %s36
      %p38 = scmp.eq.s32.totalorder %s37, 0
      %s40 = sadd.s32 %s39, 1
      %s41 = scalar_select %p38, %s39, %s40
      %p44 = pneg %p38
      %p45 = scmp.eq.s32.totalorder %s29, 1
      %p46 = por %p44, %p45
      %p47 = scmp.ne.s32.totalorder %s39, %s42
      %p48 = scmp.eq.s32.totalorder %s29, 0
      %p49 = por %p47, %p48
      %p50 = scmp.ne.s32.totalorder %s39, %s42
      %p51 = scmp.eq.s32.totalorder %s34, 1
      %p52 = por %p50, %p51
      %p53 = scmp.ne.s32.totalorder %s42, %s43
      %p54 = scmp.eq.s32.totalorder %s34, 0
      %p55 = por %p53, %p54
      %p56 = scmp.ne.s32.totalorder %s42, %s43
      %p57 = scmp.eq.s32.totalorder %s35, 1
      %p58 = por %p56, %p57
      %p60 = scmp.ne.s32.totalorder %s43, %s59
      %p61 = scmp.eq.s32.totalorder %s35, 0
      %p62 = por %p60, %p61
      %s63 = ssub.s32 %s29, %s36
      %p64 = scmp.eq.s32.totalorder %s63, 0
      %s66 = sadd.s32 %s65, 1
      %s67 = scalar_select %p64, %s65, %s66
      %p70 = pneg %p64
      %p71 = scmp.eq.s32.totalorder %s29, 1
      %p72 = por %p70, %p71
      %p73 = scmp.ne.s32.totalorder %s65, %s68
      %p74 = scmp.eq.s32.totalorder %s29, 0
      %p75 = por %p73, %p74
      %p76 = scmp.ne.s32.totalorder %s65, %s68
      %p77 = scmp.eq.s32.totalorder %s34, 1
      %p78 = por %p76, %p77
      %p79 = scmp.ne.s32.totalorder %s68, %s69
      %p80 = scmp.eq.s32.totalorder %s34, 0
      %p81 = por %p79, %p80
      %p82 = scmp.ne.s32.totalorder %s68, %s69
      %p83 = scmp.eq.s32.totalorder %s35, 1
      %p84 = por %p82, %p83
      %p86 = scmp.ne.s32.totalorder %s69, %s85
      %p87 = scmp.eq.s32.totalorder %s35, 0
      %p88 = por %p86, %p87
      %s90 = sadd.s32 %s89, 1
      %p93 = scmp.eq.s32.totalorder %s29, 1
      %p94 = scmp.ne.s32.totalorder %s89, %s91
      %p95 = scmp.eq.s32.totalorder %s29, 0
      %p96 = por %p94, %p95
      %p97 = scmp.ne.s32.totalorder %s89, %s91
      %p98 = scmp.eq.s32.totalorder %s34, 1
      %p99 = por %p97, %p98
      %p100 = scmp.ne.s32.totalorder %s91, %s92
      %p101 = scmp.eq.s32.totalorder %s34, 0
      %p102 = por %p100, %p101
      %p103 = scmp.ne.s32.totalorder %s91, %s92
      %p104 = scmp.eq.s32.totalorder %s35, 1
      %p105 = por %p103, %p104
      %p107 = scmp.ne.s32.totalorder %s92, %s106
      %p108 = scmp.eq.s32.totalorder %s35, 0
      %p109 = por %p107, %p108
      %s111 = sadd.s32 %s110, 1
      %p114 = scmp.eq.s32.totalorder %s29, 1
      %p115 = scmp.ne.s32.totalorder %s110, %s112
      %p116 = scmp.eq.s32.totalorder %s29, 0
      %p117 = por %p115, %p116
      %p118 = scmp.ne.s32.totalorder %s110, %s112
      %p119 = scmp.eq.s32.totalorder %s34, 1
      %p120 = por %p118, %p119
      %p121 = scmp.ne.s32.totalorder %s112, %s113
      %p122 = scmp.eq.s32.totalorder %s34, 0
      %p123 = por %p121, %p122
      %p124 = scmp.ne.s32.totalorder %s112, %s113
      %p125 = scmp.eq.s32.totalorder %s35, 1
      %p126 = por %p124, %p125
      %p128 = scmp.ne.s32.totalorder %s113, %s127
      %p129 = scmp.eq.s32.totalorder %s35, 0
      %p130 = por %p128, %p129
      %s132 = sadd.s32 %s131, 1
      %p135 = scmp.eq.s32.totalorder %s29, 1
      %p136 = scmp.ne.s32.totalorder %s131, %s133
      %p137 = scmp.eq.s32.totalorder %s29, 0
      %p138 = por %p136, %p137
      %p139 = scmp.ne.s32.totalorder %s131, %s133
      %p140 = scmp.eq.s32.totalorder %s34, 1
      %p141 = por %p139, %p140
      %p142 = scmp.ne.s32.totalorder %s133, %s134
      %p143 = scmp.eq.s32.totalorder %s34, 0
      %p144 = por %p142, %p143
      %p145 = scmp.ne.s32.totalorder %s133, %s134
      %p146 = scmp.eq.s32.totalorder %s35, 1
      %p147 = por %p145, %p146
      %p149 = scmp.ne.s32.totalorder %s134, %s148
      %p150 = scmp.eq.s32.totalorder %s35, 0
      %p151 = por %p149, %p150
      %s153 = sadd.s32 %s152, 1
      %p156 = scmp.eq.s32.totalorder %s29, 1
      %p157 = scmp.ne.s32.totalorder %s152, %s154
      %p158 = scmp.eq.s32.totalorder %s29, 0
      %p159 = por %p157, %p158
      %p160 = scmp.ne.s32.totalorder %s152, %s154
      %p161 = scmp.eq.s32.totalorder %s34, 1
      %p162 = por %p160, %p161
      %p163 = scmp.ne.s32.totalorder %s154, %s155
      %p164 = scmp.eq.s32.totalorder %s34, 0
      %p165 = por %p163, %p164
      %p166 = scmp.ne.s32.totalorder %s154, %s155
      %p167 = scmp.eq.s32.totalorder %s35, 1
      %p168 = por %p166, %p167
      %p170 = scmp.ne.s32.totalorder %s155, %s169
      %p171 = scmp.eq.s32.totalorder %s35, 0
      %p172 = por %p170, %p171
      %s174 = sadd.s32 %s173, 1
      %p177 = scmp.eq.s32.totalorder %s29, 1
      %p178 = scmp.ne.s32.totalorder %s173, %s175
      %p179 = scmp.eq.s32.totalorder %s29, 0
      %p180 = por %p178, %p179
      %p181 = scmp.ne.s32.totalorder %s173, %s175
      %p182 = scmp.eq.s32.totalorder %s34, 1
      %p183 = por %p181, %p182
      %p184 = scmp.ne.s32.totalorder %s175, %s176
      %p185 = scmp.eq.s32.totalorder %s34, 0
      %p186 = por %p184, %p185
      %p187 = scmp.ne.s32.totalorder %s175, %s176
      %p188 = scmp.eq.s32.totalorder %s35, 1
      %p189 = por %p187, %p188
      %p191 = scmp.ne.s32.totalorder %s176, %s190
      %p192 = scmp.eq.s32.totalorder %s35, 0
      %p193 = por %p191, %p192
      %s195 = sadd.s32 %s194, 1
      %p198 = scmp.eq.s32.totalorder %s29, 1
      %p199 = scmp.ne.s32.totalorder %s194, %s196
      %p200 = scmp.eq.s32.totalorder %s29, 0
      %p201 = por %p199, %p200
      %p202 = scmp.ne.s32.totalorder %s194, %s196
      %p203 = scmp.eq.s32.totalorder %s34, 1
      %p204 = por %p202, %p203
      %p205 = scmp.ne.s32.totalorder %s196, %s197
      %p206 = scmp.eq.s32.totalorder %s34, 0
      %p207 = por %p205, %p206
      %p208 = scmp.ne.s32.totalorder %s196, %s197
      %p209 = scmp.eq.s32.totalorder %s35, 1
      %p210 = por %p208, %p209
      %p212 = scmp.ne.s32.totalorder %s197, %s211
      %p213 = scmp.eq.s32.totalorder %s35, 0
      %p214 = por %p212, %p213
      %s216 = sadd.s32 %s215, 1
      %p219 = scmp.eq.s32.totalorder %s29, 1
      %p220 = scmp.ne.s32.totalorder %s215, %s217
      %p221 = scmp.eq.s32.totalorder %s29, 0
      %p222 = por %p220, %p221
      %p223 = scmp.ne.s32.totalorder %s215, %s217
      %p224 = scmp.eq.s32.totalorder %s34, 1
      %p225 = por %p223, %p224
      %p226 = scmp.ne.s32.totalorder %s217, %s218
      %p227 = scmp.eq.s32.totalorder %s34, 0
      %p228 = por %p226, %p227
      %p229 = scmp.ne.s32.totalorder %s217, %s218
      %p230 = scmp.eq.s32.totalorder %s35, 1
      %p231 = por %p229, %p230
      %p233 = scmp.ne.s32.totalorder %s218, %s232
      %p234 = scmp.eq.s32.totalorder %s35, 0
      %p235 = por %p233, %p234
      %s237 = sadd.s32 %s236, 1
      %p240 = scmp.eq.s32.totalorder %s29, 1
      %p241 = scmp.ne.s32.totalorder %s236, %s238
      %p242 = scmp.eq.s32.totalorder %s29, 0
      %p243 = por %p241, %p242
      %p244 = scmp.ne.s32.totalorder %s236, %s238
      %p245 = scmp.eq.s32.totalorder %s34, 1
      %p246 = por %p244, %p245
      %p247 = scmp.ne.s32.totalorder %s238, %s239
      %p248 = scmp.eq.s32.totalorder %s34, 0
      %p249 = por %p247, %p248
      %p250 = scmp.ne.s32.totalorder %s238, %s239
      %p251 = scmp.eq.s32.totalorder %s35, 1
      %p252 = por %p250, %p251
      %p254 = scmp.ne.s32.totalorder %s239, %s253
      %p255 = scmp.eq.s32.totalorder %s35, 0
      %p256 = por %p254, %p255
      %s258 = sadd.s32 %s257, 1
      %p261 = scmp.eq.s32.totalorder %s29, 1
      %p262 = scmp.ne.s32.totalorder %s257, %s259
      %p263 = scmp.eq.s32.totalorder %s29, 0
      %p264 = por %p262, %p263
      %p265 = scmp.ne.s32.totalorder %s257, %s259
      %p266 = scmp.eq.s32.totalorder %s34, 1
      %p267 = por %p265, %p266
      %p268 = scmp.ne.s32.totalorder %s259, %s260
      %p269 = scmp.eq.s32.totalorder %s34, 0
      %p270 = por %p268, %p269
      %p271 = scmp.ne.s32.totalorder %s259, %s260
      %p272 = scmp.eq.s32.totalorder %s35, 1
      %p273 = por %p271, %p272
      %p275 = scmp.ne.s32.totalorder %s260, %s274
      %p276 = scmp.eq.s32.totalorder %s35, 0
      %p277 = por %p275, %p276
      %s279 = sadd.s32 %s278, 1
      %p282 = scmp.eq.s32.totalorder %s29, 1
      %p283 = scmp.ne.s32.totalorder %s278, %s280
      %p284 = scmp.eq.s32.totalorder %s29, 0
      %p285 = por %p283, %p284
      %p286 = scmp.ne.s32.totalorder %s278, %s280
      %p287 = scmp.eq.s32.totalorder %s34, 1
      %p288 = por %p286, %p287
      %p289 = scmp.ne.s32.totalorder %s280, %s281
      %p290 = scmp.eq.s32.totalorder %s34, 0
      %p291 = por %p289, %p290
      %p292 = scmp.ne.s32.totalorder %s280, %s281
      %p293 = scmp.eq.s32.totalorder %s35, 1
      %p294 = por %p292, %p293
      %p296 = scmp.ne.s32.totalorder %s281, %s295
      %p297 = scmp.eq.s32.totalorder %s35, 0
      %p298 = por %p296, %p297
      %s300 = sadd.s32 %s299, 1
      %p303 = scmp.eq.s32.totalorder %s29, 1
      %p304 = scmp.ne.s32.totalorder %s299, %s301
      %p305 = scmp.eq.s32.totalorder %s29, 0
      %p306 = por %p304, %p305
      %p307 = scmp.ne.s32.totalorder %s299, %s301
      %p308 = scmp.eq.s32.totalorder %s34, 1
      %p309 = por %p307, %p308
      %p310 = scmp.ne.s32.totalorder %s301, %s302
      %p311 = scmp.eq.s32.totalorder %s34, 0
      %p312 = por %p310, %p311
      %p313 = scmp.ne.s32.totalorder %s301, %s302
      %p314 = scmp.eq.s32.totalorder %s35, 1
      %p315 = por %p313, %p314
      %p317 = scmp.ne.s32.totalorder %s302, %s316
      %p318 = scmp.eq.s32.totalorder %s35, 0
      %p319 = por %p317, %p318
      %s321 = sadd.s32 %s320, 1
      %p324 = scmp.eq.s32.totalorder %s29, 1
      %p325 = scmp.ne.s32.totalorder %s320, %s322
      %p326 = scmp.eq.s32.totalorder %s29, 0
      %p327 = por %p325, %p326
      %p328 = scmp.ne.s32.totalorder %s320, %s322
      %p329 = scmp.eq.s32.totalorder %s34, 1
      %p330 = por %p328, %p329
      %p331 = scmp.ne.s32.totalorder %s322, %s323
      %p332 = scmp.eq.s32.totalorder %s34, 0
      %p333 = por %p331, %p332
      %p334 = scmp.ne.s32.totalorder %s322, %s323
      %p335 = scmp.eq.s32.totalorder %s35, 1
      %p336 = por %p334, %p335
      %p338 = scmp.ne.s32.totalorder %s323, %s337
      %p339 = scmp.eq.s32.totalorder %s35, 0
      %p340 = por %p338, %p339
      %s342 = sadd.s32 %s341, 1
      %p345 = scmp.eq.s32.totalorder %s29, 1
      %p346 = scmp.ne.s32.totalorder %s341, %s343
      %p347 = scmp.eq.s32.totalorder %s29, 0
      %p348 = por %p346, %p347
      %p349 = scmp.ne.s32.totalorder %s341, %s343
      %p350 = scmp.eq.s32.totalorder %s34, 1
      %p351 = por %p349, %p350
      %p352 = scmp.ne.s32.totalorder %s343, %s344
      %p353 = scmp.eq.s32.totalorder %s34, 0
      %p354 = por %p352, %p353
      %p355 = scmp.ne.s32.totalorder %s343, %s344
      %p356 = scmp.eq.s32.totalorder %s35, 1
      %p357 = por %p355, %p356
      %p359 = scmp.ne.s32.totalorder %s344, %s358
      %p360 = scmp.eq.s32.totalorder %s35, 0
      %p361 = por %p359, %p360
      %s363 = sadd.s32 %s362, 1
      %p366 = scmp.eq.s32.totalorder %s29, 1
      %p367 = scmp.ne.s32.totalorder %s362, %s364
      %p368 = scmp.eq.s32.totalorder %s29, 0
      %p369 = por %p367, %p368
      %p370 = scmp.ne.s32.totalorder %s362, %s364
      %p371 = scmp.eq.s32.totalorder %s34, 1
      %p372 = por %p370, %p371
      %p373 = scmp.ne.s32.totalorder %s364, %s365
      %p374 = scmp.eq.s32.totalorder %s34, 0
      %p375 = por %p373, %p374
      %p376 = scmp.ne.s32.totalorder %s364, %s365
      %p377 = scmp.eq.s32.totalorder %s35, 1
      %p378 = por %p376, %p377
      %p380 = scmp.ne.s32.totalorder %s365, %s379
      %p381 = scmp.eq.s32.totalorder %s35, 0
      %p382 = por %p380, %p381
      %s384 = sadd.s32 %s383, 1
      %p387 = scmp.eq.s32.totalorder %s29, 1
      %p388 = scmp.ne.s32.totalorder %s383, %s385
      %p389 = scmp.eq.s32.totalorder %s29, 0
      %p390 = por %p388, %p389
      %p391 = scmp.ne.s32.totalorder %s383, %s385
      %p392 = scmp.eq.s32.totalorder %s34, 1
      %p393 = por %p391, %p392
      %p394 = scmp.ne.s32.totalorder %s385, %s386
      %p395 = scmp.eq.s32.totalorder %s34, 0
      %p396 = por %p394, %p395
      %p397 = scmp.ne.s32.totalorder %s385, %s386
      %p398 = scmp.eq.s32.totalorder %s35, 1
      %p399 = por %p397, %p398
      %p401 = scmp.ne.s32.totalorder %s386, %s400
      %p402 = scmp.eq.s32.totalorder %s35, 0
      %p403 = por %p401, %p402
      %s405 = sadd.s32 %s404, 1
      %p408 = scmp.eq.s32.totalorder %s29, 1
      %p409 = scmp.ne.s32.totalorder %s404, %s406
      %p410 = scmp.eq.s32.totalorder %s29, 0
      %p411 = por %p409, %p410
      %p412 = scmp.ne.s32.totalorder %s404, %s406
      %p413 = scmp.eq.s32.totalorder %s34, 1
      %p414 = por %p412, %p413
      %p415 = scmp.ne.s32.totalorder %s406, %s407
      %p416 = scmp.eq.s32.totalorder %s34, 0
      %p417 = por %p415, %p416
      %p418 = scmp.ne.s32.totalorder %s406, %s407
      %p419 = scmp.eq.s32.totalorder %s35, 1
      %p420 = por %p418, %p419
      %p422 = scmp.ne.s32.totalorder %s407, %s421
      %p423 = scmp.eq.s32.totalorder %s35, 0
      %p424 = por %p422, %p423
      %s426 = sadd.s32 %s425, 1
      %p429 = scmp.eq.s32.totalorder %s29, 1
      %p430 = scmp.ne.s32.totalorder %s425, %s427
      %p431 = scmp.eq.s32.totalorder %s29, 0
      %p432 = por %p430, %p431
      %p433 = scmp.ne.s32.totalorder %s425, %s427
      %p434 = scmp.eq.s32.totalorder %s34, 1
      %p435 = por %p433, %p434
      %p436 = scmp.ne.s32.totalorder %s427, %s428
      %p437 = scmp.eq.s32.totalorder %s34, 0
      %p438 = por %p436, %p437
      %p439 = scmp.ne.s32.totalorder %s427, %s428
      %p440 = scmp.eq.s32.totalorder %s35, 1
      %p441 = por %p439, %p440
      %p443 = scmp.ne.s32.totalorder %s428, %s442
      %p444 = scmp.eq.s32.totalorder %s35, 0
      %p445 = por %p443, %p444
      %s447 = sadd.s32 %s446, 1
      %p450 = scmp.eq.s32.totalorder %s29, 1
      %p451 = scmp.ne.s32.totalorder %s446, %s448
      %p452 = scmp.eq.s32.totalorder %s29, 0
      %p453 = por %p451, %p452
      %p454 = scmp.ne.s32.totalorder %s446, %s448
      %p455 = scmp.eq.s32.totalorder %s34, 1
      %p456 = por %p454, %p455
      %p457 = scmp.ne.s32.totalorder %s448, %s449
      %p458 = scmp.eq.s32.totalorder %s34, 0
      %p459 = por %p457, %p458
      %p460 = scmp.ne.s32.totalorder %s448, %s449
      %p461 = scmp.eq.s32.totalorder %s35, 1
      %p462 = por %p460, %p461
      %p464 = scmp.ne.s32.totalorder %s449, %s463
      %p465 = scmp.eq.s32.totalorder %s35, 0
      %p466 = por %p464, %p465
      %s467 = ssub.s32 %s29, %s36
      %p468 = scmp.eq.s32.totalorder %s467, 0
      %s470 = sadd.s32 %s469, 1
      %s471 = scalar_select %p468, %s469, %s470
      %p474 = pneg %p468
      %p475 = scmp.eq.s32.totalorder %s29, 1
      %p476 = por %p474, %p475
      %p477 = scmp.ne.s32.totalorder %s469, %s472
      %p478 = scmp.eq.s32.totalorder %s29, 0
      %p479 = por %p477, %p478
      %p480 = scmp.ne.s32.totalorder %s469, %s472
      %p481 = scmp.eq.s32.totalorder %s34, 1
      %p482 = por %p480, %p481
      %p483 = scmp.ne.s32.totalorder %s472, %s473
      %p484 = scmp.eq.s32.totalorder %s34, 0
      %p485 = por %p483, %p484
      %p486 = scmp.ne.s32.totalorder %s472, %s473
      %p487 = scmp.eq.s32.totalorder %s35, 1
      %p488 = por %p486, %p487
      %p490 = scmp.ne.s32.totalorder %s473, %s489
      %p491 = scmp.eq.s32.totalorder %s35, 0
      %p492 = por %p490, %p491
      %p493 = scmp.le.s32.totalorder 1, %s29
      %p494 = scmp.lt.s32.totalorder %s29, 3
      %p495 = pnand %p493, %p494
      %p496 = pneg %p495
      // Predicated region
      $region9: #{deepsleepnet_feature.1} parent=5 // pred_check
        _
      $region10: #{deepsleepnet_feature.1} parent=5 // pred_check_branch
        %498 = sbr.rel (%p495) target = $region12
      $region11: #{deepsleepnet_feature.1} parent=5 // pred_region
        %s499 = ssub.s32 %s29, 1
        // Predicated region
        $region13: #{deepsleepnet_feature.1} parent=11 // pred_check
          %p500 = pneg %p102
        $region14: #{deepsleepnet_feature.1} parent=11 // pred_check_branch
          %502 = sbr.rel (%p500) target = $region16
        $region15: #{deepsleepnet_feature.1} parent=11 // pred_region
          %s504 = ssub.s32 576, 576
          %505 = vsyncadd [#allocation5], %s504
          %s506 = sshll.u32 [#allocation4], 4
          %s507 = int_to_ptr.vmem [resolvable:$true] %s506
          %512 = dma.hbm_to_vmem [thread:$0]  %s2, 576, %s507, [#allocation5], 64, 64, 4
        $region16: #{deepsleepnet_feature.1} parent=11 // pred_fallthru
          _
        // Predicated region
        $region17: #{deepsleepnet_feature.1} parent=11 // pred_check
          %p513 = pneg %p123
        $region18: #{deepsleepnet_feature.1} parent=11 // pred_check_branch
          %515 = sbr.rel (%p513) target = $region20
        $region19: #{deepsleepnet_feature.1} parent=11 // pred_region
          _
        $region20: #{deepsleepnet_feature.1} parent=11 // pred_fallthru
          _
        // Predicated region
        $region21: #{deepsleepnet_feature.1} parent=11 // pred_check
          %p516 = pneg %p144
        $region22: #{deepsleepnet_feature.1} parent=11 // pred_check_branch
          %518 = sbr.rel (%p516) target = $region24
        $region23: #{deepsleepnet_feature.1} parent=11 // pred_region
          _
        $region24: #{deepsleepnet_feature.1} parent=11 // pred_fallthru
          _
        // Predicated region
        $region25: #{deepsleepnet_feature.1} parent=11 // pred_check
          %p519 = pneg %p165
        $region26: #{deepsleepnet_feature.1} parent=11 // pred_check_branch
          %521 = sbr.rel (%p519) target = $region28
        $region27: #{deepsleepnet_feature.1} parent=11 // pred_region
          _
        $region28: #{deepsleepnet_feature.1} parent=11 // pred_fallthru
          _
        // Predicated region
        $region29: #{deepsleepnet_feature.1} parent=11 // pred_check
          %p522 = pneg %p186
        $region30: #{deepsleepnet_feature.1} parent=11 // pred_check_branch
          %524 = sbr.rel (%p522) target = $region32
        $region31: #{deepsleepnet_feature.1} parent=11 // pred_region
          _
        $region32: #{deepsleepnet_feature.1} parent=11 // pred_fallthru
          _
        // Predicated region
        $region33: #{deepsleepnet_feature.1} parent=11 // pred_check
          %p525 = pneg %p207
        $region34: #{deepsleepnet_feature.1} parent=11 // pred_check_branch
          %527 = sbr.rel (%p525) target = $region36
        $region35: #{deepsleepnet_feature.1} parent=11 // pred_region
          _
        $region36: #{deepsleepnet_feature.1} parent=11 // pred_fallthru
          _
        // Predicated region
        $region37: #{deepsleepnet_feature.1} parent=11 // pred_check
          %p528 = pneg %p228
        $region38: #{deepsleepnet_feature.1} parent=11 // pred_check_branch
          %530 = sbr.rel (%p528) target = $region40
        $region39: #{deepsleepnet_feature.1} parent=11 // pred_region
          %s532 = ssub.s32 3584, 3584
          %533 = vsyncadd [#allocation7], %s532
          %s534 = sshll.u32 [#allocation6], 4
          %s535 = int_to_ptr.vmem [resolvable:$true] %s534
          %540 = dma.hbm_to_vmem [thread:$0]  %s8, 3584, %s535, [#allocation7], 64, 64, 4
        $region40: #{deepsleepnet_feature.1} parent=11 // pred_fallthru
          _
        // Predicated region
        $region41: #{deepsleepnet_feature.1} parent=11 // pred_check
          %p541 = pneg %p249
        $region42: #{deepsleepnet_feature.1} parent=11 // pred_check_branch
          %543 = sbr.rel (%p541) target = $region44
        $region43: #{deepsleepnet_feature.1} parent=11 // pred_region
          _
        $region44: #{deepsleepnet_feature.1} parent=11 // pred_fallthru
          _
        // Predicated region
        $region45: #{deepsleepnet_feature.1} parent=11 // pred_check
          %p544 = pneg %p270
        $region46: #{deepsleepnet_feature.1} parent=11 // pred_check_branch
          %546 = sbr.rel (%p544) target = $region48
        $region47: #{deepsleepnet_feature.1} parent=11 // pred_region
          _
        $region48: #{deepsleepnet_feature.1} parent=11 // pred_fallthru
          _
        // Predicated region
        $region49: #{deepsleepnet_feature.1} parent=11 // pred_check
          %p547 = pneg %p291
        $region50: #{deepsleepnet_feature.1} parent=11 // pred_check_branch
          %549 = sbr.rel (%p547) target = $region52
        $region51: #{deepsleepnet_feature.1} parent=11 // pred_region
          %s551 = ssub.s32 24576, 24576
          %552 = vsyncadd [#allocation7], %s551
          %s553 = sshll.u32 [#allocation8], 4
          %s554 = int_to_ptr.vmem [resolvable:$true] %s553
          %559 = dma.hbm_to_vmem [thread:$0]  %s11, 24576, %s554, [#allocation7], 64, 64, 4
        $region52: #{deepsleepnet_feature.1} parent=11 // pred_fallthru
          _
        // Predicated region
        $region53: #{deepsleepnet_feature.1} parent=11 // pred_check
          %p560 = pneg %p312
        $region54: #{deepsleepnet_feature.1} parent=11 // pred_check_branch
          %562 = sbr.rel (%p560) target = $region56
        $region55: #{deepsleepnet_feature.1} parent=11 // pred_region
          _
        $region56: #{deepsleepnet_feature.1} parent=11 // pred_fallthru
          _
        // Predicated region
        $region57: #{deepsleepnet_feature.1} parent=11 // pred_check
          %p563 = pneg %p333
        $region58: #{deepsleepnet_feature.1} parent=11 // pred_check_branch
          %565 = sbr.rel (%p563) target = $region60
        $region59: #{deepsleepnet_feature.1} parent=11 // pred_region
          _
        $region60: #{deepsleepnet_feature.1} parent=11 // pred_fallthru
          _
        // Predicated region
        $region61: #{deepsleepnet_feature.1} parent=11 // pred_check
          %p566 = pneg %p354
        $region62: #{deepsleepnet_feature.1} parent=11 // pred_check_branch
          %568 = sbr.rel (%p566) target = $region64
        $region63: #{deepsleepnet_feature.1} parent=11 // pred_region
          %s570 = ssub.s32 2048, 2048
          %571 = vsyncadd [#allocation10], %s570
          %s572 = sshll.u32 [#allocation9], 4
          %s573 = int_to_ptr.vmem [resolvable:$true] %s572
          %578 = dma.hbm_to_vmem [thread:$0]  %s14, 2048, %s573, [#allocation10], 64, 64, 4
        $region64: #{deepsleepnet_feature.1} parent=11 // pred_fallthru
          _
        // Predicated region
        $region65: #{deepsleepnet_feature.1} parent=11 // pred_check
          %p579 = pneg %p375
        $region66: #{deepsleepnet_feature.1} parent=11 // pred_check_branch
          %581 = sbr.rel (%p579) target = $region68
        $region67: #{deepsleepnet_feature.1} parent=11 // pred_region
          _
        $region68: #{deepsleepnet_feature.1} parent=11 // pred_fallthru
          _
        // Predicated region
        $region69: #{deepsleepnet_feature.1} parent=11 // pred_check
          %p582 = pneg %p396
        $region70: #{deepsleepnet_feature.1} parent=11 // pred_check_branch
          %584 = sbr.rel (%p582) target = $region72
        $region71: #{deepsleepnet_feature.1} parent=11 // pred_region
          %s586 = ssub.s32 3072, 3072
          %587 = vsyncadd [#allocation10], %s586
          %s588 = sshll.u32 [#allocation11], 4
          %s589 = int_to_ptr.vmem [resolvable:$true] %s588
          %594 = dma.hbm_to_vmem [thread:$0]  %s16, 3072, %s589, [#allocation10], 64, 64, 4
        $region72: #{deepsleepnet_feature.1} parent=11 // pred_fallthru
          _
        // Predicated region
        $region73: #{deepsleepnet_feature.1} parent=11 // pred_check
          %p595 = pneg %p417
        $region74: #{deepsleepnet_feature.1} parent=11 // pred_check_branch
          %597 = sbr.rel (%p595) target = $region76
        $region75: #{deepsleepnet_feature.1} parent=11 // pred_region
          _
        $region76: #{deepsleepnet_feature.1} parent=11 // pred_fallthru
          _
        // Predicated region
        $region77: #{deepsleepnet_feature.1} parent=11 // pred_check
          %p598 = pneg %p438
        $region78: #{deepsleepnet_feature.1} parent=11 // pred_check_branch
          %600 = sbr.rel (%p598) target = $region80
        $region79: #{deepsleepnet_feature.1} parent=11 // pred_region
          _
        $region80: #{deepsleepnet_feature.1} parent=11 // pred_fallthru
          _
        // Predicated region
        $region81: #{deepsleepnet_feature.1} parent=11 // pred_check
          %p601 = pneg %p459
        $region82: #{deepsleepnet_feature.1} parent=11 // pred_check_branch
          %603 = sbr.rel (%p601) target = $region84
        $region83: #{deepsleepnet_feature.1} parent=11 // pred_region
          _
        $region84: #{deepsleepnet_feature.1} parent=11 // pred_fallthru
          _
      $region12: #{deepsleepnet_feature.1} parent=5 // pred_fallthru
        _
      %p604 = scmp.lt.s32.totalorder %s29, 2
      // Predicated region
      $region85: #{deepsleepnet_feature.1} parent=5 // pred_check
        %p605 = pneg %p604
      $region86: #{deepsleepnet_feature.1} parent=5 // pred_check_branch
        %607 = sbr.rel (%p605) target = $region88
      $region87: #{deepsleepnet_feature.1} parent=5 // pred_region
        // Predicated region
        $region89: #{deepsleepnet_feature.1} parent=87 // pred_check
          %p608 = pneg %p49
        $region90: #{deepsleepnet_feature.1} parent=87 // pred_check_branch
          %610 = sbr.rel (%p608) target = $region92
        $region91: #{deepsleepnet_feature.1} parent=87 // pred_region
          %p611 = scmp.lt.s32.totalorder %s29, 1
          %s612 = scalar_select %p611, %s29, 1
          %s613 = smul.addr %s612, 26
          %s614 = smul.addr %s613, 8
          %s615 = scalar_lea.vmem %s0, %s614
        $region92: #{deepsleepnet_feature.1} parent=87 // pred_fallthru
          _
        // Predicated region
        $region93: #{deepsleepnet_feature.1} parent=87 // pred_check
          %p616 = pneg %p75
        $region94: #{deepsleepnet_feature.1} parent=87 // pred_check_branch
          %618 = sbr.rel (%p616) target = $region96
        $region95: #{deepsleepnet_feature.1} parent=87 // pred_region
          %p619 = scmp.lt.s32.totalorder %s29, 1
          %s620 = scalar_select %p619, %s29, 1
          %s621 = smul.addr %s620, 4
          %s622 = smul.addr %s621, 8
          %s623 = scalar_lea.vmem %s1, %s622
        $region96: #{deepsleepnet_feature.1} parent=87 // pred_fallthru
          _
      $region88: #{deepsleepnet_feature.1} parent=5 // pred_fallthru
        _
      %p624 = scmp.le.s32.totalorder 1, %s29
      %p625 = scmp.lt.s32.totalorder %s29, 3
      %p626 = pnand %p624, %p625
      %p627 = pneg %p626
      // Predicated region
      $region97: #{deepsleepnet_feature.1} parent=5 // pred_check
        _
      $region98: #{deepsleepnet_feature.1} parent=5 // pred_check_branch
        %629 = sbr.rel (%p626) target = $region100
      $region99: #{deepsleepnet_feature.1} parent=5 // pred_region
        %s630 = ssub.s32 %s29, 1
        // Predicated region
        $region101: #{deepsleepnet_feature.1} parent=99 // pred_check
          %p631 = pneg %p102
        $region102: #{deepsleepnet_feature.1} parent=99 // pred_check_branch
          %633 = sbr.rel (%p631) target = $region104
        $region103: #{deepsleepnet_feature.1} parent=99 // pred_region
          %634 = dma.done [#allocation5], 576
        $region104: #{deepsleepnet_feature.1} parent=99 // pred_fallthru
          _
        // Predicated region
        $region105: #{deepsleepnet_feature.1} parent=99 // pred_check
          %p635 = pneg %p228
        $region106: #{deepsleepnet_feature.1} parent=99 // pred_check_branch
          %637 = sbr.rel (%p635) target = $region108
        $region107: #{deepsleepnet_feature.1} parent=99 // pred_region
          %638 = dma.done [#allocation7], 3584
        $region108: #{deepsleepnet_feature.1} parent=99 // pred_fallthru
          _
        // Predicated region
        $region109: #{deepsleepnet_feature.1} parent=99 // pred_check
          %p639 = pneg %p291
        $region110: #{deepsleepnet_feature.1} parent=99 // pred_check_branch
          %641 = sbr.rel (%p639) target = $region112
        $region111: #{deepsleepnet_feature.1} parent=99 // pred_region
          %642 = dma.done [#allocation7], 24576
        $region112: #{deepsleepnet_feature.1} parent=99 // pred_fallthru
          _
        // Predicated region
        $region113: #{deepsleepnet_feature.1} parent=99 // pred_check
          %p643 = pneg %p354
        $region114: #{deepsleepnet_feature.1} parent=99 // pred_check_branch
          %645 = sbr.rel (%p643) target = $region116
        $region115: #{deepsleepnet_feature.1} parent=99 // pred_region
          %646 = dma.done [#allocation10], 2048
        $region116: #{deepsleepnet_feature.1} parent=99 // pred_fallthru
          _
        // Predicated region
        $region117: #{deepsleepnet_feature.1} parent=99 // pred_check
          %p647 = pneg %p396
        $region118: #{deepsleepnet_feature.1} parent=99 // pred_check_branch
          %649 = sbr.rel (%p647) target = $region120
        $region119: #{deepsleepnet_feature.1} parent=99 // pred_region
          %650 = dma.done [#allocation10], 3072
        $region120: #{deepsleepnet_feature.1} parent=99 // pred_fallthru
          _
        %p651 = scmp.lt.s32.totalorder %s34, 1
        %s652 = scalar_select %p651, %s34, 1
        %s653 = smul.addr %s652, 26
        %s654 = smul.addr %s653, 8
        %s655 = scalar_lea.vmem %s0, %s654
        %p656 = pneg %p55
        %p657 = pneg %p52
        %p658 = scmp.lt.s32.totalorder %s34, 1
        %s659 = scalar_select %p658, %s34, 1
        %s660 = smul.addr %s659, 4
        %s661 = smul.addr %s660, 8
        %s662 = scalar_lea.vmem %s1, %s661
        %p663 = pneg %p81
        %p664 = pneg %p78
        %p665 = pneg %p102
        %p666 = pneg %p99
        %p667 = pneg %p123
        %p668 = pneg %p120
        %p669 = pneg %p144
        %p670 = pneg %p141
        %p671 = pneg %p165
        %p672 = pneg %p162
        %p673 = pneg %p186
        %p674 = pneg %p183
        %p675 = pneg %p207
        %p676 = pneg %p204
        %p677 = pneg %p228
        %p678 = pneg %p225
        %p679 = pneg %p249
        %p680 = pneg %p246
        %p681 = pneg %p270
        %p682 = pneg %p267
        %p683 = pneg %p291
        %p684 = pneg %p288
        %p685 = pneg %p312
        %p686 = pneg %p309
        %p687 = pneg %p333
        %p688 = pneg %p330
        %p689 = pneg %p354
        %p690 = pneg %p351
        %p691 = pneg %p375
        %p692 = pneg %p372
        %p693 = pneg %p396
        %p694 = pneg %p393
        %p695 = pneg %p417
        %p696 = pneg %p414
        %p697 = pneg %p438
        %p698 = pneg %p435
        %p699 = pneg %p459
        %p700 = pneg %p456
        %p701 = pneg %p485
        %p702 = pneg %p482
        %p703 = scmp.lt.s32.totalorder %s34, 1
        %s704 = scalar_select %p703, %s34, 1
        %s705 = smul.addr %s704, 8
        %s706 = scalar_lea.vmem %s20, %s705
        %p707 = scmp.lt.s32.totalorder %s34, 1
        %s708 = scalar_select %p707, %s34, 1
        %s709 = smul.addr %s708, 26
        %s710 = smul.addr %s709, 8
        %s711 = scalar_lea.vmem %s0, %s710
        %p712 = scmp.lt.s32.totalorder %s34, 1
        %s713 = scalar_select %p712, %s34, 1
        %s714 = smul.addr %s713, 4
        %s715 = smul.addr %s714, 8
        %s716 = scalar_lea.vmem %s1, %s715
        %p717 = scmp.lt.s32.totalorder %s34, 1
        %s718 = scalar_select %p717, %s34, 1
        %s719 = smul.addr %s718, 8
        %s720 = scalar_lea.vmem %s20, %s719
        %v722 = vld [vmem:[%s711] sm:$0xff]
        %v723 = vld [vmem:[%s711 + $0x8] sm:$0xff]
        %v724 = vld [vmem:[%s711 + $0x10] sm:$0xff]
        %v725 = vld [vmem:[%s711 + $0x18] sm:$0xff]
        %v726 = vld [vmem:[%s711 + $0x20] sm:$0xff]
        %v727 = vld [vmem:[%s711 + $0x28] sm:$0xff]
        %v728 = vld [vmem:[%s711 + $0x30] sm:$0xff]
        %v729 = vld [vmem:[%s711 + $0x38] sm:$0xff]
        %v730 = vld [vmem:[%s711 + $0x40] sm:$0xff]
        %v731 = vld [vmem:[%s711 + $0x48] sm:$0xff]
        %v732 = vld [vmem:[%s711 + $0x50] sm:$0xff]
        %v733 = vld [vmem:[%s711 + $0x58] sm:$0xff]
        %v734 = vld [vmem:[%s711 + $0x60] sm:$0xff]
        %v735 = vld [vmem:[%s711 + $0x68] sm:$0xff]
        %v736 = vld [vmem:[%s711 + $0x70] sm:$0xff]
        %v737 = vld [vmem:[%s711 + $0x78] sm:$0xff]
        %v738 = vld [vmem:[%s711 + $0x80] sm:$0xff]
        %v739 = vld [vmem:[%s711 + $0x88] sm:$0xff]
        %v740 = vld [vmem:[%s711 + $0x90] sm:$0xff]
        %v741 = vld [vmem:[%s711 + $0x98] sm:$0xff]
        %v742 = vld [vmem:[%s711 + $0xa0] sm:$0xff]
        %v743 = vld [vmem:[%s711 + $0xa8] sm:$0xff]
        %v744 = vld [vmem:[%s711 + $0xb0] sm:$0xff]
        %v745 = vld [vmem:[%s711 + $0xb8] sm:$0xff]
        %v746 = vld [vmem:[%s711 + $0xc0] sm:$0xff]
        %v747 = vpack.c.bf16 %v723, %v722
        %v748 = vpack.c.bf16 %v725, %v724
        %v749 = vpack.c.bf16 %v727, %v726
        %v750 = vpack.c.bf16 %v729, %v728
        %v751 = vpack.c.bf16 %v731, %v730
        %v752 = vpack.c.bf16 %v733, %v732
        %v753 = vpack.c.bf16 %v735, %v734
        %v754 = vpack.c.bf16 %v737, %v736
        %v755 = vpack.c.bf16 %v739, %v738
        %v756 = vpack.c.bf16 %v741, %v740
        %v757 = vpack.c.bf16 %v743, %v742
        %v758 = vpack.c.bf16 %v745, %v744
        %v759 = vpack.c.bf16 %v746, %v746
        %v760 = vld [vmem:[#allocation4] sm:$0xf]
        %v761 = vld [vmem:[%s711 + $0x1] sm:$0xff]
        %v762 = vld [vmem:[%s711 + $0x9] sm:$0xff]
        %v763 = vld [vmem:[%s711 + $0x11] sm:$0xff]
        %v764 = vld [vmem:[%s711 + $0x19] sm:$0xff]
        %v765 = vld [vmem:[%s711 + $0x21] sm:$0xff]
        %v766 = vld [vmem:[%s711 + $0x29] sm:$0xff]
        %v767 = vld [vmem:[%s711 + $0x31] sm:$0xff]
        %v768 = vld [vmem:[%s711 + $0x39] sm:$0xff]
        %v769 = vld [vmem:[%s711 + $0x41] sm:$0xff]
        %v770 = vld [vmem:[%s711 + $0x49] sm:$0xff]
        %v771 = vld [vmem:[%s711 + $0x51] sm:$0xff]
        %v772 = vld [vmem:[%s711 + $0x59] sm:$0xff]
        %v773 = vld [vmem:[%s711 + $0x61] sm:$0xff]
        %v774 = vld [vmem:[%s711 + $0x69] sm:$0xff]
        %v775 = vld [vmem:[%s711 + $0x71] sm:$0xff]
        %v776 = vld [vmem:[%s711 + $0x79] sm:$0xff]
        %v777 = vld [vmem:[%s711 + $0x81] sm:$0xff]
        %v778 = vld [vmem:[%s711 + $0x89] sm:$0xff]
        %v779 = vld [vmem:[%s711 + $0x91] sm:$0xff]
        %v780 = vld [vmem:[%s711 + $0x99] sm:$0xff]
        %v781 = vld [vmem:[%s711 + $0xa1] sm:$0xff]
        %v782 = vld [vmem:[%s711 + $0xa9] sm:$0xff]
        %v783 = vld [vmem:[%s711 + $0xb1] sm:$0xff]
        %v784 = vld [vmem:[%s711 + $0xb9] sm:$0xff]
        %v785 = vld [vmem:[%s711 + $0xc1] sm:$0xff]
        %v786 = vpack.c.bf16 %v762, %v761
        %v787 = vpack.c.bf16 %v764, %v763
        %v788 = vpack.c.bf16 %v766, %v765
        %v789 = vpack.c.bf16 %v768, %v767
        %v790 = vpack.c.bf16 %v770, %v769
        %v791 = vpack.c.bf16 %v772, %v771
        %v792 = vpack.c.bf16 %v774, %v773
        %v793 = vpack.c.bf16 %v776, %v775
        %v794 = vpack.c.bf16 %v778, %v777
        %v795 = vpack.c.bf16 %v780, %v779
        %v796 = vpack.c.bf16 %v782, %v781
        %v797 = vpack.c.bf16 %v784, %v783
        %v798 = vpack.c.bf16 %v785, %v785
        %s799 = scalar_lea.vmem [#allocation4], 4
        %v800 = vld [vmem:[%s799] sm:$0xf]
        %vm801 = vcmask 64512
        %v803 = vsel %vm801, %v786, 0
        %v806 = vsel %vm801, %v787, 0
        %v809 = vsel %vm801, %v788, 0
        %v812 = vsel %vm801, %v789, 0
        %v815 = vsel %vm801, %v790, 0
        %v818 = vsel %vm801, %v791, 0
        %v821 = vsel %vm801, %v792, 0
        %v824 = vsel %vm801, %v793, 0
        %v827 = vsel %vm801, %v794, 0
        %v830 = vsel %vm801, %v795, 0
        %v833 = vsel %vm801, %v796, 0
        %v836 = vsel %vm801, %v797, 0
        %v839 = vsel %vm801, %v798, 0
        %vm841 = vcmask 1043456
        %v843 = vsel %vm841, %v800, 0
        %845 = vmatprep.subr.bf16.mxu0 0
        %846 = vmatpush1.bf16.msra.mxu0 0
        %847 = vmatprep.subr.bf16.mxu0 0
        %848 = vmatpush1.bf16.msra.mxu0 0
        %849 = vmatprep.subr.bf16.mxu0 0
        %850 = vmatpush1.bf16.msra.mxu0 0
        %851 = vmatprep.subr.bf16.mxu0 0
        %852 = vmatpush1.bf16.msra.mxu0 0
        %853 = vmatprep.subr.bf16.mxu0 0
        %854 = vmatpush1.bf16.msra.mxu0 0
        %855 = vmatprep.subr.bf16.mxu0 0
        %856 = vmatpush1.bf16.msra.mxu0 0
        %857 = vmatprep.subr.bf16.mxu0 0
        %858 = vmatpush1.bf16.msra.mxu0 0
        %859 = vmatprep.subr.bf16.mxu0 0
        %860 = vmatpush1.bf16.msra.mxu0 %v843
        %861 = vmatprep.subr.bf16.mxu0 0
        %862 = vmatpush2.bf16.msra.mxu0 0
        %863 = vmatprep.subr.bf16.mxu0 0
        %864 = vmatpush2.bf16.msra.mxu0 0
        %865 = vmatprep.subr.bf16.mxu0 0
        %866 = vmatpush2.bf16.msra.mxu0 0
        %867 = vmatprep.subr.bf16.mxu0 0
        %868 = vmatpush2.bf16.msra.mxu0 0
        %869 = vmatprep.subr.bf16.mxu0 0
        %870 = vmatpush2.bf16.msra.mxu0 0
        %871 = vmatprep.subr.bf16.mxu0 0
        %872 = vmatpush2.bf16.msra.mxu0 0
        %873 = vmatprep.subr.bf16.mxu0 0
        %874 = vmatpush2.bf16.msra.mxu0 0
        %875 = vmatprep.subr.bf16.mxu0 0
        %876 = vmatpush2.bf16.msra.mxu0 0
        %877 = vmatprep.mubr.bf16.mxu0 0
        %878 = vmatmul.mubr.bf16.gmra.mxu0 %v803
        %v879 = vpop.f32.mrf.mxu0
        %v880 = vadd.f32 0.0, %v879
        %v881 = vpop.f32.mrf.mxu0
        %v882 = vpop.f32.mrf.mxu0
        %v883 = vadd.f32 0.0, %v882
        %v884 = vpop.f32.mrf.mxu0
        %885 = vmatprep.mubr.bf16.mxu0 0
        %886 = vmatmul.mubr.bf16.gmra.mxu0 %v806
        %v887 = vpop.f32.mrf.mxu0
        %v888 = vadd.f32 0.0, %v887
        %v889 = vpop.f32.mrf.mxu0
        %v890 = vpop.f32.mrf.mxu0
        %v891 = vadd.f32 0.0, %v890
        %v892 = vpop.f32.mrf.mxu0
        %893 = vmatprep.mubr.bf16.mxu0 0
        %894 = vmatmul.mubr.bf16.gmra.mxu0 %v809
        %v895 = vpop.f32.mrf.mxu0
        %v896 = vadd.f32 0.0, %v895
        %v897 = vpop.f32.mrf.mxu0
        %v898 = vpop.f32.mrf.mxu0
        %v899 = vadd.f32 0.0, %v898
        %v900 = vpop.f32.mrf.mxu0
        %901 = vmatprep.mubr.bf16.mxu0 0
        %902 = vmatmul.mubr.bf16.gmra.mxu0 %v812
        %v903 = vpop.f32.mrf.mxu0
        %v904 = vadd.f32 0.0, %v903
        %v905 = vpop.f32.mrf.mxu0
        %v906 = vpop.f32.mrf.mxu0
        %v907 = vadd.f32 0.0, %v906
        %v908 = vpop.f32.mrf.mxu0
        %909 = vmatprep.mubr.bf16.mxu0 0
        %910 = vmatmul.mubr.bf16.gmra.mxu0 %v815
        %v911 = vpop.f32.mrf.mxu0
        %v912 = vadd.f32 0.0, %v911
        %v913 = vpop.f32.mrf.mxu0
        %v914 = vpop.f32.mrf.mxu0
        %v915 = vadd.f32 0.0, %v914
        %v916 = vpop.f32.mrf.mxu0
        %917 = vmatprep.mubr.bf16.mxu0 0
        %918 = vmatmul.mubr.bf16.gmra.mxu0 %v818
        %v919 = vpop.f32.mrf.mxu0
        %v920 = vadd.f32 0.0, %v919
        %v921 = vpop.f32.mrf.mxu0
        %v922 = vpop.f32.mrf.mxu0
        %v923 = vadd.f32 0.0, %v922
        %v924 = vpop.f32.mrf.mxu0
        %925 = vmatprep.mubr.bf16.mxu0 0
        %926 = vmatmul.mubr.bf16.gmra.mxu0 %v821
        %v927 = vpop.f32.mrf.mxu0
        %v928 = vadd.f32 0.0, %v927
        %v929 = vpop.f32.mrf.mxu0
        %v930 = vpop.f32.mrf.mxu0
        %v931 = vadd.f32 0.0, %v930
        %v932 = vpop.f32.mrf.mxu0
        %933 = vmatprep.mubr.bf16.mxu0 0
        %934 = vmatmul.mubr.bf16.gmra.mxu0 %v824
        %v935 = vpop.f32.mrf.mxu0
        %v936 = vadd.f32 0.0, %v935
        %v937 = vpop.f32.mrf.mxu0
        %v938 = vpop.f32.mrf.mxu0
        %v939 = vadd.f32 0.0, %v938
        %v940 = vpop.f32.mrf.mxu0
        %941 = vmatprep.mubr.bf16.mxu0 0
        %942 = vmatmul.mubr.bf16.gmra.mxu0 %v827
        %v943 = vpop.f32.mrf.mxu0
        %v944 = vadd.f32 0.0, %v943
        %v945 = vpop.f32.mrf.mxu0
        %v946 = vpop.f32.mrf.mxu0
        %v947 = vadd.f32 0.0, %v946
        %v948 = vpop.f32.mrf.mxu0
        %949 = vmatprep.mubr.bf16.mxu0 0
        %950 = vmatmul.mubr.bf16.gmra.mxu0 %v830
        %v951 = vpop.f32.mrf.mxu0
        %v952 = vadd.f32 0.0, %v951
        %v953 = vpop.f32.mrf.mxu0
        %v954 = vpop.f32.mrf.mxu0
        %v955 = vadd.f32 0.0, %v954
        %v956 = vpop.f32.mrf.mxu0
        %957 = vmatprep.mubr.bf16.mxu0 0
        %958 = vmatmul.mubr.bf16.gmra.mxu0 %v833
        %v959 = vpop.f32.mrf.mxu0
        %v960 = vadd.f32 0.0, %v959
        %v961 = vpop.f32.mrf.mxu0
        %v962 = vpop.f32.mrf.mxu0
        %v963 = vadd.f32 0.0, %v962
        %v964 = vpop.f32.mrf.mxu0
        %965 = vmatprep.mubr.bf16.mxu0 0
        %966 = vmatmul.mubr.bf16.gmra.mxu0 %v836
        %v967 = vpop.f32.mrf.mxu0
        %v968 = vadd.f32 0.0, %v967
        %v969 = vpop.f32.mrf.mxu0
        %v970 = vpop.f32.mrf.mxu0
        %v971 = vadd.f32 0.0, %v970
        %v972 = vpop.f32.mrf.mxu0
        %973 = vmatprep.mubr.bf16.mxu0 0
        %974 = vmatmul.mubr.bf16.gmra.mxu0 %v839
        %v975 = vpop.f32.mrf.mxu0
        %v976 = vadd.f32 0.0, %v975
        %v977 = vpop.f32.mrf.mxu0
        %v978 = vpop.f32.mrf.mxu0
        %v979 = vpop.f32.mrf.mxu0
        %980 = vdwg.mxu0
        %v982 = vsel %vm801, %v747, 0
        %v985 = vsel %vm801, %v748, 0
        %v988 = vsel %vm801, %v749, 0
        %v991 = vsel %vm801, %v750, 0
        %v994 = vsel %vm801, %v751, 0
        %v997 = vsel %vm801, %v752, 0
        %v1000 = vsel %vm801, %v753, 0
        %v1003 = vsel %vm801, %v754, 0
        %v1006 = vsel %vm801, %v755, 0
        %v1009 = vsel %vm801, %v756, 0
        %v1012 = vsel %vm801, %v757, 0
        %v1015 = vsel %vm801, %v758, 0
        %v1018 = vsel %vm801, %v759, 0
        %v1021 = vsel %vm841, %v760, 0
        %1023 = vmatprep.subr.bf16.mxu0 0
        %1024 = vmatpush1.bf16.msra.mxu0 0
        %1025 = vmatprep.subr.bf16.mxu0 0
        %1026 = vmatpush1.bf16.msra.mxu0 0
        %1027 = vmatprep.subr.bf16.mxu0 0
        %1028 = vmatpush1.bf16.msra.mxu0 0
        %1029 = vmatprep.subr.bf16.mxu0 0
        %1030 = vmatpush1.bf16.msra.mxu0 0
        %1031 = vmatprep.subr.bf16.mxu0 0
        %1032 = vmatpush1.bf16.msra.mxu0 0
        %1033 = vmatprep.subr.bf16.mxu0 0
        %1034 = vmatpush1.bf16.msra.mxu0 0
        %1035 = vmatprep.subr.bf16.mxu0 0
        %1036 = vmatpush1.bf16.msra.mxu0 0
        %1037 = vmatprep.subr.bf16.mxu0 0
        %1038 = vmatpush1.bf16.msra.mxu0 %v1021
        %1039 = vmatprep.subr.bf16.mxu0 0
        %1040 = vmatpush2.bf16.msra.mxu0 0
        %1041 = vmatprep.subr.bf16.mxu0 0
        %1042 = vmatpush2.bf16.msra.mxu0 0
        %1043 = vmatprep.subr.bf16.mxu0 0
        %1044 = vmatpush2.bf16.msra.mxu0 0
        %1045 = vmatprep.subr.bf16.mxu0 0
        %1046 = vmatpush2.bf16.msra.mxu0 0
        %1047 = vmatprep.subr.bf16.mxu0 0
        %1048 = vmatpush2.bf16.msra.mxu0 0
        %1049 = vmatprep.subr.bf16.mxu0 0
        %1050 = vmatpush2.bf16.msra.mxu0 0
        %1051 = vmatprep.subr.bf16.mxu0 0
        %1052 = vmatpush2.bf16.msra.mxu0 0
        %1053 = vmatprep.subr.bf16.mxu0 0
        %1054 = vmatpush2.bf16.msra.mxu0 0
        %1055 = vmatprep.mubr.bf16.mxu0 0
        %1056 = vmatmul.mubr.bf16.gmra.mxu0 %v982
        %v1057 = vpop.f32.mrf.mxu0
        %v1058 = vadd.f32 %v880, %v1057
        %v1059 = vpop.f32.mrf.mxu0
        %v1060 = vpop.f32.mrf.mxu0
        %v1061 = vadd.f32 %v883, %v1060
        %v1062 = vpop.f32.mrf.mxu0
        %1063 = vmatprep.mubr.bf16.mxu0 0
        %1064 = vmatmul.mubr.bf16.gmra.mxu0 %v985
        %v1065 = vpop.f32.mrf.mxu0
        %v1066 = vadd.f32 %v888, %v1065
        %v1067 = vpop.f32.mrf.mxu0
        %v1068 = vpop.f32.mrf.mxu0
        %v1069 = vadd.f32 %v891, %v1068
        %v1070 = vpop.f32.mrf.mxu0
        %1071 = vmatprep.mubr.bf16.mxu0 0
        %1072 = vmatmul.mubr.bf16.gmra.mxu0 %v988
        %v1073 = vpop.f32.mrf.mxu0
        %v1074 = vadd.f32 %v896, %v1073
        %v1075 = vpop.f32.mrf.mxu0
        %v1076 = vpop.f32.mrf.mxu0
        %v1077 = vadd.f32 %v899, %v1076
        %v1078 = vpop.f32.mrf.mxu0
        %1079 = vmatprep.mubr.bf16.mxu0 0
        %1080 = vmatmul.mubr.bf16.gmra.mxu0 %v991
        %v1081 = vpop.f32.mrf.mxu0
        %v1082 = vadd.f32 %v904, %v1081
        %v1083 = vpop.f32.mrf.mxu0
        %v1084 = vpop.f32.mrf.mxu0
        %v1085 = vadd.f32 %v907, %v1084
        %v1086 = vpop.f32.mrf.mxu0
        %1087 = vmatprep.mubr.bf16.mxu0 0
        %1088 = vmatmul.mubr.bf16.gmra.mxu0 %v994
        %v1089 = vpop.f32.mrf.mxu0
        %v1090 = vadd.f32 %v912, %v1089
        %v1091 = vpop.f32.mrf.mxu0
        %v1092 = vpop.f32.mrf.mxu0
        %v1093 = vadd.f32 %v915, %v1092
        %v1094 = vpop.f32.mrf.mxu0
        %1095 = vmatprep.mubr.bf16.mxu0 0
        %1096 = vmatmul.mubr.bf16.gmra.mxu0 %v997
        %v1097 = vpop.f32.mrf.mxu0
        %v1098 = vadd.f32 %v920, %v1097
        %v1099 = vpop.f32.mrf.mxu0
        %v1100 = vpop.f32.mrf.mxu0
        %v1101 = vadd.f32 %v923, %v1100
        %v1102 = vpop.f32.mrf.mxu0
        %1103 = vmatprep.mubr.bf16.mxu0 0
        %1104 = vmatmul.mubr.bf16.gmra.mxu0 %v1000
        %v1105 = vpop.f32.mrf.mxu0
        %v1106 = vadd.f32 %v928, %v1105
        %v1107 = vpop.f32.mrf.mxu0
        %v1108 = vpop.f32.mrf.mxu0
        %v1109 = vadd.f32 %v931, %v1108
        %v1110 = vpop.f32.mrf.mxu0
        %1111 = vmatprep.mubr.bf16.mxu0 0
        %1112 = vmatmul.mubr.bf16.gmra.mxu0 %v1003
        %v1113 = vpop.f32.mrf.mxu0
        %v1114 = vadd.f32 %v936, %v1113
        %v1115 = vpop.f32.mrf.mxu0
        %v1116 = vpop.f32.mrf.mxu0
        %v1117 = vadd.f32 %v939, %v1116
        %v1118 = vpop.f32.mrf.mxu0
        %1119 = vmatprep.mubr.bf16.mxu0 0
        %1120 = vmatmul.mubr.bf16.gmra.mxu0 %v1006
        %v1121 = vpop.f32.mrf.mxu0
        %v1122 = vadd.f32 %v944, %v1121
        %v1123 = vpop.f32.mrf.mxu0
        %v1124 = vpop.f32.mrf.mxu0
        %v1125 = vadd.f32 %v947, %v1124
        %v1126 = vpop.f32.mrf.mxu0
        %1127 = vmatprep.mubr.bf16.mxu0 0
        %1128 = vmatmul.mubr.bf16.gmra.mxu0 %v1009
        %v1129 = vpop.f32.mrf.mxu0
        %v1130 = vadd.f32 %v952, %v1129
        %v1131 = vpop.f32.mrf.mxu0
        %v1132 = vpop.f32.mrf.mxu0
        %v1133 = vadd.f32 %v955, %v1132
        %v1134 = vpop.f32.mrf.mxu0
        %1135 = vmatprep.mubr.bf16.mxu0 0
        %1136 = vmatmul.mubr.bf16.gmra.mxu0 %v1012
        %v1137 = vpop.f32.mrf.mxu0
        %v1138 = vadd.f32 %v960, %v1137
        %v1139 = vpop.f32.mrf.mxu0
        %v1140 = vpop.f32.mrf.mxu0
        %v1141 = vadd.f32 %v963, %v1140
        %v1142 = vpop.f32.mrf.mxu0
        %1143 = vmatprep.mubr.bf16.mxu0 0
        %1144 = vmatmul.mubr.bf16.gmra.mxu0 %v1015
        %v1145 = vpop.f32.mrf.mxu0
        %v1146 = vadd.f32 %v968, %v1145
        %v1147 = vpop.f32.mrf.mxu0
        %v1148 = vpop.f32.mrf.mxu0
        %v1149 = vadd.f32 %v971, %v1148
        %v1150 = vpop.f32.mrf.mxu0
        %1151 = vmatprep.mubr.bf16.mxu0 0
        %1152 = vmatmul.mubr.bf16.gmra.mxu0 %v1018
        %v1153 = vpop.f32.mrf.mxu0
        %v1154 = vadd.f32 %v976, %v1153
        %v1155 = vpop.f32.mrf.mxu0
        %v1156 = vpop.f32.mrf.mxu0
        %v1157 = vpop.f32.mrf.mxu0
        %1158 = vdwg.mxu0
        %v1159 = vld [vmem:[%s711 + $0x2] sm:$0xff]
        %v1160 = vld [vmem:[%s711 + $0xa] sm:$0xff]
        %v1161 = vld [vmem:[%s711 + $0x12] sm:$0xff]
        %v1162 = vld [vmem:[%s711 + $0x1a] sm:$0xff]
        %v1163 = vld [vmem:[%s711 + $0x22] sm:$0xff]
        %v1164 = vld [vmem:[%s711 + $0x2a] sm:$0xff]
        %v1165 = vld [vmem:[%s711 + $0x32] sm:$0xff]
        %v1166 = vld [vmem:[%s711 + $0x3a] sm:$0xff]
        %v1167 = vld [vmem:[%s711 + $0x42] sm:$0xff]
        %v1168 = vld [vmem:[%s711 + $0x4a] sm:$0xff]
        %v1169 = vld [vmem:[%s711 + $0x52] sm:$0xff]
        %v1170 = vld [vmem:[%s711 + $0x5a] sm:$0xff]
        %v1171 = vld [vmem:[%s711 + $0x62] sm:$0xff]
        %v1172 = vld [vmem:[%s711 + $0x6a] sm:$0xff]
        %v1173 = vld [vmem:[%s711 + $0x72] sm:$0xff]
        %v1174 = vld [vmem:[%s711 + $0x7a] sm:$0xff]
        %v1175 = vld [vmem:[%s711 + $0x82] sm:$0xff]
        %v1176 = vld [vmem:[%s711 + $0x8a] sm:$0xff]
        %v1177 = vld [vmem:[%s711 + $0x92] sm:$0xff]
        %v1178 = vld [vmem:[%s711 + $0x9a] sm:$0xff]
        %v1179 = vld [vmem:[%s711 + $0xa2] sm:$0xff]
        %v1180 = vld [vmem:[%s711 + $0xaa] sm:$0xff]
        %v1181 = vld [vmem:[%s711 + $0xb2] sm:$0xff]
        %v1182 = vld [vmem:[%s711 + $0xba] sm:$0xff]
        %v1183 = vld [vmem:[%s711 + $0xc2] sm:$0xff]
        %v1184 = vpack.c.bf16 %v1160, %v1159
        %v1185 = vpack.c.bf16 %v1162, %v1161
        %v1186 = vpack.c.bf16 %v1164, %v1163
        %v1187 = vpack.c.bf16 %v1166, %v1165
        %v1188 = vpack.c.bf16 %v1168, %v1167
        %v1189 = vpack.c.bf16 %v1170, %v1169
        %v1190 = vpack.c.bf16 %v1172, %v1171
        %v1191 = vpack.c.bf16 %v1174, %v1173
        %v1192 = vpack.c.bf16 %v1176, %v1175
        %v1193 = vpack.c.bf16 %v1178, %v1177
        %v1194 = vpack.c.bf16 %v1180, %v1179
        %v1195 = vpack.c.bf16 %v1182, %v1181
        %v1196 = vpack.c.bf16 %v1183, %v1183
        %s1197 = scalar_lea.vmem [#allocation4], 8
        %v1198 = vld [vmem:[%s1197] sm:$0xf]
        %v1200 = vsel %vm801, %v1184, 0
        %v1203 = vsel %vm801, %v1185, 0
        %v1206 = vsel %vm801, %v1186, 0
        %v1209 = vsel %vm801, %v1187, 0
        %v1212 = vsel %vm801, %v1188, 0
        %v1215 = vsel %vm801, %v1189, 0
        %v1218 = vsel %vm801, %v1190, 0
        %v1221 = vsel %vm801, %v1191, 0
        %v1224 = vsel %vm801, %v1192, 0
        %v1227 = vsel %vm801, %v1193, 0
        %v1230 = vsel %vm801, %v1194, 0
        %v1233 = vsel %vm801, %v1195, 0
        %v1236 = vsel %vm801, %v1196, 0
        %v1239 = vsel %vm841, %v1198, 0
        %1241 = vmatprep.subr.bf16.mxu0 0
        %1242 = vmatpush1.bf16.msra.mxu0 0
        %1243 = vmatprep.subr.bf16.mxu0 0
        %1244 = vmatpush1.bf16.msra.mxu0 0
        %1245 = vmatprep.subr.bf16.mxu0 0
        %1246 = vmatpush1.bf16.msra.mxu0 0
        %1247 = vmatprep.subr.bf16.mxu0 0
        %1248 = vmatpush1.bf16.msra.mxu0 0
        %1249 = vmatprep.subr.bf16.mxu0 0
        %1250 = vmatpush1.bf16.msra.mxu0 0
        %1251 = vmatprep.subr.bf16.mxu0 0
        %1252 = vmatpush1.bf16.msra.mxu0 0
        %1253 = vmatprep.subr.bf16.mxu0 0
        %1254 = vmatpush1.bf16.msra.mxu0 0
        %1255 = vmatprep.subr.bf16.mxu0 0
        %1256 = vmatpush1.bf16.msra.mxu0 %v1239
        %1257 = vmatprep.subr.bf16.mxu0 0
        %1258 = vmatpush2.bf16.msra.mxu0 0
        %1259 = vmatprep.subr.bf16.mxu0 0
        %1260 = vmatpush2.bf16.msra.mxu0 0
        %1261 = vmatprep.subr.bf16.mxu0 0
        %1262 = vmatpush2.bf16.msra.mxu0 0
        %1263 = vmatprep.subr.bf16.mxu0 0
        %1264 = vmatpush2.bf16.msra.mxu0 0
        %1265 = vmatprep.subr.bf16.mxu0 0
        %1266 = vmatpush2.bf16.msra.mxu0 0
        %1267 = vmatprep.subr.bf16.mxu0 0
        %1268 = vmatpush2.bf16.msra.mxu0 0
        %1269 = vmatprep.subr.bf16.mxu0 0
        %1270 = vmatpush2.bf16.msra.mxu0 0
        %1271 = vmatprep.subr.bf16.mxu0 0
        %1272 = vmatpush2.bf16.msra.mxu0 0
        %1273 = vmatprep.mubr.bf16.mxu0 0
        %1274 = vmatmul.mubr.bf16.gmra.mxu0 %v1200
        %v1275 = vpop.f32.mrf.mxu0
        %v1276 = vadd.f32 0.0, %v1275
        %v1277 = vpop.f32.mrf.mxu0
        %v1278 = vpop.f32.mrf.mxu0
        %v1279 = vadd.f32 0.0, %v1278
        %v1280 = vpop.f32.mrf.mxu0
        %1281 = vmatprep.mubr.bf16.mxu0 0
        %1282 = vmatmul.mubr.bf16.gmra.mxu0 %v1203
        %v1283 = vpop.f32.mrf.mxu0
        %v1284 = vadd.f32 0.0, %v1283
        %v1285 = vpop.f32.mrf.mxu0
        %v1286 = vpop.f32.mrf.mxu0
        %v1287 = vadd.f32 0.0, %v1286
        %v1288 = vpop.f32.mrf.mxu0
        %1289 = vmatprep.mubr.bf16.mxu0 0
        %1290 = vmatmul.mubr.bf16.gmra.mxu0 %v1206
        %v1291 = vpop.f32.mrf.mxu0
        %v1292 = vadd.f32 0.0, %v1291
        %v1293 = vpop.f32.mrf.mxu0
        %v1294 = vpop.f32.mrf.mxu0
        %v1295 = vadd.f32 0.0, %v1294
        %v1296 = vpop.f32.mrf.mxu0
        %1297 = vmatprep.mubr.bf16.mxu0 0
        %1298 = vmatmul.mubr.bf16.gmra.mxu0 %v1209
        %v1299 = vpop.f32.mrf.mxu0
        %v1300 = vadd.f32 0.0, %v1299
        %v1301 = vpop.f32.mrf.mxu0
        %v1302 = vpop.f32.mrf.mxu0
        %v1303 = vadd.f32 0.0, %v1302
        %v1304 = vpop.f32.mrf.mxu0
        %1305 = vmatprep.mubr.bf16.mxu0 0
        %1306 = vmatmul.mubr.bf16.gmra.mxu0 %v1212
        %v1307 = vpop.f32.mrf.mxu0
        %v1308 = vadd.f32 0.0, %v1307
        %v1309 = vpop.f32.mrf.mxu0
        %v1310 = vpop.f32.mrf.mxu0
        %v1311 = vadd.f32 0.0, %v1310
        %v1312 = vpop.f32.mrf.mxu0
        %1313 = vmatprep.mubr.bf16.mxu0 0
        %1314 = vmatmul.mubr.bf16.gmra.mxu0 %v1215
        %v1315 = vpop.f32.mrf.mxu0
        %v1316 = vadd.f32 0.0, %v1315
        %v1317 = vpop.f32.mrf.mxu0
        %v1318 = vpop.f32.mrf.mxu0
        %v1319 = vadd.f32 0.0, %v1318
        %v1320 = vpop.f32.mrf.mxu0
        %1321 = vmatprep.mubr.bf16.mxu0 0
        %1322 = vmatmul.mubr.bf16.gmra.mxu0 %v1218
        %v1323 = vpop.f32.mrf.mxu0
        %v1324 = vadd.f32 0.0, %v1323
        %v1325 = vpop.f32.mrf.mxu0
        %v1326 = vpop.f32.mrf.mxu0
        %v1327 = vadd.f32 0.0, %v1326
        %v1328 = vpop.f32.mrf.mxu0
        %1329 = vmatprep.mubr.bf16.mxu0 0
        %1330 = vmatmul.mubr.bf16.gmra.mxu0 %v1221
        %v1331 = vpop.f32.mrf.mxu0
        %v1332 = vadd.f32 0.0, %v1331
        %v1333 = vpop.f32.mrf.mxu0
        %v1334 = vpop.f32.mrf.mxu0
        %v1335 = vadd.f32 0.0, %v1334
        %v1336 = vpop.f32.mrf.mxu0
        %1337 = vmatprep.mubr.bf16.mxu0 0
        %1338 = vmatmul.mubr.bf16.gmra.mxu0 %v1224
        %v1339 = vpop.f32.mrf.mxu0
        %v1340 = vadd.f32 0.0, %v1339
        %v1341 = vpop.f32.mrf.mxu0
        %v1342 = vpop.f32.mrf.mxu0
        %v1343 = vadd.f32 0.0, %v1342
        %v1344 = vpop.f32.mrf.mxu0
        %1345 = vmatprep.mubr.bf16.mxu0 0
        %1346 = vmatmul.mubr.bf16.gmra.mxu0 %v1227
        %v1347 = vpop.f32.mrf.mxu0
        %v1348 = vadd.f32 0.0, %v1347
        %v1349 = vpop.f32.mrf.mxu0
        %v1350 = vpop.f32.mrf.mxu0
        %v1351 = vadd.f32 0.0, %v1350
        %v1352 = vpop.f32.mrf.mxu0
        %1353 = vmatprep.mubr.bf16.mxu0 0
        %1354 = vmatmul.mubr.bf16.gmra.mxu0 %v1230
        %v1355 = vpop.f32.mrf.mxu0
        %v1356 = vadd.f32 0.0, %v1355
        %v1357 = vpop.f32.mrf.mxu0
        %v1358 = vpop.f32.mrf.mxu0
        %v1359 = vadd.f32 0.0, %v1358
        %v1360 = vpop.f32.mrf.mxu0
        %1361 = vmatprep.mubr.bf16.mxu0 0
        %1362 = vmatmul.mubr.bf16.gmra.mxu0 %v1233
        %v1363 = vpop.f32.mrf.mxu0
        %v1364 = vadd.f32 0.0, %v1363
        %v1365 = vpop.f32.mrf.mxu0
        %v1366 = vpop.f32.mrf.mxu0
        %v1367 = vadd.f32 0.0, %v1366
        %v1368 = vpop.f32.mrf.mxu0
        %1369 = vmatprep.mubr.bf16.mxu0 0
        %1370 = vmatmul.mubr.bf16.gmra.mxu0 %v1236
        %v1371 = vpop.f32.mrf.mxu0
        %v1372 = vadd.f32 0.0, %v1371
        %v1373 = vpop.f32.mrf.mxu0
        %v1374 = vpop.f32.mrf.mxu0
        %v1375 = vpop.f32.mrf.mxu0
        %1376 = vdwg.mxu0
        %v1377 = vadd.f32 %v1058, %v1276
        %v1378 = vadd.f32 %v1061, %v1279
        %v1379 = vadd.f32 %v1066, %v1284
        %v1380 = vadd.f32 %v1069, %v1287
        %v1381 = vadd.f32 %v1074, %v1292
        %v1382 = vadd.f32 %v1077, %v1295
        %v1383 = vadd.f32 %v1082, %v1300
        %v1384 = vadd.f32 %v1085, %v1303
        %v1385 = vadd.f32 %v1090, %v1308
        %v1386 = vadd.f32 %v1093, %v1311
        %v1387 = vadd.f32 %v1098, %v1316
        %v1388 = vadd.f32 %v1101, %v1319
        %v1389 = vadd.f32 %v1106, %v1324
        %v1390 = vadd.f32 %v1109, %v1327
        %v1391 = vadd.f32 %v1114, %v1332
        %v1392 = vadd.f32 %v1117, %v1335
        %v1393 = vadd.f32 %v1122, %v1340
        %v1394 = vadd.f32 %v1125, %v1343
        %v1395 = vadd.f32 %v1130, %v1348
        %v1396 = vadd.f32 %v1133, %v1351
        %v1397 = vadd.f32 %v1138, %v1356
        %v1398 = vadd.f32 %v1141, %v1359
        %v1399 = vadd.f32 %v1146, %v1364
        %v1400 = vadd.f32 %v1149, %v1367
        %v1401 = vadd.f32 %v1154, %v1372
        %v1402 = vld [vmem:[%s711 + $0x3] sm:$0xff]
        %v1403 = vld [vmem:[%s711 + $0xb] sm:$0xff]
        %v1404 = vld [vmem:[%s711 + $0x13] sm:$0xff]
        %v1405 = vld [vmem:[%s711 + $0x1b] sm:$0xff]
        %v1406 = vld [vmem:[%s711 + $0x23] sm:$0xff]
        %v1407 = vld [vmem:[%s711 + $0x2b] sm:$0xff]
        %v1408 = vld [vmem:[%s711 + $0x33] sm:$0xff]
        %v1409 = vld [vmem:[%s711 + $0x3b] sm:$0xff]
        %v1410 = vld [vmem:[%s711 + $0x43] sm:$0xff]
        %v1411 = vld [vmem:[%s711 + $0x4b] sm:$0xff]
        %v1412 = vld [vmem:[%s711 + $0x53] sm:$0xff]
        %v1413 = vld [vmem:[%s711 + $0x5b] sm:$0xff]
        %v1414 = vld [vmem:[%s711 + $0x63] sm:$0xff]
        %v1415 = vld [vmem:[%s711 + $0x6b] sm:$0xff]
        %v1416 = vld [vmem:[%s711 + $0x73] sm:$0xff]
        %v1417 = vld [vmem:[%s711 + $0x7b] sm:$0xff]
        %v1418 = vld [vmem:[%s711 + $0x83] sm:$0xff]
        %v1419 = vld [vmem:[%s711 + $0x8b] sm:$0xff]
        %v1420 = vld [vmem:[%s711 + $0x93] sm:$0xff]
        %v1421 = vld [vmem:[%s711 + $0x9b] sm:$0xff]
        %v1422 = vld [vmem:[%s711 + $0xa3] sm:$0xff]
        %v1423 = vld [vmem:[%s711 + $0xab] sm:$0xff]
        %v1424 = vld [vmem:[%s711 + $0xb3] sm:$0xff]
        %v1425 = vld [vmem:[%s711 + $0xbb] sm:$0xff]
        %v1426 = vld [vmem:[%s711 + $0xc3] sm:$0xff]
        %v1427 = vpack.c.bf16 %v1403, %v1402
        %v1428 = vpack.c.bf16 %v1405, %v1404
        %v1429 = vpack.c.bf16 %v1407, %v1406
        %v1430 = vpack.c.bf16 %v1409, %v1408
        %v1431 = vpack.c.bf16 %v1411, %v1410
        %v1432 = vpack.c.bf16 %v1413, %v1412
        %v1433 = vpack.c.bf16 %v1415, %v1414
        %v1434 = vpack.c.bf16 %v1417, %v1416
        %v1435 = vpack.c.bf16 %v1419, %v1418
        %v1436 = vpack.c.bf16 %v1421, %v1420
        %v1437 = vpack.c.bf16 %v1423, %v1422
        %v1438 = vpack.c.bf16 %v1425, %v1424
        %v1439 = vpack.c.bf16 %v1426, %v1426
        %s1440 = scalar_lea.vmem [#allocation4], 12
        %v1441 = vld [vmem:[%s1440] sm:$0xf]
        %v1443 = vsel %vm801, %v1427, 0
        %v1446 = vsel %vm801, %v1428, 0
        %v1449 = vsel %vm801, %v1429, 0
        %v1452 = vsel %vm801, %v1430, 0
        %v1455 = vsel %vm801, %v1431, 0
        %v1458 = vsel %vm801, %v1432, 0
        %v1461 = vsel %vm801, %v1433, 0
        %v1464 = vsel %vm801, %v1434, 0
        %v1467 = vsel %vm801, %v1435, 0
        %v1470 = vsel %vm801, %v1436, 0
        %v1473 = vsel %vm801, %v1437, 0
        %v1476 = vsel %vm801, %v1438, 0
        %v1479 = vsel %vm801, %v1439, 0
        %v1482 = vsel %vm841, %v1441, 0
        %1484 = vmatprep.subr.bf16.mxu0 0
        %1485 = vmatpush1.bf16.msra.mxu0 0
        %1486 = vmatprep.subr.bf16.mxu0 0
        %1487 = vmatpush1.bf16.msra.mxu0 0
        %1488 = vmatprep.subr.bf16.mxu0 0
        %1489 = vmatpush1.bf16.msra.mxu0 0
        %1490 = vmatprep.subr.bf16.mxu0 0
        %1491 = vmatpush1.bf16.msra.mxu0 0
        %1492 = vmatprep.subr.bf16.mxu0 0
        %1493 = vmatpush1.bf16.msra.mxu0 0
        %1494 = vmatprep.subr.bf16.mxu0 0
        %1495 = vmatpush1.bf16.msra.mxu0 0
        %1496 = vmatprep.subr.bf16.mxu0 0
        %1497 = vmatpush1.bf16.msra.mxu0 0
        %1498 = vmatprep.subr.bf16.mxu0 0
        %1499 = vmatpush1.bf16.msra.mxu0 %v1482
        %1500 = vmatprep.subr.bf16.mxu0 0
        %1501 = vmatpush2.bf16.msra.mxu0 0
        %1502 = vmatprep.subr.bf16.mxu0 0
        %1503 = vmatpush2.bf16.msra.mxu0 0
        %1504 = vmatprep.subr.bf16.mxu0 0
        %1505 = vmatpush2.bf16.msra.mxu0 0
        %1506 = vmatprep.subr.bf16.mxu0 0
        %1507 = vmatpush2.bf16.msra.mxu0 0
        %1508 = vmatprep.subr.bf16.mxu0 0
        %1509 = vmatpush2.bf16.msra.mxu0 0
        %1510 = vmatprep.subr.bf16.mxu0 0
        %1511 = vmatpush2.bf16.msra.mxu0 0
        %1512 = vmatprep.subr.bf16.mxu0 0
        %1513 = vmatpush2.bf16.msra.mxu0 0
        %1514 = vmatprep.subr.bf16.mxu0 0
        %1515 = vmatpush2.bf16.msra.mxu0 0
        %1516 = vmatprep.mubr.bf16.mxu0 0
        %1517 = vmatmul.mubr.bf16.gmra.mxu0 %v1443
        %v1518 = vpop.f32.mrf.mxu0
        %v1519 = vadd.f32 0.0, %v1518
        %v1520 = vpop.f32.mrf.mxu0
        %v1521 = vpop.f32.mrf.mxu0
        %v1522 = vadd.f32 0.0, %v1521
        %v1523 = vpop.f32.mrf.mxu0
        %1524 = vmatprep.mubr.bf16.mxu0 0
        %1525 = vmatmul.mubr.bf16.gmra.mxu0 %v1446
        %v1526 = vpop.f32.mrf.mxu0
        %v1527 = vadd.f32 0.0, %v1526
        %v1528 = vpop.f32.mrf.mxu0
        %v1529 = vpop.f32.mrf.mxu0
        %v1530 = vadd.f32 0.0, %v1529
        %v1531 = vpop.f32.mrf.mxu0
        %1532 = vmatprep.mubr.bf16.mxu0 0
        %1533 = vmatmul.mubr.bf16.gmra.mxu0 %v1449
        %v1534 = vpop.f32.mrf.mxu0
        %v1535 = vadd.f32 0.0, %v1534
        %v1536 = vpop.f32.mrf.mxu0
        %v1537 = vpop.f32.mrf.mxu0
        %v1538 = vadd.f32 0.0, %v1537
        %v1539 = vpop.f32.mrf.mxu0
        %1540 = vmatprep.mubr.bf16.mxu0 0
        %1541 = vmatmul.mubr.bf16.gmra.mxu0 %v1452
        %v1542 = vpop.f32.mrf.mxu0
        %v1543 = vadd.f32 0.0, %v1542
        %v1544 = vpop.f32.mrf.mxu0
        %v1545 = vpop.f32.mrf.mxu0
        %v1546 = vadd.f32 0.0, %v1545
        %v1547 = vpop.f32.mrf.mxu0
        %1548 = vmatprep.mubr.bf16.mxu0 0
        %1549 = vmatmul.mubr.bf16.gmra.mxu0 %v1455
        %v1550 = vpop.f32.mrf.mxu0
        %v1551 = vadd.f32 0.0, %v1550
        %v1552 = vpop.f32.mrf.mxu0
        %v1553 = vpop.f32.mrf.mxu0
        %v1554 = vadd.f32 0.0, %v1553
        %v1555 = vpop.f32.mrf.mxu0
        %1556 = vmatprep.mubr.bf16.mxu0 0
        %1557 = vmatmul.mubr.bf16.gmra.mxu0 %v1458
        %v1558 = vpop.f32.mrf.mxu0
        %v1559 = vadd.f32 0.0, %v1558
        %v1560 = vpop.f32.mrf.mxu0
        %v1561 = vpop.f32.mrf.mxu0
        %v1562 = vadd.f32 0.0, %v1561
        %v1563 = vpop.f32.mrf.mxu0
        %1564 = vmatprep.mubr.bf16.mxu0 0
        %1565 = vmatmul.mubr.bf16.gmra.mxu0 %v1461
        %v1566 = vpop.f32.mrf.mxu0
        %v1567 = vadd.f32 0.0, %v1566
        %v1568 = vpop.f32.mrf.mxu0
        %v1569 = vpop.f32.mrf.mxu0
        %v1570 = vadd.f32 0.0, %v1569
        %v1571 = vpop.f32.mrf.mxu0
        %1572 = vmatprep.mubr.bf16.mxu0 0
        %1573 = vmatmul.mubr.bf16.gmra.mxu0 %v1464
        %v1574 = vpop.f32.mrf.mxu0
        %v1575 = vadd.f32 0.0, %v1574
        %v1576 = vpop.f32.mrf.mxu0
        %v1577 = vpop.f32.mrf.mxu0
        %v1578 = vadd.f32 0.0, %v1577
        %v1579 = vpop.f32.mrf.mxu0
        %1580 = vmatprep.mubr.bf16.mxu0 0
        %1581 = vmatmul.mubr.bf16.gmra.mxu0 %v1467
        %v1582 = vpop.f32.mrf.mxu0
        %v1583 = vadd.f32 0.0, %v1582
        %v1584 = vpop.f32.mrf.mxu0
        %v1585 = vpop.f32.mrf.mxu0
        %v1586 = vadd.f32 0.0, %v1585
        %v1587 = vpop.f32.mrf.mxu0
        %1588 = vmatprep.mubr.bf16.mxu0 0
        %1589 = vmatmul.mubr.bf16.gmra.mxu0 %v1470
        %v1590 = vpop.f32.mrf.mxu0
        %v1591 = vadd.f32 0.0, %v1590
        %v1592 = vpop.f32.mrf.mxu0
        %v1593 = vpop.f32.mrf.mxu0
        %v1594 = vadd.f32 0.0, %v1593
        %v1595 = vpop.f32.mrf.mxu0
        %1596 = vmatprep.mubr.bf16.mxu0 0
        %1597 = vmatmul.mubr.bf16.gmra.mxu0 %v1473
        %v1598 = vpop.f32.mrf.mxu0
        %v1599 = vadd.f32 0.0, %v1598
        %v1600 = vpop.f32.mrf.mxu0
        %v1601 = vpop.f32.mrf.mxu0
        %v1602 = vadd.f32 0.0, %v1601
        %v1603 = vpop.f32.mrf.mxu0
        %1604 = vmatprep.mubr.bf16.mxu0 0
        %1605 = vmatmul.mubr.bf16.gmra.mxu0 %v1476
        %v1606 = vpop.f32.mrf.mxu0
        %v1607 = vadd.f32 0.0, %v1606
        %v1608 = vpop.f32.mrf.mxu0
        %v1609 = vpop.f32.mrf.mxu0
        %v1610 = vadd.f32 0.0, %v1609
        %v1611 = vpop.f32.mrf.mxu0
        %1612 = vmatprep.mubr.bf16.mxu0 0
        %1613 = vmatmul.mubr.bf16.gmra.mxu0 %v1479
        %v1614 = vpop.f32.mrf.mxu0
        %v1615 = vadd.f32 0.0, %v1614
        %v1616 = vpop.f32.mrf.mxu0
        %v1617 = vpop.f32.mrf.mxu0
        %v1618 = vpop.f32.mrf.mxu0
        %1619 = vdwg.mxu0
        %v1620 = vadd.f32 %v1377, %v1519
        %v1621 = vadd.f32 %v1378, %v1522
        %v1622 = vadd.f32 %v1379, %v1527
        %v1623 = vadd.f32 %v1380, %v1530
        %v1624 = vadd.f32 %v1381, %v1535
        %v1625 = vadd.f32 %v1382, %v1538
        %v1626 = vadd.f32 %v1383, %v1543
        %v1627 = vadd.f32 %v1384, %v1546
        %v1628 = vadd.f32 %v1385, %v1551
        %v1629 = vadd.f32 %v1386, %v1554
        %v1630 = vadd.f32 %v1387, %v1559
        %v1631 = vadd.f32 %v1388, %v1562
        %v1632 = vadd.f32 %v1389, %v1567
        %v1633 = vadd.f32 %v1390, %v1570
        %v1634 = vadd.f32 %v1391, %v1575
        %v1635 = vadd.f32 %v1392, %v1578
        %v1636 = vadd.f32 %v1393, %v1583
        %v1637 = vadd.f32 %v1394, %v1586
        %v1638 = vadd.f32 %v1395, %v1591
        %v1639 = vadd.f32 %v1396, %v1594
        %v1640 = vadd.f32 %v1397, %v1599
        %v1641 = vadd.f32 %v1398, %v1602
        %v1642 = vadd.f32 %v1399, %v1607
        %v1643 = vadd.f32 %v1400, %v1610
        %v1644 = vadd.f32 %v1401, %v1615
        %v1645 = vld [vmem:[%s711 + $0x4] sm:$0xff]
        %v1646 = vld [vmem:[%s711 + $0xc] sm:$0xff]
        %v1647 = vld [vmem:[%s711 + $0x14] sm:$0xff]
        %v1648 = vld [vmem:[%s711 + $0x1c] sm:$0xff]
        %v1649 = vld [vmem:[%s711 + $0x24] sm:$0xff]
        %v1650 = vld [vmem:[%s711 + $0x2c] sm:$0xff]
        %v1651 = vld [vmem:[%s711 + $0x34] sm:$0xff]
        %v1652 = vld [vmem:[%s711 + $0x3c] sm:$0xff]
        %v1653 = vld [vmem:[%s711 + $0x44] sm:$0xff]
        %v1654 = vld [vmem:[%s711 + $0x4c] sm:$0xff]
        %v1655 = vld [vmem:[%s711 + $0x54] sm:$0xff]
        %v1656 = vld [vmem:[%s711 + $0x5c] sm:$0xff]
        %v1657 = vld [vmem:[%s711 + $0x64] sm:$0xff]
        %v1658 = vld [vmem:[%s711 + $0x6c] sm:$0xff]
        %v1659 = vld [vmem:[%s711 + $0x74] sm:$0xff]
        %v1660 = vld [vmem:[%s711 + $0x7c] sm:$0xff]
        %v1661 = vld [vmem:[%s711 + $0x84] sm:$0xff]
        %v1662 = vld [vmem:[%s711 + $0x8c] sm:$0xff]
        %v1663 = vld [vmem:[%s711 + $0x94] sm:$0xff]
        %v1664 = vld [vmem:[%s711 + $0x9c] sm:$0xff]
        %v1665 = vld [vmem:[%s711 + $0xa4] sm:$0xff]
        %v1666 = vld [vmem:[%s711 + $0xac] sm:$0xff]
        %v1667 = vld [vmem:[%s711 + $0xb4] sm:$0xff]
        %v1668 = vld [vmem:[%s711 + $0xbc] sm:$0xff]
        %v1669 = vld [vmem:[%s711 + $0xc4] sm:$0xff]
        %v1670 = vpack.c.bf16 %v1646, %v1645
        %v1671 = vpack.c.bf16 %v1648, %v1647
        %v1672 = vpack.c.bf16 %v1650, %v1649
        %v1673 = vpack.c.bf16 %v1652, %v1651
        %v1674 = vpack.c.bf16 %v1654, %v1653
        %v1675 = vpack.c.bf16 %v1656, %v1655
        %v1676 = vpack.c.bf16 %v1658, %v1657
        %v1677 = vpack.c.bf16 %v1660, %v1659
        %v1678 = vpack.c.bf16 %v1662, %v1661
        %v1679 = vpack.c.bf16 %v1664, %v1663
        %v1680 = vpack.c.bf16 %v1666, %v1665
        %v1681 = vpack.c.bf16 %v1668, %v1667
        %v1682 = vpack.c.bf16 %v1669, %v1669
        %s1683 = scalar_lea.vmem [#allocation4], 16
        %v1684 = vld [vmem:[%s1683] sm:$0xf]
        %v1686 = vsel %vm801, %v1670, 0
        %v1689 = vsel %vm801, %v1671, 0
        %v1692 = vsel %vm801, %v1672, 0
        %v1695 = vsel %vm801, %v1673, 0
        %v1698 = vsel %vm801, %v1674, 0
        %v1701 = vsel %vm801, %v1675, 0
        %v1704 = vsel %vm801, %v1676, 0
        %v1707 = vsel %vm801, %v1677, 0
        %v1710 = vsel %vm801, %v1678, 0
        %v1713 = vsel %vm801, %v1679, 0
        %v1716 = vsel %vm801, %v1680, 0
        %v1719 = vsel %vm801, %v1681, 0
        %v1722 = vsel %vm801, %v1682, 0
        %v1725 = vsel %vm841, %v1684, 0
        %1727 = vmatprep.subr.bf16.mxu0 0
        %1728 = vmatpush1.bf16.msra.mxu0 0
        %1729 = vmatprep.subr.bf16.mxu0 0
        %1730 = vmatpush1.bf16.msra.mxu0 0
        %1731 = vmatprep.subr.bf16.mxu0 0
        %1732 = vmatpush1.bf16.msra.mxu0 0
        %1733 = vmatprep.subr.bf16.mxu0 0
        %1734 = vmatpush1.bf16.msra.mxu0 0
        %1735 = vmatprep.subr.bf16.mxu0 0
        %1736 = vmatpush1.bf16.msra.mxu0 0
        %1737 = vmatprep.subr.bf16.mxu0 0
        %1738 = vmatpush1.bf16.msra.mxu0 0
        %1739 = vmatprep.subr.bf16.mxu0 0
        %1740 = vmatpush1.bf16.msra.mxu0 0
        %1741 = vmatprep.subr.bf16.mxu0 0
        %1742 = vmatpush1.bf16.msra.mxu0 %v1725
        %1743 = vmatprep.subr.bf16.mxu0 0
        %1744 = vmatpush2.bf16.msra.mxu0 0
        %1745 = vmatprep.subr.bf16.mxu0 0
        %1746 = vmatpush2.bf16.msra.mxu0 0
        %1747 = vmatprep.subr.bf16.mxu0 0
        %1748 = vmatpush2.bf16.msra.mxu0 0
        %1749 = vmatprep.subr.bf16.mxu0 0
        %1750 = vmatpush2.bf16.msra.mxu0 0
        %1751 = vmatprep.subr.bf16.mxu0 0
        %1752 = vmatpush2.bf16.msra.mxu0 0
        %1753 = vmatprep.subr.bf16.mxu0 0
        %1754 = vmatpush2.bf16.msra.mxu0 0
        %1755 = vmatprep.subr.bf16.mxu0 0
        %1756 = vmatpush2.bf16.msra.mxu0 0
        %1757 = vmatprep.subr.bf16.mxu0 0
        %1758 = vmatpush2.bf16.msra.mxu0 0
        %1759 = vmatprep.mubr.bf16.mxu0 0
        %1760 = vmatmul.mubr.bf16.gmra.mxu0 %v1686
        %v1761 = vpop.f32.mrf.mxu0
        %v1762 = vadd.f32 0.0, %v1761
        %v1763 = vpop.f32.mrf.mxu0
        %v1764 = vpop.f32.mrf.mxu0
        %v1765 = vadd.f32 0.0, %v1764
        %v1766 = vpop.f32.mrf.mxu0
        %1767 = vmatprep.mubr.bf16.mxu0 0
        %1768 = vmatmul.mubr.bf16.gmra.mxu0 %v1689
        %v1769 = vpop.f32.mrf.mxu0
        %v1770 = vadd.f32 0.0, %v1769
        %v1771 = vpop.f32.mrf.mxu0
        %v1772 = vpop.f32.mrf.mxu0
        %v1773 = vadd.f32 0.0, %v1772
        %v1774 = vpop.f32.mrf.mxu0
        %1775 = vmatprep.mubr.bf16.mxu0 0
        %1776 = vmatmul.mubr.bf16.gmra.mxu0 %v1692
        %v1777 = vpop.f32.mrf.mxu0
        %v1778 = vadd.f32 0.0, %v1777
        %v1779 = vpop.f32.mrf.mxu0
        %v1780 = vpop.f32.mrf.mxu0
        %v1781 = vadd.f32 0.0, %v1780
        %v1782 = vpop.f32.mrf.mxu0
        %1783 = vmatprep.mubr.bf16.mxu0 0
        %1784 = vmatmul.mubr.bf16.gmra.mxu0 %v1695
        %v1785 = vpop.f32.mrf.mxu0
        %v1786 = vadd.f32 0.0, %v1785
        %v1787 = vpop.f32.mrf.mxu0
        %v1788 = vpop.f32.mrf.mxu0
        %v1789 = vadd.f32 0.0, %v1788
        %v1790 = vpop.f32.mrf.mxu0
        %1791 = vmatprep.mubr.bf16.mxu0 0
        %1792 = vmatmul.mubr.bf16.gmra.mxu0 %v1698
        %v1793 = vpop.f32.mrf.mxu0
        %v1794 = vadd.f32 0.0, %v1793
        %v1795 = vpop.f32.mrf.mxu0
        %v1796 = vpop.f32.mrf.mxu0
        %v1797 = vadd.f32 0.0, %v1796
        %v1798 = vpop.f32.mrf.mxu0
        %1799 = vmatprep.mubr.bf16.mxu0 0
        %1800 = vmatmul.mubr.bf16.gmra.mxu0 %v1701
        %v1801 = vpop.f32.mrf.mxu0
        %v1802 = vadd.f32 0.0, %v1801
        %v1803 = vpop.f32.mrf.mxu0
        %v1804 = vpop.f32.mrf.mxu0
        %v1805 = vadd.f32 0.0, %v1804
        %v1806 = vpop.f32.mrf.mxu0
        %1807 = vmatprep.mubr.bf16.mxu0 0
        %1808 = vmatmul.mubr.bf16.gmra.mxu0 %v1704
        %v1809 = vpop.f32.mrf.mxu0
        %v1810 = vadd.f32 0.0, %v1809
        %v1811 = vpop.f32.mrf.mxu0
        %v1812 = vpop.f32.mrf.mxu0
        %v1813 = vadd.f32 0.0, %v1812
        %v1814 = vpop.f32.mrf.mxu0
        %1815 = vmatprep.mubr.bf16.mxu0 0
        %1816 = vmatmul.mubr.bf16.gmra.mxu0 %v1707
        %v1817 = vpop.f32.mrf.mxu0
        %v1818 = vadd.f32 0.0, %v1817
        %v1819 = vpop.f32.mrf.mxu0
        %v1820 = vpop.f32.mrf.mxu0
        %v1821 = vadd.f32 0.0, %v1820
        %v1822 = vpop.f32.mrf.mxu0
        %1823 = vmatprep.mubr.bf16.mxu0 0
        %1824 = vmatmul.mubr.bf16.gmra.mxu0 %v1710
        %v1825 = vpop.f32.mrf.mxu0
        %v1826 = vadd.f32 0.0, %v1825
        %v1827 = vpop.f32.mrf.mxu0
        %v1828 = vpop.f32.mrf.mxu0
        %v1829 = vadd.f32 0.0, %v1828
        %v1830 = vpop.f32.mrf.mxu0
        %1831 = vmatprep.mubr.bf16.mxu0 0
        %1832 = vmatmul.mubr.bf16.gmra.mxu0 %v1713
        %v1833 = vpop.f32.mrf.mxu0
        %v1834 = vadd.f32 0.0, %v1833
        %v1835 = vpop.f32.mrf.mxu0
        %v1836 = vpop.f32.mrf.mxu0
        %v1837 = vadd.f32 0.0, %v1836
        %v1838 = vpop.f32.mrf.mxu0
        %1839 = vmatprep.mubr.bf16.mxu0 0
        %1840 = vmatmul.mubr.bf16.gmra.mxu0 %v1716
        %v1841 = vpop.f32.mrf.mxu0
        %v1842 = vadd.f32 0.0, %v1841
        %v1843 = vpop.f32.mrf.mxu0
        %v1844 = vpop.f32.mrf.mxu0
        %v1845 = vadd.f32 0.0, %v1844
        %v1846 = vpop.f32.mrf.mxu0
        %1847 = vmatprep.mubr.bf16.mxu0 0
        %1848 = vmatmul.mubr.bf16.gmra.mxu0 %v1719
        %v1849 = vpop.f32.mrf.mxu0
        %v1850 = vadd.f32 0.0, %v1849
        %v1851 = vpop.f32.mrf.mxu0
        %v1852 = vpop.f32.mrf.mxu0
        %v1853 = vadd.f32 0.0, %v1852
        %v1854 = vpop.f32.mrf.mxu0
        %1855 = vmatprep.mubr.bf16.mxu0 0
        %1856 = vmatmul.mubr.bf16.gmra.mxu0 %v1722
        %v1857 = vpop.f32.mrf.mxu0
        %v1858 = vadd.f32 0.0, %v1857
        %v1859 = vpop.f32.mrf.mxu0
        %v1860 = vpop.f32.mrf.mxu0
        %v1861 = vpop.f32.mrf.mxu0
        %1862 = vdwg.mxu0
        %v1863 = vadd.f32 %v1620, %v1762
        %v1864 = vadd.f32 %v1621, %v1765
        %v1865 = vadd.f32 %v1622, %v1770
        %v1866 = vadd.f32 %v1623, %v1773
        %v1867 = vadd.f32 %v1624, %v1778
        %v1868 = vadd.f32 %v1625, %v1781
        %v1869 = vadd.f32 %v1626, %v1786
        %v1870 = vadd.f32 %v1627, %v1789
        %v1871 = vadd.f32 %v1628, %v1794
        %v1872 = vadd.f32 %v1629, %v1797
        %v1873 = vadd.f32 %v1630, %v1802
        %v1874 = vadd.f32 %v1631, %v1805
        %v1875 = vadd.f32 %v1632, %v1810
        %v1876 = vadd.f32 %v1633, %v1813
        %v1877 = vadd.f32 %v1634, %v1818
        %v1878 = vadd.f32 %v1635, %v1821
        %v1879 = vadd.f32 %v1636, %v1826
        %v1880 = vadd.f32 %v1637, %v1829
        %v1881 = vadd.f32 %v1638, %v1834
        %v1882 = vadd.f32 %v1639, %v1837
        %v1883 = vadd.f32 %v1640, %v1842
        %v1884 = vadd.f32 %v1641, %v1845
        %v1885 = vadd.f32 %v1642, %v1850
        %v1886 = vadd.f32 %v1643, %v1853
        %v1887 = vadd.f32 %v1644, %v1858
        %v1888 = vld [vmem:[%s711 + $0x5] sm:$0xff]
        %v1889 = vld [vmem:[%s711 + $0xd] sm:$0xff]
        %v1890 = vld [vmem:[%s711 + $0x15] sm:$0xff]
        %v1891 = vld [vmem:[%s711 + $0x1d] sm:$0xff]
        %v1892 = vld [vmem:[%s711 + $0x25] sm:$0xff]
        %v1893 = vld [vmem:[%s711 + $0x2d] sm:$0xff]
        %v1894 = vld [vmem:[%s711 + $0x35] sm:$0xff]
        %v1895 = vld [vmem:[%s711 + $0x3d] sm:$0xff]
        %v1896 = vld [vmem:[%s711 + $0x45] sm:$0xff]
        %v1897 = vld [vmem:[%s711 + $0x4d] sm:$0xff]
        %v1898 = vld [vmem:[%s711 + $0x55] sm:$0xff]
        %v1899 = vld [vmem:[%s711 + $0x5d] sm:$0xff]
        %v1900 = vld [vmem:[%s711 + $0x65] sm:$0xff]
        %v1901 = vld [vmem:[%s711 + $0x6d] sm:$0xff]
        %v1902 = vld [vmem:[%s711 + $0x75] sm:$0xff]
        %v1903 = vld [vmem:[%s711 + $0x7d] sm:$0xff]
        %v1904 = vld [vmem:[%s711 + $0x85] sm:$0xff]
        %v1905 = vld [vmem:[%s711 + $0x8d] sm:$0xff]
        %v1906 = vld [vmem:[%s711 + $0x95] sm:$0xff]
        %v1907 = vld [vmem:[%s711 + $0x9d] sm:$0xff]
        %v1908 = vld [vmem:[%s711 + $0xa5] sm:$0xff]
        %v1909 = vld [vmem:[%s711 + $0xad] sm:$0xff]
        %v1910 = vld [vmem:[%s711 + $0xb5] sm:$0xff]
        %v1911 = vld [vmem:[%s711 + $0xbd] sm:$0xff]
        %v1912 = vld [vmem:[%s711 + $0xc5] sm:$0xff]
        %v1913 = vpack.c.bf16 %v1889, %v1888
        %v1914 = vpack.c.bf16 %v1891, %v1890
        %v1915 = vpack.c.bf16 %v1893, %v1892
        %v1916 = vpack.c.bf16 %v1895, %v1894
        %v1917 = vpack.c.bf16 %v1897, %v1896
        %v1918 = vpack.c.bf16 %v1899, %v1898
        %v1919 = vpack.c.bf16 %v1901, %v1900
        %v1920 = vpack.c.bf16 %v1903, %v1902
        %v1921 = vpack.c.bf16 %v1905, %v1904
        %v1922 = vpack.c.bf16 %v1907, %v1906
        %v1923 = vpack.c.bf16 %v1909, %v1908
        %v1924 = vpack.c.bf16 %v1911, %v1910
        %v1925 = vpack.c.bf16 %v1912, %v1912
        %s1926 = scalar_lea.vmem [#allocation4], 20
        %v1927 = vld [vmem:[%s1926] sm:$0xf]
        %v1929 = vsel %vm801, %v1913, 0
        %v1932 = vsel %vm801, %v1914, 0
        %v1935 = vsel %vm801, %v1915, 0
        %v1938 = vsel %vm801, %v1916, 0
        %v1941 = vsel %vm801, %v1917, 0
        %v1944 = vsel %vm801, %v1918, 0
        %v1947 = vsel %vm801, %v1919, 0
        %v1950 = vsel %vm801, %v1920, 0
        %v1953 = vsel %vm801, %v1921, 0
        %v1956 = vsel %vm801, %v1922, 0
        %v1959 = vsel %vm801, %v1923, 0
        %v1962 = vsel %vm801, %v1924, 0
        %v1965 = vsel %vm801, %v1925, 0
        %v1968 = vsel %vm841, %v1927, 0
        %1970 = vmatprep.subr.bf16.mxu0 0
        %1971 = vmatpush1.bf16.msra.mxu0 0
        %1972 = vmatprep.subr.bf16.mxu0 0
        %1973 = vmatpush1.bf16.msra.mxu0 0
        %1974 = vmatprep.subr.bf16.mxu0 0
        %1975 = vmatpush1.bf16.msra.mxu0 0
        %1976 = vmatprep.subr.bf16.mxu0 0
        %1977 = vmatpush1.bf16.msra.mxu0 0
        %1978 = vmatprep.subr.bf16.mxu0 0
        %1979 = vmatpush1.bf16.msra.mxu0 0
        %1980 = vmatprep.subr.bf16.mxu0 0
        %1981 = vmatpush1.bf16.msra.mxu0 0
        %1982 = vmatprep.subr.bf16.mxu0 0
        %1983 = vmatpush1.bf16.msra.mxu0 0
        %1984 = vmatprep.subr.bf16.mxu0 0
        %1985 = vmatpush1.bf16.msra.mxu0 %v1968
        %1986 = vmatprep.subr.bf16.mxu0 0
        %1987 = vmatpush2.bf16.msra.mxu0 0
        %1988 = vmatprep.subr.bf16.mxu0 0
        %1989 = vmatpush2.bf16.msra.mxu0 0
        %1990 = vmatprep.subr.bf16.mxu0 0
        %1991 = vmatpush2.bf16.msra.mxu0 0
        %1992 = vmatprep.subr.bf16.mxu0 0
        %1993 = vmatpush2.bf16.msra.mxu0 0
        %1994 = vmatprep.subr.bf16.mxu0 0
        %1995 = vmatpush2.bf16.msra.mxu0 0
        %1996 = vmatprep.subr.bf16.mxu0 0
        %1997 = vmatpush2.bf16.msra.mxu0 0
        %1998 = vmatprep.subr.bf16.mxu0 0
        %1999 = vmatpush2.bf16.msra.mxu0 0
        %2000 = vmatprep.subr.bf16.mxu0 0
        %2001 = vmatpush2.bf16.msra.mxu0 0
        %2002 = vmatprep.mubr.bf16.mxu0 0
        %2003 = vmatmul.mubr.bf16.gmra.mxu0 %v1929
        %v2004 = vpop.f32.mrf.mxu0
        %v2005 = vadd.f32 0.0, %v2004
        %v2006 = vpop.f32.mrf.mxu0
        %v2007 = vpop.f32.mrf.mxu0
        %v2008 = vadd.f32 0.0, %v2007
        %v2009 = vpop.f32.mrf.mxu0
        %2010 = vmatprep.mubr.bf16.mxu0 0
        %2011 = vmatmul.mubr.bf16.gmra.mxu0 %v1932
        %v2012 = vpop.f32.mrf.mxu0
        %v2013 = vadd.f32 0.0, %v2012
        %v2014 = vpop.f32.mrf.mxu0
        %v2015 = vpop.f32.mrf.mxu0
        %v2016 = vadd.f32 0.0, %v2015
        %v2017 = vpop.f32.mrf.mxu0
        %2018 = vmatprep.mubr.bf16.mxu0 0
        %2019 = vmatmul.mubr.bf16.gmra.mxu0 %v1935
        %v2020 = vpop.f32.mrf.mxu0
        %v2021 = vadd.f32 0.0, %v2020
        %v2022 = vpop.f32.mrf.mxu0
        %v2023 = vpop.f32.mrf.mxu0
        %v2024 = vadd.f32 0.0, %v2023
        %v2025 = vpop.f32.mrf.mxu0
        %2026 = vmatprep.mubr.bf16.mxu0 0
        %2027 = vmatmul.mubr.bf16.gmra.mxu0 %v1938
        %v2028 = vpop.f32.mrf.mxu0
        %v2029 = vadd.f32 0.0, %v2028
        %v2030 = vpop.f32.mrf.mxu0
        %v2031 = vpop.f32.mrf.mxu0
        %v2032 = vadd.f32 0.0, %v2031
        %v2033 = vpop.f32.mrf.mxu0
        %2034 = vmatprep.mubr.bf16.mxu0 0
        %2035 = vmatmul.mubr.bf16.gmra.mxu0 %v1941
        %v2036 = vpop.f32.mrf.mxu0
        %v2037 = vadd.f32 0.0, %v2036
        %v2038 = vpop.f32.mrf.mxu0
        %v2039 = vpop.f32.mrf.mxu0
        %v2040 = vadd.f32 0.0, %v2039
        %v2041 = vpop.f32.mrf.mxu0
        %2042 = vmatprep.mubr.bf16.mxu0 0
        %2043 = vmatmul.mubr.bf16.gmra.mxu0 %v1944
        %v2044 = vpop.f32.mrf.mxu0
        %v2045 = vadd.f32 0.0, %v2044
        %v2046 = vpop.f32.mrf.mxu0
        %v2047 = vpop.f32.mrf.mxu0
        %v2048 = vadd.f32 0.0, %v2047
        %v2049 = vpop.f32.mrf.mxu0
        %2050 = vmatprep.mubr.bf16.mxu0 0
        %2051 = vmatmul.mubr.bf16.gmra.mxu0 %v1947
        %v2052 = vpop.f32.mrf.mxu0
        %v2053 = vadd.f32 0.0, %v2052
        %v2054 = vpop.f32.mrf.mxu0
        %v2055 = vpop.f32.mrf.mxu0
        %v2056 = vadd.f32 0.0, %v2055
        %v2057 = vpop.f32.mrf.mxu0
        %2058 = vmatprep.mubr.bf16.mxu0 0
        %2059 = vmatmul.mubr.bf16.gmra.mxu0 %v1950
        %v2060 = vpop.f32.mrf.mxu0
        %v2061 = vadd.f32 0.0, %v2060
        %v2062 = vpop.f32.mrf.mxu0
        %v2063 = vpop.f32.mrf.mxu0
        %v2064 = vadd.f32 0.0, %v2063
        %v2065 = vpop.f32.mrf.mxu0
        %2066 = vmatprep.mubr.bf16.mxu0 0
        %2067 = vmatmul.mubr.bf16.gmra.mxu0 %v1953
        %v2068 = vpop.f32.mrf.mxu0
        %v2069 = vadd.f32 0.0, %v2068
        %v2070 = vpop.f32.mrf.mxu0
        %v2071 = vpop.f32.mrf.mxu0
        %v2072 = vadd.f32 0.0, %v2071
        %v2073 = vpop.f32.mrf.mxu0
        %2074 = vmatprep.mubr.bf16.mxu0 0
        %2075 = vmatmul.mubr.bf16.gmra.mxu0 %v1956
        %v2076 = vpop.f32.mrf.mxu0
        %v2077 = vadd.f32 0.0, %v2076
        %v2078 = vpop.f32.mrf.mxu0
        %v2079 = vpop.f32.mrf.mxu0
        %v2080 = vadd.f32 0.0, %v2079
        %v2081 = vpop.f32.mrf.mxu0
        %2082 = vmatprep.mubr.bf16.mxu0 0
        %2083 = vmatmul.mubr.bf16.gmra.mxu0 %v1959
        %v2084 = vpop.f32.mrf.mxu0
        %v2085 = vadd.f32 0.0, %v2084
        %v2086 = vpop.f32.mrf.mxu0
        %v2087 = vpop.f32.mrf.mxu0
        %v2088 = vadd.f32 0.0, %v2087
        %v2089 = vpop.f32.mrf.mxu0
        %2090 = vmatprep.mubr.bf16.mxu0 0
        %2091 = vmatmul.mubr.bf16.gmra.mxu0 %v1962
        %v2092 = vpop.f32.mrf.mxu0
        %v2093 = vadd.f32 0.0, %v2092
        %v2094 = vpop.f32.mrf.mxu0
        %v2095 = vpop.f32.mrf.mxu0
        %v2096 = vadd.f32 0.0, %v2095
        %v2097 = vpop.f32.mrf.mxu0
        %2098 = vmatprep.mubr.bf16.mxu0 0
        %2099 = vmatmul.mubr.bf16.gmra.mxu0 %v1965
        %v2100 = vpop.f32.mrf.mxu0
        %v2101 = vadd.f32 0.0, %v2100
        %v2102 = vpop.f32.mrf.mxu0
        %v2103 = vpop.f32.mrf.mxu0
        %v2104 = vpop.f32.mrf.mxu0
        %2105 = vdwg.mxu0
        %v2106 = vadd.f32 %v1863, %v2005
        %v2107 = vadd.f32 %v1864, %v2008
        %v2108 = vadd.f32 %v1865, %v2013
        %v2109 = vadd.f32 %v1866, %v2016
        %v2110 = vadd.f32 %v1867, %v2021
        %v2111 = vadd.f32 %v1868, %v2024
        %v2112 = vadd.f32 %v1869, %v2029
        %v2113 = vadd.f32 %v1870, %v2032
        %v2114 = vadd.f32 %v1871, %v2037
        %v2115 = vadd.f32 %v1872, %v2040
        %v2116 = vadd.f32 %v1873, %v2045
        %v2117 = vadd.f32 %v1874, %v2048
        %v2118 = vadd.f32 %v1875, %v2053
        %v2119 = vadd.f32 %v1876, %v2056
        %v2120 = vadd.f32 %v1877, %v2061
        %v2121 = vadd.f32 %v1878, %v2064
        %v2122 = vadd.f32 %v1879, %v2069
        %v2123 = vadd.f32 %v1880, %v2072
        %v2124 = vadd.f32 %v1881, %v2077
        %v2125 = vadd.f32 %v1882, %v2080
        %v2126 = vadd.f32 %v1883, %v2085
        %v2127 = vadd.f32 %v1884, %v2088
        %v2128 = vadd.f32 %v1885, %v2093
        %v2129 = vadd.f32 %v1886, %v2096
        %v2130 = vadd.f32 %v1887, %v2101
        %v2131 = vld [vmem:[%s711 + $0x6] sm:$0xff]
        %v2132 = vld [vmem:[%s711 + $0xe] sm:$0xff]
        %v2133 = vld [vmem:[%s711 + $0x16] sm:$0xff]
        %v2134 = vld [vmem:[%s711 + $0x1e] sm:$0xff]
        %v2135 = vld [vmem:[%s711 + $0x26] sm:$0xff]
        %v2136 = vld [vmem:[%s711 + $0x2e] sm:$0xff]
        %v2137 = vld [vmem:[%s711 + $0x36] sm:$0xff]
        %v2138 = vld [vmem:[%s711 + $0x3e] sm:$0xff]
        %v2139 = vld [vmem:[%s711 + $0x46] sm:$0xff]
        %v2140 = vld [vmem:[%s711 + $0x4e] sm:$0xff]
        %v2141 = vld [vmem:[%s711 + $0x56] sm:$0xff]
        %v2142 = vld [vmem:[%s711 + $0x5e] sm:$0xff]
        %v2143 = vld [vmem:[%s711 + $0x66] sm:$0xff]
        %v2144 = vld [vmem:[%s711 + $0x6e] sm:$0xff]
        %v2145 = vld [vmem:[%s711 + $0x76] sm:$0xff]
        %v2146 = vld [vmem:[%s711 + $0x7e] sm:$0xff]
        %v2147 = vld [vmem:[%s711 + $0x86] sm:$0xff]
        %v2148 = vld [vmem:[%s711 + $0x8e] sm:$0xff]
        %v2149 = vld [vmem:[%s711 + $0x96] sm:$0xff]
        %v2150 = vld [vmem:[%s711 + $0x9e] sm:$0xff]
        %v2151 = vld [vmem:[%s711 + $0xa6] sm:$0xff]
        %v2152 = vld [vmem:[%s711 + $0xae] sm:$0xff]
        %v2153 = vld [vmem:[%s711 + $0xb6] sm:$0xff]
        %v2154 = vld [vmem:[%s711 + $0xbe] sm:$0xff]
        %v2155 = vld [vmem:[%s711 + $0xc6] sm:$0xff]
        %v2156 = vpack.c.bf16 %v2132, %v2131
        %v2157 = vpack.c.bf16 %v2134, %v2133
        %v2158 = vpack.c.bf16 %v2136, %v2135
        %v2159 = vpack.c.bf16 %v2138, %v2137
        %v2160 = vpack.c.bf16 %v2140, %v2139
        %v2161 = vpack.c.bf16 %v2142, %v2141
        %v2162 = vpack.c.bf16 %v2144, %v2143
        %v2163 = vpack.c.bf16 %v2146, %v2145
        %v2164 = vpack.c.bf16 %v2148, %v2147
        %v2165 = vpack.c.bf16 %v2150, %v2149
        %v2166 = vpack.c.bf16 %v2152, %v2151
        %v2167 = vpack.c.bf16 %v2154, %v2153
        %v2168 = vpack.c.bf16 %v2155, %v2155
        %s2169 = scalar_lea.vmem [#allocation4], 24
        %v2170 = vld [vmem:[%s2169] sm:$0xf]
        %v2172 = vsel %vm801, %v2156, 0
        %v2175 = vsel %vm801, %v2157, 0
        %v2178 = vsel %vm801, %v2158, 0
        %v2181 = vsel %vm801, %v2159, 0
        %v2184 = vsel %vm801, %v2160, 0
        %v2187 = vsel %vm801, %v2161, 0
        %v2190 = vsel %vm801, %v2162, 0
        %v2193 = vsel %vm801, %v2163, 0
        %v2196 = vsel %vm801, %v2164, 0
        %v2199 = vsel %vm801, %v2165, 0
        %v2202 = vsel %vm801, %v2166, 0
        %v2205 = vsel %vm801, %v2167, 0
        %v2208 = vsel %vm801, %v2168, 0
        %v2211 = vsel %vm841, %v2170, 0
        %2213 = vmatprep.subr.bf16.mxu0 0
        %2214 = vmatpush1.bf16.msra.mxu0 0
        %2215 = vmatprep.subr.bf16.mxu0 0
        %2216 = vmatpush1.bf16.msra.mxu0 0
        %2217 = vmatprep.subr.bf16.mxu0 0
        %2218 = vmatpush1.bf16.msra.mxu0 0
        %2219 = vmatprep.subr.bf16.mxu0 0
        %2220 = vmatpush1.bf16.msra.mxu0 0
        %2221 = vmatprep.subr.bf16.mxu0 0
        %2222 = vmatpush1.bf16.msra.mxu0 0
        %2223 = vmatprep.subr.bf16.mxu0 0
        %2224 = vmatpush1.bf16.msra.mxu0 0
        %2225 = vmatprep.subr.bf16.mxu0 0
        %2226 = vmatpush1.bf16.msra.mxu0 0
        %2227 = vmatprep.subr.bf16.mxu0 0
        %2228 = vmatpush1.bf16.msra.mxu0 %v2211
        %2229 = vmatprep.subr.bf16.mxu0 0
        %2230 = vmatpush2.bf16.msra.mxu0 0
        %2231 = vmatprep.subr.bf16.mxu0 0
        %2232 = vmatpush2.bf16.msra.mxu0 0
        %2233 = vmatprep.subr.bf16.mxu0 0
        %2234 = vmatpush2.bf16.msra.mxu0 0
        %2235 = vmatprep.subr.bf16.mxu0 0
        %2236 = vmatpush2.bf16.msra.mxu0 0
        %2237 = vmatprep.subr.bf16.mxu0 0
        %2238 = vmatpush2.bf16.msra.mxu0 0
        %2239 = vmatprep.subr.bf16.mxu0 0
        %2240 = vmatpush2.bf16.msra.mxu0 0
        %2241 = vmatprep.subr.bf16.mxu0 0
        %2242 = vmatpush2.bf16.msra.mxu0 0
        %2243 = vmatprep.subr.bf16.mxu0 0
        %2244 = vmatpush2.bf16.msra.mxu0 0
        %2245 = vmatprep.mubr.bf16.mxu0 0
        %2246 = vmatmul.mubr.bf16.gmra.mxu0 %v2172
        %v2247 = vpop.f32.mrf.mxu0
        %v2248 = vadd.f32 0.0, %v2247
        %v2249 = vpop.f32.mrf.mxu0
        %v2250 = vpop.f32.mrf.mxu0
        %v2251 = vadd.f32 0.0, %v2250
        %v2252 = vpop.f32.mrf.mxu0
        %2253 = vmatprep.mubr.bf16.mxu0 0
        %2254 = vmatmul.mubr.bf16.gmra.mxu0 %v2175
        %v2255 = vpop.f32.mrf.mxu0
        %v2256 = vadd.f32 0.0, %v2255
        %v2257 = vpop.f32.mrf.mxu0
        %v2258 = vpop.f32.mrf.mxu0
        %v2259 = vadd.f32 0.0, %v2258
        %v2260 = vpop.f32.mrf.mxu0
        %2261 = vmatprep.mubr.bf16.mxu0 0
        %2262 = vmatmul.mubr.bf16.gmra.mxu0 %v2178
        %v2263 = vpop.f32.mrf.mxu0
        %v2264 = vadd.f32 0.0, %v2263
        %v2265 = vpop.f32.mrf.mxu0
        %v2266 = vpop.f32.mrf.mxu0
        %v2267 = vadd.f32 0.0, %v2266
        %v2268 = vpop.f32.mrf.mxu0
        %2269 = vmatprep.mubr.bf16.mxu0 0
        %2270 = vmatmul.mubr.bf16.gmra.mxu0 %v2181
        %v2271 = vpop.f32.mrf.mxu0
        %v2272 = vadd.f32 0.0, %v2271
        %v2273 = vpop.f32.mrf.mxu0
        %v2274 = vpop.f32.mrf.mxu0
        %v2275 = vadd.f32 0.0, %v2274
        %v2276 = vpop.f32.mrf.mxu0
        %2277 = vmatprep.mubr.bf16.mxu0 0
        %2278 = vmatmul.mubr.bf16.gmra.mxu0 %v2184
        %v2279 = vpop.f32.mrf.mxu0
        %v2280 = vadd.f32 0.0, %v2279
        %v2281 = vpop.f32.mrf.mxu0
        %v2282 = vpop.f32.mrf.mxu0
        %v2283 = vadd.f32 0.0, %v2282
        %v2284 = vpop.f32.mrf.mxu0
        %2285 = vmatprep.mubr.bf16.mxu0 0
        %2286 = vmatmul.mubr.bf16.gmra.mxu0 %v2187
        %v2287 = vpop.f32.mrf.mxu0
        %v2288 = vadd.f32 0.0, %v2287
        %v2289 = vpop.f32.mrf.mxu0
        %v2290 = vpop.f32.mrf.mxu0
        %v2291 = vadd.f32 0.0, %v2290
        %v2292 = vpop.f32.mrf.mxu0
        %2293 = vmatprep.mubr.bf16.mxu0 0
        %2294 = vmatmul.mubr.bf16.gmra.mxu0 %v2190
        %v2295 = vpop.f32.mrf.mxu0
        %v2296 = vadd.f32 0.0, %v2295
        %v2297 = vpop.f32.mrf.mxu0
        %v2298 = vpop.f32.mrf.mxu0
        %v2299 = vadd.f32 0.0, %v2298
        %v2300 = vpop.f32.mrf.mxu0
        %2301 = vmatprep.mubr.bf16.mxu0 0
        %2302 = vmatmul.mubr.bf16.gmra.mxu0 %v2193
        %v2303 = vpop.f32.mrf.mxu0
        %v2304 = vadd.f32 0.0, %v2303
        %v2305 = vpop.f32.mrf.mxu0
        %v2306 = vpop.f32.mrf.mxu0
        %v2307 = vadd.f32 0.0, %v2306
        %v2308 = vpop.f32.mrf.mxu0
        %2309 = vmatprep.mubr.bf16.mxu0 0
        %2310 = vmatmul.mubr.bf16.gmra.mxu0 %v2196
        %v2311 = vpop.f32.mrf.mxu0
        %v2312 = vadd.f32 0.0, %v2311
        %v2313 = vpop.f32.mrf.mxu0
        %v2314 = vpop.f32.mrf.mxu0
        %v2315 = vadd.f32 0.0, %v2314
        %v2316 = vpop.f32.mrf.mxu0
        %2317 = vmatprep.mubr.bf16.mxu0 0
        %2318 = vmatmul.mubr.bf16.gmra.mxu0 %v2199
        %v2319 = vpop.f32.mrf.mxu0
        %v2320 = vadd.f32 0.0, %v2319
        %v2321 = vpop.f32.mrf.mxu0
        %v2322 = vpop.f32.mrf.mxu0
        %v2323 = vadd.f32 0.0, %v2322
        %v2324 = vpop.f32.mrf.mxu0
        %2325 = vmatprep.mubr.bf16.mxu0 0
        %2326 = vmatmul.mubr.bf16.gmra.mxu0 %v2202
        %v2327 = vpop.f32.mrf.mxu0
        %v2328 = vadd.f32 0.0, %v2327
        %v2329 = vpop.f32.mrf.mxu0
        %v2330 = vpop.f32.mrf.mxu0
        %v2331 = vadd.f32 0.0, %v2330
        %v2332 = vpop.f32.mrf.mxu0
        %2333 = vmatprep.mubr.bf16.mxu0 0
        %2334 = vmatmul.mubr.bf16.gmra.mxu0 %v2205
        %v2335 = vpop.f32.mrf.mxu0
        %v2336 = vadd.f32 0.0, %v2335
        %v2337 = vpop.f32.mrf.mxu0
        %v2338 = vpop.f32.mrf.mxu0
        %v2339 = vadd.f32 0.0, %v2338
        %v2340 = vpop.f32.mrf.mxu0
        %2341 = vmatprep.mubr.bf16.mxu0 0
        %2342 = vmatmul.mubr.bf16.gmra.mxu0 %v2208
        %v2343 = vpop.f32.mrf.mxu0
        %v2344 = vadd.f32 0.0, %v2343
        %v2345 = vpop.f32.mrf.mxu0
        %v2346 = vpop.f32.mrf.mxu0
        %v2347 = vpop.f32.mrf.mxu0
        %2348 = vdwg.mxu0
        %v2349 = vadd.f32 %v2106, %v2248
        %v2350 = vadd.f32 %v2107, %v2251
        %v2351 = vadd.f32 %v2108, %v2256
        %v2352 = vadd.f32 %v2109, %v2259
        %v2353 = vadd.f32 %v2110, %v2264
        %v2354 = vadd.f32 %v2111, %v2267
        %v2355 = vadd.f32 %v2112, %v2272
        %v2356 = vadd.f32 %v2113, %v2275
        %v2357 = vadd.f32 %v2114, %v2280
        %v2358 = vadd.f32 %v2115, %v2283
        %v2359 = vadd.f32 %v2116, %v2288
        %v2360 = vadd.f32 %v2117, %v2291
        %v2361 = vadd.f32 %v2118, %v2296
        %v2362 = vadd.f32 %v2119, %v2299
        %v2363 = vadd.f32 %v2120, %v2304
        %v2364 = vadd.f32 %v2121, %v2307
        %v2365 = vadd.f32 %v2122, %v2312
        %v2366 = vadd.f32 %v2123, %v2315
        %v2367 = vadd.f32 %v2124, %v2320
        %v2368 = vadd.f32 %v2125, %v2323
        %v2369 = vadd.f32 %v2126, %v2328
        %v2370 = vadd.f32 %v2127, %v2331
        %v2371 = vadd.f32 %v2128, %v2336
        %v2372 = vadd.f32 %v2129, %v2339
        %v2373 = vadd.f32 %v2130, %v2344
        %v2374 = vld [vmem:[%s711 + $0x7] sm:$0xff]
        %v2375 = vld [vmem:[%s711 + $0xf] sm:$0xff]
        %v2376 = vld [vmem:[%s711 + $0x17] sm:$0xff]
        %v2377 = vld [vmem:[%s711 + $0x1f] sm:$0xff]
        %v2378 = vld [vmem:[%s711 + $0x27] sm:$0xff]
        %v2379 = vld [vmem:[%s711 + $0x2f] sm:$0xff]
        %v2380 = vld [vmem:[%s711 + $0x37] sm:$0xff]
        %v2381 = vld [vmem:[%s711 + $0x3f] sm:$0xff]
        %v2382 = vld [vmem:[%s711 + $0x47] sm:$0xff]
        %v2383 = vld [vmem:[%s711 + $0x4f] sm:$0xff]
        %v2384 = vld [vmem:[%s711 + $0x57] sm:$0xff]
        %v2385 = vld [vmem:[%s711 + $0x5f] sm:$0xff]
        %v2386 = vld [vmem:[%s711 + $0x67] sm:$0xff]
        %v2387 = vld [vmem:[%s711 + $0x6f] sm:$0xff]
        %v2388 = vld [vmem:[%s711 + $0x77] sm:$0xff]
        %v2389 = vld [vmem:[%s711 + $0x7f] sm:$0xff]
        %v2390 = vld [vmem:[%s711 + $0x87] sm:$0xff]
        %v2391 = vld [vmem:[%s711 + $0x8f] sm:$0xff]
        %v2392 = vld [vmem:[%s711 + $0x97] sm:$0xff]
        %v2393 = vld [vmem:[%s711 + $0x9f] sm:$0xff]
        %v2394 = vld [vmem:[%s711 + $0xa7] sm:$0xff]
        %v2395 = vld [vmem:[%s711 + $0xaf] sm:$0xff]
        %v2396 = vld [vmem:[%s711 + $0xb7] sm:$0xff]
        %v2397 = vld [vmem:[%s711 + $0xbf] sm:$0xff]
        %v2398 = vld [vmem:[%s711 + $0xc7] sm:$0xff]
        %v2399 = vpack.c.bf16 %v2375, %v2374
        %v2400 = vpack.c.bf16 %v2377, %v2376
        %v2401 = vpack.c.bf16 %v2379, %v2378
        %v2402 = vpack.c.bf16 %v2381, %v2380
        %v2403 = vpack.c.bf16 %v2383, %v2382
        %v2404 = vpack.c.bf16 %v2385, %v2384
        %v2405 = vpack.c.bf16 %v2387, %v2386
        %v2406 = vpack.c.bf16 %v2389, %v2388
        %v2407 = vpack.c.bf16 %v2391, %v2390
        %v2408 = vpack.c.bf16 %v2393, %v2392
        %v2409 = vpack.c.bf16 %v2395, %v2394
        %v2410 = vpack.c.bf16 %v2397, %v2396
        %v2411 = vpack.c.bf16 %v2398, %v2398
        %s2412 = scalar_lea.vmem [#allocation4], 28
        %v2413 = vld [vmem:[%s2412] sm:$0xf]
        %v2415 = vsel %vm801, %v2399, 0
        %v2418 = vsel %vm801, %v2400, 0
        %v2421 = vsel %vm801, %v2401, 0
        %v2424 = vsel %vm801, %v2402, 0
        %v2427 = vsel %vm801, %v2403, 0
        %v2430 = vsel %vm801, %v2404, 0
        %v2433 = vsel %vm801, %v2405, 0
        %v2436 = vsel %vm801, %v2406, 0
        %v2439 = vsel %vm801, %v2407, 0
        %v2442 = vsel %vm801, %v2408, 0
        %v2445 = vsel %vm801, %v2409, 0
        %v2448 = vsel %vm801, %v2410, 0
        %v2451 = vsel %vm801, %v2411, 0
        %v2454 = vsel %vm841, %v2413, 0
        %2456 = vmatprep.subr.bf16.mxu0 0
        %2457 = vmatpush1.bf16.msra.mxu0 0
        %2458 = vmatprep.subr.bf16.mxu0 0
        %2459 = vmatpush1.bf16.msra.mxu0 0
        %2460 = vmatprep.subr.bf16.mxu0 0
        %2461 = vmatpush1.bf16.msra.mxu0 0
        %2462 = vmatprep.subr.bf16.mxu0 0
        %2463 = vmatpush1.bf16.msra.mxu0 0
        %2464 = vmatprep.subr.bf16.mxu0 0
        %2465 = vmatpush1.bf16.msra.mxu0 0
        %2466 = vmatprep.subr.bf16.mxu0 0
        %2467 = vmatpush1.bf16.msra.mxu0 0
        %2468 = vmatprep.subr.bf16.mxu0 0
        %2469 = vmatpush1.bf16.msra.mxu0 0
        %2470 = vmatprep.subr.bf16.mxu0 0
        %2471 = vmatpush1.bf16.msra.mxu0 %v2454
        %2472 = vmatprep.subr.bf16.mxu0 0
        %2473 = vmatpush2.bf16.msra.mxu0 0
        %2474 = vmatprep.subr.bf16.mxu0 0
        %2475 = vmatpush2.bf16.msra.mxu0 0
        %2476 = vmatprep.subr.bf16.mxu0 0
        %2477 = vmatpush2.bf16.msra.mxu0 0
        %2478 = vmatprep.subr.bf16.mxu0 0
        %2479 = vmatpush2.bf16.msra.mxu0 0
        %2480 = vmatprep.subr.bf16.mxu0 0
        %2481 = vmatpush2.bf16.msra.mxu0 0
        %2482 = vmatprep.subr.bf16.mxu0 0
        %2483 = vmatpush2.bf16.msra.mxu0 0
        %2484 = vmatprep.subr.bf16.mxu0 0
        %2485 = vmatpush2.bf16.msra.mxu0 0
        %2486 = vmatprep.subr.bf16.mxu0 0
        %2487 = vmatpush2.bf16.msra.mxu0 0
        %2488 = vmatprep.mubr.bf16.mxu0 0
        %2489 = vmatmul.mubr.bf16.gmra.mxu0 %v2415
        %v2490 = vpop.f32.mrf.mxu0
        %v2491 = vadd.f32 0.0, %v2490
        %v2492 = vpop.f32.mrf.mxu0
        %v2493 = vpop.f32.mrf.mxu0
        %v2494 = vadd.f32 0.0, %v2493
        %v2495 = vpop.f32.mrf.mxu0
        %2496 = vmatprep.mubr.bf16.mxu0 0
        %2497 = vmatmul.mubr.bf16.gmra.mxu0 %v2418
        %v2498 = vpop.f32.mrf.mxu0
        %v2499 = vadd.f32 0.0, %v2498
        %v2500 = vpop.f32.mrf.mxu0
        %v2501 = vpop.f32.mrf.mxu0
        %v2502 = vadd.f32 0.0, %v2501
        %v2503 = vpop.f32.mrf.mxu0
        %2504 = vmatprep.mubr.bf16.mxu0 0
        %2505 = vmatmul.mubr.bf16.gmra.mxu0 %v2421
        %v2506 = vpop.f32.mrf.mxu0
        %v2507 = vadd.f32 0.0, %v2506
        %v2508 = vpop.f32.mrf.mxu0
        %v2509 = vpop.f32.mrf.mxu0
        %v2510 = vadd.f32 0.0, %v2509
        %v2511 = vpop.f32.mrf.mxu0
        %2512 = vmatprep.mubr.bf16.mxu0 0
        %2513 = vmatmul.mubr.bf16.gmra.mxu0 %v2424
        %v2514 = vpop.f32.mrf.mxu0
        %v2515 = vadd.f32 0.0, %v2514
        %v2516 = vpop.f32.mrf.mxu0
        %v2517 = vpop.f32.mrf.mxu0
        %v2518 = vadd.f32 0.0, %v2517
        %v2519 = vpop.f32.mrf.mxu0
        %2520 = vmatprep.mubr.bf16.mxu0 0
        %2521 = vmatmul.mubr.bf16.gmra.mxu0 %v2427
        %v2522 = vpop.f32.mrf.mxu0
        %v2523 = vadd.f32 0.0, %v2522
        %v2524 = vpop.f32.mrf.mxu0
        %v2525 = vpop.f32.mrf.mxu0
        %v2526 = vadd.f32 0.0, %v2525
        %v2527 = vpop.f32.mrf.mxu0
        %2528 = vmatprep.mubr.bf16.mxu0 0
        %2529 = vmatmul.mubr.bf16.gmra.mxu0 %v2430
        %v2530 = vpop.f32.mrf.mxu0
        %v2531 = vadd.f32 0.0, %v2530
        %v2532 = vpop.f32.mrf.mxu0
        %v2533 = vpop.f32.mrf.mxu0
        %v2534 = vadd.f32 0.0, %v2533
        %v2535 = vpop.f32.mrf.mxu0
        %2536 = vmatprep.mubr.bf16.mxu0 0
        %2537 = vmatmul.mubr.bf16.gmra.mxu0 %v2433
        %v2538 = vpop.f32.mrf.mxu0
        %v2539 = vadd.f32 0.0, %v2538
        %v2540 = vpop.f32.mrf.mxu0
        %v2541 = vpop.f32.mrf.mxu0
        %v2542 = vadd.f32 0.0, %v2541
        %v2543 = vpop.f32.mrf.mxu0
        %2544 = vmatprep.mubr.bf16.mxu0 0
        %2545 = vmatmul.mubr.bf16.gmra.mxu0 %v2436
        %v2546 = vpop.f32.mrf.mxu0
        %v2547 = vadd.f32 0.0, %v2546
        %v2548 = vpop.f32.mrf.mxu0
        %v2549 = vpop.f32.mrf.mxu0
        %v2550 = vadd.f32 0.0, %v2549
        %v2551 = vpop.f32.mrf.mxu0
        %2552 = vmatprep.mubr.bf16.mxu0 0
        %2553 = vmatmul.mubr.bf16.gmra.mxu0 %v2439
        %v2554 = vpop.f32.mrf.mxu0
        %v2555 = vadd.f32 0.0, %v2554
        %v2556 = vpop.f32.mrf.mxu0
        %v2557 = vpop.f32.mrf.mxu0
        %v2558 = vadd.f32 0.0, %v2557
        %v2559 = vpop.f32.mrf.mxu0
        %2560 = vmatprep.mubr.bf16.mxu0 0
        %2561 = vmatmul.mubr.bf16.gmra.mxu0 %v2442
        %v2562 = vpop.f32.mrf.mxu0
        %v2563 = vadd.f32 0.0, %v2562
        %v2564 = vpop.f32.mrf.mxu0
        %v2565 = vpop.f32.mrf.mxu0
        %v2566 = vadd.f32 0.0, %v2565
        %v2567 = vpop.f32.mrf.mxu0
        %2568 = vmatprep.mubr.bf16.mxu0 0
        %2569 = vmatmul.mubr.bf16.gmra.mxu0 %v2445
        %v2570 = vpop.f32.mrf.mxu0
        %v2571 = vadd.f32 0.0, %v2570
        %v2572 = vpop.f32.mrf.mxu0
        %v2573 = vpop.f32.mrf.mxu0
        %v2574 = vadd.f32 0.0, %v2573
        %v2575 = vpop.f32.mrf.mxu0
        %2576 = vmatprep.mubr.bf16.mxu0 0
        %2577 = vmatmul.mubr.bf16.gmra.mxu0 %v2448
        %v2578 = vpop.f32.mrf.mxu0
        %v2579 = vadd.f32 0.0, %v2578
        %v2580 = vpop.f32.mrf.mxu0
        %v2581 = vpop.f32.mrf.mxu0
        %v2582 = vadd.f32 0.0, %v2581
        %v2583 = vpop.f32.mrf.mxu0
        %2584 = vmatprep.mubr.bf16.mxu0 0
        %2585 = vmatmul.mubr.bf16.gmra.mxu0 %v2451
        %v2586 = vpop.f32.mrf.mxu0
        %v2587 = vadd.f32 0.0, %v2586
        %v2588 = vpop.f32.mrf.mxu0
        %v2589 = vpop.f32.mrf.mxu0
        %v2590 = vpop.f32.mrf.mxu0
        %2591 = vdwg.mxu0
        %v2592 = vadd.f32 %v2349, %v2491
        %v2593 = vadd.f32 %v2350, %v2494
        %v2594 = vadd.f32 %v2351, %v2499
        %v2595 = vadd.f32 %v2352, %v2502
        %v2596 = vadd.f32 %v2353, %v2507
        %v2597 = vadd.f32 %v2354, %v2510
        %v2598 = vadd.f32 %v2355, %v2515
        %v2599 = vadd.f32 %v2356, %v2518
        %v2600 = vadd.f32 %v2357, %v2523
        %v2601 = vadd.f32 %v2358, %v2526
        %v2602 = vadd.f32 %v2359, %v2531
        %v2603 = vadd.f32 %v2360, %v2534
        %v2604 = vadd.f32 %v2361, %v2539
        %v2605 = vadd.f32 %v2362, %v2542
        %v2606 = vadd.f32 %v2363, %v2547
        %v2607 = vadd.f32 %v2364, %v2550
        %v2608 = vadd.f32 %v2365, %v2555
        %v2609 = vadd.f32 %v2366, %v2558
        %v2610 = vadd.f32 %v2367, %v2563
        %v2611 = vadd.f32 %v2368, %v2566
        %v2612 = vadd.f32 %v2369, %v2571
        %v2613 = vadd.f32 %v2370, %v2574
        %v2614 = vadd.f32 %v2371, %v2579
        %v2615 = vadd.f32 %v2372, %v2582
        %v2616 = vadd.f32 %v2373, %v2587
        %v2617 = vld [vmem:[%s711 + $0x8] sm:$0xff]
        %v2618 = vld [vmem:[%s711 + $0x10] sm:$0xff]
        %v2619 = vld [vmem:[%s711 + $0x18] sm:$0xff]
        %v2620 = vld [vmem:[%s711 + $0x20] sm:$0xff]
        %v2621 = vld [vmem:[%s711 + $0x28] sm:$0xff]
        %v2622 = vld [vmem:[%s711 + $0x30] sm:$0xff]
        %v2623 = vld [vmem:[%s711 + $0x38] sm:$0xff]
        %v2624 = vld [vmem:[%s711 + $0x40] sm:$0xff]
        %v2625 = vld [vmem:[%s711 + $0x48] sm:$0xff]
        %v2626 = vld [vmem:[%s711 + $0x50] sm:$0xff]
        %v2627 = vld [vmem:[%s711 + $0x58] sm:$0xff]
        %v2628 = vld [vmem:[%s711 + $0x60] sm:$0xff]
        %v2629 = vld [vmem:[%s711 + $0x68] sm:$0xff]
        %v2630 = vld [vmem:[%s711 + $0x70] sm:$0xff]
        %v2631 = vld [vmem:[%s711 + $0x78] sm:$0xff]
        %v2632 = vld [vmem:[%s711 + $0x80] sm:$0xff]
        %v2633 = vld [vmem:[%s711 + $0x88] sm:$0xff]
        %v2634 = vld [vmem:[%s711 + $0x90] sm:$0xff]
        %v2635 = vld [vmem:[%s711 + $0x98] sm:$0xff]
        %v2636 = vld [vmem:[%s711 + $0xa0] sm:$0xff]
        %v2637 = vld [vmem:[%s711 + $0xa8] sm:$0xff]
        %v2638 = vld [vmem:[%s711 + $0xb0] sm:$0xff]
        %v2639 = vld [vmem:[%s711 + $0xb8] sm:$0xff]
        %v2640 = vld [vmem:[%s711 + $0xc0] sm:$0xff]
        %v2641 = vld [vmem:[%s711 + $0xc8] sm:$0xff]
        %v2642 = vpack.c.bf16 %v2618, %v2617
        %v2643 = vpack.c.bf16 %v2620, %v2619
        %v2644 = vpack.c.bf16 %v2622, %v2621
        %v2645 = vpack.c.bf16 %v2624, %v2623
        %v2646 = vpack.c.bf16 %v2626, %v2625
        %v2647 = vpack.c.bf16 %v2628, %v2627
        %v2648 = vpack.c.bf16 %v2630, %v2629
        %v2649 = vpack.c.bf16 %v2632, %v2631
        %v2650 = vpack.c.bf16 %v2634, %v2633
        %v2651 = vpack.c.bf16 %v2636, %v2635
        %v2652 = vpack.c.bf16 %v2638, %v2637
        %v2653 = vpack.c.bf16 %v2640, %v2639
        %v2654 = vpack.c.bf16 %v2641, %v2641
        %s2655 = scalar_lea.vmem [#allocation4], 32
        %v2656 = vld [vmem:[%s2655] sm:$0xf]
        %v2658 = vsel %vm801, %v2642, 0
        %v2661 = vsel %vm801, %v2643, 0
        %v2664 = vsel %vm801, %v2644, 0
        %v2667 = vsel %vm801, %v2645, 0
        %v2670 = vsel %vm801, %v2646, 0
        %v2673 = vsel %vm801, %v2647, 0
        %v2676 = vsel %vm801, %v2648, 0
        %v2679 = vsel %vm801, %v2649, 0
        %v2682 = vsel %vm801, %v2650, 0
        %v2685 = vsel %vm801, %v2651, 0
        %v2688 = vsel %vm801, %v2652, 0
        %v2691 = vsel %vm801, %v2653, 0
        %v2694 = vsel %vm801, %v2654, 0
        %v2697 = vsel %vm841, %v2656, 0
        %2699 = vmatprep.subr.bf16.mxu0 0
        %2700 = vmatpush1.bf16.msra.mxu0 0
        %2701 = vmatprep.subr.bf16.mxu0 0
        %2702 = vmatpush1.bf16.msra.mxu0 0
        %2703 = vmatprep.subr.bf16.mxu0 0
        %2704 = vmatpush1.bf16.msra.mxu0 0
        %2705 = vmatprep.subr.bf16.mxu0 0
        %2706 = vmatpush1.bf16.msra.mxu0 0
        %2707 = vmatprep.subr.bf16.mxu0 0
        %2708 = vmatpush1.bf16.msra.mxu0 0
        %2709 = vmatprep.subr.bf16.mxu0 0
        %2710 = vmatpush1.bf16.msra.mxu0 0
        %2711 = vmatprep.subr.bf16.mxu0 0
        %2712 = vmatpush1.bf16.msra.mxu0 0
        %2713 = vmatprep.subr.bf16.mxu0 0
        %2714 = vmatpush1.bf16.msra.mxu0 %v2697
        %2715 = vmatprep.subr.bf16.mxu0 0
        %2716 = vmatpush2.bf16.msra.mxu0 0
        %2717 = vmatprep.subr.bf16.mxu0 0
        %2718 = vmatpush2.bf16.msra.mxu0 0
        %2719 = vmatprep.subr.bf16.mxu0 0
        %2720 = vmatpush2.bf16.msra.mxu0 0
        %2721 = vmatprep.subr.bf16.mxu0 0
        %2722 = vmatpush2.bf16.msra.mxu0 0
        %2723 = vmatprep.subr.bf16.mxu0 0
        %2724 = vmatpush2.bf16.msra.mxu0 0
        %2725 = vmatprep.subr.bf16.mxu0 0
        %2726 = vmatpush2.bf16.msra.mxu0 0
        %2727 = vmatprep.subr.bf16.mxu0 0
        %2728 = vmatpush2.bf16.msra.mxu0 0
        %2729 = vmatprep.subr.bf16.mxu0 0
        %2730 = vmatpush2.bf16.msra.mxu0 0
        %2731 = vmatprep.mubr.bf16.mxu0 0
        %2732 = vmatmul.mubr.bf16.gmra.mxu0 %v2658
        %v2733 = vpop.f32.mrf.mxu0
        %v2734 = vadd.f32 0.0, %v2733
        %v2735 = vpop.f32.mrf.mxu0
        %v2736 = vpop.f32.mrf.mxu0
        %v2737 = vadd.f32 0.0, %v2736
        %v2738 = vpop.f32.mrf.mxu0
        %2739 = vmatprep.mubr.bf16.mxu0 0
        %2740 = vmatmul.mubr.bf16.gmra.mxu0 %v2661
        %v2741 = vpop.f32.mrf.mxu0
        %v2742 = vadd.f32 0.0, %v2741
        %v2743 = vpop.f32.mrf.mxu0
        %v2744 = vpop.f32.mrf.mxu0
        %v2745 = vadd.f32 0.0, %v2744
        %v2746 = vpop.f32.mrf.mxu0
        %2747 = vmatprep.mubr.bf16.mxu0 0
        %2748 = vmatmul.mubr.bf16.gmra.mxu0 %v2664
        %v2749 = vpop.f32.mrf.mxu0
        %v2750 = vadd.f32 0.0, %v2749
        %v2751 = vpop.f32.mrf.mxu0
        %v2752 = vpop.f32.mrf.mxu0
        %v2753 = vadd.f32 0.0, %v2752
        %v2754 = vpop.f32.mrf.mxu0
        %2755 = vmatprep.mubr.bf16.mxu0 0
        %2756 = vmatmul.mubr.bf16.gmra.mxu0 %v2667
        %v2757 = vpop.f32.mrf.mxu0
        %v2758 = vadd.f32 0.0, %v2757
        %v2759 = vpop.f32.mrf.mxu0
        %v2760 = vpop.f32.mrf.mxu0
        %v2761 = vadd.f32 0.0, %v2760
        %v2762 = vpop.f32.mrf.mxu0
        %2763 = vmatprep.mubr.bf16.mxu0 0
        %2764 = vmatmul.mubr.bf16.gmra.mxu0 %v2670
        %v2765 = vpop.f32.mrf.mxu0
        %v2766 = vadd.f32 0.0, %v2765
        %v2767 = vpop.f32.mrf.mxu0
        %v2768 = vpop.f32.mrf.mxu0
        %v2769 = vadd.f32 0.0, %v2768
        %v2770 = vpop.f32.mrf.mxu0
        %2771 = vmatprep.mubr.bf16.mxu0 0
        %2772 = vmatmul.mubr.bf16.gmra.mxu0 %v2673
        %v2773 = vpop.f32.mrf.mxu0
        %v2774 = vadd.f32 0.0, %v2773
        %v2775 = vpop.f32.mrf.mxu0
        %v2776 = vpop.f32.mrf.mxu0
        %v2777 = vadd.f32 0.0, %v2776
        %v2778 = vpop.f32.mrf.mxu0
        %2779 = vmatprep.mubr.bf16.mxu0 0
        %2780 = vmatmul.mubr.bf16.gmra.mxu0 %v2676
        %v2781 = vpop.f32.mrf.mxu0
        %v2782 = vadd.f32 0.0, %v2781
        %v2783 = vpop.f32.mrf.mxu0
        %v2784 = vpop.f32.mrf.mxu0
        %v2785 = vadd.f32 0.0, %v2784
        %v2786 = vpop.f32.mrf.mxu0
        %2787 = vmatprep.mubr.bf16.mxu0 0
        %2788 = vmatmul.mubr.bf16.gmra.mxu0 %v2679
        %v2789 = vpop.f32.mrf.mxu0
        %v2790 = vadd.f32 0.0, %v2789
        %v2791 = vpop.f32.mrf.mxu0
        %v2792 = vpop.f32.mrf.mxu0
        %v2793 = vadd.f32 0.0, %v2792
        %v2794 = vpop.f32.mrf.mxu0
        %2795 = vmatprep.mubr.bf16.mxu0 0
        %2796 = vmatmul.mubr.bf16.gmra.mxu0 %v2682
        %v2797 = vpop.f32.mrf.mxu0
        %v2798 = vadd.f32 0.0, %v2797
        %v2799 = vpop.f32.mrf.mxu0
        %v2800 = vpop.f32.mrf.mxu0
        %v2801 = vadd.f32 0.0, %v2800
        %v2802 = vpop.f32.mrf.mxu0
        %2803 = vmatprep.mubr.bf16.mxu0 0
        %2804 = vmatmul.mubr.bf16.gmra.mxu0 %v2685
        %v2805 = vpop.f32.mrf.mxu0
        %v2806 = vadd.f32 0.0, %v2805
        %v2807 = vpop.f32.mrf.mxu0
        %v2808 = vpop.f32.mrf.mxu0
        %v2809 = vadd.f32 0.0, %v2808
        %v2810 = vpop.f32.mrf.mxu0
        %2811 = vmatprep.mubr.bf16.mxu0 0
        %2812 = vmatmul.mubr.bf16.gmra.mxu0 %v2688
        %v2813 = vpop.f32.mrf.mxu0
        %v2814 = vadd.f32 0.0, %v2813
        %v2815 = vpop.f32.mrf.mxu0
        %v2816 = vpop.f32.mrf.mxu0
        %v2817 = vadd.f32 0.0, %v2816
        %v2818 = vpop.f32.mrf.mxu0
        %2819 = vmatprep.mubr.bf16.mxu0 0
        %2820 = vmatmul.mubr.bf16.gmra.mxu0 %v2691
        %v2821 = vpop.f32.mrf.mxu0
        %v2822 = vadd.f32 0.0, %v2821
        %v2823 = vpop.f32.mrf.mxu0
        %v2824 = vpop.f32.mrf.mxu0
        %v2825 = vadd.f32 0.0, %v2824
        %v2826 = vpop.f32.mrf.mxu0
        %2827 = vmatprep.mubr.bf16.mxu0 0
        %2828 = vmatmul.mubr.bf16.gmra.mxu0 %v2694
        %v2829 = vpop.f32.mrf.mxu0
        %v2830 = vadd.f32 0.0, %v2829
        %v2831 = vpop.f32.mrf.mxu0
        %v2832 = vpop.f32.mrf.mxu0
        %v2833 = vpop.f32.mrf.mxu0
        %2834 = vdwg.mxu0
        %v2835 = vadd.f32 %v2592, %v2734
        %v2836 = vadd.f32 %v2593, %v2737
        %v2837 = vadd.f32 %v2594, %v2742
        %v2838 = vadd.f32 %v2595, %v2745
        %v2839 = vadd.f32 %v2596, %v2750
        %v2840 = vadd.f32 %v2597, %v2753
        %v2841 = vadd.f32 %v2598, %v2758
        %v2842 = vadd.f32 %v2599, %v2761
        %v2843 = vadd.f32 %v2600, %v2766
        %v2844 = vadd.f32 %v2601, %v2769
        %v2845 = vadd.f32 %v2602, %v2774
        %v2846 = vadd.f32 %v2603, %v2777
        %v2847 = vadd.f32 %v2604, %v2782
        %v2848 = vadd.f32 %v2605, %v2785
        %v2849 = vadd.f32 %v2606, %v2790
        %v2850 = vadd.f32 %v2607, %v2793
        %v2851 = vadd.f32 %v2608, %v2798
        %v2852 = vadd.f32 %v2609, %v2801
        %v2853 = vadd.f32 %v2610, %v2806
        %v2854 = vadd.f32 %v2611, %v2809
        %v2855 = vadd.f32 %v2612, %v2814
        %v2856 = vadd.f32 %v2613, %v2817
        %v2857 = vadd.f32 %v2614, %v2822
        %v2858 = vadd.f32 %v2615, %v2825
        %v2859 = vadd.f32 %v2616, %v2830
        %v2860 = vld [vmem:[%s3] sm:$0x1]
        %v2862 = vlaneseq
        %v2863 = vshrl.u32 %v2862, 7
        %v2864 = vsub.s32 0, %v2863
        %v2865 = vrot.slane %v2860, %v2864
        %v2867 = vmul.f32 %v2835, %v2865
        %v2868 = vmul.f32 %v2836, %v2865
        %v2869 = vmul.f32 %v2837, %v2865
        %v2870 = vmul.f32 %v2838, %v2865
        %v2871 = vmul.f32 %v2839, %v2865
        %v2872 = vmul.f32 %v2840, %v2865
        %v2873 = vmul.f32 %v2841, %v2865
        %v2874 = vmul.f32 %v2842, %v2865
        %v2875 = vmul.f32 %v2843, %v2865
        %v2876 = vmul.f32 %v2844, %v2865
        %v2877 = vmul.f32 %v2845, %v2865
        %v2878 = vmul.f32 %v2846, %v2865
        %v2879 = vmul.f32 %v2847, %v2865
        %v2880 = vmul.f32 %v2848, %v2865
        %v2881 = vmul.f32 %v2849, %v2865
        %v2882 = vmul.f32 %v2850, %v2865
        %v2883 = vmul.f32 %v2851, %v2865
        %v2884 = vmul.f32 %v2852, %v2865
        %v2885 = vmul.f32 %v2853, %v2865
        %v2886 = vmul.f32 %v2854, %v2865
        %v2887 = vmul.f32 %v2855, %v2865
        %v2888 = vmul.f32 %v2856, %v2865
        %v2889 = vmul.f32 %v2857, %v2865
        %v2890 = vmul.f32 %v2858, %v2865
        %v2891 = vmul.f32 %v2859, %v2865
        %v2892 = vld [vmem:[%s4] sm:$0x1]
        %v2894 = vlaneseq
        %v2895 = vshrl.u32 %v2894, 7
        %v2896 = vsub.s32 0, %v2895
        %v2897 = vrot.slane %v2892, %v2896
        %v2899 = vadd.f32 %v2867, %v2897
        %v2900 = vadd.f32 %v2868, %v2897
        %v2901 = vadd.f32 %v2869, %v2897
        %v2902 = vadd.f32 %v2870, %v2897
        %v2903 = vadd.f32 %v2871, %v2897
        %v2904 = vadd.f32 %v2872, %v2897
        %v2905 = vadd.f32 %v2873, %v2897
        %v2906 = vadd.f32 %v2874, %v2897
        %v2907 = vadd.f32 %v2875, %v2897
        %v2908 = vadd.f32 %v2876, %v2897
        %v2909 = vadd.f32 %v2877, %v2897
        %v2910 = vadd.f32 %v2878, %v2897
        %v2911 = vadd.f32 %v2879, %v2897
        %v2912 = vadd.f32 %v2880, %v2897
        %v2913 = vadd.f32 %v2881, %v2897
        %v2914 = vadd.f32 %v2882, %v2897
        %v2915 = vadd.f32 %v2883, %v2897
        %v2916 = vadd.f32 %v2884, %v2897
        %v2917 = vadd.f32 %v2885, %v2897
        %v2918 = vadd.f32 %v2886, %v2897
        %v2919 = vadd.f32 %v2887, %v2897
        %v2920 = vadd.f32 %v2888, %v2897
        %v2921 = vadd.f32 %v2889, %v2897
        %v2922 = vadd.f32 %v2890, %v2897
        %v2923 = vadd.f32 %v2891, %v2897
        %v2924 = vmax.f32 %v2899, 0.0
        %v2925 = vmax.f32 %v2900, 0.0
        %v2926 = vmax.f32 %v2901, 0.0
        %v2927 = vmax.f32 %v2902, 0.0
        %v2928 = vmax.f32 %v2903, 0.0
        %v2929 = vmax.f32 %v2904, 0.0
        %v2930 = vmax.f32 %v2905, 0.0
        %v2931 = vmax.f32 %v2906, 0.0
        %v2932 = vmax.f32 %v2907, 0.0
        %v2933 = vmax.f32 %v2908, 0.0
        %v2934 = vmax.f32 %v2909, 0.0
        %v2935 = vmax.f32 %v2910, 0.0
        %v2936 = vmax.f32 %v2911, 0.0
        %v2937 = vmax.f32 %v2912, 0.0
        %v2938 = vmax.f32 %v2913, 0.0
        %v2939 = vmax.f32 %v2914, 0.0
        %v2940 = vmax.f32 %v2915, 0.0
        %v2941 = vmax.f32 %v2916, 0.0
        %v2942 = vmax.f32 %v2917, 0.0
        %v2943 = vmax.f32 %v2918, 0.0
        %v2944 = vmax.f32 %v2919, 0.0
        %v2945 = vmax.f32 %v2920, 0.0
        %v2946 = vmax.f32 %v2921, 0.0
        %v2947 = vmax.f32 %v2922, 0.0
        %v2948 = vmax.f32 %v2923, 0.0
        %2949 = vst [vmem:[#allocation2] sm:$0xff] %v2924
        %2950 = vst [vmem:[#allocation2 + $0x8] sm:$0xff] %v2925
        %2951 = vst [vmem:[#allocation2 + $0x10] sm:$0xff] %v2926
        %2952 = vst [vmem:[#allocation2 + $0x18] sm:$0xff] %v2927
        %2953 = vst [vmem:[#allocation2 + $0x20] sm:$0xff] %v2928
        %2954 = vst [vmem:[#allocation2 + $0x28] sm:$0xff] %v2929
        %2955 = vst [vmem:[#allocation2 + $0x30] sm:$0xff] %v2930
        %2956 = vst [vmem:[#allocation2 + $0x38] sm:$0xff] %v2931
        %2957 = vst [vmem:[#allocation2 + $0x40] sm:$0xff] %v2932
        %2958 = vst [vmem:[#allocation2 + $0x48] sm:$0xff] %v2933
        %2959 = vst [vmem:[#allocation2 + $0x50] sm:$0xff] %v2934
        %2960 = vst [vmem:[#allocation2 + $0x58] sm:$0xff] %v2935
        %2961 = vst [vmem:[#allocation2 + $0x60] sm:$0xff] %v2936
        %2962 = vst [vmem:[#allocation2 + $0x68] sm:$0xff] %v2937
        %2963 = vst [vmem:[#allocation2 + $0x70] sm:$0xff] %v2938
        %2964 = vst [vmem:[#allocation2 + $0x78] sm:$0xff] %v2939
        %2965 = vst [vmem:[#allocation2 + $0x80] sm:$0xff] %v2940
        %2966 = vst [vmem:[#allocation2 + $0x88] sm:$0xff] %v2941
        %2967 = vst [vmem:[#allocation2 + $0x90] sm:$0xff] %v2942
        %2968 = vst [vmem:[#allocation2 + $0x98] sm:$0xff] %v2943
        %2969 = vst [vmem:[#allocation2 + $0xa0] sm:$0xff] %v2944
        %2970 = vst [vmem:[#allocation2 + $0xa8] sm:$0xff] %v2945
        %2971 = vst [vmem:[#allocation2 + $0xb0] sm:$0xff] %v2946
        %2972 = vst [vmem:[#allocation2 + $0xb8] sm:$0xff] %v2947
        %2973 = vst [vmem:[#allocation2 + $0xc0] sm:$0xff] %v2948
        %v2974 = vld [vmem:[#allocation2] ss:$8 sm:$0xf]
        %v2975 = vld [vmem:[#allocation2] ss:$8 sm:$0xf0]
        %v2976 = vor.u32 %v2974, %v2975
        %s2977 = scalar_lea.vmem [#allocation2], 64
        %v2978 = vld [vmem:[%s2977] ss:$8 sm:$0xf]
        %v2979 = vld [vmem:[%s2977] ss:$8 sm:$0xf0]
        %v2980 = vor.u32 %v2978, %v2979
        %s2981 = scalar_lea.vmem [#allocation2], 128
        %v2982 = vld [vmem:[%s2981] ss:$8 sm:$0xf]
        %v2983 = vld [vmem:[%s2981] ss:$8 sm:$0xf0]
        %v2984 = vor.u32 %v2982, %v2983
        %s2985 = scalar_lea.vmem [#allocation2], 192
        %v2986 = vld [vmem:[%s2985] ss:$8 sm:$0x1]
        %s2987 = scalar_lea.vmem [#allocation2], 1
        %v2988 = vld [vmem:[%s2987] ss:$8 sm:$0xf]
        %v2989 = vld [vmem:[%s2987] ss:$8 sm:$0xf0]
        %v2990 = vor.u32 %v2988, %v2989
        %s2991 = scalar_lea.vmem [#allocation2], 65
        %v2992 = vld [vmem:[%s2991] ss:$8 sm:$0xf]
        %v2993 = vld [vmem:[%s2991] ss:$8 sm:$0xf0]
        %v2994 = vor.u32 %v2992, %v2993
        %s2995 = scalar_lea.vmem [#allocation2], 129
        %v2996 = vld [vmem:[%s2995] ss:$8 sm:$0xf]
        %v2997 = vld [vmem:[%s2995] ss:$8 sm:$0xf0]
        %v2998 = vor.u32 %v2996, %v2997
        %s2999 = scalar_lea.vmem [#allocation2], 193
        %v3000 = vld [vmem:[%s2999] ss:$8 sm:$0x1]
        %v3001 = vmax.f32 %v2976, %v2990
        %v3002 = vmax.f32 %v2980, %v2994
        %v3003 = vmax.f32 %v2984, %v2998
        %v3004 = vmax.f32 %v2986, %v3000
        %s3005 = scalar_lea.vmem [#allocation2], 2
        %v3006 = vld [vmem:[%s3005] ss:$8 sm:$0xf]
        %v3007 = vld [vmem:[%s3005] ss:$8 sm:$0xf0]
        %v3008 = vor.u32 %v3006, %v3007
        %s3009 = scalar_lea.vmem [#allocation2], 66
        %v3010 = vld [vmem:[%s3009] ss:$8 sm:$0xf]
        %v3011 = vld [vmem:[%s3009] ss:$8 sm:$0xf0]
        %v3012 = vor.u32 %v3010, %v3011
        %s3013 = scalar_lea.vmem [#allocation2], 130
        %v3014 = vld [vmem:[%s3013] ss:$8 sm:$0xf]
        %v3015 = vld [vmem:[%s3013] ss:$8 sm:$0xf0]
        %v3016 = vor.u32 %v3014, %v3015
        %s3017 = scalar_lea.vmem [#allocation2], 194
        %v3018 = vld [vmem:[%s3017] ss:$8 sm:$0x1]
        %v3019 = vmax.f32 %v3001, %v3008
        %v3020 = vmax.f32 %v3002, %v3012
        %v3021 = vmax.f32 %v3003, %v3016
        %v3022 = vmax.f32 %v3004, %v3018
        %s3023 = scalar_lea.vmem [#allocation2], 3
        %v3024 = vld [vmem:[%s3023] ss:$8 sm:$0xf]
        %v3025 = vld [vmem:[%s3023] ss:$8 sm:$0xf0]
        %v3026 = vor.u32 %v3024, %v3025
        %s3027 = scalar_lea.vmem [#allocation2], 67
        %v3028 = vld [vmem:[%s3027] ss:$8 sm:$0xf]
        %v3029 = vld [vmem:[%s3027] ss:$8 sm:$0xf0]
        %v3030 = vor.u32 %v3028, %v3029
        %s3031 = scalar_lea.vmem [#allocation2], 131
        %v3032 = vld [vmem:[%s3031] ss:$8 sm:$0xf]
        %v3033 = vld [vmem:[%s3031] ss:$8 sm:$0xf0]
        %v3034 = vor.u32 %v3032, %v3033
        %s3035 = scalar_lea.vmem [#allocation2], 195
        %v3036 = vld [vmem:[%s3035] ss:$8 sm:$0x1]
        %v3037 = vmax.f32 %v3019, %v3026
        %v3038 = vmax.f32 %v3020, %v3030
        %v3039 = vmax.f32 %v3021, %v3034
        %v3040 = vmax.f32 %v3022, %v3036
        %s3041 = scalar_lea.vmem [#allocation2], 4
        %v3042 = vld [vmem:[%s3041] ss:$8 sm:$0xf]
        %v3043 = vld [vmem:[%s3041] ss:$8 sm:$0xf0]
        %v3044 = vor.u32 %v3042, %v3043
        %s3045 = scalar_lea.vmem [#allocation2], 68
        %v3046 = vld [vmem:[%s3045] ss:$8 sm:$0xf]
        %v3047 = vld [vmem:[%s3045] ss:$8 sm:$0xf0]
        %v3048 = vor.u32 %v3046, %v3047
        %s3049 = scalar_lea.vmem [#allocation2], 132
        %v3050 = vld [vmem:[%s3049] ss:$8 sm:$0xf]
        %v3051 = vld [vmem:[%s3049] ss:$8 sm:$0xf0]
        %v3052 = vor.u32 %v3050, %v3051
        %s3053 = scalar_lea.vmem [#allocation2], 196
        %v3054 = vld [vmem:[%s3053] ss:$8 sm:$0x1]
        %v3055 = vmax.f32 %v3037, %v3044
        %v3056 = vmax.f32 %v3038, %v3048
        %v3057 = vmax.f32 %v3039, %v3052
        %v3058 = vmax.f32 %v3040, %v3054
        %s3059 = scalar_lea.vmem [#allocation2], 5
        %v3060 = vld [vmem:[%s3059] ss:$8 sm:$0xf]
        %v3061 = vld [vmem:[%s3059] ss:$8 sm:$0xf0]
        %v3062 = vor.u32 %v3060, %v3061
        %s3063 = scalar_lea.vmem [#allocation2], 69
        %v3064 = vld [vmem:[%s3063] ss:$8 sm:$0xf]
        %v3065 = vld [vmem:[%s3063] ss:$8 sm:$0xf0]
        %v3066 = vor.u32 %v3064, %v3065
        %s3067 = scalar_lea.vmem [#allocation2], 133
        %v3068 = vld [vmem:[%s3067] ss:$8 sm:$0xf]
        %v3069 = vld [vmem:[%s3067] ss:$8 sm:$0xf0]
        %v3070 = vor.u32 %v3068, %v3069
        %s3071 = scalar_lea.vmem [#allocation2], 197
        %v3072 = vld [vmem:[%s3071] ss:$8 sm:$0x1]
        %v3073 = vmax.f32 %v3055, %v3062
        %v3074 = vmax.f32 %v3056, %v3066
        %v3075 = vmax.f32 %v3057, %v3070
        %v3076 = vmax.f32 %v3058, %v3072
        %s3077 = scalar_lea.vmem [#allocation2], 6
        %v3078 = vld [vmem:[%s3077] ss:$8 sm:$0xf]
        %v3079 = vld [vmem:[%s3077] ss:$8 sm:$0xf0]
        %v3080 = vor.u32 %v3078, %v3079
        %s3081 = scalar_lea.vmem [#allocation2], 70
        %v3082 = vld [vmem:[%s3081] ss:$8 sm:$0xf]
        %v3083 = vld [vmem:[%s3081] ss:$8 sm:$0xf0]
        %v3084 = vor.u32 %v3082, %v3083
        %s3085 = scalar_lea.vmem [#allocation2], 134
        %v3086 = vld [vmem:[%s3085] ss:$8 sm:$0xf]
        %v3087 = vld [vmem:[%s3085] ss:$8 sm:$0xf0]
        %v3088 = vor.u32 %v3086, %v3087
        %s3089 = scalar_lea.vmem [#allocation2], 198
        %v3090 = vld [vmem:[%s3089] ss:$8 sm:$0x1]
        %v3091 = vmax.f32 %v3073, %v3080
        %v3092 = vmax.f32 %v3074, %v3084
        %v3093 = vmax.f32 %v3075, %v3088
        %v3094 = vmax.f32 %v3076, %v3090
        %s3095 = scalar_lea.vmem [#allocation2], 7
        %v3096 = vld [vmem:[%s3095] ss:$8 sm:$0xf]
        %v3097 = vld [vmem:[%s3095] ss:$8 sm:$0xf0]
        %v3098 = vor.u32 %v3096, %v3097
        %s3099 = scalar_lea.vmem [#allocation2], 71
        %v3100 = vld [vmem:[%s3099] ss:$8 sm:$0xf]
        %v3101 = vld [vmem:[%s3099] ss:$8 sm:$0xf0]
        %v3102 = vor.u32 %v3100, %v3101
        %s3103 = scalar_lea.vmem [#allocation2], 135
        %v3104 = vld [vmem:[%s3103] ss:$8 sm:$0xf]
        %v3105 = vld [vmem:[%s3103] ss:$8 sm:$0xf0]
        %v3106 = vor.u32 %v3104, %v3105
        %s3107 = scalar_lea.vmem [#allocation2], 199
        %v3108 = vld [vmem:[%s3107] ss:$8 sm:$0x1]
        %v3109 = vmax.f32 %v3091, %v3098
        %v3110 = vmax.f32 %v3092, %v3102
        %v3111 = vmax.f32 %v3093, %v3106
        %v3112 = vmax.f32 %v3094, %v3108
        %3113 = vst [vmem:[#allocation3] sm:$0x7] 0.0
        %3114 = vst [vmem:[#allocation3 + $0x1c] sm:$0xf] 0.0
        %3115 = vst [vmem:[#allocation3 + $0x3] sm:$0xff] %v3109
        %3116 = vst [vmem:[#allocation3 + $0xb] sm:$0xff] %v3110
        %3117 = vst [vmem:[#allocation3 + $0x13] sm:$0xff] %v3111
        %3118 = vst [vmem:[#allocation3 + $0x1b] sm:$0x1] %v3112
        %v3119 = vld [vmem:[#allocation3] sm:$0xff]
        %v3120 = vld [vmem:[#allocation3 + $0x8] sm:$0xff]
        %v3121 = vld [vmem:[#allocation3 + $0x10] sm:$0xff]
        %v3122 = vld [vmem:[#allocation3 + $0x18] sm:$0x1]
        %v3123 = vpack.c.bf16 %v3120, %v3119
        %v3124 = vpack.c.bf16 %v3122, %v3121
        %v3125 = vld [vmem:[%s5] sm:$0xf]
        %v3126 = vld [vmem:[%s5 + $0x4] sm:$0xf]
        %v3127 = vld [vmem:[%s5 + $0x8] sm:$0xf]
        %v3128 = vld [vmem:[%s5 + $0xc] sm:$0xf]
        %v3129 = vld [vmem:[%s5 + $0x10] sm:$0xf]
        %v3130 = vld [vmem:[%s5 + $0x14] sm:$0xf]
        %v3131 = vld [vmem:[%s5 + $0x18] sm:$0xf]
        %v3132 = vld [vmem:[%s5 + $0x1c] sm:$0xf]
        %v3133 = vld [vmem:[%s5 + $0x20] sm:$0xf]
        %v3134 = vld [vmem:[%s5 + $0x24] sm:$0xf]
        %v3135 = vld [vmem:[%s5 + $0x28] sm:$0xf]
        %v3136 = vld [vmem:[%s5 + $0x2c] sm:$0xf]
        %v3137 = vld [vmem:[%s5 + $0x30] sm:$0xf]
        %v3138 = vld [vmem:[%s5 + $0x34] sm:$0xf]
        %v3139 = vld [vmem:[%s5 + $0x38] sm:$0xf]
        %v3140 = vld [vmem:[%s5 + $0x3c] sm:$0xf]
        %v3141 = vld [vmem:[#allocation3 + $0x1] sm:$0xff]
        %v3142 = vld [vmem:[#allocation3 + $0x9] sm:$0xff]
        %v3143 = vld [vmem:[#allocation3 + $0x11] sm:$0xff]
        %v3144 = vld [vmem:[#allocation3 + $0x19] sm:$0x1]
        %v3145 = vpack.c.bf16 %v3142, %v3141
        %v3146 = vpack.c.bf16 %v3144, %v3143
        %s3147 = scalar_lea.vmem %s5, 64
        %v3148 = vld [vmem:[%s3147] sm:$0xf]
        %v3149 = vld [vmem:[%s3147 + $0x4] sm:$0xf]
        %v3150 = vld [vmem:[%s3147 + $0x8] sm:$0xf]
        %v3151 = vld [vmem:[%s3147 + $0xc] sm:$0xf]
        %v3152 = vld [vmem:[%s3147 + $0x10] sm:$0xf]
        %v3153 = vld [vmem:[%s3147 + $0x14] sm:$0xf]
        %v3154 = vld [vmem:[%s3147 + $0x18] sm:$0xf]
        %v3155 = vld [vmem:[%s3147 + $0x1c] sm:$0xf]
        %v3156 = vld [vmem:[%s3147 + $0x20] sm:$0xf]
        %v3157 = vld [vmem:[%s3147 + $0x24] sm:$0xf]
        %v3158 = vld [vmem:[%s3147 + $0x28] sm:$0xf]
        %v3159 = vld [vmem:[%s3147 + $0x2c] sm:$0xf]
        %v3160 = vld [vmem:[%s3147 + $0x30] sm:$0xf]
        %v3161 = vld [vmem:[%s3147 + $0x34] sm:$0xf]
        %v3162 = vld [vmem:[%s3147 + $0x38] sm:$0xf]
        %v3163 = vld [vmem:[%s3147 + $0x3c] sm:$0xf]
        %v3180 = vunpack.c.l.b16 %v3148
        %v3181 = vunpack.c.l.b16 %v3149
        %v3182 = vunpack.c.l.b16 %v3150
        %v3183 = vunpack.c.l.b16 %v3151
        %v3184 = vunpack.c.l.b16 %v3152
        %v3185 = vunpack.c.l.b16 %v3153
        %v3186 = vunpack.c.l.b16 %v3154
        %v3187 = vunpack.c.l.b16 %v3155
        %v3188 = vunpack.c.l.b16 %v3156
        %v3189 = vunpack.c.l.b16 %v3157
        %v3190 = vunpack.c.l.b16 %v3158
        %v3191 = vunpack.c.l.b16 %v3159
        %v3192 = vunpack.c.l.b16 %v3160
        %v3193 = vunpack.c.l.b16 %v3161
        %v3194 = vunpack.c.l.b16 %v3162
        %v3195 = vunpack.c.l.b16 %v3163
        %v3196 = vpack.c.b16 %v3181, %v3180
        %v3197 = vpack.c.b16 %v3183, %v3182
        %v3198 = vpack.c.b16 %v3185, %v3184
        %v3199 = vpack.c.b16 %v3187, %v3186
        %v3200 = vpack.c.b16 %v3189, %v3188
        %v3201 = vpack.c.b16 %v3191, %v3190
        %v3202 = vpack.c.b16 %v3193, %v3192
        %v3203 = vpack.c.b16 %v3195, %v3194
        %3212 = vmatprep.subr.bf16.mxu0 0
        %3213 = vmatpush1.bf16.msra.mxu0 %v3203
        %3214 = vmatprep.subr.bf16.mxu0 0
        %3215 = vmatpush1.bf16.msra.mxu0 %v3202
        %3216 = vmatprep.subr.bf16.mxu0 0
        %3217 = vmatpush1.bf16.msra.mxu0 %v3201
        %3218 = vmatprep.subr.bf16.mxu0 0
        %3219 = vmatpush1.bf16.msra.mxu0 %v3200
        %3220 = vmatprep.subr.bf16.mxu0 0
        %3221 = vmatpush1.bf16.msra.mxu0 %v3199
        %3222 = vmatprep.subr.bf16.mxu0 0
        %3223 = vmatpush1.bf16.msra.mxu0 %v3198
        %3224 = vmatprep.subr.bf16.mxu0 0
        %3225 = vmatpush1.bf16.msra.mxu0 %v3197
        %3226 = vmatprep.subr.bf16.mxu0 0
        %3227 = vmatpush1.bf16.msra.mxu0 %v3196
        %3228 = vmatprep.subr.bf16.mxu0 0
        %3229 = vmatpush2.bf16.msra.mxu0 0
        %3230 = vmatprep.subr.bf16.mxu0 0
        %3231 = vmatpush2.bf16.msra.mxu0 0
        %3232 = vmatprep.subr.bf16.mxu0 0
        %3233 = vmatpush2.bf16.msra.mxu0 0
        %3234 = vmatprep.subr.bf16.mxu0 0
        %3235 = vmatpush2.bf16.msra.mxu0 0
        %3236 = vmatprep.subr.bf16.mxu0 0
        %3237 = vmatpush2.bf16.msra.mxu0 0
        %3238 = vmatprep.subr.bf16.mxu0 0
        %3239 = vmatpush2.bf16.msra.mxu0 0
        %3240 = vmatprep.subr.bf16.mxu0 0
        %3241 = vmatpush2.bf16.msra.mxu0 0
        %3242 = vmatprep.subr.bf16.mxu0 0
        %3243 = vmatpush2.bf16.msra.mxu0 0
        %3244 = vmatprep.mubr.bf16.mxu0 0
        %3245 = vmatmul.mubr.bf16.gmra.mxu0 %v3145
        %v3246 = vpop.f32.mrf.mxu0
        %v3247 = vadd.f32 0.0, %v3246
        %v3248 = vpop.f32.mrf.mxu0
        %v3249 = vpop.f32.mrf.mxu0
        %v3250 = vadd.f32 0.0, %v3249
        %v3251 = vpop.f32.mrf.mxu0
        %3252 = vmatprep.mubr.bf16.mxu0 0
        %3253 = vmatmul.mubr.bf16.gmra.mxu0 %v3146
        %v3254 = vpop.f32.mrf.mxu0
        %v3255 = vadd.f32 0.0, %v3254
        %v3256 = vpop.f32.mrf.mxu0
        %v3257 = vpop.f32.mrf.mxu0
        %v3258 = vadd.f32 0.0, %v3257
        %v3259 = vpop.f32.mrf.mxu0
        %3260 = vdwg.mxu0
        %v3277 = vunpack.c.l.b16 %v3125
        %v3278 = vunpack.c.l.b16 %v3126
        %v3279 = vunpack.c.l.b16 %v3127
        %v3280 = vunpack.c.l.b16 %v3128
        %v3281 = vunpack.c.l.b16 %v3129
        %v3282 = vunpack.c.l.b16 %v3130
        %v3283 = vunpack.c.l.b16 %v3131
        %v3284 = vunpack.c.l.b16 %v3132
        %v3285 = vunpack.c.l.b16 %v3133
        %v3286 = vunpack.c.l.b16 %v3134
        %v3287 = vunpack.c.l.b16 %v3135
        %v3288 = vunpack.c.l.b16 %v3136
        %v3289 = vunpack.c.l.b16 %v3137
        %v3290 = vunpack.c.l.b16 %v3138
        %v3291 = vunpack.c.l.b16 %v3139
        %v3292 = vunpack.c.l.b16 %v3140
        %v3293 = vpack.c.b16 %v3278, %v3277
        %v3294 = vpack.c.b16 %v3280, %v3279
        %v3295 = vpack.c.b16 %v3282, %v3281
        %v3296 = vpack.c.b16 %v3284, %v3283
        %v3297 = vpack.c.b16 %v3286, %v3285
        %v3298 = vpack.c.b16 %v3288, %v3287
        %v3299 = vpack.c.b16 %v3290, %v3289
        %v3300 = vpack.c.b16 %v3292, %v3291
        %3309 = vmatprep.subr.bf16.mxu0 0
        %3310 = vmatpush1.bf16.msra.mxu0 %v3300
        %3311 = vmatprep.subr.bf16.mxu0 0
        %3312 = vmatpush1.bf16.msra.mxu0 %v3299
        %3313 = vmatprep.subr.bf16.mxu0 0
        %3314 = vmatpush1.bf16.msra.mxu0 %v3298
        %3315 = vmatprep.subr.bf16.mxu0 0
        %3316 = vmatpush1.bf16.msra.mxu0 %v3297
        %3317 = vmatprep.subr.bf16.mxu0 0
        %3318 = vmatpush1.bf16.msra.mxu0 %v3296
        %3319 = vmatprep.subr.bf16.mxu0 0
        %3320 = vmatpush1.bf16.msra.mxu0 %v3295
        %3321 = vmatprep.subr.bf16.mxu0 0
        %3322 = vmatpush1.bf16.msra.mxu0 %v3294
        %3323 = vmatprep.subr.bf16.mxu0 0
        %3324 = vmatpush1.bf16.msra.mxu0 %v3293
        %3325 = vmatprep.subr.bf16.mxu0 0
        %3326 = vmatpush2.bf16.msra.mxu0 0
        %3327 = vmatprep.subr.bf16.mxu0 0
        %3328 = vmatpush2.bf16.msra.mxu0 0
        %3329 = vmatprep.subr.bf16.mxu0 0
        %3330 = vmatpush2.bf16.msra.mxu0 0
        %3331 = vmatprep.subr.bf16.mxu0 0
        %3332 = vmatpush2.bf16.msra.mxu0 0
        %3333 = vmatprep.subr.bf16.mxu0 0
        %3334 = vmatpush2.bf16.msra.mxu0 0
        %3335 = vmatprep.subr.bf16.mxu0 0
        %3336 = vmatpush2.bf16.msra.mxu0 0
        %3337 = vmatprep.subr.bf16.mxu0 0
        %3338 = vmatpush2.bf16.msra.mxu0 0
        %3339 = vmatprep.subr.bf16.mxu0 0
        %3340 = vmatpush2.bf16.msra.mxu0 0
        %3341 = vmatprep.mubr.bf16.mxu0 0
        %3342 = vmatmul.mubr.bf16.gmra.mxu0 %v3123
        %v3343 = vpop.f32.mrf.mxu0
        %v3344 = vadd.f32 %v3247, %v3343
        %v3345 = vpop.f32.mrf.mxu0
        %v3346 = vpop.f32.mrf.mxu0
        %v3347 = vadd.f32 %v3250, %v3346
        %v3348 = vpop.f32.mrf.mxu0
        %3349 = vmatprep.mubr.bf16.mxu0 0
        %3350 = vmatmul.mubr.bf16.gmra.mxu0 %v3124
        %v3351 = vpop.f32.mrf.mxu0
        %v3352 = vadd.f32 %v3255, %v3351
        %v3353 = vpop.f32.mrf.mxu0
        %v3354 = vpop.f32.mrf.mxu0
        %v3355 = vadd.f32 %v3258, %v3354
        %v3356 = vpop.f32.mrf.mxu0
        %3357 = vdwg.mxu0
        %v3358 = vld [vmem:[#allocation3 + $0x2] sm:$0xff]
        %v3359 = vld [vmem:[#allocation3 + $0xa] sm:$0xff]
        %v3360 = vld [vmem:[#allocation3 + $0x12] sm:$0xff]
        %v3361 = vld [vmem:[#allocation3 + $0x1a] sm:$0x1]
        %v3362 = vpack.c.bf16 %v3359, %v3358
        %v3363 = vpack.c.bf16 %v3361, %v3360
        %s3364 = scalar_lea.vmem %s5, 128
        %v3365 = vld [vmem:[%s3364] sm:$0xf]
        %v3366 = vld [vmem:[%s3364 + $0x4] sm:$0xf]
        %v3367 = vld [vmem:[%s3364 + $0x8] sm:$0xf]
        %v3368 = vld [vmem:[%s3364 + $0xc] sm:$0xf]
        %v3369 = vld [vmem:[%s3364 + $0x10] sm:$0xf]
        %v3370 = vld [vmem:[%s3364 + $0x14] sm:$0xf]
        %v3371 = vld [vmem:[%s3364 + $0x18] sm:$0xf]
        %v3372 = vld [vmem:[%s3364 + $0x1c] sm:$0xf]
        %v3373 = vld [vmem:[%s3364 + $0x20] sm:$0xf]
        %v3374 = vld [vmem:[%s3364 + $0x24] sm:$0xf]
        %v3375 = vld [vmem:[%s3364 + $0x28] sm:$0xf]
        %v3376 = vld [vmem:[%s3364 + $0x2c] sm:$0xf]
        %v3377 = vld [vmem:[%s3364 + $0x30] sm:$0xf]
        %v3378 = vld [vmem:[%s3364 + $0x34] sm:$0xf]
        %v3379 = vld [vmem:[%s3364 + $0x38] sm:$0xf]
        %v3380 = vld [vmem:[%s3364 + $0x3c] sm:$0xf]
        %v3397 = vunpack.c.l.b16 %v3365
        %v3398 = vunpack.c.l.b16 %v3366
        %v3399 = vunpack.c.l.b16 %v3367
        %v3400 = vunpack.c.l.b16 %v3368
        %v3401 = vunpack.c.l.b16 %v3369
        %v3402 = vunpack.c.l.b16 %v3370
        %v3403 = vunpack.c.l.b16 %v3371
        %v3404 = vunpack.c.l.b16 %v3372
        %v3405 = vunpack.c.l.b16 %v3373
        %v3406 = vunpack.c.l.b16 %v3374
        %v3407 = vunpack.c.l.b16 %v3375
        %v3408 = vunpack.c.l.b16 %v3376
        %v3409 = vunpack.c.l.b16 %v3377
        %v3410 = vunpack.c.l.b16 %v3378
        %v3411 = vunpack.c.l.b16 %v3379
        %v3412 = vunpack.c.l.b16 %v3380
        %v3413 = vpack.c.b16 %v3398, %v3397
        %v3414 = vpack.c.b16 %v3400, %v3399
        %v3415 = vpack.c.b16 %v3402, %v3401
        %v3416 = vpack.c.b16 %v3404, %v3403
        %v3417 = vpack.c.b16 %v3406, %v3405
        %v3418 = vpack.c.b16 %v3408, %v3407
        %v3419 = vpack.c.b16 %v3410, %v3409
        %v3420 = vpack.c.b16 %v3412, %v3411
        %3429 = vmatprep.subr.bf16.mxu0 0
        %3430 = vmatpush1.bf16.msra.mxu0 %v3420
        %3431 = vmatprep.subr.bf16.mxu0 0
        %3432 = vmatpush1.bf16.msra.mxu0 %v3419
        %3433 = vmatprep.subr.bf16.mxu0 0
        %3434 = vmatpush1.bf16.msra.mxu0 %v3418
        %3435 = vmatprep.subr.bf16.mxu0 0
        %3436 = vmatpush1.bf16.msra.mxu0 %v3417
        %3437 = vmatprep.subr.bf16.mxu0 0
        %3438 = vmatpush1.bf16.msra.mxu0 %v3416
        %3439 = vmatprep.subr.bf16.mxu0 0
        %3440 = vmatpush1.bf16.msra.mxu0 %v3415
        %3441 = vmatprep.subr.bf16.mxu0 0
        %3442 = vmatpush1.bf16.msra.mxu0 %v3414
        %3443 = vmatprep.subr.bf16.mxu0 0
        %3444 = vmatpush1.bf16.msra.mxu0 %v3413
        %3445 = vmatprep.subr.bf16.mxu0 0
        %3446 = vmatpush2.bf16.msra.mxu0 0
        %3447 = vmatprep.subr.bf16.mxu0 0
        %3448 = vmatpush2.bf16.msra.mxu0 0
        %3449 = vmatprep.subr.bf16.mxu0 0
        %3450 = vmatpush2.bf16.msra.mxu0 0
        %3451 = vmatprep.subr.bf16.mxu0 0
        %3452 = vmatpush2.bf16.msra.mxu0 0
        %3453 = vmatprep.subr.bf16.mxu0 0
        %3454 = vmatpush2.bf16.msra.mxu0 0
        %3455 = vmatprep.subr.bf16.mxu0 0
        %3456 = vmatpush2.bf16.msra.mxu0 0
        %3457 = vmatprep.subr.bf16.mxu0 0
        %3458 = vmatpush2.bf16.msra.mxu0 0
        %3459 = vmatprep.subr.bf16.mxu0 0
        %3460 = vmatpush2.bf16.msra.mxu0 0
        %3461 = vmatprep.mubr.bf16.mxu0 0
        %3462 = vmatmul.mubr.bf16.gmra.mxu0 %v3362
        %v3463 = vpop.f32.mrf.mxu0
        %v3464 = vadd.f32 0.0, %v3463
        %v3465 = vpop.f32.mrf.mxu0
        %v3466 = vpop.f32.mrf.mxu0
        %v3467 = vadd.f32 0.0, %v3466
        %v3468 = vpop.f32.mrf.mxu0
        %3469 = vmatprep.mubr.bf16.mxu0 0
        %3470 = vmatmul.mubr.bf16.gmra.mxu0 %v3363
        %v3471 = vpop.f32.mrf.mxu0
        %v3472 = vadd.f32 0.0, %v3471
        %v3473 = vpop.f32.mrf.mxu0
        %v3474 = vpop.f32.mrf.mxu0
        %v3475 = vadd.f32 0.0, %v3474
        %v3476 = vpop.f32.mrf.mxu0
        %3477 = vdwg.mxu0
        %v3478 = vadd.f32 %v3344, %v3464
        %v3479 = vadd.f32 %v3347, %v3467
        %v3480 = vadd.f32 %v3352, %v3472
        %v3481 = vadd.f32 %v3355, %v3475
        %v3482 = vld [vmem:[#allocation3 + $0x3] sm:$0xff]
        %v3483 = vld [vmem:[#allocation3 + $0xb] sm:$0xff]
        %v3484 = vld [vmem:[#allocation3 + $0x13] sm:$0xff]
        %v3485 = vld [vmem:[#allocation3 + $0x1b] sm:$0x1]
        %v3486 = vpack.c.bf16 %v3483, %v3482
        %v3487 = vpack.c.bf16 %v3485, %v3484
        %s3488 = scalar_lea.vmem %s5, 192
        %v3489 = vld [vmem:[%s3488] sm:$0xf]
        %v3490 = vld [vmem:[%s3488 + $0x4] sm:$0xf]
        %v3491 = vld [vmem:[%s3488 + $0x8] sm:$0xf]
        %v3492 = vld [vmem:[%s3488 + $0xc] sm:$0xf]
        %v3493 = vld [vmem:[%s3488 + $0x10] sm:$0xf]
        %v3494 = vld [vmem:[%s3488 + $0x14] sm:$0xf]
        %v3495 = vld [vmem:[%s3488 + $0x18] sm:$0xf]
        %v3496 = vld [vmem:[%s3488 + $0x1c] sm:$0xf]
        %v3497 = vld [vmem:[%s3488 + $0x20] sm:$0xf]
        %v3498 = vld [vmem:[%s3488 + $0x24] sm:$0xf]
        %v3499 = vld [vmem:[%s3488 + $0x28] sm:$0xf]
        %v3500 = vld [vmem:[%s3488 + $0x2c] sm:$0xf]
        %v3501 = vld [vmem:[%s3488 + $0x30] sm:$0xf]
        %v3502 = vld [vmem:[%s3488 + $0x34] sm:$0xf]
        %v3503 = vld [vmem:[%s3488 + $0x38] sm:$0xf]
        %v3504 = vld [vmem:[%s3488 + $0x3c] sm:$0xf]
        %v3521 = vunpack.c.l.b16 %v3489
        %v3522 = vunpack.c.l.b16 %v3490
        %v3523 = vunpack.c.l.b16 %v3491
        %v3524 = vunpack.c.l.b16 %v3492
        %v3525 = vunpack.c.l.b16 %v3493
        %v3526 = vunpack.c.l.b16 %v3494
        %v3527 = vunpack.c.l.b16 %v3495
        %v3528 = vunpack.c.l.b16 %v3496
        %v3529 = vunpack.c.l.b16 %v3497
        %v3530 = vunpack.c.l.b16 %v3498
        %v3531 = vunpack.c.l.b16 %v3499
        %v3532 = vunpack.c.l.b16 %v3500
        %v3533 = vunpack.c.l.b16 %v3501
        %v3534 = vunpack.c.l.b16 %v3502
        %v3535 = vunpack.c.l.b16 %v3503
        %v3536 = vunpack.c.l.b16 %v3504
        %v3537 = vpack.c.b16 %v3522, %v3521
        %v3538 = vpack.c.b16 %v3524, %v3523
        %v3539 = vpack.c.b16 %v3526, %v3525
        %v3540 = vpack.c.b16 %v3528, %v3527
        %v3541 = vpack.c.b16 %v3530, %v3529
        %v3542 = vpack.c.b16 %v3532, %v3531
        %v3543 = vpack.c.b16 %v3534, %v3533
        %v3544 = vpack.c.b16 %v3536, %v3535
        %3553 = vmatprep.subr.bf16.mxu0 0
        %3554 = vmatpush1.bf16.msra.mxu0 %v3544
        %3555 = vmatprep.subr.bf16.mxu0 0
        %3556 = vmatpush1.bf16.msra.mxu0 %v3543
        %3557 = vmatprep.subr.bf16.mxu0 0
        %3558 = vmatpush1.bf16.msra.mxu0 %v3542
        %3559 = vmatprep.subr.bf16.mxu0 0
        %3560 = vmatpush1.bf16.msra.mxu0 %v3541
        %3561 = vmatprep.subr.bf16.mxu0 0
        %3562 = vmatpush1.bf16.msra.mxu0 %v3540
        %3563 = vmatprep.subr.bf16.mxu0 0
        %3564 = vmatpush1.bf16.msra.mxu0 %v3539
        %3565 = vmatprep.subr.bf16.mxu0 0
        %3566 = vmatpush1.bf16.msra.mxu0 %v3538
        %3567 = vmatprep.subr.bf16.mxu0 0
        %3568 = vmatpush1.bf16.msra.mxu0 %v3537
        %3569 = vmatprep.subr.bf16.mxu0 0
        %3570 = vmatpush2.bf16.msra.mxu0 0
        %3571 = vmatprep.subr.bf16.mxu0 0
        %3572 = vmatpush2.bf16.msra.mxu0 0
        %3573 = vmatprep.subr.bf16.mxu0 0
        %3574 = vmatpush2.bf16.msra.mxu0 0
        %3575 = vmatprep.subr.bf16.mxu0 0
        %3576 = vmatpush2.bf16.msra.mxu0 0
        %3577 = vmatprep.subr.bf16.mxu0 0
        %3578 = vmatpush2.bf16.msra.mxu0 0
        %3579 = vmatprep.subr.bf16.mxu0 0
        %3580 = vmatpush2.bf16.msra.mxu0 0
        %3581 = vmatprep.subr.bf16.mxu0 0
        %3582 = vmatpush2.bf16.msra.mxu0 0
        %3583 = vmatprep.subr.bf16.mxu0 0
        %3584 = vmatpush2.bf16.msra.mxu0 0
        %3585 = vmatprep.mubr.bf16.mxu0 0
        %3586 = vmatmul.mubr.bf16.gmra.mxu0 %v3486
        %v3587 = vpop.f32.mrf.mxu0
        %v3588 = vadd.f32 0.0, %v3587
        %v3589 = vpop.f32.mrf.mxu0
        %v3590 = vpop.f32.mrf.mxu0
        %v3591 = vadd.f32 0.0, %v3590
        %v3592 = vpop.f32.mrf.mxu0
        %3593 = vmatprep.mubr.bf16.mxu0 0
        %3594 = vmatmul.mubr.bf16.gmra.mxu0 %v3487
        %v3595 = vpop.f32.mrf.mxu0
        %v3596 = vadd.f32 0.0, %v3595
        %v3597 = vpop.f32.mrf.mxu0
        %v3598 = vpop.f32.mrf.mxu0
        %v3599 = vadd.f32 0.0, %v3598
        %v3600 = vpop.f32.mrf.mxu0
        %3601 = vdwg.mxu0
        %v3602 = vadd.f32 %v3478, %v3588
        %v3603 = vadd.f32 %v3479, %v3591
        %v3604 = vadd.f32 %v3480, %v3596
        %v3605 = vadd.f32 %v3481, %v3599
        %v3606 = vld [vmem:[#allocation3 + $0x4] sm:$0xff]
        %v3607 = vld [vmem:[#allocation3 + $0xc] sm:$0xff]
        %v3608 = vld [vmem:[#allocation3 + $0x14] sm:$0xff]
        %v3609 = vld [vmem:[#allocation3 + $0x1c] sm:$0x1]
        %v3610 = vpack.c.bf16 %v3607, %v3606
        %v3611 = vpack.c.bf16 %v3609, %v3608
        %s3612 = scalar_lea.vmem %s5, 256
        %v3613 = vld [vmem:[%s3612] sm:$0xf]
        %v3614 = vld [vmem:[%s3612 + $0x4] sm:$0xf]
        %v3615 = vld [vmem:[%s3612 + $0x8] sm:$0xf]
        %v3616 = vld [vmem:[%s3612 + $0xc] sm:$0xf]
        %v3617 = vld [vmem:[%s3612 + $0x10] sm:$0xf]
        %v3618 = vld [vmem:[%s3612 + $0x14] sm:$0xf]
        %v3619 = vld [vmem:[%s3612 + $0x18] sm:$0xf]
        %v3620 = vld [vmem:[%s3612 + $0x1c] sm:$0xf]
        %v3621 = vld [vmem:[%s3612 + $0x20] sm:$0xf]
        %v3622 = vld [vmem:[%s3612 + $0x24] sm:$0xf]
        %v3623 = vld [vmem:[%s3612 + $0x28] sm:$0xf]
        %v3624 = vld [vmem:[%s3612 + $0x2c] sm:$0xf]
        %v3625 = vld [vmem:[%s3612 + $0x30] sm:$0xf]
        %v3626 = vld [vmem:[%s3612 + $0x34] sm:$0xf]
        %v3627 = vld [vmem:[%s3612 + $0x38] sm:$0xf]
        %v3628 = vld [vmem:[%s3612 + $0x3c] sm:$0xf]
        %v3645 = vunpack.c.l.b16 %v3613
        %v3646 = vunpack.c.l.b16 %v3614
        %v3647 = vunpack.c.l.b16 %v3615
        %v3648 = vunpack.c.l.b16 %v3616
        %v3649 = vunpack.c.l.b16 %v3617
        %v3650 = vunpack.c.l.b16 %v3618
        %v3651 = vunpack.c.l.b16 %v3619
        %v3652 = vunpack.c.l.b16 %v3620
        %v3653 = vunpack.c.l.b16 %v3621
        %v3654 = vunpack.c.l.b16 %v3622
        %v3655 = vunpack.c.l.b16 %v3623
        %v3656 = vunpack.c.l.b16 %v3624
        %v3657 = vunpack.c.l.b16 %v3625
        %v3658 = vunpack.c.l.b16 %v3626
        %v3659 = vunpack.c.l.b16 %v3627
        %v3660 = vunpack.c.l.b16 %v3628
        %v3661 = vpack.c.b16 %v3646, %v3645
        %v3662 = vpack.c.b16 %v3648, %v3647
        %v3663 = vpack.c.b16 %v3650, %v3649
        %v3664 = vpack.c.b16 %v3652, %v3651
        %v3665 = vpack.c.b16 %v3654, %v3653
        %v3666 = vpack.c.b16 %v3656, %v3655
        %v3667 = vpack.c.b16 %v3658, %v3657
        %v3668 = vpack.c.b16 %v3660, %v3659
        %3677 = vmatprep.subr.bf16.mxu0 0
        %3678 = vmatpush1.bf16.msra.mxu0 %v3668
        %3679 = vmatprep.subr.bf16.mxu0 0
        %3680 = vmatpush1.bf16.msra.mxu0 %v3667
        %3681 = vmatprep.subr.bf16.mxu0 0
        %3682 = vmatpush1.bf16.msra.mxu0 %v3666
        %3683 = vmatprep.subr.bf16.mxu0 0
        %3684 = vmatpush1.bf16.msra.mxu0 %v3665
        %3685 = vmatprep.subr.bf16.mxu0 0
        %3686 = vmatpush1.bf16.msra.mxu0 %v3664
        %3687 = vmatprep.subr.bf16.mxu0 0
        %3688 = vmatpush1.bf16.msra.mxu0 %v3663
        %3689 = vmatprep.subr.bf16.mxu0 0
        %3690 = vmatpush1.bf16.msra.mxu0 %v3662
        %3691 = vmatprep.subr.bf16.mxu0 0
        %3692 = vmatpush1.bf16.msra.mxu0 %v3661
        %3693 = vmatprep.subr.bf16.mxu0 0
        %3694 = vmatpush2.bf16.msra.mxu0 0
        %3695 = vmatprep.subr.bf16.mxu0 0
        %3696 = vmatpush2.bf16.msra.mxu0 0
        %3697 = vmatprep.subr.bf16.mxu0 0
        %3698 = vmatpush2.bf16.msra.mxu0 0
        %3699 = vmatprep.subr.bf16.mxu0 0
        %3700 = vmatpush2.bf16.msra.mxu0 0
        %3701 = vmatprep.subr.bf16.mxu0 0
        %3702 = vmatpush2.bf16.msra.mxu0 0
        %3703 = vmatprep.subr.bf16.mxu0 0
        %3704 = vmatpush2.bf16.msra.mxu0 0
        %3705 = vmatprep.subr.bf16.mxu0 0
        %3706 = vmatpush2.bf16.msra.mxu0 0
        %3707 = vmatprep.subr.bf16.mxu0 0
        %3708 = vmatpush2.bf16.msra.mxu0 0
        %3709 = vmatprep.mubr.bf16.mxu0 0
        %3710 = vmatmul.mubr.bf16.gmra.mxu0 %v3610
        %v3711 = vpop.f32.mrf.mxu0
        %v3712 = vadd.f32 0.0, %v3711
        %v3713 = vpop.f32.mrf.mxu0
        %v3714 = vpop.f32.mrf.mxu0
        %v3715 = vadd.f32 0.0, %v3714
        %v3716 = vpop.f32.mrf.mxu0
        %3717 = vmatprep.mubr.bf16.mxu0 0
        %3718 = vmatmul.mubr.bf16.gmra.mxu0 %v3611
        %v3719 = vpop.f32.mrf.mxu0
        %v3720 = vadd.f32 0.0, %v3719
        %v3721 = vpop.f32.mrf.mxu0
        %v3722 = vpop.f32.mrf.mxu0
        %v3723 = vadd.f32 0.0, %v3722
        %v3724 = vpop.f32.mrf.mxu0
        %3725 = vdwg.mxu0
        %v3726 = vadd.f32 %v3602, %v3712
        %v3727 = vadd.f32 %v3603, %v3715
        %v3728 = vadd.f32 %v3604, %v3720
        %v3729 = vadd.f32 %v3605, %v3723
        %v3730 = vld [vmem:[#allocation3 + $0x5] sm:$0xff]
        %v3731 = vld [vmem:[#allocation3 + $0xd] sm:$0xff]
        %v3732 = vld [vmem:[#allocation3 + $0x15] sm:$0xff]
        %v3733 = vld [vmem:[#allocation3 + $0x1d] sm:$0x1]
        %v3734 = vpack.c.bf16 %v3731, %v3730
        %v3735 = vpack.c.bf16 %v3733, %v3732
        %s3736 = scalar_lea.vmem %s5, 320
        %v3737 = vld [vmem:[%s3736] sm:$0xf]
        %v3738 = vld [vmem:[%s3736 + $0x4] sm:$0xf]
        %v3739 = vld [vmem:[%s3736 + $0x8] sm:$0xf]
        %v3740 = vld [vmem:[%s3736 + $0xc] sm:$0xf]
        %v3741 = vld [vmem:[%s3736 + $0x10] sm:$0xf]
        %v3742 = vld [vmem:[%s3736 + $0x14] sm:$0xf]
        %v3743 = vld [vmem:[%s3736 + $0x18] sm:$0xf]
        %v3744 = vld [vmem:[%s3736 + $0x1c] sm:$0xf]
        %v3745 = vld [vmem:[%s3736 + $0x20] sm:$0xf]
        %v3746 = vld [vmem:[%s3736 + $0x24] sm:$0xf]
        %v3747 = vld [vmem:[%s3736 + $0x28] sm:$0xf]
        %v3748 = vld [vmem:[%s3736 + $0x2c] sm:$0xf]
        %v3749 = vld [vmem:[%s3736 + $0x30] sm:$0xf]
        %v3750 = vld [vmem:[%s3736 + $0x34] sm:$0xf]
        %v3751 = vld [vmem:[%s3736 + $0x38] sm:$0xf]
        %v3752 = vld [vmem:[%s3736 + $0x3c] sm:$0xf]
        %v3769 = vunpack.c.l.b16 %v3737
        %v3770 = vunpack.c.l.b16 %v3738
        %v3771 = vunpack.c.l.b16 %v3739
        %v3772 = vunpack.c.l.b16 %v3740
        %v3773 = vunpack.c.l.b16 %v3741
        %v3774 = vunpack.c.l.b16 %v3742
        %v3775 = vunpack.c.l.b16 %v3743
        %v3776 = vunpack.c.l.b16 %v3744
        %v3777 = vunpack.c.l.b16 %v3745
        %v3778 = vunpack.c.l.b16 %v3746
        %v3779 = vunpack.c.l.b16 %v3747
        %v3780 = vunpack.c.l.b16 %v3748
        %v3781 = vunpack.c.l.b16 %v3749
        %v3782 = vunpack.c.l.b16 %v3750
        %v3783 = vunpack.c.l.b16 %v3751
        %v3784 = vunpack.c.l.b16 %v3752
        %v3785 = vpack.c.b16 %v3770, %v3769
        %v3786 = vpack.c.b16 %v3772, %v3771
        %v3787 = vpack.c.b16 %v3774, %v3773
        %v3788 = vpack.c.b16 %v3776, %v3775
        %v3789 = vpack.c.b16 %v3778, %v3777
        %v3790 = vpack.c.b16 %v3780, %v3779
        %v3791 = vpack.c.b16 %v3782, %v3781
        %v3792 = vpack.c.b16 %v3784, %v3783
        %3801 = vmatprep.subr.bf16.mxu0 0
        %3802 = vmatpush1.bf16.msra.mxu0 %v3792
        %3803 = vmatprep.subr.bf16.mxu0 0
        %3804 = vmatpush1.bf16.msra.mxu0 %v3791
        %3805 = vmatprep.subr.bf16.mxu0 0
        %3806 = vmatpush1.bf16.msra.mxu0 %v3790
        %3807 = vmatprep.subr.bf16.mxu0 0
        %3808 = vmatpush1.bf16.msra.mxu0 %v3789
        %3809 = vmatprep.subr.bf16.mxu0 0
        %3810 = vmatpush1.bf16.msra.mxu0 %v3788
        %3811 = vmatprep.subr.bf16.mxu0 0
        %3812 = vmatpush1.bf16.msra.mxu0 %v3787
        %3813 = vmatprep.subr.bf16.mxu0 0
        %3814 = vmatpush1.bf16.msra.mxu0 %v3786
        %3815 = vmatprep.subr.bf16.mxu0 0
        %3816 = vmatpush1.bf16.msra.mxu0 %v3785
        %3817 = vmatprep.subr.bf16.mxu0 0
        %3818 = vmatpush2.bf16.msra.mxu0 0
        %3819 = vmatprep.subr.bf16.mxu0 0
        %3820 = vmatpush2.bf16.msra.mxu0 0
        %3821 = vmatprep.subr.bf16.mxu0 0
        %3822 = vmatpush2.bf16.msra.mxu0 0
        %3823 = vmatprep.subr.bf16.mxu0 0
        %3824 = vmatpush2.bf16.msra.mxu0 0
        %3825 = vmatprep.subr.bf16.mxu0 0
        %3826 = vmatpush2.bf16.msra.mxu0 0
        %3827 = vmatprep.subr.bf16.mxu0 0
        %3828 = vmatpush2.bf16.msra.mxu0 0
        %3829 = vmatprep.subr.bf16.mxu0 0
        %3830 = vmatpush2.bf16.msra.mxu0 0
        %3831 = vmatprep.subr.bf16.mxu0 0
        %3832 = vmatpush2.bf16.msra.mxu0 0
        %3833 = vmatprep.mubr.bf16.mxu0 0
        %3834 = vmatmul.mubr.bf16.gmra.mxu0 %v3734
        %v3835 = vpop.f32.mrf.mxu0
        %v3836 = vadd.f32 0.0, %v3835
        %v3837 = vpop.f32.mrf.mxu0
        %v3838 = vpop.f32.mrf.mxu0
        %v3839 = vadd.f32 0.0, %v3838
        %v3840 = vpop.f32.mrf.mxu0
        %3841 = vmatprep.mubr.bf16.mxu0 0
        %3842 = vmatmul.mubr.bf16.gmra.mxu0 %v3735
        %v3843 = vpop.f32.mrf.mxu0
        %v3844 = vadd.f32 0.0, %v3843
        %v3845 = vpop.f32.mrf.mxu0
        %v3846 = vpop.f32.mrf.mxu0
        %v3847 = vadd.f32 0.0, %v3846
        %v3848 = vpop.f32.mrf.mxu0
        %3849 = vdwg.mxu0
        %v3850 = vadd.f32 %v3726, %v3836
        %v3851 = vadd.f32 %v3727, %v3839
        %v3852 = vadd.f32 %v3728, %v3844
        %v3853 = vadd.f32 %v3729, %v3847
        %v3854 = vld [vmem:[#allocation3 + $0x6] sm:$0xff]
        %v3855 = vld [vmem:[#allocation3 + $0xe] sm:$0xff]
        %v3856 = vld [vmem:[#allocation3 + $0x16] sm:$0xff]
        %v3857 = vld [vmem:[#allocation3 + $0x1e] sm:$0x1]
        %v3858 = vpack.c.bf16 %v3855, %v3854
        %v3859 = vpack.c.bf16 %v3857, %v3856
        %s3860 = scalar_lea.vmem %s5, 384
        %v3861 = vld [vmem:[%s3860] sm:$0xf]
        %v3862 = vld [vmem:[%s3860 + $0x4] sm:$0xf]
        %v3863 = vld [vmem:[%s3860 + $0x8] sm:$0xf]
        %v3864 = vld [vmem:[%s3860 + $0xc] sm:$0xf]
        %v3865 = vld [vmem:[%s3860 + $0x10] sm:$0xf]
        %v3866 = vld [vmem:[%s3860 + $0x14] sm:$0xf]
        %v3867 = vld [vmem:[%s3860 + $0x18] sm:$0xf]
        %v3868 = vld [vmem:[%s3860 + $0x1c] sm:$0xf]
        %v3869 = vld [vmem:[%s3860 + $0x20] sm:$0xf]
        %v3870 = vld [vmem:[%s3860 + $0x24] sm:$0xf]
        %v3871 = vld [vmem:[%s3860 + $0x28] sm:$0xf]
        %v3872 = vld [vmem:[%s3860 + $0x2c] sm:$0xf]
        %v3873 = vld [vmem:[%s3860 + $0x30] sm:$0xf]
        %v3874 = vld [vmem:[%s3860 + $0x34] sm:$0xf]
        %v3875 = vld [vmem:[%s3860 + $0x38] sm:$0xf]
        %v3876 = vld [vmem:[%s3860 + $0x3c] sm:$0xf]
        %v3893 = vunpack.c.l.b16 %v3861
        %v3894 = vunpack.c.l.b16 %v3862
        %v3895 = vunpack.c.l.b16 %v3863
        %v3896 = vunpack.c.l.b16 %v3864
        %v3897 = vunpack.c.l.b16 %v3865
        %v3898 = vunpack.c.l.b16 %v3866
        %v3899 = vunpack.c.l.b16 %v3867
        %v3900 = vunpack.c.l.b16 %v3868
        %v3901 = vunpack.c.l.b16 %v3869
        %v3902 = vunpack.c.l.b16 %v3870
        %v3903 = vunpack.c.l.b16 %v3871
        %v3904 = vunpack.c.l.b16 %v3872
        %v3905 = vunpack.c.l.b16 %v3873
        %v3906 = vunpack.c.l.b16 %v3874
        %v3907 = vunpack.c.l.b16 %v3875
        %v3908 = vunpack.c.l.b16 %v3876
        %v3909 = vpack.c.b16 %v3894, %v3893
        %v3910 = vpack.c.b16 %v3896, %v3895
        %v3911 = vpack.c.b16 %v3898, %v3897
        %v3912 = vpack.c.b16 %v3900, %v3899
        %v3913 = vpack.c.b16 %v3902, %v3901
        %v3914 = vpack.c.b16 %v3904, %v3903
        %v3915 = vpack.c.b16 %v3906, %v3905
        %v3916 = vpack.c.b16 %v3908, %v3907
        %3925 = vmatprep.subr.bf16.mxu0 0
        %3926 = vmatpush1.bf16.msra.mxu0 %v3916
        %3927 = vmatprep.subr.bf16.mxu0 0
        %3928 = vmatpush1.bf16.msra.mxu0 %v3915
        %3929 = vmatprep.subr.bf16.mxu0 0
        %3930 = vmatpush1.bf16.msra.mxu0 %v3914
        %3931 = vmatprep.subr.bf16.mxu0 0
        %3932 = vmatpush1.bf16.msra.mxu0 %v3913
        %3933 = vmatprep.subr.bf16.mxu0 0
        %3934 = vmatpush1.bf16.msra.mxu0 %v3912
        %3935 = vmatprep.subr.bf16.mxu0 0
        %3936 = vmatpush1.bf16.msra.mxu0 %v3911
        %3937 = vmatprep.subr.bf16.mxu0 0
        %3938 = vmatpush1.bf16.msra.mxu0 %v3910
        %3939 = vmatprep.subr.bf16.mxu0 0
        %3940 = vmatpush1.bf16.msra.mxu0 %v3909
        %3941 = vmatprep.subr.bf16.mxu0 0
        %3942 = vmatpush2.bf16.msra.mxu0 0
        %3943 = vmatprep.subr.bf16.mxu0 0
        %3944 = vmatpush2.bf16.msra.mxu0 0
        %3945 = vmatprep.subr.bf16.mxu0 0
        %3946 = vmatpush2.bf16.msra.mxu0 0
        %3947 = vmatprep.subr.bf16.mxu0 0
        %3948 = vmatpush2.bf16.msra.mxu0 0
        %3949 = vmatprep.subr.bf16.mxu0 0
        %3950 = vmatpush2.bf16.msra.mxu0 0
        %3951 = vmatprep.subr.bf16.mxu0 0
        %3952 = vmatpush2.bf16.msra.mxu0 0
        %3953 = vmatprep.subr.bf16.mxu0 0
        %3954 = vmatpush2.bf16.msra.mxu0 0
        %3955 = vmatprep.subr.bf16.mxu0 0
        %3956 = vmatpush2.bf16.msra.mxu0 0
        %3957 = vmatprep.mubr.bf16.mxu0 0
        %3958 = vmatmul.mubr.bf16.gmra.mxu0 %v3858
        %v3959 = vpop.f32.mrf.mxu0
        %v3960 = vadd.f32 0.0, %v3959
        %v3961 = vpop.f32.mrf.mxu0
        %v3962 = vpop.f32.mrf.mxu0
        %v3963 = vadd.f32 0.0, %v3962
        %v3964 = vpop.f32.mrf.mxu0
        %3965 = vmatprep.mubr.bf16.mxu0 0
        %3966 = vmatmul.mubr.bf16.gmra.mxu0 %v3859
        %v3967 = vpop.f32.mrf.mxu0
        %v3968 = vadd.f32 0.0, %v3967
        %v3969 = vpop.f32.mrf.mxu0
        %v3970 = vpop.f32.mrf.mxu0
        %v3971 = vadd.f32 0.0, %v3970
        %v3972 = vpop.f32.mrf.mxu0
        %3973 = vdwg.mxu0
        %v3974 = vadd.f32 %v3850, %v3960
        %v3975 = vadd.f32 %v3851, %v3963
        %v3976 = vadd.f32 %v3852, %v3968
        %v3977 = vadd.f32 %v3853, %v3971
        %v3978 = vld [vmem:[#allocation3 + $0x7] sm:$0xff]
        %v3979 = vld [vmem:[#allocation3 + $0xf] sm:$0xff]
        %v3980 = vld [vmem:[#allocation3 + $0x17] sm:$0xff]
        %v3981 = vld [vmem:[#allocation3 + $0x1f] sm:$0x1]
        %v3982 = vpack.c.bf16 %v3979, %v3978
        %v3983 = vpack.c.bf16 %v3981, %v3980
        %s3984 = scalar_lea.vmem %s5, 448
        %v3985 = vld [vmem:[%s3984] sm:$0xf]
        %v3986 = vld [vmem:[%s3984 + $0x4] sm:$0xf]
        %v3987 = vld [vmem:[%s3984 + $0x8] sm:$0xf]
        %v3988 = vld [vmem:[%s3984 + $0xc] sm:$0xf]
        %v3989 = vld [vmem:[%s3984 + $0x10] sm:$0xf]
        %v3990 = vld [vmem:[%s3984 + $0x14] sm:$0xf]
        %v3991 = vld [vmem:[%s3984 + $0x18] sm:$0xf]
        %v3992 = vld [vmem:[%s3984 + $0x1c] sm:$0xf]
        %v3993 = vld [vmem:[%s3984 + $0x20] sm:$0xf]
        %v3994 = vld [vmem:[%s3984 + $0x24] sm:$0xf]
        %v3995 = vld [vmem:[%s3984 + $0x28] sm:$0xf]
        %v3996 = vld [vmem:[%s3984 + $0x2c] sm:$0xf]
        %v3997 = vld [vmem:[%s3984 + $0x30] sm:$0xf]
        %v3998 = vld [vmem:[%s3984 + $0x34] sm:$0xf]
        %v3999 = vld [vmem:[%s3984 + $0x38] sm:$0xf]
        %v4000 = vld [vmem:[%s3984 + $0x3c] sm:$0xf]
        %v4017 = vunpack.c.l.b16 %v3985
        %v4018 = vunpack.c.l.b16 %v3986
        %v4019 = vunpack.c.l.b16 %v3987
        %v4020 = vunpack.c.l.b16 %v3988
        %v4021 = vunpack.c.l.b16 %v3989
        %v4022 = vunpack.c.l.b16 %v3990
        %v4023 = vunpack.c.l.b16 %v3991
        %v4024 = vunpack.c.l.b16 %v3992
        %v4025 = vunpack.c.l.b16 %v3993
        %v4026 = vunpack.c.l.b16 %v3994
        %v4027 = vunpack.c.l.b16 %v3995
        %v4028 = vunpack.c.l.b16 %v3996
        %v4029 = vunpack.c.l.b16 %v3997
        %v4030 = vunpack.c.l.b16 %v3998
        %v4031 = vunpack.c.l.b16 %v3999
        %v4032 = vunpack.c.l.b16 %v4000
        %v4033 = vpack.c.b16 %v4018, %v4017
        %v4034 = vpack.c.b16 %v4020, %v4019
        %v4035 = vpack.c.b16 %v4022, %v4021
        %v4036 = vpack.c.b16 %v4024, %v4023
        %v4037 = vpack.c.b16 %v4026, %v4025
        %v4038 = vpack.c.b16 %v4028, %v4027
        %v4039 = vpack.c.b16 %v4030, %v4029
        %v4040 = vpack.c.b16 %v4032, %v4031
        %4049 = vmatprep.subr.bf16.mxu0 0
        %4050 = vmatpush1.bf16.msra.mxu0 %v4040
        %4051 = vmatprep.subr.bf16.mxu0 0
        %4052 = vmatpush1.bf16.msra.mxu0 %v4039
        %4053 = vmatprep.subr.bf16.mxu0 0
        %4054 = vmatpush1.bf16.msra.mxu0 %v4038
        %4055 = vmatprep.subr.bf16.mxu0 0
        %4056 = vmatpush1.bf16.msra.mxu0 %v4037
        %4057 = vmatprep.subr.bf16.mxu0 0
        %4058 = vmatpush1.bf16.msra.mxu0 %v4036
        %4059 = vmatprep.subr.bf16.mxu0 0
        %4060 = vmatpush1.bf16.msra.mxu0 %v4035
        %4061 = vmatprep.subr.bf16.mxu0 0
        %4062 = vmatpush1.bf16.msra.mxu0 %v4034
        %4063 = vmatprep.subr.bf16.mxu0 0
        %4064 = vmatpush1.bf16.msra.mxu0 %v4033
        %4065 = vmatprep.subr.bf16.mxu0 0
        %4066 = vmatpush2.bf16.msra.mxu0 0
        %4067 = vmatprep.subr.bf16.mxu0 0
        %4068 = vmatpush2.bf16.msra.mxu0 0
        %4069 = vmatprep.subr.bf16.mxu0 0
        %4070 = vmatpush2.bf16.msra.mxu0 0
        %4071 = vmatprep.subr.bf16.mxu0 0
        %4072 = vmatpush2.bf16.msra.mxu0 0
        %4073 = vmatprep.subr.bf16.mxu0 0
        %4074 = vmatpush2.bf16.msra.mxu0 0
        %4075 = vmatprep.subr.bf16.mxu0 0
        %4076 = vmatpush2.bf16.msra.mxu0 0
        %4077 = vmatprep.subr.bf16.mxu0 0
        %4078 = vmatpush2.bf16.msra.mxu0 0
        %4079 = vmatprep.subr.bf16.mxu0 0
        %4080 = vmatpush2.bf16.msra.mxu0 0
        %4081 = vmatprep.mubr.bf16.mxu0 0
        %4082 = vmatmul.mubr.bf16.gmra.mxu0 %v3982
        %v4083 = vpop.f32.mrf.mxu0
        %v4084 = vadd.f32 0.0, %v4083
        %v4085 = vpop.f32.mrf.mxu0
        %v4086 = vpop.f32.mrf.mxu0
        %v4087 = vadd.f32 0.0, %v4086
        %v4088 = vpop.f32.mrf.mxu0
        %4089 = vmatprep.mubr.bf16.mxu0 0
        %4090 = vmatmul.mubr.bf16.gmra.mxu0 %v3983
        %v4091 = vpop.f32.mrf.mxu0
        %v4092 = vadd.f32 0.0, %v4091
        %v4093 = vpop.f32.mrf.mxu0
        %v4094 = vpop.f32.mrf.mxu0
        %v4095 = vadd.f32 0.0, %v4094
        %v4096 = vpop.f32.mrf.mxu0
        %4097 = vdwg.mxu0
        %v4098 = vadd.f32 %v3974, %v4084
        %v4099 = vadd.f32 %v3975, %v4087
        %v4100 = vadd.f32 %v3976, %v4092
        %v4101 = vadd.f32 %v3977, %v4095
        %v4102 = vld [vmem:[%s6] sm:$0x1]
        %v4104 = vlaneseq
        %v4105 = vshrl.u32 %v4104, 7
        %v4106 = vsub.s32 0, %v4105
        %v4107 = vrot.slane %v4102, %v4106
        %v4109 = vmul.f32 %v4098, %v4107
        %v4110 = vmul.f32 %v4099, %v4107
        %v4111 = vmul.f32 %v4100, %v4107
        %v4112 = vmul.f32 %v4101, %v4107
        %v4113 = vld [vmem:[%s7] sm:$0x1]
        %v4115 = vlaneseq
        %v4116 = vshrl.u32 %v4115, 7
        %v4117 = vsub.s32 0, %v4116
        %v4118 = vrot.slane %v4113, %v4117
        %v4120 = vadd.f32 %v4109, %v4118
        %v4121 = vadd.f32 %v4110, %v4118
        %v4122 = vadd.f32 %v4111, %v4118
        %v4123 = vadd.f32 %v4112, %v4118
        %v4124 = vmax.f32 %v4120, 0.0
        %v4125 = vmax.f32 %v4121, 0.0
        %v4126 = vmax.f32 %v4122, 0.0
        %v4127 = vmax.f32 %v4123, 0.0
        %4128 = vst [vmem:[#allocation3 + $0x3] sm:$0xff] %v4124
        %4129 = vst [vmem:[#allocation3 + $0xb] sm:$0xff] %v4125
        %4130 = vst [vmem:[#allocation3 + $0x13] sm:$0xff] %v4126
        %4131 = vst [vmem:[#allocation3 + $0x1b] sm:$0x1] %v4127
        %v4132 = vld [vmem:[#allocation3] sm:$0xff]
        %v4133 = vld [vmem:[#allocation3 + $0x8] sm:$0xff]
        %v4134 = vld [vmem:[#allocation3 + $0x10] sm:$0xff]
        %v4135 = vld [vmem:[#allocation3 + $0x18] sm:$0x1]
        %v4136 = vpack.c.bf16 %v4133, %v4132
        %v4137 = vpack.c.bf16 %v4135, %v4134
        %s4138 = scalar_lea.vmem %s5, 512
        %v4139 = vld [vmem:[%s4138] sm:$0xf]
        %v4140 = vld [vmem:[%s4138 + $0x4] sm:$0xf]
        %v4141 = vld [vmem:[%s4138 + $0x8] sm:$0xf]
        %v4142 = vld [vmem:[%s4138 + $0xc] sm:$0xf]
        %v4143 = vld [vmem:[%s4138 + $0x10] sm:$0xf]
        %v4144 = vld [vmem:[%s4138 + $0x14] sm:$0xf]
        %v4145 = vld [vmem:[%s4138 + $0x18] sm:$0xf]
        %v4146 = vld [vmem:[%s4138 + $0x1c] sm:$0xf]
        %v4147 = vld [vmem:[%s4138 + $0x20] sm:$0xf]
        %v4148 = vld [vmem:[%s4138 + $0x24] sm:$0xf]
        %v4149 = vld [vmem:[%s4138 + $0x28] sm:$0xf]
        %v4150 = vld [vmem:[%s4138 + $0x2c] sm:$0xf]
        %v4151 = vld [vmem:[%s4138 + $0x30] sm:$0xf]
        %v4152 = vld [vmem:[%s4138 + $0x34] sm:$0xf]
        %v4153 = vld [vmem:[%s4138 + $0x38] sm:$0xf]
        %v4154 = vld [vmem:[%s4138 + $0x3c] sm:$0xf]
        %v4155 = vld [vmem:[#allocation3 + $0x1] sm:$0xff]
        %v4156 = vld [vmem:[#allocation3 + $0x9] sm:$0xff]
        %v4157 = vld [vmem:[#allocation3 + $0x11] sm:$0xff]
        %v4158 = vld [vmem:[#allocation3 + $0x19] sm:$0x1]
        %v4159 = vpack.c.bf16 %v4156, %v4155
        %v4160 = vpack.c.bf16 %v4158, %v4157
        %s4161 = scalar_lea.vmem %s5, 576
        %v4162 = vld [vmem:[%s4161] sm:$0xf]
        %v4163 = vld [vmem:[%s4161 + $0x4] sm:$0xf]
        %v4164 = vld [vmem:[%s4161 + $0x8] sm:$0xf]
        %v4165 = vld [vmem:[%s4161 + $0xc] sm:$0xf]
        %v4166 = vld [vmem:[%s4161 + $0x10] sm:$0xf]
        %v4167 = vld [vmem:[%s4161 + $0x14] sm:$0xf]
        %v4168 = vld [vmem:[%s4161 + $0x18] sm:$0xf]
        %v4169 = vld [vmem:[%s4161 + $0x1c] sm:$0xf]
        %v4170 = vld [vmem:[%s4161 + $0x20] sm:$0xf]
        %v4171 = vld [vmem:[%s4161 + $0x24] sm:$0xf]
        %v4172 = vld [vmem:[%s4161 + $0x28] sm:$0xf]
        %v4173 = vld [vmem:[%s4161 + $0x2c] sm:$0xf]
        %v4174 = vld [vmem:[%s4161 + $0x30] sm:$0xf]
        %v4175 = vld [vmem:[%s4161 + $0x34] sm:$0xf]
        %v4176 = vld [vmem:[%s4161 + $0x38] sm:$0xf]
        %v4177 = vld [vmem:[%s4161 + $0x3c] sm:$0xf]
        %v4194 = vunpack.c.l.b16 %v4162
        %v4195 = vunpack.c.l.b16 %v4163
        %v4196 = vunpack.c.l.b16 %v4164
        %v4197 = vunpack.c.l.b16 %v4165
        %v4198 = vunpack.c.l.b16 %v4166
        %v4199 = vunpack.c.l.b16 %v4167
        %v4200 = vunpack.c.l.b16 %v4168
        %v4201 = vunpack.c.l.b16 %v4169
        %v4202 = vunpack.c.l.b16 %v4170
        %v4203 = vunpack.c.l.b16 %v4171
        %v4204 = vunpack.c.l.b16 %v4172
        %v4205 = vunpack.c.l.b16 %v4173
        %v4206 = vunpack.c.l.b16 %v4174
        %v4207 = vunpack.c.l.b16 %v4175
        %v4208 = vunpack.c.l.b16 %v4176
        %v4209 = vunpack.c.l.b16 %v4177
        %v4210 = vpack.c.b16 %v4195, %v4194
        %v4211 = vpack.c.b16 %v4197, %v4196
        %v4212 = vpack.c.b16 %v4199, %v4198
        %v4213 = vpack.c.b16 %v4201, %v4200
        %v4214 = vpack.c.b16 %v4203, %v4202
        %v4215 = vpack.c.b16 %v4205, %v4204
        %v4216 = vpack.c.b16 %v4207, %v4206
        %v4217 = vpack.c.b16 %v4209, %v4208
        %4226 = vmatprep.subr.bf16.mxu0 0
        %4227 = vmatpush1.bf16.msra.mxu0 %v4217
        %4228 = vmatprep.subr.bf16.mxu0 0
        %4229 = vmatpush1.bf16.msra.mxu0 %v4216
        %4230 = vmatprep.subr.bf16.mxu0 0
        %4231 = vmatpush1.bf16.msra.mxu0 %v4215
        %4232 = vmatprep.subr.bf16.mxu0 0
        %4233 = vmatpush1.bf16.msra.mxu0 %v4214
        %4234 = vmatprep.subr.bf16.mxu0 0
        %4235 = vmatpush1.bf16.msra.mxu0 %v4213
        %4236 = vmatprep.subr.bf16.mxu0 0
        %4237 = vmatpush1.bf16.msra.mxu0 %v4212
        %4238 = vmatprep.subr.bf16.mxu0 0
        %4239 = vmatpush1.bf16.msra.mxu0 %v4211
        %4240 = vmatprep.subr.bf16.mxu0 0
        %4241 = vmatpush1.bf16.msra.mxu0 %v4210
        %4242 = vmatprep.subr.bf16.mxu0 0
        %4243 = vmatpush2.bf16.msra.mxu0 0
        %4244 = vmatprep.subr.bf16.mxu0 0
        %4245 = vmatpush2.bf16.msra.mxu0 0
        %4246 = vmatprep.subr.bf16.mxu0 0
        %4247 = vmatpush2.bf16.msra.mxu0 0
        %4248 = vmatprep.subr.bf16.mxu0 0
        %4249 = vmatpush2.bf16.msra.mxu0 0
        %4250 = vmatprep.subr.bf16.mxu0 0
        %4251 = vmatpush2.bf16.msra.mxu0 0
        %4252 = vmatprep.subr.bf16.mxu0 0
        %4253 = vmatpush2.bf16.msra.mxu0 0
        %4254 = vmatprep.subr.bf16.mxu0 0
        %4255 = vmatpush2.bf16.msra.mxu0 0
        %4256 = vmatprep.subr.bf16.mxu0 0
        %4257 = vmatpush2.bf16.msra.mxu0 0
        %4258 = vmatprep.mubr.bf16.mxu0 0
        %4259 = vmatmul.mubr.bf16.gmra.mxu0 %v4159
        %v4260 = vpop.f32.mrf.mxu0
        %v4261 = vadd.f32 0.0, %v4260
        %v4262 = vpop.f32.mrf.mxu0
        %v4263 = vpop.f32.mrf.mxu0
        %v4264 = vadd.f32 0.0, %v4263
        %v4265 = vpop.f32.mrf.mxu0
        %4266 = vmatprep.mubr.bf16.mxu0 0
        %4267 = vmatmul.mubr.bf16.gmra.mxu0 %v4160
        %v4268 = vpop.f32.mrf.mxu0
        %v4269 = vadd.f32 0.0, %v4268
        %v4270 = vpop.f32.mrf.mxu0
        %v4271 = vpop.f32.mrf.mxu0
        %v4272 = vadd.f32 0.0, %v4271
        %v4273 = vpop.f32.mrf.mxu0
        %4274 = vdwg.mxu0
        %v4291 = vunpack.c.l.b16 %v4139
        %v4292 = vunpack.c.l.b16 %v4140
        %v4293 = vunpack.c.l.b16 %v4141
        %v4294 = vunpack.c.l.b16 %v4142
        %v4295 = vunpack.c.l.b16 %v4143
        %v4296 = vunpack.c.l.b16 %v4144
        %v4297 = vunpack.c.l.b16 %v4145
        %v4298 = vunpack.c.l.b16 %v4146
        %v4299 = vunpack.c.l.b16 %v4147
        %v4300 = vunpack.c.l.b16 %v4148
        %v4301 = vunpack.c.l.b16 %v4149
        %v4302 = vunpack.c.l.b16 %v4150
        %v4303 = vunpack.c.l.b16 %v4151
        %v4304 = vunpack.c.l.b16 %v4152
        %v4305 = vunpack.c.l.b16 %v4153
        %v4306 = vunpack.c.l.b16 %v4154
        %v4307 = vpack.c.b16 %v4292, %v4291
        %v4308 = vpack.c.b16 %v4294, %v4293
        %v4309 = vpack.c.b16 %v4296, %v4295
        %v4310 = vpack.c.b16 %v4298, %v4297
        %v4311 = vpack.c.b16 %v4300, %v4299
        %v4312 = vpack.c.b16 %v4302, %v4301
        %v4313 = vpack.c.b16 %v4304, %v4303
        %v4314 = vpack.c.b16 %v4306, %v4305
        %4323 = vmatprep.subr.bf16.mxu0 0
        %4324 = vmatpush1.bf16.msra.mxu0 %v4314
        %4325 = vmatprep.subr.bf16.mxu0 0
        %4326 = vmatpush1.bf16.msra.mxu0 %v4313
        %4327 = vmatprep.subr.bf16.mxu0 0
        %4328 = vmatpush1.bf16.msra.mxu0 %v4312
        %4329 = vmatprep.subr.bf16.mxu0 0
        %4330 = vmatpush1.bf16.msra.mxu0 %v4311
        %4331 = vmatprep.subr.bf16.mxu0 0
        %4332 = vmatpush1.bf16.msra.mxu0 %v4310
        %4333 = vmatprep.subr.bf16.mxu0 0
        %4334 = vmatpush1.bf16.msra.mxu0 %v4309
        %4335 = vmatprep.subr.bf16.mxu0 0
        %4336 = vmatpush1.bf16.msra.mxu0 %v4308
        %4337 = vmatprep.subr.bf16.mxu0 0
        %4338 = vmatpush1.bf16.msra.mxu0 %v4307
        %4339 = vmatprep.subr.bf16.mxu0 0
        %4340 = vmatpush2.bf16.msra.mxu0 0
        %4341 = vmatprep.subr.bf16.mxu0 0
        %4342 = vmatpush2.bf16.msra.mxu0 0
        %4343 = vmatprep.subr.bf16.mxu0 0
        %4344 = vmatpush2.bf16.msra.mxu0 0
        %4345 = vmatprep.subr.bf16.mxu0 0
        %4346 = vmatpush2.bf16.msra.mxu0 0
        %4347 = vmatprep.subr.bf16.mxu0 0
        %4348 = vmatpush2.bf16.msra.mxu0 0
        %4349 = vmatprep.subr.bf16.mxu0 0
        %4350 = vmatpush2.bf16.msra.mxu0 0
        %4351 = vmatprep.subr.bf16.mxu0 0
        %4352 = vmatpush2.bf16.msra.mxu0 0
        %4353 = vmatprep.subr.bf16.mxu0 0
        %4354 = vmatpush2.bf16.msra.mxu0 0
        %4355 = vmatprep.mubr.bf16.mxu0 0
        %4356 = vmatmul.mubr.bf16.gmra.mxu0 %v4136
        %v4357 = vpop.f32.mrf.mxu0
        %v4358 = vadd.f32 %v4261, %v4357
        %v4359 = vpop.f32.mrf.mxu0
        %v4360 = vpop.f32.mrf.mxu0
        %v4361 = vadd.f32 %v4264, %v4360
        %v4362 = vpop.f32.mrf.mxu0
        %4363 = vmatprep.mubr.bf16.mxu0 0
        %4364 = vmatmul.mubr.bf16.gmra.mxu0 %v4137
        %v4365 = vpop.f32.mrf.mxu0
        %v4366 = vadd.f32 %v4269, %v4365
        %v4367 = vpop.f32.mrf.mxu0
        %v4368 = vpop.f32.mrf.mxu0
        %v4369 = vadd.f32 %v4272, %v4368
        %v4370 = vpop.f32.mrf.mxu0
        %4371 = vdwg.mxu0
        %v4372 = vld [vmem:[#allocation3 + $0x2] sm:$0xff]
        %v4373 = vld [vmem:[#allocation3 + $0xa] sm:$0xff]
        %v4374 = vld [vmem:[#allocation3 + $0x12] sm:$0xff]
        %v4375 = vld [vmem:[#allocation3 + $0x1a] sm:$0x1]
        %v4376 = vpack.c.bf16 %v4373, %v4372
        %v4377 = vpack.c.bf16 %v4375, %v4374
        %s4378 = scalar_lea.vmem %s5, 640
        %v4379 = vld [vmem:[%s4378] sm:$0xf]
        %v4380 = vld [vmem:[%s4378 + $0x4] sm:$0xf]
        %v4381 = vld [vmem:[%s4378 + $0x8] sm:$0xf]
        %v4382 = vld [vmem:[%s4378 + $0xc] sm:$0xf]
        %v4383 = vld [vmem:[%s4378 + $0x10] sm:$0xf]
        %v4384 = vld [vmem:[%s4378 + $0x14] sm:$0xf]
        %v4385 = vld [vmem:[%s4378 + $0x18] sm:$0xf]
        %v4386 = vld [vmem:[%s4378 + $0x1c] sm:$0xf]
        %v4387 = vld [vmem:[%s4378 + $0x20] sm:$0xf]
        %v4388 = vld [vmem:[%s4378 + $0x24] sm:$0xf]
        %v4389 = vld [vmem:[%s4378 + $0x28] sm:$0xf]
        %v4390 = vld [vmem:[%s4378 + $0x2c] sm:$0xf]
        %v4391 = vld [vmem:[%s4378 + $0x30] sm:$0xf]
        %v4392 = vld [vmem:[%s4378 + $0x34] sm:$0xf]
        %v4393 = vld [vmem:[%s4378 + $0x38] sm:$0xf]
        %v4394 = vld [vmem:[%s4378 + $0x3c] sm:$0xf]
        %v4411 = vunpack.c.l.b16 %v4379
        %v4412 = vunpack.c.l.b16 %v4380
        %v4413 = vunpack.c.l.b16 %v4381
        %v4414 = vunpack.c.l.b16 %v4382
        %v4415 = vunpack.c.l.b16 %v4383
        %v4416 = vunpack.c.l.b16 %v4384
        %v4417 = vunpack.c.l.b16 %v4385
        %v4418 = vunpack.c.l.b16 %v4386
        %v4419 = vunpack.c.l.b16 %v4387
        %v4420 = vunpack.c.l.b16 %v4388
        %v4421 = vunpack.c.l.b16 %v4389
        %v4422 = vunpack.c.l.b16 %v4390
        %v4423 = vunpack.c.l.b16 %v4391
        %v4424 = vunpack.c.l.b16 %v4392
        %v4425 = vunpack.c.l.b16 %v4393
        %v4426 = vunpack.c.l.b16 %v4394
        %v4427 = vpack.c.b16 %v4412, %v4411
        %v4428 = vpack.c.b16 %v4414, %v4413
        %v4429 = vpack.c.b16 %v4416, %v4415
        %v4430 = vpack.c.b16 %v4418, %v4417
        %v4431 = vpack.c.b16 %v4420, %v4419
        %v4432 = vpack.c.b16 %v4422, %v4421
        %v4433 = vpack.c.b16 %v4424, %v4423
        %v4434 = vpack.c.b16 %v4426, %v4425
        %4443 = vmatprep.subr.bf16.mxu0 0
        %4444 = vmatpush1.bf16.msra.mxu0 %v4434
        %4445 = vmatprep.subr.bf16.mxu0 0
        %4446 = vmatpush1.bf16.msra.mxu0 %v4433
        %4447 = vmatprep.subr.bf16.mxu0 0
        %4448 = vmatpush1.bf16.msra.mxu0 %v4432
        %4449 = vmatprep.subr.bf16.mxu0 0
        %4450 = vmatpush1.bf16.msra.mxu0 %v4431
        %4451 = vmatprep.subr.bf16.mxu0 0
        %4452 = vmatpush1.bf16.msra.mxu0 %v4430
        %4453 = vmatprep.subr.bf16.mxu0 0
        %4454 = vmatpush1.bf16.msra.mxu0 %v4429
        %4455 = vmatprep.subr.bf16.mxu0 0
        %4456 = vmatpush1.bf16.msra.mxu0 %v4428
        %4457 = vmatprep.subr.bf16.mxu0 0
        %4458 = vmatpush1.bf16.msra.mxu0 %v4427
        %4459 = vmatprep.subr.bf16.mxu0 0
        %4460 = vmatpush2.bf16.msra.mxu0 0
        %4461 = vmatprep.subr.bf16.mxu0 0
        %4462 = vmatpush2.bf16.msra.mxu0 0
        %4463 = vmatprep.subr.bf16.mxu0 0
        %4464 = vmatpush2.bf16.msra.mxu0 0
        %4465 = vmatprep.subr.bf16.mxu0 0
        %4466 = vmatpush2.bf16.msra.mxu0 0
        %4467 = vmatprep.subr.bf16.mxu0 0
        %4468 = vmatpush2.bf16.msra.mxu0 0
        %4469 = vmatprep.subr.bf16.mxu0 0
        %4470 = vmatpush2.bf16.msra.mxu0 0
        %4471 = vmatprep.subr.bf16.mxu0 0
        %4472 = vmatpush2.bf16.msra.mxu0 0
        %4473 = vmatprep.subr.bf16.mxu0 0
        %4474 = vmatpush2.bf16.msra.mxu0 0
        %4475 = vmatprep.mubr.bf16.mxu0 0
        %4476 = vmatmul.mubr.bf16.gmra.mxu0 %v4376
        %v4477 = vpop.f32.mrf.mxu0
        %v4478 = vadd.f32 0.0, %v4477
        %v4479 = vpop.f32.mrf.mxu0
        %v4480 = vpop.f32.mrf.mxu0
        %v4481 = vadd.f32 0.0, %v4480
        %v4482 = vpop.f32.mrf.mxu0
        %4483 = vmatprep.mubr.bf16.mxu0 0
        %4484 = vmatmul.mubr.bf16.gmra.mxu0 %v4377
        %v4485 = vpop.f32.mrf.mxu0
        %v4486 = vadd.f32 0.0, %v4485
        %v4487 = vpop.f32.mrf.mxu0
        %v4488 = vpop.f32.mrf.mxu0
        %v4489 = vadd.f32 0.0, %v4488
        %v4490 = vpop.f32.mrf.mxu0
        %4491 = vdwg.mxu0
        %v4492 = vadd.f32 %v4358, %v4478
        %v4493 = vadd.f32 %v4361, %v4481
        %v4494 = vadd.f32 %v4366, %v4486
        %v4495 = vadd.f32 %v4369, %v4489
        %v4496 = vld [vmem:[#allocation3 + $0x3] sm:$0xff]
        %v4497 = vld [vmem:[#allocation3 + $0xb] sm:$0xff]
        %v4498 = vld [vmem:[#allocation3 + $0x13] sm:$0xff]
        %v4499 = vld [vmem:[#allocation3 + $0x1b] sm:$0x1]
        %v4500 = vpack.c.bf16 %v4497, %v4496
        %v4501 = vpack.c.bf16 %v4499, %v4498
        %s4502 = scalar_lea.vmem %s5, 704
        %v4503 = vld [vmem:[%s4502] sm:$0xf]
        %v4504 = vld [vmem:[%s4502 + $0x4] sm:$0xf]
        %v4505 = vld [vmem:[%s4502 + $0x8] sm:$0xf]
        %v4506 = vld [vmem:[%s4502 + $0xc] sm:$0xf]
        %v4507 = vld [vmem:[%s4502 + $0x10] sm:$0xf]
        %v4508 = vld [vmem:[%s4502 + $0x14] sm:$0xf]
        %v4509 = vld [vmem:[%s4502 + $0x18] sm:$0xf]
        %v4510 = vld [vmem:[%s4502 + $0x1c] sm:$0xf]
        %v4511 = vld [vmem:[%s4502 + $0x20] sm:$0xf]
        %v4512 = vld [vmem:[%s4502 + $0x24] sm:$0xf]
        %v4513 = vld [vmem:[%s4502 + $0x28] sm:$0xf]
        %v4514 = vld [vmem:[%s4502 + $0x2c] sm:$0xf]
        %v4515 = vld [vmem:[%s4502 + $0x30] sm:$0xf]
        %v4516 = vld [vmem:[%s4502 + $0x34] sm:$0xf]
        %v4517 = vld [vmem:[%s4502 + $0x38] sm:$0xf]
        %v4518 = vld [vmem:[%s4502 + $0x3c] sm:$0xf]
        %v4535 = vunpack.c.l.b16 %v4503
        %v4536 = vunpack.c.l.b16 %v4504
        %v4537 = vunpack.c.l.b16 %v4505
        %v4538 = vunpack.c.l.b16 %v4506
        %v4539 = vunpack.c.l.b16 %v4507
        %v4540 = vunpack.c.l.b16 %v4508
        %v4541 = vunpack.c.l.b16 %v4509
        %v4542 = vunpack.c.l.b16 %v4510
        %v4543 = vunpack.c.l.b16 %v4511
        %v4544 = vunpack.c.l.b16 %v4512
        %v4545 = vunpack.c.l.b16 %v4513
        %v4546 = vunpack.c.l.b16 %v4514
        %v4547 = vunpack.c.l.b16 %v4515
        %v4548 = vunpack.c.l.b16 %v4516
        %v4549 = vunpack.c.l.b16 %v4517
        %v4550 = vunpack.c.l.b16 %v4518
        %v4551 = vpack.c.b16 %v4536, %v4535
        %v4552 = vpack.c.b16 %v4538, %v4537
        %v4553 = vpack.c.b16 %v4540, %v4539
        %v4554 = vpack.c.b16 %v4542, %v4541
        %v4555 = vpack.c.b16 %v4544, %v4543
        %v4556 = vpack.c.b16 %v4546, %v4545
        %v4557 = vpack.c.b16 %v4548, %v4547
        %v4558 = vpack.c.b16 %v4550, %v4549
        %4567 = vmatprep.subr.bf16.mxu0 0
        %4568 = vmatpush1.bf16.msra.mxu0 %v4558
        %4569 = vmatprep.subr.bf16.mxu0 0
        %4570 = vmatpush1.bf16.msra.mxu0 %v4557
        %4571 = vmatprep.subr.bf16.mxu0 0
        %4572 = vmatpush1.bf16.msra.mxu0 %v4556
        %4573 = vmatprep.subr.bf16.mxu0 0
        %4574 = vmatpush1.bf16.msra.mxu0 %v4555
        %4575 = vmatprep.subr.bf16.mxu0 0
        %4576 = vmatpush1.bf16.msra.mxu0 %v4554
        %4577 = vmatprep.subr.bf16.mxu0 0
        %4578 = vmatpush1.bf16.msra.mxu0 %v4553
        %4579 = vmatprep.subr.bf16.mxu0 0
        %4580 = vmatpush1.bf16.msra.mxu0 %v4552
        %4581 = vmatprep.subr.bf16.mxu0 0
        %4582 = vmatpush1.bf16.msra.mxu0 %v4551
        %4583 = vmatprep.subr.bf16.mxu0 0
        %4584 = vmatpush2.bf16.msra.mxu0 0
        %4585 = vmatprep.subr.bf16.mxu0 0
        %4586 = vmatpush2.bf16.msra.mxu0 0
        %4587 = vmatprep.subr.bf16.mxu0 0
        %4588 = vmatpush2.bf16.msra.mxu0 0
        %4589 = vmatprep.subr.bf16.mxu0 0
        %4590 = vmatpush2.bf16.msra.mxu0 0
        %4591 = vmatprep.subr.bf16.mxu0 0
        %4592 = vmatpush2.bf16.msra.mxu0 0
        %4593 = vmatprep.subr.bf16.mxu0 0
        %4594 = vmatpush2.bf16.msra.mxu0 0
        %4595 = vmatprep.subr.bf16.mxu0 0
        %4596 = vmatpush2.bf16.msra.mxu0 0
        %4597 = vmatprep.subr.bf16.mxu0 0
        %4598 = vmatpush2.bf16.msra.mxu0 0
        %4599 = vmatprep.mubr.bf16.mxu0 0
        %4600 = vmatmul.mubr.bf16.gmra.mxu0 %v4500
        %v4601 = vpop.f32.mrf.mxu0
        %v4602 = vadd.f32 0.0, %v4601
        %v4603 = vpop.f32.mrf.mxu0
        %v4604 = vpop.f32.mrf.mxu0
        %v4605 = vadd.f32 0.0, %v4604
        %v4606 = vpop.f32.mrf.mxu0
        %4607 = vmatprep.mubr.bf16.mxu0 0
        %4608 = vmatmul.mubr.bf16.gmra.mxu0 %v4501
        %v4609 = vpop.f32.mrf.mxu0
        %v4610 = vadd.f32 0.0, %v4609
        %v4611 = vpop.f32.mrf.mxu0
        %v4612 = vpop.f32.mrf.mxu0
        %v4613 = vadd.f32 0.0, %v4612
        %v4614 = vpop.f32.mrf.mxu0
        %4615 = vdwg.mxu0
        %v4616 = vadd.f32 %v4492, %v4602
        %v4617 = vadd.f32 %v4493, %v4605
        %v4618 = vadd.f32 %v4494, %v4610
        %v4619 = vadd.f32 %v4495, %v4613
        %v4620 = vld [vmem:[#allocation3 + $0x4] sm:$0xff]
        %v4621 = vld [vmem:[#allocation3 + $0xc] sm:$0xff]
        %v4622 = vld [vmem:[#allocation3 + $0x14] sm:$0xff]
        %v4623 = vld [vmem:[#allocation3 + $0x1c] sm:$0x1]
        %v4624 = vpack.c.bf16 %v4621, %v4620
        %v4625 = vpack.c.bf16 %v4623, %v4622
        %s4626 = scalar_lea.vmem %s5, 768
        %v4627 = vld [vmem:[%s4626] sm:$0xf]
        %v4628 = vld [vmem:[%s4626 + $0x4] sm:$0xf]
        %v4629 = vld [vmem:[%s4626 + $0x8] sm:$0xf]
        %v4630 = vld [vmem:[%s4626 + $0xc] sm:$0xf]
        %v4631 = vld [vmem:[%s4626 + $0x10] sm:$0xf]
        %v4632 = vld [vmem:[%s4626 + $0x14] sm:$0xf]
        %v4633 = vld [vmem:[%s4626 + $0x18] sm:$0xf]
        %v4634 = vld [vmem:[%s4626 + $0x1c] sm:$0xf]
        %v4635 = vld [vmem:[%s4626 + $0x20] sm:$0xf]
        %v4636 = vld [vmem:[%s4626 + $0x24] sm:$0xf]
        %v4637 = vld [vmem:[%s4626 + $0x28] sm:$0xf]
        %v4638 = vld [vmem:[%s4626 + $0x2c] sm:$0xf]
        %v4639 = vld [vmem:[%s4626 + $0x30] sm:$0xf]
        %v4640 = vld [vmem:[%s4626 + $0x34] sm:$0xf]
        %v4641 = vld [vmem:[%s4626 + $0x38] sm:$0xf]
        %v4642 = vld [vmem:[%s4626 + $0x3c] sm:$0xf]
        %v4659 = vunpack.c.l.b16 %v4627
        %v4660 = vunpack.c.l.b16 %v4628
        %v4661 = vunpack.c.l.b16 %v4629
        %v4662 = vunpack.c.l.b16 %v4630
        %v4663 = vunpack.c.l.b16 %v4631
        %v4664 = vunpack.c.l.b16 %v4632
        %v4665 = vunpack.c.l.b16 %v4633
        %v4666 = vunpack.c.l.b16 %v4634
        %v4667 = vunpack.c.l.b16 %v4635
        %v4668 = vunpack.c.l.b16 %v4636
        %v4669 = vunpack.c.l.b16 %v4637
        %v4670 = vunpack.c.l.b16 %v4638
        %v4671 = vunpack.c.l.b16 %v4639
        %v4672 = vunpack.c.l.b16 %v4640
        %v4673 = vunpack.c.l.b16 %v4641
        %v4674 = vunpack.c.l.b16 %v4642
        %v4675 = vpack.c.b16 %v4660, %v4659
        %v4676 = vpack.c.b16 %v4662, %v4661
        %v4677 = vpack.c.b16 %v4664, %v4663
        %v4678 = vpack.c.b16 %v4666, %v4665
        %v4679 = vpack.c.b16 %v4668, %v4667
        %v4680 = vpack.c.b16 %v4670, %v4669
        %v4681 = vpack.c.b16 %v4672, %v4671
        %v4682 = vpack.c.b16 %v4674, %v4673
        %4691 = vmatprep.subr.bf16.mxu0 0
        %4692 = vmatpush1.bf16.msra.mxu0 %v4682
        %4693 = vmatprep.subr.bf16.mxu0 0
        %4694 = vmatpush1.bf16.msra.mxu0 %v4681
        %4695 = vmatprep.subr.bf16.mxu0 0
        %4696 = vmatpush1.bf16.msra.mxu0 %v4680
        %4697 = vmatprep.subr.bf16.mxu0 0
        %4698 = vmatpush1.bf16.msra.mxu0 %v4679
        %4699 = vmatprep.subr.bf16.mxu0 0
        %4700 = vmatpush1.bf16.msra.mxu0 %v4678
        %4701 = vmatprep.subr.bf16.mxu0 0
        %4702 = vmatpush1.bf16.msra.mxu0 %v4677
        %4703 = vmatprep.subr.bf16.mxu0 0
        %4704 = vmatpush1.bf16.msra.mxu0 %v4676
        %4705 = vmatprep.subr.bf16.mxu0 0
        %4706 = vmatpush1.bf16.msra.mxu0 %v4675
        %4707 = vmatprep.subr.bf16.mxu0 0
        %4708 = vmatpush2.bf16.msra.mxu0 0
        %4709 = vmatprep.subr.bf16.mxu0 0
        %4710 = vmatpush2.bf16.msra.mxu0 0
        %4711 = vmatprep.subr.bf16.mxu0 0
        %4712 = vmatpush2.bf16.msra.mxu0 0
        %4713 = vmatprep.subr.bf16.mxu0 0
        %4714 = vmatpush2.bf16.msra.mxu0 0
        %4715 = vmatprep.subr.bf16.mxu0 0
        %4716 = vmatpush2.bf16.msra.mxu0 0
        %4717 = vmatprep.subr.bf16.mxu0 0
        %4718 = vmatpush2.bf16.msra.mxu0 0
        %4719 = vmatprep.subr.bf16.mxu0 0
        %4720 = vmatpush2.bf16.msra.mxu0 0
        %4721 = vmatprep.subr.bf16.mxu0 0
        %4722 = vmatpush2.bf16.msra.mxu0 0
        %4723 = vmatprep.mubr.bf16.mxu0 0
        %4724 = vmatmul.mubr.bf16.gmra.mxu0 %v4624
        %v4725 = vpop.f32.mrf.mxu0
        %v4726 = vadd.f32 0.0, %v4725
        %v4727 = vpop.f32.mrf.mxu0
        %v4728 = vpop.f32.mrf.mxu0
        %v4729 = vadd.f32 0.0, %v4728
        %v4730 = vpop.f32.mrf.mxu0
        %4731 = vmatprep.mubr.bf16.mxu0 0
        %4732 = vmatmul.mubr.bf16.gmra.mxu0 %v4625
        %v4733 = vpop.f32.mrf.mxu0
        %v4734 = vadd.f32 0.0, %v4733
        %v4735 = vpop.f32.mrf.mxu0
        %v4736 = vpop.f32.mrf.mxu0
        %v4737 = vadd.f32 0.0, %v4736
        %v4738 = vpop.f32.mrf.mxu0
        %4739 = vdwg.mxu0
        %v4740 = vadd.f32 %v4616, %v4726
        %v4741 = vadd.f32 %v4617, %v4729
        %v4742 = vadd.f32 %v4618, %v4734
        %v4743 = vadd.f32 %v4619, %v4737
        %v4744 = vld [vmem:[#allocation3 + $0x5] sm:$0xff]
        %v4745 = vld [vmem:[#allocation3 + $0xd] sm:$0xff]
        %v4746 = vld [vmem:[#allocation3 + $0x15] sm:$0xff]
        %v4747 = vld [vmem:[#allocation3 + $0x1d] sm:$0x1]
        %v4748 = vpack.c.bf16 %v4745, %v4744
        %v4749 = vpack.c.bf16 %v4747, %v4746
        %s4750 = scalar_lea.vmem %s5, 832
        %v4751 = vld [vmem:[%s4750] sm:$0xf]
        %v4752 = vld [vmem:[%s4750 + $0x4] sm:$0xf]
        %v4753 = vld [vmem:[%s4750 + $0x8] sm:$0xf]
        %v4754 = vld [vmem:[%s4750 + $0xc] sm:$0xf]
        %v4755 = vld [vmem:[%s4750 + $0x10] sm:$0xf]
        %v4756 = vld [vmem:[%s4750 + $0x14] sm:$0xf]
        %v4757 = vld [vmem:[%s4750 + $0x18] sm:$0xf]
        %v4758 = vld [vmem:[%s4750 + $0x1c] sm:$0xf]
        %v4759 = vld [vmem:[%s4750 + $0x20] sm:$0xf]
        %v4760 = vld [vmem:[%s4750 + $0x24] sm:$0xf]
        %v4761 = vld [vmem:[%s4750 + $0x28] sm:$0xf]
        %v4762 = vld [vmem:[%s4750 + $0x2c] sm:$0xf]
        %v4763 = vld [vmem:[%s4750 + $0x30] sm:$0xf]
        %v4764 = vld [vmem:[%s4750 + $0x34] sm:$0xf]
        %v4765 = vld [vmem:[%s4750 + $0x38] sm:$0xf]
        %v4766 = vld [vmem:[%s4750 + $0x3c] sm:$0xf]
        %v4783 = vunpack.c.l.b16 %v4751
        %v4784 = vunpack.c.l.b16 %v4752
        %v4785 = vunpack.c.l.b16 %v4753
        %v4786 = vunpack.c.l.b16 %v4754
        %v4787 = vunpack.c.l.b16 %v4755
        %v4788 = vunpack.c.l.b16 %v4756
        %v4789 = vunpack.c.l.b16 %v4757
        %v4790 = vunpack.c.l.b16 %v4758
        %v4791 = vunpack.c.l.b16 %v4759
        %v4792 = vunpack.c.l.b16 %v4760
        %v4793 = vunpack.c.l.b16 %v4761
        %v4794 = vunpack.c.l.b16 %v4762
        %v4795 = vunpack.c.l.b16 %v4763
        %v4796 = vunpack.c.l.b16 %v4764
        %v4797 = vunpack.c.l.b16 %v4765
        %v4798 = vunpack.c.l.b16 %v4766
        %v4799 = vpack.c.b16 %v4784, %v4783
        %v4800 = vpack.c.b16 %v4786, %v4785
        %v4801 = vpack.c.b16 %v4788, %v4787
        %v4802 = vpack.c.b16 %v4790, %v4789
        %v4803 = vpack.c.b16 %v4792, %v4791
        %v4804 = vpack.c.b16 %v4794, %v4793
        %v4805 = vpack.c.b16 %v4796, %v4795
        %v4806 = vpack.c.b16 %v4798, %v4797
        %4815 = vmatprep.subr.bf16.mxu0 0
        %4816 = vmatpush1.bf16.msra.mxu0 %v4806
        %4817 = vmatprep.subr.bf16.mxu0 0
        %4818 = vmatpush1.bf16.msra.mxu0 %v4805
        %4819 = vmatprep.subr.bf16.mxu0 0
        %4820 = vmatpush1.bf16.msra.mxu0 %v4804
        %4821 = vmatprep.subr.bf16.mxu0 0
        %4822 = vmatpush1.bf16.msra.mxu0 %v4803
        %4823 = vmatprep.subr.bf16.mxu0 0
        %4824 = vmatpush1.bf16.msra.mxu0 %v4802
        %4825 = vmatprep.subr.bf16.mxu0 0
        %4826 = vmatpush1.bf16.msra.mxu0 %v4801
        %4827 = vmatprep.subr.bf16.mxu0 0
        %4828 = vmatpush1.bf16.msra.mxu0 %v4800
        %4829 = vmatprep.subr.bf16.mxu0 0
        %4830 = vmatpush1.bf16.msra.mxu0 %v4799
        %4831 = vmatprep.subr.bf16.mxu0 0
        %4832 = vmatpush2.bf16.msra.mxu0 0
        %4833 = vmatprep.subr.bf16.mxu0 0
        %4834 = vmatpush2.bf16.msra.mxu0 0
        %4835 = vmatprep.subr.bf16.mxu0 0
        %4836 = vmatpush2.bf16.msra.mxu0 0
        %4837 = vmatprep.subr.bf16.mxu0 0
        %4838 = vmatpush2.bf16.msra.mxu0 0
        %4839 = vmatprep.subr.bf16.mxu0 0
        %4840 = vmatpush2.bf16.msra.mxu0 0
        %4841 = vmatprep.subr.bf16.mxu0 0
        %4842 = vmatpush2.bf16.msra.mxu0 0
        %4843 = vmatprep.subr.bf16.mxu0 0
        %4844 = vmatpush2.bf16.msra.mxu0 0
        %4845 = vmatprep.subr.bf16.mxu0 0
        %4846 = vmatpush2.bf16.msra.mxu0 0
        %4847 = vmatprep.mubr.bf16.mxu0 0
        %4848 = vmatmul.mubr.bf16.gmra.mxu0 %v4748
        %v4849 = vpop.f32.mrf.mxu0
        %v4850 = vadd.f32 0.0, %v4849
        %v4851 = vpop.f32.mrf.mxu0
        %v4852 = vpop.f32.mrf.mxu0
        %v4853 = vadd.f32 0.0, %v4852
        %v4854 = vpop.f32.mrf.mxu0
        %4855 = vmatprep.mubr.bf16.mxu0 0
        %4856 = vmatmul.mubr.bf16.gmra.mxu0 %v4749
        %v4857 = vpop.f32.mrf.mxu0
        %v4858 = vadd.f32 0.0, %v4857
        %v4859 = vpop.f32.mrf.mxu0
        %v4860 = vpop.f32.mrf.mxu0
        %v4861 = vadd.f32 0.0, %v4860
        %v4862 = vpop.f32.mrf.mxu0
        %4863 = vdwg.mxu0
        %v4864 = vadd.f32 %v4740, %v4850
        %v4865 = vadd.f32 %v4741, %v4853
        %v4866 = vadd.f32 %v4742, %v4858
        %v4867 = vadd.f32 %v4743, %v4861
        %v4868 = vld [vmem:[#allocation3 + $0x6] sm:$0xff]
        %v4869 = vld [vmem:[#allocation3 + $0xe] sm:$0xff]
        %v4870 = vld [vmem:[#allocation3 + $0x16] sm:$0xff]
        %v4871 = vld [vmem:[#allocation3 + $0x1e] sm:$0x1]
        %v4872 = vpack.c.bf16 %v4869, %v4868
        %v4873 = vpack.c.bf16 %v4871, %v4870
        %s4874 = scalar_lea.vmem %s5, 896
        %v4875 = vld [vmem:[%s4874] sm:$0xf]
        %v4876 = vld [vmem:[%s4874 + $0x4] sm:$0xf]
        %v4877 = vld [vmem:[%s4874 + $0x8] sm:$0xf]
        %v4878 = vld [vmem:[%s4874 + $0xc] sm:$0xf]
        %v4879 = vld [vmem:[%s4874 + $0x10] sm:$0xf]
        %v4880 = vld [vmem:[%s4874 + $0x14] sm:$0xf]
        %v4881 = vld [vmem:[%s4874 + $0x18] sm:$0xf]
        %v4882 = vld [vmem:[%s4874 + $0x1c] sm:$0xf]
        %v4883 = vld [vmem:[%s4874 + $0x20] sm:$0xf]
        %v4884 = vld [vmem:[%s4874 + $0x24] sm:$0xf]
        %v4885 = vld [vmem:[%s4874 + $0x28] sm:$0xf]
        %v4886 = vld [vmem:[%s4874 + $0x2c] sm:$0xf]
        %v4887 = vld [vmem:[%s4874 + $0x30] sm:$0xf]
        %v4888 = vld [vmem:[%s4874 + $0x34] sm:$0xf]
        %v4889 = vld [vmem:[%s4874 + $0x38] sm:$0xf]
        %v4890 = vld [vmem:[%s4874 + $0x3c] sm:$0xf]
        %v4907 = vunpack.c.l.b16 %v4875
        %v4908 = vunpack.c.l.b16 %v4876
        %v4909 = vunpack.c.l.b16 %v4877
        %v4910 = vunpack.c.l.b16 %v4878
        %v4911 = vunpack.c.l.b16 %v4879
        %v4912 = vunpack.c.l.b16 %v4880
        %v4913 = vunpack.c.l.b16 %v4881
        %v4914 = vunpack.c.l.b16 %v4882
        %v4915 = vunpack.c.l.b16 %v4883
        %v4916 = vunpack.c.l.b16 %v4884
        %v4917 = vunpack.c.l.b16 %v4885
        %v4918 = vunpack.c.l.b16 %v4886
        %v4919 = vunpack.c.l.b16 %v4887
        %v4920 = vunpack.c.l.b16 %v4888
        %v4921 = vunpack.c.l.b16 %v4889
        %v4922 = vunpack.c.l.b16 %v4890
        %v4923 = vpack.c.b16 %v4908, %v4907
        %v4924 = vpack.c.b16 %v4910, %v4909
        %v4925 = vpack.c.b16 %v4912, %v4911
        %v4926 = vpack.c.b16 %v4914, %v4913
        %v4927 = vpack.c.b16 %v4916, %v4915
        %v4928 = vpack.c.b16 %v4918, %v4917
        %v4929 = vpack.c.b16 %v4920, %v4919
        %v4930 = vpack.c.b16 %v4922, %v4921
        %4939 = vmatprep.subr.bf16.mxu0 0
        %4940 = vmatpush1.bf16.msra.mxu0 %v4930
        %4941 = vmatprep.subr.bf16.mxu0 0
        %4942 = vmatpush1.bf16.msra.mxu0 %v4929
        %4943 = vmatprep.subr.bf16.mxu0 0
        %4944 = vmatpush1.bf16.msra.mxu0 %v4928
        %4945 = vmatprep.subr.bf16.mxu0 0
        %4946 = vmatpush1.bf16.msra.mxu0 %v4927
        %4947 = vmatprep.subr.bf16.mxu0 0
        %4948 = vmatpush1.bf16.msra.mxu0 %v4926
        %4949 = vmatprep.subr.bf16.mxu0 0
        %4950 = vmatpush1.bf16.msra.mxu0 %v4925
        %4951 = vmatprep.subr.bf16.mxu0 0
        %4952 = vmatpush1.bf16.msra.mxu0 %v4924
        %4953 = vmatprep.subr.bf16.mxu0 0
        %4954 = vmatpush1.bf16.msra.mxu0 %v4923
        %4955 = vmatprep.subr.bf16.mxu0 0
        %4956 = vmatpush2.bf16.msra.mxu0 0
        %4957 = vmatprep.subr.bf16.mxu0 0
        %4958 = vmatpush2.bf16.msra.mxu0 0
        %4959 = vmatprep.subr.bf16.mxu0 0
        %4960 = vmatpush2.bf16.msra.mxu0 0
        %4961 = vmatprep.subr.bf16.mxu0 0
        %4962 = vmatpush2.bf16.msra.mxu0 0
        %4963 = vmatprep.subr.bf16.mxu0 0
        %4964 = vmatpush2.bf16.msra.mxu0 0
        %4965 = vmatprep.subr.bf16.mxu0 0
        %4966 = vmatpush2.bf16.msra.mxu0 0
        %4967 = vmatprep.subr.bf16.mxu0 0
        %4968 = vmatpush2.bf16.msra.mxu0 0
        %4969 = vmatprep.subr.bf16.mxu0 0
        %4970 = vmatpush2.bf16.msra.mxu0 0
        %4971 = vmatprep.mubr.bf16.mxu0 0
        %4972 = vmatmul.mubr.bf16.gmra.mxu0 %v4872
        %v4973 = vpop.f32.mrf.mxu0
        %v4974 = vadd.f32 0.0, %v4973
        %v4975 = vpop.f32.mrf.mxu0
        %v4976 = vpop.f32.mrf.mxu0
        %v4977 = vadd.f32 0.0, %v4976
        %v4978 = vpop.f32.mrf.mxu0
        %4979 = vmatprep.mubr.bf16.mxu0 0
        %4980 = vmatmul.mubr.bf16.gmra.mxu0 %v4873
        %v4981 = vpop.f32.mrf.mxu0
        %v4982 = vadd.f32 0.0, %v4981
        %v4983 = vpop.f32.mrf.mxu0
        %v4984 = vpop.f32.mrf.mxu0
        %v4985 = vadd.f32 0.0, %v4984
        %v4986 = vpop.f32.mrf.mxu0
        %4987 = vdwg.mxu0
        %v4988 = vadd.f32 %v4864, %v4974
        %v4989 = vadd.f32 %v4865, %v4977
        %v4990 = vadd.f32 %v4866, %v4982
        %v4991 = vadd.f32 %v4867, %v4985
        %v4992 = vld [vmem:[#allocation3 + $0x7] sm:$0xff]
        %v4993 = vld [vmem:[#allocation3 + $0xf] sm:$0xff]
        %v4994 = vld [vmem:[#allocation3 + $0x17] sm:$0xff]
        %v4995 = vld [vmem:[#allocation3 + $0x1f] sm:$0x1]
        %v4996 = vpack.c.bf16 %v4993, %v4992
        %v4997 = vpack.c.bf16 %v4995, %v4994
        %s4998 = scalar_lea.vmem %s5, 960
        %v4999 = vld [vmem:[%s4998] sm:$0xf]
        %v5000 = vld [vmem:[%s4998 + $0x4] sm:$0xf]
        %v5001 = vld [vmem:[%s4998 + $0x8] sm:$0xf]
        %v5002 = vld [vmem:[%s4998 + $0xc] sm:$0xf]
        %v5003 = vld [vmem:[%s4998 + $0x10] sm:$0xf]
        %v5004 = vld [vmem:[%s4998 + $0x14] sm:$0xf]
        %v5005 = vld [vmem:[%s4998 + $0x18] sm:$0xf]
        %v5006 = vld [vmem:[%s4998 + $0x1c] sm:$0xf]
        %v5007 = vld [vmem:[%s4998 + $0x20] sm:$0xf]
        %v5008 = vld [vmem:[%s4998 + $0x24] sm:$0xf]
        %v5009 = vld [vmem:[%s4998 + $0x28] sm:$0xf]
        %v5010 = vld [vmem:[%s4998 + $0x2c] sm:$0xf]
        %v5011 = vld [vmem:[%s4998 + $0x30] sm:$0xf]
        %v5012 = vld [vmem:[%s4998 + $0x34] sm:$0xf]
        %v5013 = vld [vmem:[%s4998 + $0x38] sm:$0xf]
        %v5014 = vld [vmem:[%s4998 + $0x3c] sm:$0xf]
        %v5031 = vunpack.c.l.b16 %v4999
        %v5032 = vunpack.c.l.b16 %v5000
        %v5033 = vunpack.c.l.b16 %v5001
        %v5034 = vunpack.c.l.b16 %v5002
        %v5035 = vunpack.c.l.b16 %v5003
        %v5036 = vunpack.c.l.b16 %v5004
        %v5037 = vunpack.c.l.b16 %v5005
        %v5038 = vunpack.c.l.b16 %v5006
        %v5039 = vunpack.c.l.b16 %v5007
        %v5040 = vunpack.c.l.b16 %v5008
        %v5041 = vunpack.c.l.b16 %v5009
        %v5042 = vunpack.c.l.b16 %v5010
        %v5043 = vunpack.c.l.b16 %v5011
        %v5044 = vunpack.c.l.b16 %v5012
        %v5045 = vunpack.c.l.b16 %v5013
        %v5046 = vunpack.c.l.b16 %v5014
        %v5047 = vpack.c.b16 %v5032, %v5031
        %v5048 = vpack.c.b16 %v5034, %v5033
        %v5049 = vpack.c.b16 %v5036, %v5035
        %v5050 = vpack.c.b16 %v5038, %v5037
        %v5051 = vpack.c.b16 %v5040, %v5039
        %v5052 = vpack.c.b16 %v5042, %v5041
        %v5053 = vpack.c.b16 %v5044, %v5043
        %v5054 = vpack.c.b16 %v5046, %v5045
        %5063 = vmatprep.subr.bf16.mxu0 0
        %5064 = vmatpush1.bf16.msra.mxu0 %v5054
        %5065 = vmatprep.subr.bf16.mxu0 0
        %5066 = vmatpush1.bf16.msra.mxu0 %v5053
        %5067 = vmatprep.subr.bf16.mxu0 0
        %5068 = vmatpush1.bf16.msra.mxu0 %v5052
        %5069 = vmatprep.subr.bf16.mxu0 0
        %5070 = vmatpush1.bf16.msra.mxu0 %v5051
        %5071 = vmatprep.subr.bf16.mxu0 0
        %5072 = vmatpush1.bf16.msra.mxu0 %v5050
        %5073 = vmatprep.subr.bf16.mxu0 0
        %5074 = vmatpush1.bf16.msra.mxu0 %v5049
        %5075 = vmatprep.subr.bf16.mxu0 0
        %5076 = vmatpush1.bf16.msra.mxu0 %v5048
        %5077 = vmatprep.subr.bf16.mxu0 0
        %5078 = vmatpush1.bf16.msra.mxu0 %v5047
        %5079 = vmatprep.subr.bf16.mxu0 0
        %5080 = vmatpush2.bf16.msra.mxu0 0
        %5081 = vmatprep.subr.bf16.mxu0 0
        %5082 = vmatpush2.bf16.msra.mxu0 0
        %5083 = vmatprep.subr.bf16.mxu0 0
        %5084 = vmatpush2.bf16.msra.mxu0 0
        %5085 = vmatprep.subr.bf16.mxu0 0
        %5086 = vmatpush2.bf16.msra.mxu0 0
        %5087 = vmatprep.subr.bf16.mxu0 0
        %5088 = vmatpush2.bf16.msra.mxu0 0
        %5089 = vmatprep.subr.bf16.mxu0 0
        %5090 = vmatpush2.bf16.msra.mxu0 0
        %5091 = vmatprep.subr.bf16.mxu0 0
        %5092 = vmatpush2.bf16.msra.mxu0 0
        %5093 = vmatprep.subr.bf16.mxu0 0
        %5094 = vmatpush2.bf16.msra.mxu0 0
        %5095 = vmatprep.mubr.bf16.mxu0 0
        %5096 = vmatmul.mubr.bf16.gmra.mxu0 %v4996
        %v5097 = vpop.f32.mrf.mxu0
        %v5098 = vadd.f32 0.0, %v5097
        %v5099 = vpop.f32.mrf.mxu0
        %v5100 = vpop.f32.mrf.mxu0
        %v5101 = vadd.f32 0.0, %v5100
        %v5102 = vpop.f32.mrf.mxu0
        %5103 = vmatprep.mubr.bf16.mxu0 0
        %5104 = vmatmul.mubr.bf16.gmra.mxu0 %v4997
        %v5105 = vpop.f32.mrf.mxu0
        %v5106 = vadd.f32 0.0, %v5105
        %v5107 = vpop.f32.mrf.mxu0
        %v5108 = vpop.f32.mrf.mxu0
        %v5109 = vadd.f32 0.0, %v5108
        %v5110 = vpop.f32.mrf.mxu0
        %5111 = vdwg.mxu0
        %v5112 = vadd.f32 %v4988, %v5098
        %v5113 = vadd.f32 %v4989, %v5101
        %v5114 = vadd.f32 %v4990, %v5106
        %v5115 = vadd.f32 %v4991, %v5109
        %s5116 = scalar_lea.vmem %s6, 1
        %v5117 = vld [vmem:[%s5116] sm:$0x1]
        %v5119 = vlaneseq
        %v5120 = vshrl.u32 %v5119, 7
        %v5121 = vsub.s32 0, %v5120
        %v5122 = vrot.slane %v5117, %v5121
        %v5124 = vmul.f32 %v5112, %v5122
        %v5125 = vmul.f32 %v5113, %v5122
        %v5126 = vmul.f32 %v5114, %v5122
        %v5127 = vmul.f32 %v5115, %v5122
        %s5128 = scalar_lea.vmem %s7, 1
        %v5129 = vld [vmem:[%s5128] sm:$0x1]
        %v5131 = vlaneseq
        %v5132 = vshrl.u32 %v5131, 7
        %v5133 = vsub.s32 0, %v5132
        %v5134 = vrot.slane %v5129, %v5133
        %v5136 = vadd.f32 %v5124, %v5134
        %v5137 = vadd.f32 %v5125, %v5134
        %v5138 = vadd.f32 %v5126, %v5134
        %v5139 = vadd.f32 %v5127, %v5134
        %v5140 = vmax.f32 %v5136, 0.0
        %v5141 = vmax.f32 %v5137, 0.0
        %v5142 = vmax.f32 %v5138, 0.0
        %v5143 = vmax.f32 %v5139, 0.0
        %5144 = vst [vmem:[#allocation3 + $0x3] sm:$0xff] %v5140
        %5145 = vst [vmem:[#allocation3 + $0xb] sm:$0xff] %v5141
        %5146 = vst [vmem:[#allocation3 + $0x13] sm:$0xff] %v5142
        %5147 = vst [vmem:[#allocation3 + $0x1b] sm:$0x1] %v5143
        %v5148 = vld [vmem:[#allocation3] sm:$0xff]
        %v5149 = vld [vmem:[#allocation3 + $0x8] sm:$0xff]
        %v5150 = vld [vmem:[#allocation3 + $0x10] sm:$0xff]
        %v5151 = vld [vmem:[#allocation3 + $0x18] sm:$0x1]
        %v5152 = vpack.c.bf16 %v5149, %v5148
        %v5153 = vpack.c.bf16 %v5151, %v5150
        %s5154 = scalar_lea.vmem %s5, 1024
        %v5155 = vld [vmem:[%s5154] sm:$0xf]
        %v5156 = vld [vmem:[%s5154 + $0x4] sm:$0xf]
        %v5157 = vld [vmem:[%s5154 + $0x8] sm:$0xf]
        %v5158 = vld [vmem:[%s5154 + $0xc] sm:$0xf]
        %v5159 = vld [vmem:[%s5154 + $0x10] sm:$0xf]
        %v5160 = vld [vmem:[%s5154 + $0x14] sm:$0xf]
        %v5161 = vld [vmem:[%s5154 + $0x18] sm:$0xf]
        %v5162 = vld [vmem:[%s5154 + $0x1c] sm:$0xf]
        %v5163 = vld [vmem:[%s5154 + $0x20] sm:$0xf]
        %v5164 = vld [vmem:[%s5154 + $0x24] sm:$0xf]
        %v5165 = vld [vmem:[%s5154 + $0x28] sm:$0xf]
        %v5166 = vld [vmem:[%s5154 + $0x2c] sm:$0xf]
        %v5167 = vld [vmem:[%s5154 + $0x30] sm:$0xf]
        %v5168 = vld [vmem:[%s5154 + $0x34] sm:$0xf]
        %v5169 = vld [vmem:[%s5154 + $0x38] sm:$0xf]
        %v5170 = vld [vmem:[%s5154 + $0x3c] sm:$0xf]
        %v5171 = vld [vmem:[#allocation3 + $0x1] sm:$0xff]
        %v5172 = vld [vmem:[#allocation3 + $0x9] sm:$0xff]
        %v5173 = vld [vmem:[#allocation3 + $0x11] sm:$0xff]
        %v5174 = vld [vmem:[#allocation3 + $0x19] sm:$0x1]
        %v5175 = vpack.c.bf16 %v5172, %v5171
        %v5176 = vpack.c.bf16 %v5174, %v5173
        %s5177 = scalar_lea.vmem %s5, 1088
        %v5178 = vld [vmem:[%s5177] sm:$0xf]
        %v5179 = vld [vmem:[%s5177 + $0x4] sm:$0xf]
        %v5180 = vld [vmem:[%s5177 + $0x8] sm:$0xf]
        %v5181 = vld [vmem:[%s5177 + $0xc] sm:$0xf]
        %v5182 = vld [vmem:[%s5177 + $0x10] sm:$0xf]
        %v5183 = vld [vmem:[%s5177 + $0x14] sm:$0xf]
        %v5184 = vld [vmem:[%s5177 + $0x18] sm:$0xf]
        %v5185 = vld [vmem:[%s5177 + $0x1c] sm:$0xf]
        %v5186 = vld [vmem:[%s5177 + $0x20] sm:$0xf]
        %v5187 = vld [vmem:[%s5177 + $0x24] sm:$0xf]
        %v5188 = vld [vmem:[%s5177 + $0x28] sm:$0xf]
        %v5189 = vld [vmem:[%s5177 + $0x2c] sm:$0xf]
        %v5190 = vld [vmem:[%s5177 + $0x30] sm:$0xf]
        %v5191 = vld [vmem:[%s5177 + $0x34] sm:$0xf]
        %v5192 = vld [vmem:[%s5177 + $0x38] sm:$0xf]
        %v5193 = vld [vmem:[%s5177 + $0x3c] sm:$0xf]
        %v5210 = vunpack.c.l.b16 %v5178
        %v5211 = vunpack.c.l.b16 %v5179
        %v5212 = vunpack.c.l.b16 %v5180
        %v5213 = vunpack.c.l.b16 %v5181
        %v5214 = vunpack.c.l.b16 %v5182
        %v5215 = vunpack.c.l.b16 %v5183
        %v5216 = vunpack.c.l.b16 %v5184
        %v5217 = vunpack.c.l.b16 %v5185
        %v5218 = vunpack.c.l.b16 %v5186
        %v5219 = vunpack.c.l.b16 %v5187
        %v5220 = vunpack.c.l.b16 %v5188
        %v5221 = vunpack.c.l.b16 %v5189
        %v5222 = vunpack.c.l.b16 %v5190
        %v5223 = vunpack.c.l.b16 %v5191
        %v5224 = vunpack.c.l.b16 %v5192
        %v5225 = vunpack.c.l.b16 %v5193
        %v5226 = vpack.c.b16 %v5211, %v5210
        %v5227 = vpack.c.b16 %v5213, %v5212
        %v5228 = vpack.c.b16 %v5215, %v5214
        %v5229 = vpack.c.b16 %v5217, %v5216
        %v5230 = vpack.c.b16 %v5219, %v5218
        %v5231 = vpack.c.b16 %v5221, %v5220
        %v5232 = vpack.c.b16 %v5223, %v5222
        %v5233 = vpack.c.b16 %v5225, %v5224
        %5242 = vmatprep.subr.bf16.mxu0 0
        %5243 = vmatpush1.bf16.msra.mxu0 %v5233
        %5244 = vmatprep.subr.bf16.mxu0 0
        %5245 = vmatpush1.bf16.msra.mxu0 %v5232
        %5246 = vmatprep.subr.bf16.mxu0 0
        %5247 = vmatpush1.bf16.msra.mxu0 %v5231
        %5248 = vmatprep.subr.bf16.mxu0 0
        %5249 = vmatpush1.bf16.msra.mxu0 %v5230
        %5250 = vmatprep.subr.bf16.mxu0 0
        %5251 = vmatpush1.bf16.msra.mxu0 %v5229
        %5252 = vmatprep.subr.bf16.mxu0 0
        %5253 = vmatpush1.bf16.msra.mxu0 %v5228
        %5254 = vmatprep.subr.bf16.mxu0 0
        %5255 = vmatpush1.bf16.msra.mxu0 %v5227
        %5256 = vmatprep.subr.bf16.mxu0 0
        %5257 = vmatpush1.bf16.msra.mxu0 %v5226
        %5258 = vmatprep.subr.bf16.mxu0 0
        %5259 = vmatpush2.bf16.msra.mxu0 0
        %5260 = vmatprep.subr.bf16.mxu0 0
        %5261 = vmatpush2.bf16.msra.mxu0 0
        %5262 = vmatprep.subr.bf16.mxu0 0
        %5263 = vmatpush2.bf16.msra.mxu0 0
        %5264 = vmatprep.subr.bf16.mxu0 0
        %5265 = vmatpush2.bf16.msra.mxu0 0
        %5266 = vmatprep.subr.bf16.mxu0 0
        %5267 = vmatpush2.bf16.msra.mxu0 0
        %5268 = vmatprep.subr.bf16.mxu0 0
        %5269 = vmatpush2.bf16.msra.mxu0 0
        %5270 = vmatprep.subr.bf16.mxu0 0
        %5271 = vmatpush2.bf16.msra.mxu0 0
        %5272 = vmatprep.subr.bf16.mxu0 0
        %5273 = vmatpush2.bf16.msra.mxu0 0
        %5274 = vmatprep.mubr.bf16.mxu0 0
        %5275 = vmatmul.mubr.bf16.gmra.mxu0 %v5175
        %v5276 = vpop.f32.mrf.mxu0
        %v5277 = vadd.f32 0.0, %v5276
        %v5278 = vpop.f32.mrf.mxu0
        %v5279 = vpop.f32.mrf.mxu0
        %v5280 = vadd.f32 0.0, %v5279
        %v5281 = vpop.f32.mrf.mxu0
        %5282 = vmatprep.mubr.bf16.mxu0 0
        %5283 = vmatmul.mubr.bf16.gmra.mxu0 %v5176
        %v5284 = vpop.f32.mrf.mxu0
        %v5285 = vadd.f32 0.0, %v5284
        %v5286 = vpop.f32.mrf.mxu0
        %v5287 = vpop.f32.mrf.mxu0
        %v5288 = vadd.f32 0.0, %v5287
        %v5289 = vpop.f32.mrf.mxu0
        %5290 = vdwg.mxu0
        %v5307 = vunpack.c.l.b16 %v5155
        %v5308 = vunpack.c.l.b16 %v5156
        %v5309 = vunpack.c.l.b16 %v5157
        %v5310 = vunpack.c.l.b16 %v5158
        %v5311 = vunpack.c.l.b16 %v5159
        %v5312 = vunpack.c.l.b16 %v5160
        %v5313 = vunpack.c.l.b16 %v5161
        %v5314 = vunpack.c.l.b16 %v5162
        %v5315 = vunpack.c.l.b16 %v5163
        %v5316 = vunpack.c.l.b16 %v5164
        %v5317 = vunpack.c.l.b16 %v5165
        %v5318 = vunpack.c.l.b16 %v5166
        %v5319 = vunpack.c.l.b16 %v5167
        %v5320 = vunpack.c.l.b16 %v5168
        %v5321 = vunpack.c.l.b16 %v5169
        %v5322 = vunpack.c.l.b16 %v5170
        %v5323 = vpack.c.b16 %v5308, %v5307
        %v5324 = vpack.c.b16 %v5310, %v5309
        %v5325 = vpack.c.b16 %v5312, %v5311
        %v5326 = vpack.c.b16 %v5314, %v5313
        %v5327 = vpack.c.b16 %v5316, %v5315
        %v5328 = vpack.c.b16 %v5318, %v5317
        %v5329 = vpack.c.b16 %v5320, %v5319
        %v5330 = vpack.c.b16 %v5322, %v5321
        %5339 = vmatprep.subr.bf16.mxu0 0
        %5340 = vmatpush1.bf16.msra.mxu0 %v5330
        %5341 = vmatprep.subr.bf16.mxu0 0
        %5342 = vmatpush1.bf16.msra.mxu0 %v5329
        %5343 = vmatprep.subr.bf16.mxu0 0
        %5344 = vmatpush1.bf16.msra.mxu0 %v5328
        %5345 = vmatprep.subr.bf16.mxu0 0
        %5346 = vmatpush1.bf16.msra.mxu0 %v5327
        %5347 = vmatprep.subr.bf16.mxu0 0
        %5348 = vmatpush1.bf16.msra.mxu0 %v5326
        %5349 = vmatprep.subr.bf16.mxu0 0
        %5350 = vmatpush1.bf16.msra.mxu0 %v5325
        %5351 = vmatprep.subr.bf16.mxu0 0
        %5352 = vmatpush1.bf16.msra.mxu0 %v5324
        %5353 = vmatprep.subr.bf16.mxu0 0
        %5354 = vmatpush1.bf16.msra.mxu0 %v5323
        %5355 = vmatprep.subr.bf16.mxu0 0
        %5356 = vmatpush2.bf16.msra.mxu0 0
        %5357 = vmatprep.subr.bf16.mxu0 0
        %5358 = vmatpush2.bf16.msra.mxu0 0
        %5359 = vmatprep.subr.bf16.mxu0 0
        %5360 = vmatpush2.bf16.msra.mxu0 0
        %5361 = vmatprep.subr.bf16.mxu0 0
        %5362 = vmatpush2.bf16.msra.mxu0 0
        %5363 = vmatprep.subr.bf16.mxu0 0
        %5364 = vmatpush2.bf16.msra.mxu0 0
        %5365 = vmatprep.subr.bf16.mxu0 0
        %5366 = vmatpush2.bf16.msra.mxu0 0
        %5367 = vmatprep.subr.bf16.mxu0 0
        %5368 = vmatpush2.bf16.msra.mxu0 0
        %5369 = vmatprep.subr.bf16.mxu0 0
        %5370 = vmatpush2.bf16.msra.mxu0 0
        %5371 = vmatprep.mubr.bf16.mxu0 0
        %5372 = vmatmul.mubr.bf16.gmra.mxu0 %v5152
        %v5373 = vpop.f32.mrf.mxu0
        %v5374 = vadd.f32 %v5277, %v5373
        %v5375 = vpop.f32.mrf.mxu0
        %v5376 = vpop.f32.mrf.mxu0
        %v5377 = vadd.f32 %v5280, %v5376
        %v5378 = vpop.f32.mrf.mxu0
        %5379 = vmatprep.mubr.bf16.mxu0 0
        %5380 = vmatmul.mubr.bf16.gmra.mxu0 %v5153
        %v5381 = vpop.f32.mrf.mxu0
        %v5382 = vadd.f32 %v5285, %v5381
        %v5383 = vpop.f32.mrf.mxu0
        %v5384 = vpop.f32.mrf.mxu0
        %v5385 = vadd.f32 %v5288, %v5384
        %v5386 = vpop.f32.mrf.mxu0
        %5387 = vdwg.mxu0
        %v5388 = vld [vmem:[#allocation3 + $0x2] sm:$0xff]
        %v5389 = vld [vmem:[#allocation3 + $0xa] sm:$0xff]
        %v5390 = vld [vmem:[#allocation3 + $0x12] sm:$0xff]
        %v5391 = vld [vmem:[#allocation3 + $0x1a] sm:$0x1]
        %v5392 = vpack.c.bf16 %v5389, %v5388
        %v5393 = vpack.c.bf16 %v5391, %v5390
        %s5394 = scalar_lea.vmem %s5, 1152
        %v5395 = vld [vmem:[%s5394] sm:$0xf]
        %v5396 = vld [vmem:[%s5394 + $0x4] sm:$0xf]
        %v5397 = vld [vmem:[%s5394 + $0x8] sm:$0xf]
        %v5398 = vld [vmem:[%s5394 + $0xc] sm:$0xf]
        %v5399 = vld [vmem:[%s5394 + $0x10] sm:$0xf]
        %v5400 = vld [vmem:[%s5394 + $0x14] sm:$0xf]
        %v5401 = vld [vmem:[%s5394 + $0x18] sm:$0xf]
        %v5402 = vld [vmem:[%s5394 + $0x1c] sm:$0xf]
        %v5403 = vld [vmem:[%s5394 + $0x20] sm:$0xf]
        %v5404 = vld [vmem:[%s5394 + $0x24] sm:$0xf]
        %v5405 = vld [vmem:[%s5394 + $0x28] sm:$0xf]
        %v5406 = vld [vmem:[%s5394 + $0x2c] sm:$0xf]
        %v5407 = vld [vmem:[%s5394 + $0x30] sm:$0xf]
        %v5408 = vld [vmem:[%s5394 + $0x34] sm:$0xf]
        %v5409 = vld [vmem:[%s5394 + $0x38] sm:$0xf]
        %v5410 = vld [vmem:[%s5394 + $0x3c] sm:$0xf]
        %v5427 = vunpack.c.l.b16 %v5395
        %v5428 = vunpack.c.l.b16 %v5396
        %v5429 = vunpack.c.l.b16 %v5397
        %v5430 = vunpack.c.l.b16 %v5398
        %v5431 = vunpack.c.l.b16 %v5399
        %v5432 = vunpack.c.l.b16 %v5400
        %v5433 = vunpack.c.l.b16 %v5401
        %v5434 = vunpack.c.l.b16 %v5402
        %v5435 = vunpack.c.l.b16 %v5403
        %v5436 = vunpack.c.l.b16 %v5404
        %v5437 = vunpack.c.l.b16 %v5405
        %v5438 = vunpack.c.l.b16 %v5406
        %v5439 = vunpack.c.l.b16 %v5407
        %v5440 = vunpack.c.l.b16 %v5408
        %v5441 = vunpack.c.l.b16 %v5409
        %v5442 = vunpack.c.l.b16 %v5410
        %v5443 = vpack.c.b16 %v5428, %v5427
        %v5444 = vpack.c.b16 %v5430, %v5429
        %v5445 = vpack.c.b16 %v5432, %v5431
        %v5446 = vpack.c.b16 %v5434, %v5433
        %v5447 = vpack.c.b16 %v5436, %v5435
        %v5448 = vpack.c.b16 %v5438, %v5437
        %v5449 = vpack.c.b16 %v5440, %v5439
        %v5450 = vpack.c.b16 %v5442, %v5441
        %5459 = vmatprep.subr.bf16.mxu0 0
        %5460 = vmatpush1.bf16.msra.mxu0 %v5450
        %5461 = vmatprep.subr.bf16.mxu0 0
        %5462 = vmatpush1.bf16.msra.mxu0 %v5449
        %5463 = vmatprep.subr.bf16.mxu0 0
        %5464 = vmatpush1.bf16.msra.mxu0 %v5448
        %5465 = vmatprep.subr.bf16.mxu0 0
        %5466 = vmatpush1.bf16.msra.mxu0 %v5447
        %5467 = vmatprep.subr.bf16.mxu0 0
        %5468 = vmatpush1.bf16.msra.mxu0 %v5446
        %5469 = vmatprep.subr.bf16.mxu0 0
        %5470 = vmatpush1.bf16.msra.mxu0 %v5445
        %5471 = vmatprep.subr.bf16.mxu0 0
        %5472 = vmatpush1.bf16.msra.mxu0 %v5444
        %5473 = vmatprep.subr.bf16.mxu0 0
        %5474 = vmatpush1.bf16.msra.mxu0 %v5443
        %5475 = vmatprep.subr.bf16.mxu0 0
        %5476 = vmatpush2.bf16.msra.mxu0 0
        %5477 = vmatprep.subr.bf16.mxu0 0
        %5478 = vmatpush2.bf16.msra.mxu0 0
        %5479 = vmatprep.subr.bf16.mxu0 0
        %5480 = vmatpush2.bf16.msra.mxu0 0
        %5481 = vmatprep.subr.bf16.mxu0 0
        %5482 = vmatpush2.bf16.msra.mxu0 0
        %5483 = vmatprep.subr.bf16.mxu0 0
        %5484 = vmatpush2.bf16.msra.mxu0 0
        %5485 = vmatprep.subr.bf16.mxu0 0
        %5486 = vmatpush2.bf16.msra.mxu0 0
        %5487 = vmatprep.subr.bf16.mxu0 0
        %5488 = vmatpush2.bf16.msra.mxu0 0
        %5489 = vmatprep.subr.bf16.mxu0 0
        %5490 = vmatpush2.bf16.msra.mxu0 0
        %5491 = vmatprep.mubr.bf16.mxu0 0
        %5492 = vmatmul.mubr.bf16.gmra.mxu0 %v5392
        %v5493 = vpop.f32.mrf.mxu0
        %v5494 = vadd.f32 0.0, %v5493
        %v5495 = vpop.f32.mrf.mxu0
        %v5496 = vpop.f32.mrf.mxu0
        %v5497 = vadd.f32 0.0, %v5496
        %v5498 = vpop.f32.mrf.mxu0
        %5499 = vmatprep.mubr.bf16.mxu0 0
        %5500 = vmatmul.mubr.bf16.gmra.mxu0 %v5393
        %v5501 = vpop.f32.mrf.mxu0
        %v5502 = vadd.f32 0.0, %v5501
        %v5503 = vpop.f32.mrf.mxu0
        %v5504 = vpop.f32.mrf.mxu0
        %v5505 = vadd.f32 0.0, %v5504
        %v5506 = vpop.f32.mrf.mxu0
        %5507 = vdwg.mxu0
        %v5508 = vadd.f32 %v5374, %v5494
        %v5509 = vadd.f32 %v5377, %v5497
        %v5510 = vadd.f32 %v5382, %v5502
        %v5511 = vadd.f32 %v5385, %v5505
        %v5512 = vld [vmem:[#allocation3 + $0x3] sm:$0xff]
        %v5513 = vld [vmem:[#allocation3 + $0xb] sm:$0xff]
        %v5514 = vld [vmem:[#allocation3 + $0x13] sm:$0xff]
        %v5515 = vld [vmem:[#allocation3 + $0x1b] sm:$0x1]
        %v5516 = vpack.c.bf16 %v5513, %v5512
        %v5517 = vpack.c.bf16 %v5515, %v5514
        %s5518 = scalar_lea.vmem %s5, 1216
        %v5519 = vld [vmem:[%s5518] sm:$0xf]
        %v5520 = vld [vmem:[%s5518 + $0x4] sm:$0xf]
        %v5521 = vld [vmem:[%s5518 + $0x8] sm:$0xf]
        %v5522 = vld [vmem:[%s5518 + $0xc] sm:$0xf]
        %v5523 = vld [vmem:[%s5518 + $0x10] sm:$0xf]
        %v5524 = vld [vmem:[%s5518 + $0x14] sm:$0xf]
        %v5525 = vld [vmem:[%s5518 + $0x18] sm:$0xf]
        %v5526 = vld [vmem:[%s5518 + $0x1c] sm:$0xf]
        %v5527 = vld [vmem:[%s5518 + $0x20] sm:$0xf]
        %v5528 = vld [vmem:[%s5518 + $0x24] sm:$0xf]
        %v5529 = vld [vmem:[%s5518 + $0x28] sm:$0xf]
        %v5530 = vld [vmem:[%s5518 + $0x2c] sm:$0xf]
        %v5531 = vld [vmem:[%s5518 + $0x30] sm:$0xf]
        %v5532 = vld [vmem:[%s5518 + $0x34] sm:$0xf]
        %v5533 = vld [vmem:[%s5518 + $0x38] sm:$0xf]
        %v5534 = vld [vmem:[%s5518 + $0x3c] sm:$0xf]
        %v5551 = vunpack.c.l.b16 %v5519
        %v5552 = vunpack.c.l.b16 %v5520
        %v5553 = vunpack.c.l.b16 %v5521
        %v5554 = vunpack.c.l.b16 %v5522
        %v5555 = vunpack.c.l.b16 %v5523
        %v5556 = vunpack.c.l.b16 %v5524
        %v5557 = vunpack.c.l.b16 %v5525
        %v5558 = vunpack.c.l.b16 %v5526
        %v5559 = vunpack.c.l.b16 %v5527
        %v5560 = vunpack.c.l.b16 %v5528
        %v5561 = vunpack.c.l.b16 %v5529
        %v5562 = vunpack.c.l.b16 %v5530
        %v5563 = vunpack.c.l.b16 %v5531
        %v5564 = vunpack.c.l.b16 %v5532
        %v5565 = vunpack.c.l.b16 %v5533
        %v5566 = vunpack.c.l.b16 %v5534
        %v5567 = vpack.c.b16 %v5552, %v5551
        %v5568 = vpack.c.b16 %v5554, %v5553
        %v5569 = vpack.c.b16 %v5556, %v5555
        %v5570 = vpack.c.b16 %v5558, %v5557
        %v5571 = vpack.c.b16 %v5560, %v5559
        %v5572 = vpack.c.b16 %v5562, %v5561
        %v5573 = vpack.c.b16 %v5564, %v5563
        %v5574 = vpack.c.b16 %v5566, %v5565
        %5583 = vmatprep.subr.bf16.mxu0 0
        %5584 = vmatpush1.bf16.msra.mxu0 %v5574
        %5585 = vmatprep.subr.bf16.mxu0 0
        %5586 = vmatpush1.bf16.msra.mxu0 %v5573
        %5587 = vmatprep.subr.bf16.mxu0 0
        %5588 = vmatpush1.bf16.msra.mxu0 %v5572
        %5589 = vmatprep.subr.bf16.mxu0 0
        %5590 = vmatpush1.bf16.msra.mxu0 %v5571
        %5591 = vmatprep.subr.bf16.mxu0 0
        %5592 = vmatpush1.bf16.msra.mxu0 %v5570
        %5593 = vmatprep.subr.bf16.mxu0 0
        %5594 = vmatpush1.bf16.msra.mxu0 %v5569
        %5595 = vmatprep.subr.bf16.mxu0 0
        %5596 = vmatpush1.bf16.msra.mxu0 %v5568
        %5597 = vmatprep.subr.bf16.mxu0 0
        %5598 = vmatpush1.bf16.msra.mxu0 %v5567
        %5599 = vmatprep.subr.bf16.mxu0 0
        %5600 = vmatpush2.bf16.msra.mxu0 0
        %5601 = vmatprep.subr.bf16.mxu0 0
        %5602 = vmatpush2.bf16.msra.mxu0 0
        %5603 = vmatprep.subr.bf16.mxu0 0
        %5604 = vmatpush2.bf16.msra.mxu0 0
        %5605 = vmatprep.subr.bf16.mxu0 0
        %5606 = vmatpush2.bf16.msra.mxu0 0
        %5607 = vmatprep.subr.bf16.mxu0 0
        %5608 = vmatpush2.bf16.msra.mxu0 0
        %5609 = vmatprep.subr.bf16.mxu0 0
        %5610 = vmatpush2.bf16.msra.mxu0 0
        %5611 = vmatprep.subr.bf16.mxu0 0
        %5612 = vmatpush2.bf16.msra.mxu0 0
        %5613 = vmatprep.subr.bf16.mxu0 0
        %5614 = vmatpush2.bf16.msra.mxu0 0
        %5615 = vmatprep.mubr.bf16.mxu0 0
        %5616 = vmatmul.mubr.bf16.gmra.mxu0 %v5516
        %v5617 = vpop.f32.mrf.mxu0
        %v5618 = vadd.f32 0.0, %v5617
        %v5619 = vpop.f32.mrf.mxu0
        %v5620 = vpop.f32.mrf.mxu0
        %v5621 = vadd.f32 0.0, %v5620
        %v5622 = vpop.f32.mrf.mxu0
        %5623 = vmatprep.mubr.bf16.mxu0 0
        %5624 = vmatmul.mubr.bf16.gmra.mxu0 %v5517
        %v5625 = vpop.f32.mrf.mxu0
        %v5626 = vadd.f32 0.0, %v5625
        %v5627 = vpop.f32.mrf.mxu0
        %v5628 = vpop.f32.mrf.mxu0
        %v5629 = vadd.f32 0.0, %v5628
        %v5630 = vpop.f32.mrf.mxu0
        %5631 = vdwg.mxu0
        %v5632 = vadd.f32 %v5508, %v5618
        %v5633 = vadd.f32 %v5509, %v5621
        %v5634 = vadd.f32 %v5510, %v5626
        %v5635 = vadd.f32 %v5511, %v5629
        %v5636 = vld [vmem:[#allocation3 + $0x4] sm:$0xff]
        %v5637 = vld [vmem:[#allocation3 + $0xc] sm:$0xff]
        %v5638 = vld [vmem:[#allocation3 + $0x14] sm:$0xff]
        %v5639 = vld [vmem:[#allocation3 + $0x1c] sm:$0x1]
        %v5640 = vpack.c.bf16 %v5637, %v5636
        %v5641 = vpack.c.bf16 %v5639, %v5638
        %s5642 = scalar_lea.vmem %s5, 1280
        %v5643 = vld [vmem:[%s5642] sm:$0xf]
        %v5644 = vld [vmem:[%s5642 + $0x4] sm:$0xf]
        %v5645 = vld [vmem:[%s5642 + $0x8] sm:$0xf]
        %v5646 = vld [vmem:[%s5642 + $0xc] sm:$0xf]
        %v5647 = vld [vmem:[%s5642 + $0x10] sm:$0xf]
        %v5648 = vld [vmem:[%s5642 + $0x14] sm:$0xf]
        %v5649 = vld [vmem:[%s5642 + $0x18] sm:$0xf]
        %v5650 = vld [vmem:[%s5642 + $0x1c] sm:$0xf]
        %v5651 = vld [vmem:[%s5642 + $0x20] sm:$0xf]
        %v5652 = vld [vmem:[%s5642 + $0x24] sm:$0xf]
        %v5653 = vld [vmem:[%s5642 + $0x28] sm:$0xf]
        %v5654 = vld [vmem:[%s5642 + $0x2c] sm:$0xf]
        %v5655 = vld [vmem:[%s5642 + $0x30] sm:$0xf]
        %v5656 = vld [vmem:[%s5642 + $0x34] sm:$0xf]
        %v5657 = vld [vmem:[%s5642 + $0x38] sm:$0xf]
        %v5658 = vld [vmem:[%s5642 + $0x3c] sm:$0xf]
        %v5675 = vunpack.c.l.b16 %v5643
        %v5676 = vunpack.c.l.b16 %v5644
        %v5677 = vunpack.c.l.b16 %v5645
        %v5678 = vunpack.c.l.b16 %v5646
        %v5679 = vunpack.c.l.b16 %v5647
        %v5680 = vunpack.c.l.b16 %v5648
        %v5681 = vunpack.c.l.b16 %v5649
        %v5682 = vunpack.c.l.b16 %v5650
        %v5683 = vunpack.c.l.b16 %v5651
        %v5684 = vunpack.c.l.b16 %v5652
        %v5685 = vunpack.c.l.b16 %v5653
        %v5686 = vunpack.c.l.b16 %v5654
        %v5687 = vunpack.c.l.b16 %v5655
        %v5688 = vunpack.c.l.b16 %v5656
        %v5689 = vunpack.c.l.b16 %v5657
        %v5690 = vunpack.c.l.b16 %v5658
        %v5691 = vpack.c.b16 %v5676, %v5675
        %v5692 = vpack.c.b16 %v5678, %v5677
        %v5693 = vpack.c.b16 %v5680, %v5679
        %v5694 = vpack.c.b16 %v5682, %v5681
        %v5695 = vpack.c.b16 %v5684, %v5683
        %v5696 = vpack.c.b16 %v5686, %v5685
        %v5697 = vpack.c.b16 %v5688, %v5687
        %v5698 = vpack.c.b16 %v5690, %v5689
        %5707 = vmatprep.subr.bf16.mxu0 0
        %5708 = vmatpush1.bf16.msra.mxu0 %v5698
        %5709 = vmatprep.subr.bf16.mxu0 0
        %5710 = vmatpush1.bf16.msra.mxu0 %v5697
        %5711 = vmatprep.subr.bf16.mxu0 0
        %5712 = vmatpush1.bf16.msra.mxu0 %v5696
        %5713 = vmatprep.subr.bf16.mxu0 0
        %5714 = vmatpush1.bf16.msra.mxu0 %v5695
        %5715 = vmatprep.subr.bf16.mxu0 0
        %5716 = vmatpush1.bf16.msra.mxu0 %v5694
        %5717 = vmatprep.subr.bf16.mxu0 0
        %5718 = vmatpush1.bf16.msra.mxu0 %v5693
        %5719 = vmatprep.subr.bf16.mxu0 0
        %5720 = vmatpush1.bf16.msra.mxu0 %v5692
        %5721 = vmatprep.subr.bf16.mxu0 0
        %5722 = vmatpush1.bf16.msra.mxu0 %v5691
        %5723 = vmatprep.subr.bf16.mxu0 0
        %5724 = vmatpush2.bf16.msra.mxu0 0
        %5725 = vmatprep.subr.bf16.mxu0 0
        %5726 = vmatpush2.bf16.msra.mxu0 0
        %5727 = vmatprep.subr.bf16.mxu0 0
        %5728 = vmatpush2.bf16.msra.mxu0 0
        %5729 = vmatprep.subr.bf16.mxu0 0
        %5730 = vmatpush2.bf16.msra.mxu0 0
        %5731 = vmatprep.subr.bf16.mxu0 0
        %5732 = vmatpush2.bf16.msra.mxu0 0
        %5733 = vmatprep.subr.bf16.mxu0 0
        %5734 = vmatpush2.bf16.msra.mxu0 0
        %5735 = vmatprep.subr.bf16.mxu0 0
        %5736 = vmatpush2.bf16.msra.mxu0 0
        %5737 = vmatprep.subr.bf16.mxu0 0
        %5738 = vmatpush2.bf16.msra.mxu0 0
        %5739 = vmatprep.mubr.bf16.mxu0 0
        %5740 = vmatmul.mubr.bf16.gmra.mxu0 %v5640
        %v5741 = vpop.f32.mrf.mxu0
        %v5742 = vadd.f32 0.0, %v5741
        %v5743 = vpop.f32.mrf.mxu0
        %v5744 = vpop.f32.mrf.mxu0
        %v5745 = vadd.f32 0.0, %v5744
        %v5746 = vpop.f32.mrf.mxu0
        %5747 = vmatprep.mubr.bf16.mxu0 0
        %5748 = vmatmul.mubr.bf16.gmra.mxu0 %v5641
        %v5749 = vpop.f32.mrf.mxu0
        %v5750 = vadd.f32 0.0, %v5749
        %v5751 = vpop.f32.mrf.mxu0
        %v5752 = vpop.f32.mrf.mxu0
        %v5753 = vadd.f32 0.0, %v5752
        %v5754 = vpop.f32.mrf.mxu0
        %5755 = vdwg.mxu0
        %v5756 = vadd.f32 %v5632, %v5742
        %v5757 = vadd.f32 %v5633, %v5745
        %v5758 = vadd.f32 %v5634, %v5750
        %v5759 = vadd.f32 %v5635, %v5753
        %v5760 = vld [vmem:[#allocation3 + $0x5] sm:$0xff]
        %v5761 = vld [vmem:[#allocation3 + $0xd] sm:$0xff]
        %v5762 = vld [vmem:[#allocation3 + $0x15] sm:$0xff]
        %v5763 = vld [vmem:[#allocation3 + $0x1d] sm:$0x1]
        %v5764 = vpack.c.bf16 %v5761, %v5760
        %v5765 = vpack.c.bf16 %v5763, %v5762
        %s5766 = scalar_lea.vmem %s5, 1344
        %v5767 = vld [vmem:[%s5766] sm:$0xf]
        %v5768 = vld [vmem:[%s5766 + $0x4] sm:$0xf]
        %v5769 = vld [vmem:[%s5766 + $0x8] sm:$0xf]
        %v5770 = vld [vmem:[%s5766 + $0xc] sm:$0xf]
        %v5771 = vld [vmem:[%s5766 + $0x10] sm:$0xf]
        %v5772 = vld [vmem:[%s5766 + $0x14] sm:$0xf]
        %v5773 = vld [vmem:[%s5766 + $0x18] sm:$0xf]
        %v5774 = vld [vmem:[%s5766 + $0x1c] sm:$0xf]
        %v5775 = vld [vmem:[%s5766 + $0x20] sm:$0xf]
        %v5776 = vld [vmem:[%s5766 + $0x24] sm:$0xf]
        %v5777 = vld [vmem:[%s5766 + $0x28] sm:$0xf]
        %v5778 = vld [vmem:[%s5766 + $0x2c] sm:$0xf]
        %v5779 = vld [vmem:[%s5766 + $0x30] sm:$0xf]
        %v5780 = vld [vmem:[%s5766 + $0x34] sm:$0xf]
        %v5781 = vld [vmem:[%s5766 + $0x38] sm:$0xf]
        %v5782 = vld [vmem:[%s5766 + $0x3c] sm:$0xf]
        %v5799 = vunpack.c.l.b16 %v5767
        %v5800 = vunpack.c.l.b16 %v5768
        %v5801 = vunpack.c.l.b16 %v5769
        %v5802 = vunpack.c.l.b16 %v5770
        %v5803 = vunpack.c.l.b16 %v5771
        %v5804 = vunpack.c.l.b16 %v5772
        %v5805 = vunpack.c.l.b16 %v5773
        %v5806 = vunpack.c.l.b16 %v5774
        %v5807 = vunpack.c.l.b16 %v5775
        %v5808 = vunpack.c.l.b16 %v5776
        %v5809 = vunpack.c.l.b16 %v5777
        %v5810 = vunpack.c.l.b16 %v5778
        %v5811 = vunpack.c.l.b16 %v5779
        %v5812 = vunpack.c.l.b16 %v5780
        %v5813 = vunpack.c.l.b16 %v5781
        %v5814 = vunpack.c.l.b16 %v5782
        %v5815 = vpack.c.b16 %v5800, %v5799
        %v5816 = vpack.c.b16 %v5802, %v5801
        %v5817 = vpack.c.b16 %v5804, %v5803
        %v5818 = vpack.c.b16 %v5806, %v5805
        %v5819 = vpack.c.b16 %v5808, %v5807
        %v5820 = vpack.c.b16 %v5810, %v5809
        %v5821 = vpack.c.b16 %v5812, %v5811
        %v5822 = vpack.c.b16 %v5814, %v5813
        %5831 = vmatprep.subr.bf16.mxu0 0
        %5832 = vmatpush1.bf16.msra.mxu0 %v5822
        %5833 = vmatprep.subr.bf16.mxu0 0
        %5834 = vmatpush1.bf16.msra.mxu0 %v5821
        %5835 = vmatprep.subr.bf16.mxu0 0
        %5836 = vmatpush1.bf16.msra.mxu0 %v5820
        %5837 = vmatprep.subr.bf16.mxu0 0
        %5838 = vmatpush1.bf16.msra.mxu0 %v5819
        %5839 = vmatprep.subr.bf16.mxu0 0
        %5840 = vmatpush1.bf16.msra.mxu0 %v5818
        %5841 = vmatprep.subr.bf16.mxu0 0
        %5842 = vmatpush1.bf16.msra.mxu0 %v5817
        %5843 = vmatprep.subr.bf16.mxu0 0
        %5844 = vmatpush1.bf16.msra.mxu0 %v5816
        %5845 = vmatprep.subr.bf16.mxu0 0
        %5846 = vmatpush1.bf16.msra.mxu0 %v5815
        %5847 = vmatprep.subr.bf16.mxu0 0
        %5848 = vmatpush2.bf16.msra.mxu0 0
        %5849 = vmatprep.subr.bf16.mxu0 0
        %5850 = vmatpush2.bf16.msra.mxu0 0
        %5851 = vmatprep.subr.bf16.mxu0 0
        %5852 = vmatpush2.bf16.msra.mxu0 0
        %5853 = vmatprep.subr.bf16.mxu0 0
        %5854 = vmatpush2.bf16.msra.mxu0 0
        %5855 = vmatprep.subr.bf16.mxu0 0
        %5856 = vmatpush2.bf16.msra.mxu0 0
        %5857 = vmatprep.subr.bf16.mxu0 0
        %5858 = vmatpush2.bf16.msra.mxu0 0
        %5859 = vmatprep.subr.bf16.mxu0 0
        %5860 = vmatpush2.bf16.msra.mxu0 0
        %5861 = vmatprep.subr.bf16.mxu0 0
        %5862 = vmatpush2.bf16.msra.mxu0 0
        %5863 = vmatprep.mubr.bf16.mxu0 0
        %5864 = vmatmul.mubr.bf16.gmra.mxu0 %v5764
        %v5865 = vpop.f32.mrf.mxu0
        %v5866 = vadd.f32 0.0, %v5865
        %v5867 = vpop.f32.mrf.mxu0
        %v5868 = vpop.f32.mrf.mxu0
        %v5869 = vadd.f32 0.0, %v5868
        %v5870 = vpop.f32.mrf.mxu0
        %5871 = vmatprep.mubr.bf16.mxu0 0
        %5872 = vmatmul.mubr.bf16.gmra.mxu0 %v5765
        %v5873 = vpop.f32.mrf.mxu0
        %v5874 = vadd.f32 0.0, %v5873
        %v5875 = vpop.f32.mrf.mxu0
        %v5876 = vpop.f32.mrf.mxu0
        %v5877 = vadd.f32 0.0, %v5876
        %v5878 = vpop.f32.mrf.mxu0
        %5879 = vdwg.mxu0
        %v5880 = vadd.f32 %v5756, %v5866
        %v5881 = vadd.f32 %v5757, %v5869
        %v5882 = vadd.f32 %v5758, %v5874
        %v5883 = vadd.f32 %v5759, %v5877
        %v5884 = vld [vmem:[#allocation3 + $0x6] sm:$0xff]
        %v5885 = vld [vmem:[#allocation3 + $0xe] sm:$0xff]
        %v5886 = vld [vmem:[#allocation3 + $0x16] sm:$0xff]
        %v5887 = vld [vmem:[#allocation3 + $0x1e] sm:$0x1]
        %v5888 = vpack.c.bf16 %v5885, %v5884
        %v5889 = vpack.c.bf16 %v5887, %v5886
        %s5890 = scalar_lea.vmem %s5, 1408
        %v5891 = vld [vmem:[%s5890] sm:$0xf]
        %v5892 = vld [vmem:[%s5890 + $0x4] sm:$0xf]
        %v5893 = vld [vmem:[%s5890 + $0x8] sm:$0xf]
        %v5894 = vld [vmem:[%s5890 + $0xc] sm:$0xf]
        %v5895 = vld [vmem:[%s5890 + $0x10] sm:$0xf]
        %v5896 = vld [vmem:[%s5890 + $0x14] sm:$0xf]
        %v5897 = vld [vmem:[%s5890 + $0x18] sm:$0xf]
        %v5898 = vld [vmem:[%s5890 + $0x1c] sm:$0xf]
        %v5899 = vld [vmem:[%s5890 + $0x20] sm:$0xf]
        %v5900 = vld [vmem:[%s5890 + $0x24] sm:$0xf]
        %v5901 = vld [vmem:[%s5890 + $0x28] sm:$0xf]
        %v5902 = vld [vmem:[%s5890 + $0x2c] sm:$0xf]
        %v5903 = vld [vmem:[%s5890 + $0x30] sm:$0xf]
        %v5904 = vld [vmem:[%s5890 + $0x34] sm:$0xf]
        %v5905 = vld [vmem:[%s5890 + $0x38] sm:$0xf]
        %v5906 = vld [vmem:[%s5890 + $0x3c] sm:$0xf]
        %v5923 = vunpack.c.l.b16 %v5891
        %v5924 = vunpack.c.l.b16 %v5892
        %v5925 = vunpack.c.l.b16 %v5893
        %v5926 = vunpack.c.l.b16 %v5894
        %v5927 = vunpack.c.l.b16 %v5895
        %v5928 = vunpack.c.l.b16 %v5896
        %v5929 = vunpack.c.l.b16 %v5897
        %v5930 = vunpack.c.l.b16 %v5898
        %v5931 = vunpack.c.l.b16 %v5899
        %v5932 = vunpack.c.l.b16 %v5900
        %v5933 = vunpack.c.l.b16 %v5901
        %v5934 = vunpack.c.l.b16 %v5902
        %v5935 = vunpack.c.l.b16 %v5903
        %v5936 = vunpack.c.l.b16 %v5904
        %v5937 = vunpack.c.l.b16 %v5905
        %v5938 = vunpack.c.l.b16 %v5906
        %v5939 = vpack.c.b16 %v5924, %v5923
        %v5940 = vpack.c.b16 %v5926, %v5925
        %v5941 = vpack.c.b16 %v5928, %v5927
        %v5942 = vpack.c.b16 %v5930, %v5929
        %v5943 = vpack.c.b16 %v5932, %v5931
        %v5944 = vpack.c.b16 %v5934, %v5933
        %v5945 = vpack.c.b16 %v5936, %v5935
        %v5946 = vpack.c.b16 %v5938, %v5937
        %5955 = vmatprep.subr.bf16.mxu0 0
        %5956 = vmatpush1.bf16.msra.mxu0 %v5946
        %5957 = vmatprep.subr.bf16.mxu0 0
        %5958 = vmatpush1.bf16.msra.mxu0 %v5945
        %5959 = vmatprep.subr.bf16.mxu0 0
        %5960 = vmatpush1.bf16.msra.mxu0 %v5944
        %5961 = vmatprep.subr.bf16.mxu0 0
        %5962 = vmatpush1.bf16.msra.mxu0 %v5943
        %5963 = vmatprep.subr.bf16.mxu0 0
        %5964 = vmatpush1.bf16.msra.mxu0 %v5942
        %5965 = vmatprep.subr.bf16.mxu0 0
        %5966 = vmatpush1.bf16.msra.mxu0 %v5941
        %5967 = vmatprep.subr.bf16.mxu0 0
        %5968 = vmatpush1.bf16.msra.mxu0 %v5940
        %5969 = vmatprep.subr.bf16.mxu0 0
        %5970 = vmatpush1.bf16.msra.mxu0 %v5939
        %5971 = vmatprep.subr.bf16.mxu0 0
        %5972 = vmatpush2.bf16.msra.mxu0 0
        %5973 = vmatprep.subr.bf16.mxu0 0
        %5974 = vmatpush2.bf16.msra.mxu0 0
        %5975 = vmatprep.subr.bf16.mxu0 0
        %5976 = vmatpush2.bf16.msra.mxu0 0
        %5977 = vmatprep.subr.bf16.mxu0 0
        %5978 = vmatpush2.bf16.msra.mxu0 0
        %5979 = vmatprep.subr.bf16.mxu0 0
        %5980 = vmatpush2.bf16.msra.mxu0 0
        %5981 = vmatprep.subr.bf16.mxu0 0
        %5982 = vmatpush2.bf16.msra.mxu0 0
        %5983 = vmatprep.subr.bf16.mxu0 0
        %5984 = vmatpush2.bf16.msra.mxu0 0
        %5985 = vmatprep.subr.bf16.mxu0 0
        %5986 = vmatpush2.bf16.msra.mxu0 0
        %5987 = vmatprep.mubr.bf16.mxu0 0
        %5988 = vmatmul.mubr.bf16.gmra.mxu0 %v5888
        %v5989 = vpop.f32.mrf.mxu0
        %v5990 = vadd.f32 0.0, %v5989
        %v5991 = vpop.f32.mrf.mxu0
        %v5992 = vpop.f32.mrf.mxu0
        %v5993 = vadd.f32 0.0, %v5992
        %v5994 = vpop.f32.mrf.mxu0
        %5995 = vmatprep.mubr.bf16.mxu0 0
        %5996 = vmatmul.mubr.bf16.gmra.mxu0 %v5889
        %v5997 = vpop.f32.mrf.mxu0
        %v5998 = vadd.f32 0.0, %v5997
        %v5999 = vpop.f32.mrf.mxu0
        %v6000 = vpop.f32.mrf.mxu0
        %v6001 = vadd.f32 0.0, %v6000
        %v6002 = vpop.f32.mrf.mxu0
        %6003 = vdwg.mxu0
        %v6004 = vadd.f32 %v5880, %v5990
        %v6005 = vadd.f32 %v5881, %v5993
        %v6006 = vadd.f32 %v5882, %v5998
        %v6007 = vadd.f32 %v5883, %v6001
        %v6008 = vld [vmem:[#allocation3 + $0x7] sm:$0xff]
        %v6009 = vld [vmem:[#allocation3 + $0xf] sm:$0xff]
        %v6010 = vld [vmem:[#allocation3 + $0x17] sm:$0xff]
        %v6011 = vld [vmem:[#allocation3 + $0x1f] sm:$0x1]
        %v6012 = vpack.c.bf16 %v6009, %v6008
        %v6013 = vpack.c.bf16 %v6011, %v6010
        %s6014 = scalar_lea.vmem %s5, 1472
        %v6015 = vld [vmem:[%s6014] sm:$0xf]
        %v6016 = vld [vmem:[%s6014 + $0x4] sm:$0xf]
        %v6017 = vld [vmem:[%s6014 + $0x8] sm:$0xf]
        %v6018 = vld [vmem:[%s6014 + $0xc] sm:$0xf]
        %v6019 = vld [vmem:[%s6014 + $0x10] sm:$0xf]
        %v6020 = vld [vmem:[%s6014 + $0x14] sm:$0xf]
        %v6021 = vld [vmem:[%s6014 + $0x18] sm:$0xf]
        %v6022 = vld [vmem:[%s6014 + $0x1c] sm:$0xf]
        %v6023 = vld [vmem:[%s6014 + $0x20] sm:$0xf]
        %v6024 = vld [vmem:[%s6014 + $0x24] sm:$0xf]
        %v6025 = vld [vmem:[%s6014 + $0x28] sm:$0xf]
        %v6026 = vld [vmem:[%s6014 + $0x2c] sm:$0xf]
        %v6027 = vld [vmem:[%s6014 + $0x30] sm:$0xf]
        %v6028 = vld [vmem:[%s6014 + $0x34] sm:$0xf]
        %v6029 = vld [vmem:[%s6014 + $0x38] sm:$0xf]
        %v6030 = vld [vmem:[%s6014 + $0x3c] sm:$0xf]
        %v6047 = vunpack.c.l.b16 %v6015
        %v6048 = vunpack.c.l.b16 %v6016
        %v6049 = vunpack.c.l.b16 %v6017
        %v6050 = vunpack.c.l.b16 %v6018
        %v6051 = vunpack.c.l.b16 %v6019
        %v6052 = vunpack.c.l.b16 %v6020
        %v6053 = vunpack.c.l.b16 %v6021
        %v6054 = vunpack.c.l.b16 %v6022
        %v6055 = vunpack.c.l.b16 %v6023
        %v6056 = vunpack.c.l.b16 %v6024
        %v6057 = vunpack.c.l.b16 %v6025
        %v6058 = vunpack.c.l.b16 %v6026
        %v6059 = vunpack.c.l.b16 %v6027
        %v6060 = vunpack.c.l.b16 %v6028
        %v6061 = vunpack.c.l.b16 %v6029
        %v6062 = vunpack.c.l.b16 %v6030
        %v6063 = vpack.c.b16 %v6048, %v6047
        %v6064 = vpack.c.b16 %v6050, %v6049
        %v6065 = vpack.c.b16 %v6052, %v6051
        %v6066 = vpack.c.b16 %v6054, %v6053
        %v6067 = vpack.c.b16 %v6056, %v6055
        %v6068 = vpack.c.b16 %v6058, %v6057
        %v6069 = vpack.c.b16 %v6060, %v6059
        %v6070 = vpack.c.b16 %v6062, %v6061
        %6079 = vmatprep.subr.bf16.mxu0 0
        %6080 = vmatpush1.bf16.msra.mxu0 %v6070
        %6081 = vmatprep.subr.bf16.mxu0 0
        %6082 = vmatpush1.bf16.msra.mxu0 %v6069
        %6083 = vmatprep.subr.bf16.mxu0 0
        %6084 = vmatpush1.bf16.msra.mxu0 %v6068
        %6085 = vmatprep.subr.bf16.mxu0 0
        %6086 = vmatpush1.bf16.msra.mxu0 %v6067
        %6087 = vmatprep.subr.bf16.mxu0 0
        %6088 = vmatpush1.bf16.msra.mxu0 %v6066
        %6089 = vmatprep.subr.bf16.mxu0 0
        %6090 = vmatpush1.bf16.msra.mxu0 %v6065
        %6091 = vmatprep.subr.bf16.mxu0 0
        %6092 = vmatpush1.bf16.msra.mxu0 %v6064
        %6093 = vmatprep.subr.bf16.mxu0 0
        %6094 = vmatpush1.bf16.msra.mxu0 %v6063
        %6095 = vmatprep.subr.bf16.mxu0 0
        %6096 = vmatpush2.bf16.msra.mxu0 0
        %6097 = vmatprep.subr.bf16.mxu0 0
        %6098 = vmatpush2.bf16.msra.mxu0 0
        %6099 = vmatprep.subr.bf16.mxu0 0
        %6100 = vmatpush2.bf16.msra.mxu0 0
        %6101 = vmatprep.subr.bf16.mxu0 0
        %6102 = vmatpush2.bf16.msra.mxu0 0
        %6103 = vmatprep.subr.bf16.mxu0 0
        %6104 = vmatpush2.bf16.msra.mxu0 0
        %6105 = vmatprep.subr.bf16.mxu0 0
        %6106 = vmatpush2.bf16.msra.mxu0 0
        %6107 = vmatprep.subr.bf16.mxu0 0
        %6108 = vmatpush2.bf16.msra.mxu0 0
        %6109 = vmatprep.subr.bf16.mxu0 0
        %6110 = vmatpush2.bf16.msra.mxu0 0
        %6111 = vmatprep.mubr.bf16.mxu0 0
        %6112 = vmatmul.mubr.bf16.gmra.mxu0 %v6012
        %v6113 = vpop.f32.mrf.mxu0
        %v6114 = vadd.f32 0.0, %v6113
        %v6115 = vpop.f32.mrf.mxu0
        %v6116 = vpop.f32.mrf.mxu0
        %v6117 = vadd.f32 0.0, %v6116
        %v6118 = vpop.f32.mrf.mxu0
        %6119 = vmatprep.mubr.bf16.mxu0 0
        %6120 = vmatmul.mubr.bf16.gmra.mxu0 %v6013
        %v6121 = vpop.f32.mrf.mxu0
        %v6122 = vadd.f32 0.0, %v6121
        %v6123 = vpop.f32.mrf.mxu0
        %v6124 = vpop.f32.mrf.mxu0
        %v6125 = vadd.f32 0.0, %v6124
        %v6126 = vpop.f32.mrf.mxu0
        %6127 = vdwg.mxu0
        %v6128 = vadd.f32 %v6004, %v6114
        %v6129 = vadd.f32 %v6005, %v6117
        %v6130 = vadd.f32 %v6006, %v6122
        %v6131 = vadd.f32 %v6007, %v6125
        %s6132 = scalar_lea.vmem %s6, 2
        %v6133 = vld [vmem:[%s6132] sm:$0x1]
        %v6135 = vlaneseq
        %v6136 = vshrl.u32 %v6135, 7
        %v6137 = vsub.s32 0, %v6136
        %v6138 = vrot.slane %v6133, %v6137
        %v6140 = vmul.f32 %v6128, %v6138
        %v6141 = vmul.f32 %v6129, %v6138
        %v6142 = vmul.f32 %v6130, %v6138
        %v6143 = vmul.f32 %v6131, %v6138
        %s6144 = scalar_lea.vmem %s7, 2
        %v6145 = vld [vmem:[%s6144] sm:$0x1]
        %v6147 = vlaneseq
        %v6148 = vshrl.u32 %v6147, 7
        %v6149 = vsub.s32 0, %v6148
        %v6150 = vrot.slane %v6145, %v6149
        %v6152 = vadd.f32 %v6140, %v6150
        %v6153 = vadd.f32 %v6141, %v6150
        %v6154 = vadd.f32 %v6142, %v6150
        %v6155 = vadd.f32 %v6143, %v6150
        %v6156 = vmax.f32 %v6152, 0.0
        %v6157 = vmax.f32 %v6153, 0.0
        %v6158 = vmax.f32 %v6154, 0.0
        %v6159 = vmax.f32 %v6155, 0.0
        %6160 = vst [vmem:[#allocation2] sm:$0x1] 0.0
        %6161 = vst [vmem:[#allocation2 + $0x1] sm:$0xff] %v6156
        %6162 = vst [vmem:[#allocation2 + $0x9] sm:$0xff] %v6157
        %6163 = vst [vmem:[#allocation2 + $0x11] sm:$0xff] %v6158
        %6164 = vst [vmem:[#allocation2 + $0x19] sm:$0x1] %v6159
        %6165 = vst [vmem:[#allocation2 + $0x1a] sm:$0x3] 0.0
        %v6166 = vld [vmem:[#allocation2] ss:$4 sm:$0x7f]
        %v6167 = vld [vmem:[%s2987] ss:$4 sm:$0x7f]
        %v6168 = vmax.f32 %v6166, %v6167
        %v6169 = vld [vmem:[%s3005] ss:$4 sm:$0x7f]
        %v6170 = vmax.f32 %v6168, %v6169
        %v6171 = vld [vmem:[%s3023] ss:$4 sm:$0x7f]
        %v6172 = vmax.f32 %v6170, %v6171
        %v6173 = vld [vmem:[%s716] sm:$0xff]
        %v6174 = vld [vmem:[%s716 + $0x8] sm:$0xff]
        %v6175 = vld [vmem:[%s716 + $0x10] sm:$0xff]
        %v6176 = vpack.c.bf16 %v6174, %v6173
        %v6177 = vpack.c.bf16 %v6175, %v6175
        %v6178 = vld [vmem:[#allocation6] sm:$0xf]
        %v6179 = vld [vmem:[#allocation6 + $0x4] sm:$0xf]
        %v6180 = vld [vmem:[#allocation6 + $0x8] sm:$0xf]
        %v6181 = vld [vmem:[#allocation6 + $0xc] sm:$0xf]
        %v6182 = vld [vmem:[#allocation6 + $0x10] sm:$0xf]
        %v6183 = vld [vmem:[#allocation6 + $0x14] sm:$0xf]
        %v6184 = vld [vmem:[#allocation6 + $0x18] sm:$0xf]
        %v6185 = vld [vmem:[%s716 + $0x1] sm:$0xff]
        %v6186 = vld [vmem:[%s716 + $0x9] sm:$0xff]
        %v6187 = vld [vmem:[%s716 + $0x11] sm:$0xff]
        %v6188 = vpack.c.bf16 %v6186, %v6185
        %v6189 = vpack.c.bf16 %v6187, %v6187
        %s6190 = scalar_lea.vmem [#allocation6], 28
        %v6191 = vld [vmem:[%s6190] sm:$0xf]
        %v6192 = vld [vmem:[%s6190 + $0x4] sm:$0xf]
        %v6193 = vld [vmem:[%s6190 + $0x8] sm:$0xf]
        %v6194 = vld [vmem:[%s6190 + $0xc] sm:$0xf]
        %v6195 = vld [vmem:[%s6190 + $0x10] sm:$0xf]
        %v6196 = vld [vmem:[%s6190 + $0x14] sm:$0xf]
        %v6197 = vld [vmem:[%s6190 + $0x18] sm:$0xf]
        %v6205 = vunpack.c.l.b16 %v6191
        %v6206 = vunpack.c.l.b16 %v6192
        %v6207 = vunpack.c.l.b16 %v6193
        %v6208 = vunpack.c.l.b16 %v6194
        %v6209 = vunpack.c.l.b16 %v6195
        %v6210 = vunpack.c.l.b16 %v6196
        %v6211 = vunpack.c.l.b16 %v6197
        %v6212 = vpack.c.b16 %v6206, %v6205
        %v6213 = vpack.c.b16 %v6208, %v6207
        %v6214 = vpack.c.b16 %v6210, %v6209
        %v6215 = vpack.c.b16 %v6211, %v6211
        %vm6219 = vcmask 457728
        %v6221 = vsel %vm6219, %v6188, 0
        %v6224 = vsel %vm6219, %v6189, 0
        %v6227 = vsel %vm841, %v6215, 0
        %6229 = vmatprep.subr.bf16.mxu0 0
        %6230 = vmatpush1.bf16.msra.mxu0 0
        %6231 = vmatprep.subr.bf16.mxu0 0
        %6232 = vmatpush1.bf16.msra.mxu0 0
        %6233 = vmatprep.subr.bf16.mxu0 0
        %6234 = vmatpush1.bf16.msra.mxu0 0
        %6235 = vmatprep.subr.bf16.mxu0 0
        %6236 = vmatpush1.bf16.msra.mxu0 0
        %6237 = vmatprep.subr.bf16.mxu0 0
        %6238 = vmatpush1.bf16.msra.mxu0 %v6227
        %6239 = vmatprep.subr.bf16.mxu0 0
        %6240 = vmatpush1.bf16.msra.mxu0 %v6214
        %6241 = vmatprep.subr.bf16.mxu0 0
        %6242 = vmatpush1.bf16.msra.mxu0 %v6213
        %6243 = vmatprep.subr.bf16.mxu0 0
        %6244 = vmatpush1.bf16.msra.mxu0 %v6212
        %6245 = vmatprep.subr.bf16.mxu0 0
        %6246 = vmatpush2.bf16.msra.mxu0 0
        %6247 = vmatprep.subr.bf16.mxu0 0
        %6248 = vmatpush2.bf16.msra.mxu0 0
        %6249 = vmatprep.subr.bf16.mxu0 0
        %6250 = vmatpush2.bf16.msra.mxu0 0
        %6251 = vmatprep.subr.bf16.mxu0 0
        %6252 = vmatpush2.bf16.msra.mxu0 0
        %6253 = vmatprep.subr.bf16.mxu0 0
        %6254 = vmatpush2.bf16.msra.mxu0 0
        %6255 = vmatprep.subr.bf16.mxu0 0
        %6256 = vmatpush2.bf16.msra.mxu0 0
        %6257 = vmatprep.subr.bf16.mxu0 0
        %6258 = vmatpush2.bf16.msra.mxu0 0
        %6259 = vmatprep.subr.bf16.mxu0 0
        %6260 = vmatpush2.bf16.msra.mxu0 0
        %6261 = vmatprep.mubr.bf16.mxu0 0
        %6262 = vmatmul.mubr.bf16.gmra.mxu0 %v6221
        %v6263 = vpop.f32.mrf.mxu0
        %v6264 = vadd.f32 0.0, %v6263
        %v6265 = vpop.f32.mrf.mxu0
        %v6266 = vpop.f32.mrf.mxu0
        %v6267 = vadd.f32 0.0, %v6266
        %v6268 = vpop.f32.mrf.mxu0
        %6269 = vmatprep.mubr.bf16.mxu0 0
        %6270 = vmatmul.mubr.bf16.gmra.mxu0 %v6224
        %v6271 = vpop.f32.mrf.mxu0
        %v6272 = vadd.f32 0.0, %v6271
        %v6273 = vpop.f32.mrf.mxu0
        %v6274 = vpop.f32.mrf.mxu0
        %v6275 = vpop.f32.mrf.mxu0
        %6276 = vdwg.mxu0
        %v6284 = vunpack.c.l.b16 %v6178
        %v6285 = vunpack.c.l.b16 %v6179
        %v6286 = vunpack.c.l.b16 %v6180
        %v6287 = vunpack.c.l.b16 %v6181
        %v6288 = vunpack.c.l.b16 %v6182
        %v6289 = vunpack.c.l.b16 %v6183
        %v6290 = vunpack.c.l.b16 %v6184
        %v6291 = vpack.c.b16 %v6285, %v6284
        %v6292 = vpack.c.b16 %v6287, %v6286
        %v6293 = vpack.c.b16 %v6289, %v6288
        %v6294 = vpack.c.b16 %v6290, %v6290
        %v6299 = vsel %vm6219, %v6176, 0
        %v6302 = vsel %vm6219, %v6177, 0
        %v6305 = vsel %vm841, %v6294, 0
        %6307 = vmatprep.subr.bf16.mxu0 0
        %6308 = vmatpush1.bf16.msra.mxu0 0
        %6309 = vmatprep.subr.bf16.mxu0 0
        %6310 = vmatpush1.bf16.msra.mxu0 0
        %6311 = vmatprep.subr.bf16.mxu0 0
        %6312 = vmatpush1.bf16.msra.mxu0 0
        %6313 = vmatprep.subr.bf16.mxu0 0
        %6314 = vmatpush1.bf16.msra.mxu0 0
        %6315 = vmatprep.subr.bf16.mxu0 0
        %6316 = vmatpush1.bf16.msra.mxu0 %v6305
        %6317 = vmatprep.subr.bf16.mxu0 0
        %6318 = vmatpush1.bf16.msra.mxu0 %v6293
        %6319 = vmatprep.subr.bf16.mxu0 0
        %6320 = vmatpush1.bf16.msra.mxu0 %v6292
        %6321 = vmatprep.subr.bf16.mxu0 0
        %6322 = vmatpush1.bf16.msra.mxu0 %v6291
        %6323 = vmatprep.subr.bf16.mxu0 0
        %6324 = vmatpush2.bf16.msra.mxu0 0
        %6325 = vmatprep.subr.bf16.mxu0 0
        %6326 = vmatpush2.bf16.msra.mxu0 0
        %6327 = vmatprep.subr.bf16.mxu0 0
        %6328 = vmatpush2.bf16.msra.mxu0 0
        %6329 = vmatprep.subr.bf16.mxu0 0
        %6330 = vmatpush2.bf16.msra.mxu0 0
        %6331 = vmatprep.subr.bf16.mxu0 0
        %6332 = vmatpush2.bf16.msra.mxu0 0
        %6333 = vmatprep.subr.bf16.mxu0 0
        %6334 = vmatpush2.bf16.msra.mxu0 0
        %6335 = vmatprep.subr.bf16.mxu0 0
        %6336 = vmatpush2.bf16.msra.mxu0 0
        %6337 = vmatprep.subr.bf16.mxu0 0
        %6338 = vmatpush2.bf16.msra.mxu0 0
        %6339 = vmatprep.mubr.bf16.mxu0 0
        %6340 = vmatmul.mubr.bf16.gmra.mxu0 %v6299
        %v6341 = vpop.f32.mrf.mxu0
        %v6342 = vadd.f32 %v6264, %v6341
        %v6343 = vpop.f32.mrf.mxu0
        %v6344 = vpop.f32.mrf.mxu0
        %v6345 = vadd.f32 %v6267, %v6344
        %v6346 = vpop.f32.mrf.mxu0
        %6347 = vmatprep.mubr.bf16.mxu0 0
        %6348 = vmatmul.mubr.bf16.gmra.mxu0 %v6302
        %v6349 = vpop.f32.mrf.mxu0
        %v6350 = vadd.f32 %v6272, %v6349
        %v6351 = vpop.f32.mrf.mxu0
        %v6352 = vpop.f32.mrf.mxu0
        %v6353 = vpop.f32.mrf.mxu0
        %6354 = vdwg.mxu0
        %v6355 = vld [vmem:[%s716 + $0x2] sm:$0xff]
        %v6356 = vld [vmem:[%s716 + $0xa] sm:$0xff]
        %v6357 = vld [vmem:[%s716 + $0x12] sm:$0xff]
        %v6358 = vpack.c.bf16 %v6356, %v6355
        %v6359 = vpack.c.bf16 %v6357, %v6357
        %s6360 = scalar_lea.vmem [#allocation6], 56
        %v6361 = vld [vmem:[%s6360] sm:$0xf]
        %v6362 = vld [vmem:[%s6360 + $0x4] sm:$0xf]
        %v6363 = vld [vmem:[%s6360 + $0x8] sm:$0xf]
        %v6364 = vld [vmem:[%s6360 + $0xc] sm:$0xf]
        %v6365 = vld [vmem:[%s6360 + $0x10] sm:$0xf]
        %v6366 = vld [vmem:[%s6360 + $0x14] sm:$0xf]
        %v6367 = vld [vmem:[%s6360 + $0x18] sm:$0xf]
        %v6375 = vunpack.c.l.b16 %v6361
        %v6376 = vunpack.c.l.b16 %v6362
        %v6377 = vunpack.c.l.b16 %v6363
        %v6378 = vunpack.c.l.b16 %v6364
        %v6379 = vunpack.c.l.b16 %v6365
        %v6380 = vunpack.c.l.b16 %v6366
        %v6381 = vunpack.c.l.b16 %v6367
        %v6382 = vpack.c.b16 %v6376, %v6375
        %v6383 = vpack.c.b16 %v6378, %v6377
        %v6384 = vpack.c.b16 %v6380, %v6379
        %v6385 = vpack.c.b16 %v6381, %v6381
        %v6390 = vsel %vm6219, %v6358, 0
        %v6393 = vsel %vm6219, %v6359, 0
        %v6396 = vsel %vm841, %v6385, 0
        %6398 = vmatprep.subr.bf16.mxu0 0
        %6399 = vmatpush1.bf16.msra.mxu0 0
        %6400 = vmatprep.subr.bf16.mxu0 0
        %6401 = vmatpush1.bf16.msra.mxu0 0
        %6402 = vmatprep.subr.bf16.mxu0 0
        %6403 = vmatpush1.bf16.msra.mxu0 0
        %6404 = vmatprep.subr.bf16.mxu0 0
        %6405 = vmatpush1.bf16.msra.mxu0 0
        %6406 = vmatprep.subr.bf16.mxu0 0
        %6407 = vmatpush1.bf16.msra.mxu0 %v6396
        %6408 = vmatprep.subr.bf16.mxu0 0
        %6409 = vmatpush1.bf16.msra.mxu0 %v6384
        %6410 = vmatprep.subr.bf16.mxu0 0
        %6411 = vmatpush1.bf16.msra.mxu0 %v6383
        %6412 = vmatprep.subr.bf16.mxu0 0
        %6413 = vmatpush1.bf16.msra.mxu0 %v6382
        %6414 = vmatprep.subr.bf16.mxu0 0
        %6415 = vmatpush2.bf16.msra.mxu0 0
        %6416 = vmatprep.subr.bf16.mxu0 0
        %6417 = vmatpush2.bf16.msra.mxu0 0
        %6418 = vmatprep.subr.bf16.mxu0 0
        %6419 = vmatpush2.bf16.msra.mxu0 0
        %6420 = vmatprep.subr.bf16.mxu0 0
        %6421 = vmatpush2.bf16.msra.mxu0 0
        %6422 = vmatprep.subr.bf16.mxu0 0
        %6423 = vmatpush2.bf16.msra.mxu0 0
        %6424 = vmatprep.subr.bf16.mxu0 0
        %6425 = vmatpush2.bf16.msra.mxu0 0
        %6426 = vmatprep.subr.bf16.mxu0 0
        %6427 = vmatpush2.bf16.msra.mxu0 0
        %6428 = vmatprep.subr.bf16.mxu0 0
        %6429 = vmatpush2.bf16.msra.mxu0 0
        %6430 = vmatprep.mubr.bf16.mxu0 0
        %6431 = vmatmul.mubr.bf16.gmra.mxu0 %v6390
        %v6432 = vpop.f32.mrf.mxu0
        %v6433 = vadd.f32 0.0, %v6432
        %v6434 = vpop.f32.mrf.mxu0
        %v6435 = vpop.f32.mrf.mxu0
        %v6436 = vadd.f32 0.0, %v6435
        %v6437 = vpop.f32.mrf.mxu0
        %6438 = vmatprep.mubr.bf16.mxu0 0
        %6439 = vmatmul.mubr.bf16.gmra.mxu0 %v6393
        %v6440 = vpop.f32.mrf.mxu0
        %v6441 = vadd.f32 0.0, %v6440
        %v6442 = vpop.f32.mrf.mxu0
        %v6443 = vpop.f32.mrf.mxu0
        %v6444 = vpop.f32.mrf.mxu0
        %6445 = vdwg.mxu0
        %v6446 = vadd.f32 %v6342, %v6433
        %v6447 = vadd.f32 %v6345, %v6436
        %v6448 = vadd.f32 %v6350, %v6441
        %v6449 = vld [vmem:[%s716 + $0x3] sm:$0xff]
        %v6450 = vld [vmem:[%s716 + $0xb] sm:$0xff]
        %v6451 = vld [vmem:[%s716 + $0x13] sm:$0xff]
        %v6452 = vpack.c.bf16 %v6450, %v6449
        %v6453 = vpack.c.bf16 %v6451, %v6451
        %s6454 = scalar_lea.vmem [#allocation6], 84
        %v6455 = vld [vmem:[%s6454] sm:$0xf]
        %v6456 = vld [vmem:[%s6454 + $0x4] sm:$0xf]
        %v6457 = vld [vmem:[%s6454 + $0x8] sm:$0xf]
        %v6458 = vld [vmem:[%s6454 + $0xc] sm:$0xf]
        %v6459 = vld [vmem:[%s6454 + $0x10] sm:$0xf]
        %v6460 = vld [vmem:[%s6454 + $0x14] sm:$0xf]
        %v6461 = vld [vmem:[%s6454 + $0x18] sm:$0xf]
        %v6469 = vunpack.c.l.b16 %v6455
        %v6470 = vunpack.c.l.b16 %v6456
        %v6471 = vunpack.c.l.b16 %v6457
        %v6472 = vunpack.c.l.b16 %v6458
        %v6473 = vunpack.c.l.b16 %v6459
        %v6474 = vunpack.c.l.b16 %v6460
        %v6475 = vunpack.c.l.b16 %v6461
        %v6476 = vpack.c.b16 %v6470, %v6469
        %v6477 = vpack.c.b16 %v6472, %v6471
        %v6478 = vpack.c.b16 %v6474, %v6473
        %v6479 = vpack.c.b16 %v6475, %v6475
        %v6484 = vsel %vm6219, %v6452, 0
        %v6487 = vsel %vm6219, %v6453, 0
        %v6490 = vsel %vm841, %v6479, 0
        %6492 = vmatprep.subr.bf16.mxu0 0
        %6493 = vmatpush1.bf16.msra.mxu0 0
        %6494 = vmatprep.subr.bf16.mxu0 0
        %6495 = vmatpush1.bf16.msra.mxu0 0
        %6496 = vmatprep.subr.bf16.mxu0 0
        %6497 = vmatpush1.bf16.msra.mxu0 0
        %6498 = vmatprep.subr.bf16.mxu0 0
        %6499 = vmatpush1.bf16.msra.mxu0 0
        %6500 = vmatprep.subr.bf16.mxu0 0
        %6501 = vmatpush1.bf16.msra.mxu0 %v6490
        %6502 = vmatprep.subr.bf16.mxu0 0
        %6503 = vmatpush1.bf16.msra.mxu0 %v6478
        %6504 = vmatprep.subr.bf16.mxu0 0
        %6505 = vmatpush1.bf16.msra.mxu0 %v6477
        %6506 = vmatprep.subr.bf16.mxu0 0
        %6507 = vmatpush1.bf16.msra.mxu0 %v6476
        %6508 = vmatprep.subr.bf16.mxu0 0
        %6509 = vmatpush2.bf16.msra.mxu0 0
        %6510 = vmatprep.subr.bf16.mxu0 0
        %6511 = vmatpush2.bf16.msra.mxu0 0
        %6512 = vmatprep.subr.bf16.mxu0 0
        %6513 = vmatpush2.bf16.msra.mxu0 0
        %6514 = vmatprep.subr.bf16.mxu0 0
        %6515 = vmatpush2.bf16.msra.mxu0 0
        %6516 = vmatprep.subr.bf16.mxu0 0
        %6517 = vmatpush2.bf16.msra.mxu0 0
        %6518 = vmatprep.subr.bf16.mxu0 0
        %6519 = vmatpush2.bf16.msra.mxu0 0
        %6520 = vmatprep.subr.bf16.mxu0 0
        %6521 = vmatpush2.bf16.msra.mxu0 0
        %6522 = vmatprep.subr.bf16.mxu0 0
        %6523 = vmatpush2.bf16.msra.mxu0 0
        %6524 = vmatprep.mubr.bf16.mxu0 0
        %6525 = vmatmul.mubr.bf16.gmra.mxu0 %v6484
        %v6526 = vpop.f32.mrf.mxu0
        %v6527 = vadd.f32 0.0, %v6526
        %v6528 = vpop.f32.mrf.mxu0
        %v6529 = vpop.f32.mrf.mxu0
        %v6530 = vadd.f32 0.0, %v6529
        %v6531 = vpop.f32.mrf.mxu0
        %6532 = vmatprep.mubr.bf16.mxu0 0
        %6533 = vmatmul.mubr.bf16.gmra.mxu0 %v6487
        %v6534 = vpop.f32.mrf.mxu0
        %v6535 = vadd.f32 0.0, %v6534
        %v6536 = vpop.f32.mrf.mxu0
        %v6537 = vpop.f32.mrf.mxu0
        %v6538 = vpop.f32.mrf.mxu0
        %6539 = vdwg.mxu0
        %v6540 = vadd.f32 %v6446, %v6527
        %v6541 = vadd.f32 %v6447, %v6530
        %v6542 = vadd.f32 %v6448, %v6535
        %v6543 = vld [vmem:[%s716 + $0x4] sm:$0xff]
        %v6544 = vld [vmem:[%s716 + $0xc] sm:$0xff]
        %v6545 = vld [vmem:[%s716 + $0x14] sm:$0xff]
        %v6546 = vpack.c.bf16 %v6544, %v6543
        %v6547 = vpack.c.bf16 %v6545, %v6545
        %s6548 = scalar_lea.vmem [#allocation6], 112
        %v6549 = vld [vmem:[%s6548] sm:$0xf]
        %v6550 = vld [vmem:[%s6548 + $0x4] sm:$0xf]
        %v6551 = vld [vmem:[%s6548 + $0x8] sm:$0xf]
        %v6552 = vld [vmem:[%s6548 + $0xc] sm:$0xf]
        %v6553 = vld [vmem:[%s6548 + $0x10] sm:$0xf]
        %v6554 = vld [vmem:[%s6548 + $0x14] sm:$0xf]
        %v6555 = vld [vmem:[%s6548 + $0x18] sm:$0xf]
        %v6563 = vunpack.c.l.b16 %v6549
        %v6564 = vunpack.c.l.b16 %v6550
        %v6565 = vunpack.c.l.b16 %v6551
        %v6566 = vunpack.c.l.b16 %v6552
        %v6567 = vunpack.c.l.b16 %v6553
        %v6568 = vunpack.c.l.b16 %v6554
        %v6569 = vunpack.c.l.b16 %v6555
        %v6570 = vpack.c.b16 %v6564, %v6563
        %v6571 = vpack.c.b16 %v6566, %v6565
        %v6572 = vpack.c.b16 %v6568, %v6567
        %v6573 = vpack.c.b16 %v6569, %v6569
        %v6578 = vsel %vm6219, %v6546, 0
        %v6581 = vsel %vm6219, %v6547, 0
        %v6584 = vsel %vm841, %v6573, 0
        %6586 = vmatprep.subr.bf16.mxu0 0
        %6587 = vmatpush1.bf16.msra.mxu0 0
        %6588 = vmatprep.subr.bf16.mxu0 0
        %6589 = vmatpush1.bf16.msra.mxu0 0
        %6590 = vmatprep.subr.bf16.mxu0 0
        %6591 = vmatpush1.bf16.msra.mxu0 0
        %6592 = vmatprep.subr.bf16.mxu0 0
        %6593 = vmatpush1.bf16.msra.mxu0 0
        %6594 = vmatprep.subr.bf16.mxu0 0
        %6595 = vmatpush1.bf16.msra.mxu0 %v6584
        %6596 = vmatprep.subr.bf16.mxu0 0
        %6597 = vmatpush1.bf16.msra.mxu0 %v6572
        %6598 = vmatprep.subr.bf16.mxu0 0
        %6599 = vmatpush1.bf16.msra.mxu0 %v6571
        %6600 = vmatprep.subr.bf16.mxu0 0
        %6601 = vmatpush1.bf16.msra.mxu0 %v6570
        %6602 = vmatprep.subr.bf16.mxu0 0
        %6603 = vmatpush2.bf16.msra.mxu0 0
        %6604 = vmatprep.subr.bf16.mxu0 0
        %6605 = vmatpush2.bf16.msra.mxu0 0
        %6606 = vmatprep.subr.bf16.mxu0 0
        %6607 = vmatpush2.bf16.msra.mxu0 0
        %6608 = vmatprep.subr.bf16.mxu0 0
        %6609 = vmatpush2.bf16.msra.mxu0 0
        %6610 = vmatprep.subr.bf16.mxu0 0
        %6611 = vmatpush2.bf16.msra.mxu0 0
        %6612 = vmatprep.subr.bf16.mxu0 0
        %6613 = vmatpush2.bf16.msra.mxu0 0
        %6614 = vmatprep.subr.bf16.mxu0 0
        %6615 = vmatpush2.bf16.msra.mxu0 0
        %6616 = vmatprep.subr.bf16.mxu0 0
        %6617 = vmatpush2.bf16.msra.mxu0 0
        %6618 = vmatprep.mubr.bf16.mxu0 0
        %6619 = vmatmul.mubr.bf16.gmra.mxu0 %v6578
        %v6620 = vpop.f32.mrf.mxu0
        %v6621 = vadd.f32 0.0, %v6620
        %v6622 = vpop.f32.mrf.mxu0
        %v6623 = vpop.f32.mrf.mxu0
        %v6624 = vadd.f32 0.0, %v6623
        %v6625 = vpop.f32.mrf.mxu0
        %6626 = vmatprep.mubr.bf16.mxu0 0
        %6627 = vmatmul.mubr.bf16.gmra.mxu0 %v6581
        %v6628 = vpop.f32.mrf.mxu0
        %v6629 = vadd.f32 0.0, %v6628
        %v6630 = vpop.f32.mrf.mxu0
        %v6631 = vpop.f32.mrf.mxu0
        %v6632 = vpop.f32.mrf.mxu0
        %6633 = vdwg.mxu0
        %v6634 = vadd.f32 %v6540, %v6621
        %v6635 = vadd.f32 %v6541, %v6624
        %v6636 = vadd.f32 %v6542, %v6629
        %v6637 = vld [vmem:[%s716 + $0x5] sm:$0xff]
        %v6638 = vld [vmem:[%s716 + $0xd] sm:$0xff]
        %v6639 = vld [vmem:[%s716 + $0x15] sm:$0xff]
        %v6640 = vpack.c.bf16 %v6638, %v6637
        %v6641 = vpack.c.bf16 %v6639, %v6639
        %s6642 = scalar_lea.vmem [#allocation6], 140
        %v6643 = vld [vmem:[%s6642] sm:$0xf]
        %v6644 = vld [vmem:[%s6642 + $0x4] sm:$0xf]
        %v6645 = vld [vmem:[%s6642 + $0x8] sm:$0xf]
        %v6646 = vld [vmem:[%s6642 + $0xc] sm:$0xf]
        %v6647 = vld [vmem:[%s6642 + $0x10] sm:$0xf]
        %v6648 = vld [vmem:[%s6642 + $0x14] sm:$0xf]
        %v6649 = vld [vmem:[%s6642 + $0x18] sm:$0xf]
        %v6657 = vunpack.c.l.b16 %v6643
        %v6658 = vunpack.c.l.b16 %v6644
        %v6659 = vunpack.c.l.b16 %v6645
        %v6660 = vunpack.c.l.b16 %v6646
        %v6661 = vunpack.c.l.b16 %v6647
        %v6662 = vunpack.c.l.b16 %v6648
        %v6663 = vunpack.c.l.b16 %v6649
        %v6664 = vpack.c.b16 %v6658, %v6657
        %v6665 = vpack.c.b16 %v6660, %v6659
        %v6666 = vpack.c.b16 %v6662, %v6661
        %v6667 = vpack.c.b16 %v6663, %v6663
        %v6672 = vsel %vm6219, %v6640, 0
        %v6675 = vsel %vm6219, %v6641, 0
        %v6678 = vsel %vm841, %v6667, 0
        %6680 = vmatprep.subr.bf16.mxu0 0
        %6681 = vmatpush1.bf16.msra.mxu0 0
        %6682 = vmatprep.subr.bf16.mxu0 0
        %6683 = vmatpush1.bf16.msra.mxu0 0
        %6684 = vmatprep.subr.bf16.mxu0 0
        %6685 = vmatpush1.bf16.msra.mxu0 0
        %6686 = vmatprep.subr.bf16.mxu0 0
        %6687 = vmatpush1.bf16.msra.mxu0 0
        %6688 = vmatprep.subr.bf16.mxu0 0
        %6689 = vmatpush1.bf16.msra.mxu0 %v6678
        %6690 = vmatprep.subr.bf16.mxu0 0
        %6691 = vmatpush1.bf16.msra.mxu0 %v6666
        %6692 = vmatprep.subr.bf16.mxu0 0
        %6693 = vmatpush1.bf16.msra.mxu0 %v6665
        %6694 = vmatprep.subr.bf16.mxu0 0
        %6695 = vmatpush1.bf16.msra.mxu0 %v6664
        %6696 = vmatprep.subr.bf16.mxu0 0
        %6697 = vmatpush2.bf16.msra.mxu0 0
        %6698 = vmatprep.subr.bf16.mxu0 0
        %6699 = vmatpush2.bf16.msra.mxu0 0
        %6700 = vmatprep.subr.bf16.mxu0 0
        %6701 = vmatpush2.bf16.msra.mxu0 0
        %6702 = vmatprep.subr.bf16.mxu0 0
        %6703 = vmatpush2.bf16.msra.mxu0 0
        %6704 = vmatprep.subr.bf16.mxu0 0
        %6705 = vmatpush2.bf16.msra.mxu0 0
        %6706 = vmatprep.subr.bf16.mxu0 0
        %6707 = vmatpush2.bf16.msra.mxu0 0
        %6708 = vmatprep.subr.bf16.mxu0 0
        %6709 = vmatpush2.bf16.msra.mxu0 0
        %6710 = vmatprep.subr.bf16.mxu0 0
        %6711 = vmatpush2.bf16.msra.mxu0 0
        %6712 = vmatprep.mubr.bf16.mxu0 0
        %6713 = vmatmul.mubr.bf16.gmra.mxu0 %v6672
        %v6714 = vpop.f32.mrf.mxu0
        %v6715 = vadd.f32 0.0, %v6714
        %v6716 = vpop.f32.mrf.mxu0
        %v6717 = vpop.f32.mrf.mxu0
        %v6718 = vadd.f32 0.0, %v6717
        %v6719 = vpop.f32.mrf.mxu0
        %6720 = vmatprep.mubr.bf16.mxu0 0
        %6721 = vmatmul.mubr.bf16.gmra.mxu0 %v6675
        %v6722 = vpop.f32.mrf.mxu0
        %v6723 = vadd.f32 0.0, %v6722
        %v6724 = vpop.f32.mrf.mxu0
        %v6725 = vpop.f32.mrf.mxu0
        %v6726 = vpop.f32.mrf.mxu0
        %6727 = vdwg.mxu0
        %v6728 = vadd.f32 %v6634, %v6715
        %v6729 = vadd.f32 %v6635, %v6718
        %v6730 = vadd.f32 %v6636, %v6723
        %v6731 = vld [vmem:[%s716 + $0x6] sm:$0xff]
        %v6732 = vld [vmem:[%s716 + $0xe] sm:$0xff]
        %v6733 = vld [vmem:[%s716 + $0x16] sm:$0xff]
        %v6734 = vpack.c.bf16 %v6732, %v6731
        %v6735 = vpack.c.bf16 %v6733, %v6733
        %s6736 = scalar_lea.vmem [#allocation6], 168
        %v6737 = vld [vmem:[%s6736] sm:$0xf]
        %v6738 = vld [vmem:[%s6736 + $0x4] sm:$0xf]
        %v6739 = vld [vmem:[%s6736 + $0x8] sm:$0xf]
        %v6740 = vld [vmem:[%s6736 + $0xc] sm:$0xf]
        %v6741 = vld [vmem:[%s6736 + $0x10] sm:$0xf]
        %v6742 = vld [vmem:[%s6736 + $0x14] sm:$0xf]
        %v6743 = vld [vmem:[%s6736 + $0x18] sm:$0xf]
        %v6751 = vunpack.c.l.b16 %v6737
        %v6752 = vunpack.c.l.b16 %v6738
        %v6753 = vunpack.c.l.b16 %v6739
        %v6754 = vunpack.c.l.b16 %v6740
        %v6755 = vunpack.c.l.b16 %v6741
        %v6756 = vunpack.c.l.b16 %v6742
        %v6757 = vunpack.c.l.b16 %v6743
        %v6758 = vpack.c.b16 %v6752, %v6751
        %v6759 = vpack.c.b16 %v6754, %v6753
        %v6760 = vpack.c.b16 %v6756, %v6755
        %v6761 = vpack.c.b16 %v6757, %v6757
        %v6766 = vsel %vm6219, %v6734, 0
        %v6769 = vsel %vm6219, %v6735, 0
        %v6772 = vsel %vm841, %v6761, 0
        %6774 = vmatprep.subr.bf16.mxu0 0
        %6775 = vmatpush1.bf16.msra.mxu0 0
        %6776 = vmatprep.subr.bf16.mxu0 0
        %6777 = vmatpush1.bf16.msra.mxu0 0
        %6778 = vmatprep.subr.bf16.mxu0 0
        %6779 = vmatpush1.bf16.msra.mxu0 0
        %6780 = vmatprep.subr.bf16.mxu0 0
        %6781 = vmatpush1.bf16.msra.mxu0 0
        %6782 = vmatprep.subr.bf16.mxu0 0
        %6783 = vmatpush1.bf16.msra.mxu0 %v6772
        %6784 = vmatprep.subr.bf16.mxu0 0
        %6785 = vmatpush1.bf16.msra.mxu0 %v6760
        %6786 = vmatprep.subr.bf16.mxu0 0
        %6787 = vmatpush1.bf16.msra.mxu0 %v6759
        %6788 = vmatprep.subr.bf16.mxu0 0
        %6789 = vmatpush1.bf16.msra.mxu0 %v6758
        %6790 = vmatprep.subr.bf16.mxu0 0
        %6791 = vmatpush2.bf16.msra.mxu0 0
        %6792 = vmatprep.subr.bf16.mxu0 0
        %6793 = vmatpush2.bf16.msra.mxu0 0
        %6794 = vmatprep.subr.bf16.mxu0 0
        %6795 = vmatpush2.bf16.msra.mxu0 0
        %6796 = vmatprep.subr.bf16.mxu0 0
        %6797 = vmatpush2.bf16.msra.mxu0 0
        %6798 = vmatprep.subr.bf16.mxu0 0
        %6799 = vmatpush2.bf16.msra.mxu0 0
        %6800 = vmatprep.subr.bf16.mxu0 0
        %6801 = vmatpush2.bf16.msra.mxu0 0
        %6802 = vmatprep.subr.bf16.mxu0 0
        %6803 = vmatpush2.bf16.msra.mxu0 0
        %6804 = vmatprep.subr.bf16.mxu0 0
        %6805 = vmatpush2.bf16.msra.mxu0 0
        %6806 = vmatprep.mubr.bf16.mxu0 0
        %6807 = vmatmul.mubr.bf16.gmra.mxu0 %v6766
        %v6808 = vpop.f32.mrf.mxu0
        %v6809 = vadd.f32 0.0, %v6808
        %v6810 = vpop.f32.mrf.mxu0
        %v6811 = vpop.f32.mrf.mxu0
        %v6812 = vadd.f32 0.0, %v6811
        %v6813 = vpop.f32.mrf.mxu0
        %6814 = vmatprep.mubr.bf16.mxu0 0
        %6815 = vmatmul.mubr.bf16.gmra.mxu0 %v6769
        %v6816 = vpop.f32.mrf.mxu0
        %v6817 = vadd.f32 0.0, %v6816
        %v6818 = vpop.f32.mrf.mxu0
        %v6819 = vpop.f32.mrf.mxu0
        %v6820 = vpop.f32.mrf.mxu0
        %6821 = vdwg.mxu0
        %v6822 = vadd.f32 %v6728, %v6809
        %v6823 = vadd.f32 %v6729, %v6812
        %v6824 = vadd.f32 %v6730, %v6817
        %v6825 = vld [vmem:[%s716 + $0x7] sm:$0xff]
        %v6826 = vld [vmem:[%s716 + $0xf] sm:$0xff]
        %v6827 = vld [vmem:[%s716 + $0x17] sm:$0xff]
        %v6828 = vpack.c.bf16 %v6826, %v6825
        %v6829 = vpack.c.bf16 %v6827, %v6827
        %s6830 = scalar_lea.vmem [#allocation6], 196
        %v6831 = vld [vmem:[%s6830] sm:$0xf]
        %v6832 = vld [vmem:[%s6830 + $0x4] sm:$0xf]
        %v6833 = vld [vmem:[%s6830 + $0x8] sm:$0xf]
        %v6834 = vld [vmem:[%s6830 + $0xc] sm:$0xf]
        %v6835 = vld [vmem:[%s6830 + $0x10] sm:$0xf]
        %v6836 = vld [vmem:[%s6830 + $0x14] sm:$0xf]
        %v6837 = vld [vmem:[%s6830 + $0x18] sm:$0xf]
        %v6845 = vunpack.c.l.b16 %v6831
        %v6846 = vunpack.c.l.b16 %v6832
        %v6847 = vunpack.c.l.b16 %v6833
        %v6848 = vunpack.c.l.b16 %v6834
        %v6849 = vunpack.c.l.b16 %v6835
        %v6850 = vunpack.c.l.b16 %v6836
        %v6851 = vunpack.c.l.b16 %v6837
        %v6852 = vpack.c.b16 %v6846, %v6845
        %v6853 = vpack.c.b16 %v6848, %v6847
        %v6854 = vpack.c.b16 %v6850, %v6849
        %v6855 = vpack.c.b16 %v6851, %v6851
        %v6860 = vsel %vm6219, %v6828, 0
        %v6863 = vsel %vm6219, %v6829, 0
        %v6866 = vsel %vm841, %v6855, 0
        %6868 = vmatprep.subr.bf16.mxu0 0
        %6869 = vmatpush1.bf16.msra.mxu0 0
        %6870 = vmatprep.subr.bf16.mxu0 0
        %6871 = vmatpush1.bf16.msra.mxu0 0
        %6872 = vmatprep.subr.bf16.mxu0 0
        %6873 = vmatpush1.bf16.msra.mxu0 0
        %6874 = vmatprep.subr.bf16.mxu0 0
        %6875 = vmatpush1.bf16.msra.mxu0 0
        %6876 = vmatprep.subr.bf16.mxu0 0
        %6877 = vmatpush1.bf16.msra.mxu0 %v6866
        %6878 = vmatprep.subr.bf16.mxu0 0
        %6879 = vmatpush1.bf16.msra.mxu0 %v6854
        %6880 = vmatprep.subr.bf16.mxu0 0
        %6881 = vmatpush1.bf16.msra.mxu0 %v6853
        %6882 = vmatprep.subr.bf16.mxu0 0
        %6883 = vmatpush1.bf16.msra.mxu0 %v6852
        %6884 = vmatprep.subr.bf16.mxu0 0
        %6885 = vmatpush2.bf16.msra.mxu0 0
        %6886 = vmatprep.subr.bf16.mxu0 0
        %6887 = vmatpush2.bf16.msra.mxu0 0
        %6888 = vmatprep.subr.bf16.mxu0 0
        %6889 = vmatpush2.bf16.msra.mxu0 0
        %6890 = vmatprep.subr.bf16.mxu0 0
        %6891 = vmatpush2.bf16.msra.mxu0 0
        %6892 = vmatprep.subr.bf16.mxu0 0
        %6893 = vmatpush2.bf16.msra.mxu0 0
        %6894 = vmatprep.subr.bf16.mxu0 0
        %6895 = vmatpush2.bf16.msra.mxu0 0
        %6896 = vmatprep.subr.bf16.mxu0 0
        %6897 = vmatpush2.bf16.msra.mxu0 0
        %6898 = vmatprep.subr.bf16.mxu0 0
        %6899 = vmatpush2.bf16.msra.mxu0 0
        %6900 = vmatprep.mubr.bf16.mxu0 0
        %6901 = vmatmul.mubr.bf16.gmra.mxu0 %v6860
        %v6902 = vpop.f32.mrf.mxu0
        %v6903 = vadd.f32 0.0, %v6902
        %v6904 = vpop.f32.mrf.mxu0
        %v6905 = vpop.f32.mrf.mxu0
        %v6906 = vadd.f32 0.0, %v6905
        %v6907 = vpop.f32.mrf.mxu0
        %6908 = vmatprep.mubr.bf16.mxu0 0
        %6909 = vmatmul.mubr.bf16.gmra.mxu0 %v6863
        %v6910 = vpop.f32.mrf.mxu0
        %v6911 = vadd.f32 0.0, %v6910
        %v6912 = vpop.f32.mrf.mxu0
        %v6913 = vpop.f32.mrf.mxu0
        %v6914 = vpop.f32.mrf.mxu0
        %6915 = vdwg.mxu0
        %v6916 = vadd.f32 %v6822, %v6903
        %v6917 = vadd.f32 %v6823, %v6906
        %v6918 = vadd.f32 %v6824, %v6911
        %v6919 = vld [vmem:[%s9] sm:$0x1]
        %v6921 = vlaneseq
        %v6922 = vshrl.u32 %v6921, 7
        %v6923 = vsub.s32 0, %v6922
        %v6924 = vrot.slane %v6919, %v6923
        %v6926 = vmul.f32 %v6916, %v6924
        %v6927 = vmul.f32 %v6917, %v6924
        %v6928 = vmul.f32 %v6918, %v6924
        %v6929 = vld [vmem:[%s10] sm:$0x1]
        %v6931 = vlaneseq
        %v6932 = vshrl.u32 %v6931, 7
        %v6933 = vsub.s32 0, %v6932
        %v6934 = vrot.slane %v6929, %v6933
        %v6936 = vadd.f32 %v6926, %v6934
        %v6937 = vadd.f32 %v6927, %v6934
        %v6938 = vadd.f32 %v6928, %v6934
        %v6939 = vmax.f32 %v6936, 0.0
        %v6940 = vmax.f32 %v6937, 0.0
        %v6941 = vmax.f32 %v6938, 0.0
        %6942 = vst [vmem:[#allocation2] sm:$0xff] %v6939
        %6943 = vst [vmem:[#allocation2 + $0x8] sm:$0xff] %v6940
        %6944 = vst [vmem:[#allocation2 + $0x10] sm:$0xff] %v6941
        %v6945 = vld [vmem:[#allocation2] ss:$4 sm:$0x3f]
        %v6946 = vld [vmem:[%s2987] ss:$4 sm:$0x3f]
        %v6947 = vmax.f32 %v6945, %v6946
        %v6948 = vld [vmem:[%s3005] ss:$4 sm:$0x3f]
        %v6949 = vmax.f32 %v6947, %v6948
        %v6950 = vld [vmem:[%s3023] ss:$4 sm:$0x3f]
        %v6951 = vmax.f32 %v6949, %v6950
        %6952 = vst [vmem:[#allocation3] sm:$0x7] 0.0
        %6953 = vst [vmem:[#allocation3 + $0x9] sm:$0xf] 0.0
        %6954 = vst [vmem:[#allocation3 + $0x3] sm:$0x3f] %v6951
        %v6955 = vld [vmem:[#allocation3] sm:$0x3f]
        %v6956 = vpack.c.bf16 %v6955, %v6955
        %v6957 = vld [vmem:[#allocation8] sm:$0xf]
        %v6958 = vld [vmem:[#allocation8 + $0x4] sm:$0xf]
        %v6959 = vld [vmem:[#allocation8 + $0x8] sm:$0xf]
        %v6960 = vld [vmem:[#allocation8 + $0xc] sm:$0xf]
        %v6961 = vld [vmem:[#allocation8 + $0x10] sm:$0xf]
        %v6962 = vld [vmem:[#allocation8 + $0x14] sm:$0xf]
        %v6963 = vld [vmem:[#allocation8 + $0x18] sm:$0xf]
        %v6964 = vld [vmem:[#allocation8 + $0x1c] sm:$0xf]
        %v6965 = vld [vmem:[#allocation8 + $0x20] sm:$0xf]
        %v6966 = vld [vmem:[#allocation8 + $0x24] sm:$0xf]
        %v6967 = vld [vmem:[#allocation8 + $0x28] sm:$0xf]
        %v6968 = vld [vmem:[#allocation8 + $0x2c] sm:$0xf]
        %v6969 = vld [vmem:[#allocation8 + $0x30] sm:$0xf]
        %v6970 = vld [vmem:[#allocation8 + $0x34] sm:$0xf]
        %v6971 = vld [vmem:[#allocation8 + $0x38] sm:$0xf]
        %v6972 = vld [vmem:[#allocation8 + $0x3c] sm:$0xf]
        %v6973 = vld [vmem:[#allocation3 + $0x1] sm:$0x3f]
        %v6974 = vpack.c.bf16 %v6973, %v6973
        %s6975 = scalar_lea.vmem [#allocation8], 64
        %v6976 = vld [vmem:[%s6975] sm:$0xf]
        %v6977 = vld [vmem:[%s6975 + $0x4] sm:$0xf]
        %v6978 = vld [vmem:[%s6975 + $0x8] sm:$0xf]
        %v6979 = vld [vmem:[%s6975 + $0xc] sm:$0xf]
        %v6980 = vld [vmem:[%s6975 + $0x10] sm:$0xf]
        %v6981 = vld [vmem:[%s6975 + $0x14] sm:$0xf]
        %v6982 = vld [vmem:[%s6975 + $0x18] sm:$0xf]
        %v6983 = vld [vmem:[%s6975 + $0x1c] sm:$0xf]
        %v6984 = vld [vmem:[%s6975 + $0x20] sm:$0xf]
        %v6985 = vld [vmem:[%s6975 + $0x24] sm:$0xf]
        %v6986 = vld [vmem:[%s6975 + $0x28] sm:$0xf]
        %v6987 = vld [vmem:[%s6975 + $0x2c] sm:$0xf]
        %v6988 = vld [vmem:[%s6975 + $0x30] sm:$0xf]
        %v6989 = vld [vmem:[%s6975 + $0x34] sm:$0xf]
        %v6990 = vld [vmem:[%s6975 + $0x38] sm:$0xf]
        %v6991 = vld [vmem:[%s6975 + $0x3c] sm:$0xf]
        %v7008 = vunpack.c.l.b16 %v6976
        %v7009 = vunpack.c.l.b16 %v6977
        %v7010 = vunpack.c.l.b16 %v6978
        %v7011 = vunpack.c.l.b16 %v6979
        %v7012 = vunpack.c.l.b16 %v6980
        %v7013 = vunpack.c.l.b16 %v6981
        %v7014 = vunpack.c.l.b16 %v6982
        %v7015 = vunpack.c.l.b16 %v6983
        %v7016 = vunpack.c.l.b16 %v6984
        %v7017 = vunpack.c.l.b16 %v6985
        %v7018 = vunpack.c.l.b16 %v6986
        %v7019 = vunpack.c.l.b16 %v6987
        %v7020 = vunpack.c.l.b16 %v6988
        %v7021 = vunpack.c.l.b16 %v6989
        %v7022 = vunpack.c.l.b16 %v6990
        %v7023 = vunpack.c.l.b16 %v6991
        %v7024 = vpack.c.b16 %v7009, %v7008
        %v7025 = vpack.c.b16 %v7011, %v7010
        %v7026 = vpack.c.b16 %v7013, %v7012
        %v7027 = vpack.c.b16 %v7015, %v7014
        %v7028 = vpack.c.b16 %v7017, %v7016
        %v7029 = vpack.c.b16 %v7019, %v7018
        %v7030 = vpack.c.b16 %v7021, %v7020
        %v7031 = vpack.c.b16 %v7023, %v7022
        %7040 = vmatprep.subr.bf16.mxu0 0
        %7041 = vmatpush1.bf16.msra.mxu0 %v7031
        %7042 = vmatprep.subr.bf16.mxu0 0
        %7043 = vmatpush1.bf16.msra.mxu0 %v7030
        %7044 = vmatprep.subr.bf16.mxu0 0
        %7045 = vmatpush1.bf16.msra.mxu0 %v7029
        %7046 = vmatprep.subr.bf16.mxu0 0
        %7047 = vmatpush1.bf16.msra.mxu0 %v7028
        %7048 = vmatprep.subr.bf16.mxu0 0
        %7049 = vmatpush1.bf16.msra.mxu0 %v7027
        %7050 = vmatprep.subr.bf16.mxu0 0
        %7051 = vmatpush1.bf16.msra.mxu0 %v7026
        %7052 = vmatprep.subr.bf16.mxu0 0
        %7053 = vmatpush1.bf16.msra.mxu0 %v7025
        %7054 = vmatprep.subr.bf16.mxu0 0
        %7055 = vmatpush1.bf16.msra.mxu0 %v7024
        %7056 = vmatprep.subr.bf16.mxu0 0
        %7057 = vmatpush2.bf16.msra.mxu0 0
        %7058 = vmatprep.subr.bf16.mxu0 0
        %7059 = vmatpush2.bf16.msra.mxu0 0
        %7060 = vmatprep.subr.bf16.mxu0 0
        %7061 = vmatpush2.bf16.msra.mxu0 0
        %7062 = vmatprep.subr.bf16.mxu0 0
        %7063 = vmatpush2.bf16.msra.mxu0 0
        %7064 = vmatprep.subr.bf16.mxu0 0
        %7065 = vmatpush2.bf16.msra.mxu0 0
        %7066 = vmatprep.subr.bf16.mxu0 0
        %7067 = vmatpush2.bf16.msra.mxu0 0
        %7068 = vmatprep.subr.bf16.mxu0 0
        %7069 = vmatpush2.bf16.msra.mxu0 0
        %7070 = vmatprep.subr.bf16.mxu0 0
        %7071 = vmatpush2.bf16.msra.mxu0 0
        %7072 = vmatprep.mubr.bf16.mxu0 0
        %7073 = vmatmul.mubr.bf16.gmra.mxu0 %v6974
        %v7074 = vpop.f32.mrf.mxu0
        %v7075 = vadd.f32 0.0, %v7074
        %v7076 = vpop.f32.mrf.mxu0
        %v7077 = vpop.f32.mrf.mxu0
        %v7078 = vpop.f32.mrf.mxu0
        %7079 = vdwg.mxu0
        %v7096 = vunpack.c.l.b16 %v6957
        %v7097 = vunpack.c.l.b16 %v6958
        %v7098 = vunpack.c.l.b16 %v6959
        %v7099 = vunpack.c.l.b16 %v6960
        %v7100 = vunpack.c.l.b16 %v6961
        %v7101 = vunpack.c.l.b16 %v6962
        %v7102 = vunpack.c.l.b16 %v6963
        %v7103 = vunpack.c.l.b16 %v6964
        %v7104 = vunpack.c.l.b16 %v6965
        %v7105 = vunpack.c.l.b16 %v6966
        %v7106 = vunpack.c.l.b16 %v6967
        %v7107 = vunpack.c.l.b16 %v6968
        %v7108 = vunpack.c.l.b16 %v6969
        %v7109 = vunpack.c.l.b16 %v6970
        %v7110 = vunpack.c.l.b16 %v6971
        %v7111 = vunpack.c.l.b16 %v6972
        %v7112 = vpack.c.b16 %v7097, %v7096
        %v7113 = vpack.c.b16 %v7099, %v7098
        %v7114 = vpack.c.b16 %v7101, %v7100
        %v7115 = vpack.c.b16 %v7103, %v7102
        %v7116 = vpack.c.b16 %v7105, %v7104
        %v7117 = vpack.c.b16 %v7107, %v7106
        %v7118 = vpack.c.b16 %v7109, %v7108
        %v7119 = vpack.c.b16 %v7111, %v7110
        %7128 = vmatprep.subr.bf16.mxu0 0
        %7129 = vmatpush1.bf16.msra.mxu0 %v7119
        %7130 = vmatprep.subr.bf16.mxu0 0
        %7131 = vmatpush1.bf16.msra.mxu0 %v7118
        %7132 = vmatprep.subr.bf16.mxu0 0
        %7133 = vmatpush1.bf16.msra.mxu0 %v7117
        %7134 = vmatprep.subr.bf16.mxu0 0
        %7135 = vmatpush1.bf16.msra.mxu0 %v7116
        %7136 = vmatprep.subr.bf16.mxu0 0
        %7137 = vmatpush1.bf16.msra.mxu0 %v7115
        %7138 = vmatprep.subr.bf16.mxu0 0
        %7139 = vmatpush1.bf16.msra.mxu0 %v7114
        %7140 = vmatprep.subr.bf16.mxu0 0
        %7141 = vmatpush1.bf16.msra.mxu0 %v7113
        %7142 = vmatprep.subr.bf16.mxu0 0
        %7143 = vmatpush1.bf16.msra.mxu0 %v7112
        %7144 = vmatprep.subr.bf16.mxu0 0
        %7145 = vmatpush2.bf16.msra.mxu0 0
        %7146 = vmatprep.subr.bf16.mxu0 0
        %7147 = vmatpush2.bf16.msra.mxu0 0
        %7148 = vmatprep.subr.bf16.mxu0 0
        %7149 = vmatpush2.bf16.msra.mxu0 0
        %7150 = vmatprep.subr.bf16.mxu0 0
        %7151 = vmatpush2.bf16.msra.mxu0 0
        %7152 = vmatprep.subr.bf16.mxu0 0
        %7153 = vmatpush2.bf16.msra.mxu0 0
        %7154 = vmatprep.subr.bf16.mxu0 0
        %7155 = vmatpush2.bf16.msra.mxu0 0
        %7156 = vmatprep.subr.bf16.mxu0 0
        %7157 = vmatpush2.bf16.msra.mxu0 0
        %7158 = vmatprep.subr.bf16.mxu0 0
        %7159 = vmatpush2.bf16.msra.mxu0 0
        %7160 = vmatprep.mubr.bf16.mxu0 0
        %7161 = vmatmul.mubr.bf16.gmra.mxu0 %v6956
        %v7162 = vpop.f32.mrf.mxu0
        %v7163 = vadd.f32 %v7075, %v7162
        %v7164 = vpop.f32.mrf.mxu0
        %v7165 = vpop.f32.mrf.mxu0
        %v7166 = vpop.f32.mrf.mxu0
        %7167 = vdwg.mxu0
        %v7168 = vld [vmem:[#allocation3 + $0x2] sm:$0x3f]
        %v7169 = vpack.c.bf16 %v7168, %v7168
        %s7170 = scalar_lea.vmem [#allocation8], 128
        %v7171 = vld [vmem:[%s7170] sm:$0xf]
        %v7172 = vld [vmem:[%s7170 + $0x4] sm:$0xf]
        %v7173 = vld [vmem:[%s7170 + $0x8] sm:$0xf]
        %v7174 = vld [vmem:[%s7170 + $0xc] sm:$0xf]
        %v7175 = vld [vmem:[%s7170 + $0x10] sm:$0xf]
        %v7176 = vld [vmem:[%s7170 + $0x14] sm:$0xf]
        %v7177 = vld [vmem:[%s7170 + $0x18] sm:$0xf]
        %v7178 = vld [vmem:[%s7170 + $0x1c] sm:$0xf]
        %v7179 = vld [vmem:[%s7170 + $0x20] sm:$0xf]
        %v7180 = vld [vmem:[%s7170 + $0x24] sm:$0xf]
        %v7181 = vld [vmem:[%s7170 + $0x28] sm:$0xf]
        %v7182 = vld [vmem:[%s7170 + $0x2c] sm:$0xf]
        %v7183 = vld [vmem:[%s7170 + $0x30] sm:$0xf]
        %v7184 = vld [vmem:[%s7170 + $0x34] sm:$0xf]
        %v7185 = vld [vmem:[%s7170 + $0x38] sm:$0xf]
        %v7186 = vld [vmem:[%s7170 + $0x3c] sm:$0xf]
        %v7203 = vunpack.c.l.b16 %v7171
        %v7204 = vunpack.c.l.b16 %v7172
        %v7205 = vunpack.c.l.b16 %v7173
        %v7206 = vunpack.c.l.b16 %v7174
        %v7207 = vunpack.c.l.b16 %v7175
        %v7208 = vunpack.c.l.b16 %v7176
        %v7209 = vunpack.c.l.b16 %v7177
        %v7210 = vunpack.c.l.b16 %v7178
        %v7211 = vunpack.c.l.b16 %v7179
        %v7212 = vunpack.c.l.b16 %v7180
        %v7213 = vunpack.c.l.b16 %v7181
        %v7214 = vunpack.c.l.b16 %v7182
        %v7215 = vunpack.c.l.b16 %v7183
        %v7216 = vunpack.c.l.b16 %v7184
        %v7217 = vunpack.c.l.b16 %v7185
        %v7218 = vunpack.c.l.b16 %v7186
        %v7219 = vpack.c.b16 %v7204, %v7203
        %v7220 = vpack.c.b16 %v7206, %v7205
        %v7221 = vpack.c.b16 %v7208, %v7207
        %v7222 = vpack.c.b16 %v7210, %v7209
        %v7223 = vpack.c.b16 %v7212, %v7211
        %v7224 = vpack.c.b16 %v7214, %v7213
        %v7225 = vpack.c.b16 %v7216, %v7215
        %v7226 = vpack.c.b16 %v7218, %v7217
        %7235 = vmatprep.subr.bf16.mxu0 0
        %7236 = vmatpush1.bf16.msra.mxu0 %v7226
        %7237 = vmatprep.subr.bf16.mxu0 0
        %7238 = vmatpush1.bf16.msra.mxu0 %v7225
        %7239 = vmatprep.subr.bf16.mxu0 0
        %7240 = vmatpush1.bf16.msra.mxu0 %v7224
        %7241 = vmatprep.subr.bf16.mxu0 0
        %7242 = vmatpush1.bf16.msra.mxu0 %v7223
        %7243 = vmatprep.subr.bf16.mxu0 0
        %7244 = vmatpush1.bf16.msra.mxu0 %v7222
        %7245 = vmatprep.subr.bf16.mxu0 0
        %7246 = vmatpush1.bf16.msra.mxu0 %v7221
        %7247 = vmatprep.subr.bf16.mxu0 0
        %7248 = vmatpush1.bf16.msra.mxu0 %v7220
        %7249 = vmatprep.subr.bf16.mxu0 0
        %7250 = vmatpush1.bf16.msra.mxu0 %v7219
        %7251 = vmatprep.subr.bf16.mxu0 0
        %7252 = vmatpush2.bf16.msra.mxu0 0
        %7253 = vmatprep.subr.bf16.mxu0 0
        %7254 = vmatpush2.bf16.msra.mxu0 0
        %7255 = vmatprep.subr.bf16.mxu0 0
        %7256 = vmatpush2.bf16.msra.mxu0 0
        %7257 = vmatprep.subr.bf16.mxu0 0
        %7258 = vmatpush2.bf16.msra.mxu0 0
        %7259 = vmatprep.subr.bf16.mxu0 0
        %7260 = vmatpush2.bf16.msra.mxu0 0
        %7261 = vmatprep.subr.bf16.mxu0 0
        %7262 = vmatpush2.bf16.msra.mxu0 0
        %7263 = vmatprep.subr.bf16.mxu0 0
        %7264 = vmatpush2.bf16.msra.mxu0 0
        %7265 = vmatprep.subr.bf16.mxu0 0
        %7266 = vmatpush2.bf16.msra.mxu0 0
        %7267 = vmatprep.mubr.bf16.mxu0 0
        %7268 = vmatmul.mubr.bf16.gmra.mxu0 %v7169
        %v7269 = vpop.f32.mrf.mxu0
        %v7270 = vadd.f32 0.0, %v7269
        %v7271 = vpop.f32.mrf.mxu0
        %v7272 = vpop.f32.mrf.mxu0
        %v7273 = vpop.f32.mrf.mxu0
        %7274 = vdwg.mxu0
        %v7275 = vadd.f32 %v7163, %v7270
        %v7276 = vld [vmem:[#allocation3 + $0x3] sm:$0x3f]
        %v7277 = vpack.c.bf16 %v7276, %v7276
        %s7278 = scalar_lea.vmem [#allocation8], 192
        %v7279 = vld [vmem:[%s7278] sm:$0xf]
        %v7280 = vld [vmem:[%s7278 + $0x4] sm:$0xf]
        %v7281 = vld [vmem:[%s7278 + $0x8] sm:$0xf]
        %v7282 = vld [vmem:[%s7278 + $0xc] sm:$0xf]
        %v7283 = vld [vmem:[%s7278 + $0x10] sm:$0xf]
        %v7284 = vld [vmem:[%s7278 + $0x14] sm:$0xf]
        %v7285 = vld [vmem:[%s7278 + $0x18] sm:$0xf]
        %v7286 = vld [vmem:[%s7278 + $0x1c] sm:$0xf]
        %v7287 = vld [vmem:[%s7278 + $0x20] sm:$0xf]
        %v7288 = vld [vmem:[%s7278 + $0x24] sm:$0xf]
        %v7289 = vld [vmem:[%s7278 + $0x28] sm:$0xf]
        %v7290 = vld [vmem:[%s7278 + $0x2c] sm:$0xf]
        %v7291 = vld [vmem:[%s7278 + $0x30] sm:$0xf]
        %v7292 = vld [vmem:[%s7278 + $0x34] sm:$0xf]
        %v7293 = vld [vmem:[%s7278 + $0x38] sm:$0xf]
        %v7294 = vld [vmem:[%s7278 + $0x3c] sm:$0xf]
        %v7311 = vunpack.c.l.b16 %v7279
        %v7312 = vunpack.c.l.b16 %v7280
        %v7313 = vunpack.c.l.b16 %v7281
        %v7314 = vunpack.c.l.b16 %v7282
        %v7315 = vunpack.c.l.b16 %v7283
        %v7316 = vunpack.c.l.b16 %v7284
        %v7317 = vunpack.c.l.b16 %v7285
        %v7318 = vunpack.c.l.b16 %v7286
        %v7319 = vunpack.c.l.b16 %v7287
        %v7320 = vunpack.c.l.b16 %v7288
        %v7321 = vunpack.c.l.b16 %v7289
        %v7322 = vunpack.c.l.b16 %v7290
        %v7323 = vunpack.c.l.b16 %v7291
        %v7324 = vunpack.c.l.b16 %v7292
        %v7325 = vunpack.c.l.b16 %v7293
        %v7326 = vunpack.c.l.b16 %v7294
        %v7327 = vpack.c.b16 %v7312, %v7311
        %v7328 = vpack.c.b16 %v7314, %v7313
        %v7329 = vpack.c.b16 %v7316, %v7315
        %v7330 = vpack.c.b16 %v7318, %v7317
        %v7331 = vpack.c.b16 %v7320, %v7319
        %v7332 = vpack.c.b16 %v7322, %v7321
        %v7333 = vpack.c.b16 %v7324, %v7323
        %v7334 = vpack.c.b16 %v7326, %v7325
        %7343 = vmatprep.subr.bf16.mxu0 0
        %7344 = vmatpush1.bf16.msra.mxu0 %v7334
        %7345 = vmatprep.subr.bf16.mxu0 0
        %7346 = vmatpush1.bf16.msra.mxu0 %v7333
        %7347 = vmatprep.subr.bf16.mxu0 0
        %7348 = vmatpush1.bf16.msra.mxu0 %v7332
        %7349 = vmatprep.subr.bf16.mxu0 0
        %7350 = vmatpush1.bf16.msra.mxu0 %v7331
        %7351 = vmatprep.subr.bf16.mxu0 0
        %7352 = vmatpush1.bf16.msra.mxu0 %v7330
        %7353 = vmatprep.subr.bf16.mxu0 0
        %7354 = vmatpush1.bf16.msra.mxu0 %v7329
        %7355 = vmatprep.subr.bf16.mxu0 0
        %7356 = vmatpush1.bf16.msra.mxu0 %v7328
        %7357 = vmatprep.subr.bf16.mxu0 0
        %7358 = vmatpush1.bf16.msra.mxu0 %v7327
        %7359 = vmatprep.subr.bf16.mxu0 0
        %7360 = vmatpush2.bf16.msra.mxu0 0
        %7361 = vmatprep.subr.bf16.mxu0 0
        %7362 = vmatpush2.bf16.msra.mxu0 0
        %7363 = vmatprep.subr.bf16.mxu0 0
        %7364 = vmatpush2.bf16.msra.mxu0 0
        %7365 = vmatprep.subr.bf16.mxu0 0
        %7366 = vmatpush2.bf16.msra.mxu0 0
        %7367 = vmatprep.subr.bf16.mxu0 0
        %7368 = vmatpush2.bf16.msra.mxu0 0
        %7369 = vmatprep.subr.bf16.mxu0 0
        %7370 = vmatpush2.bf16.msra.mxu0 0
        %7371 = vmatprep.subr.bf16.mxu0 0
        %7372 = vmatpush2.bf16.msra.mxu0 0
        %7373 = vmatprep.subr.bf16.mxu0 0
        %7374 = vmatpush2.bf16.msra.mxu0 0
        %7375 = vmatprep.mubr.bf16.mxu0 0
        %7376 = vmatmul.mubr.bf16.gmra.mxu0 %v7277
        %v7377 = vpop.f32.mrf.mxu0
        %v7378 = vadd.f32 0.0, %v7377
        %v7379 = vpop.f32.mrf.mxu0
        %v7380 = vpop.f32.mrf.mxu0
        %v7381 = vpop.f32.mrf.mxu0
        %7382 = vdwg.mxu0
        %v7383 = vadd.f32 %v7275, %v7378
        %v7384 = vld [vmem:[#allocation3 + $0x4] sm:$0x3f]
        %v7385 = vpack.c.bf16 %v7384, %v7384
        %s7386 = scalar_lea.vmem [#allocation8], 256
        %v7387 = vld [vmem:[%s7386] sm:$0xf]
        %v7388 = vld [vmem:[%s7386 + $0x4] sm:$0xf]
        %v7389 = vld [vmem:[%s7386 + $0x8] sm:$0xf]
        %v7390 = vld [vmem:[%s7386 + $0xc] sm:$0xf]
        %v7391 = vld [vmem:[%s7386 + $0x10] sm:$0xf]
        %v7392 = vld [vmem:[%s7386 + $0x14] sm:$0xf]
        %v7393 = vld [vmem:[%s7386 + $0x18] sm:$0xf]
        %v7394 = vld [vmem:[%s7386 + $0x1c] sm:$0xf]
        %v7395 = vld [vmem:[%s7386 + $0x20] sm:$0xf]
        %v7396 = vld [vmem:[%s7386 + $0x24] sm:$0xf]
        %v7397 = vld [vmem:[%s7386 + $0x28] sm:$0xf]
        %v7398 = vld [vmem:[%s7386 + $0x2c] sm:$0xf]
        %v7399 = vld [vmem:[%s7386 + $0x30] sm:$0xf]
        %v7400 = vld [vmem:[%s7386 + $0x34] sm:$0xf]
        %v7401 = vld [vmem:[%s7386 + $0x38] sm:$0xf]
        %v7402 = vld [vmem:[%s7386 + $0x3c] sm:$0xf]
        %v7419 = vunpack.c.l.b16 %v7387
        %v7420 = vunpack.c.l.b16 %v7388
        %v7421 = vunpack.c.l.b16 %v7389
        %v7422 = vunpack.c.l.b16 %v7390
        %v7423 = vunpack.c.l.b16 %v7391
        %v7424 = vunpack.c.l.b16 %v7392
        %v7425 = vunpack.c.l.b16 %v7393
        %v7426 = vunpack.c.l.b16 %v7394
        %v7427 = vunpack.c.l.b16 %v7395
        %v7428 = vunpack.c.l.b16 %v7396
        %v7429 = vunpack.c.l.b16 %v7397
        %v7430 = vunpack.c.l.b16 %v7398
        %v7431 = vunpack.c.l.b16 %v7399
        %v7432 = vunpack.c.l.b16 %v7400
        %v7433 = vunpack.c.l.b16 %v7401
        %v7434 = vunpack.c.l.b16 %v7402
        %v7435 = vpack.c.b16 %v7420, %v7419
        %v7436 = vpack.c.b16 %v7422, %v7421
        %v7437 = vpack.c.b16 %v7424, %v7423
        %v7438 = vpack.c.b16 %v7426, %v7425
        %v7439 = vpack.c.b16 %v7428, %v7427
        %v7440 = vpack.c.b16 %v7430, %v7429
        %v7441 = vpack.c.b16 %v7432, %v7431
        %v7442 = vpack.c.b16 %v7434, %v7433
        %7451 = vmatprep.subr.bf16.mxu0 0
        %7452 = vmatpush1.bf16.msra.mxu0 %v7442
        %7453 = vmatprep.subr.bf16.mxu0 0
        %7454 = vmatpush1.bf16.msra.mxu0 %v7441
        %7455 = vmatprep.subr.bf16.mxu0 0
        %7456 = vmatpush1.bf16.msra.mxu0 %v7440
        %7457 = vmatprep.subr.bf16.mxu0 0
        %7458 = vmatpush1.bf16.msra.mxu0 %v7439
        %7459 = vmatprep.subr.bf16.mxu0 0
        %7460 = vmatpush1.bf16.msra.mxu0 %v7438
        %7461 = vmatprep.subr.bf16.mxu0 0
        %7462 = vmatpush1.bf16.msra.mxu0 %v7437
        %7463 = vmatprep.subr.bf16.mxu0 0
        %7464 = vmatpush1.bf16.msra.mxu0 %v7436
        %7465 = vmatprep.subr.bf16.mxu0 0
        %7466 = vmatpush1.bf16.msra.mxu0 %v7435
        %7467 = vmatprep.subr.bf16.mxu0 0
        %7468 = vmatpush2.bf16.msra.mxu0 0
        %7469 = vmatprep.subr.bf16.mxu0 0
        %7470 = vmatpush2.bf16.msra.mxu0 0
        %7471 = vmatprep.subr.bf16.mxu0 0
        %7472 = vmatpush2.bf16.msra.mxu0 0
        %7473 = vmatprep.subr.bf16.mxu0 0
        %7474 = vmatpush2.bf16.msra.mxu0 0
        %7475 = vmatprep.subr.bf16.mxu0 0
        %7476 = vmatpush2.bf16.msra.mxu0 0
        %7477 = vmatprep.subr.bf16.mxu0 0
        %7478 = vmatpush2.bf16.msra.mxu0 0
        %7479 = vmatprep.subr.bf16.mxu0 0
        %7480 = vmatpush2.bf16.msra.mxu0 0
        %7481 = vmatprep.subr.bf16.mxu0 0
        %7482 = vmatpush2.bf16.msra.mxu0 0
        %7483 = vmatprep.mubr.bf16.mxu0 0
        %7484 = vmatmul.mubr.bf16.gmra.mxu0 %v7385
        %v7485 = vpop.f32.mrf.mxu0
        %v7486 = vadd.f32 0.0, %v7485
        %v7487 = vpop.f32.mrf.mxu0
        %v7488 = vpop.f32.mrf.mxu0
        %v7489 = vpop.f32.mrf.mxu0
        %7490 = vdwg.mxu0
        %v7491 = vadd.f32 %v7383, %v7486
        %v7492 = vld [vmem:[#allocation3 + $0x5] sm:$0x3f]
        %v7493 = vpack.c.bf16 %v7492, %v7492
        %s7494 = scalar_lea.vmem [#allocation8], 320
        %v7495 = vld [vmem:[%s7494] sm:$0xf]
        %v7496 = vld [vmem:[%s7494 + $0x4] sm:$0xf]
        %v7497 = vld [vmem:[%s7494 + $0x8] sm:$0xf]
        %v7498 = vld [vmem:[%s7494 + $0xc] sm:$0xf]
        %v7499 = vld [vmem:[%s7494 + $0x10] sm:$0xf]
        %v7500 = vld [vmem:[%s7494 + $0x14] sm:$0xf]
        %v7501 = vld [vmem:[%s7494 + $0x18] sm:$0xf]
        %v7502 = vld [vmem:[%s7494 + $0x1c] sm:$0xf]
        %v7503 = vld [vmem:[%s7494 + $0x20] sm:$0xf]
        %v7504 = vld [vmem:[%s7494 + $0x24] sm:$0xf]
        %v7505 = vld [vmem:[%s7494 + $0x28] sm:$0xf]
        %v7506 = vld [vmem:[%s7494 + $0x2c] sm:$0xf]
        %v7507 = vld [vmem:[%s7494 + $0x30] sm:$0xf]
        %v7508 = vld [vmem:[%s7494 + $0x34] sm:$0xf]
        %v7509 = vld [vmem:[%s7494 + $0x38] sm:$0xf]
        %v7510 = vld [vmem:[%s7494 + $0x3c] sm:$0xf]
        %v7527 = vunpack.c.l.b16 %v7495
        %v7528 = vunpack.c.l.b16 %v7496
        %v7529 = vunpack.c.l.b16 %v7497
        %v7530 = vunpack.c.l.b16 %v7498
        %v7531 = vunpack.c.l.b16 %v7499
        %v7532 = vunpack.c.l.b16 %v7500
        %v7533 = vunpack.c.l.b16 %v7501
        %v7534 = vunpack.c.l.b16 %v7502
        %v7535 = vunpack.c.l.b16 %v7503
        %v7536 = vunpack.c.l.b16 %v7504
        %v7537 = vunpack.c.l.b16 %v7505
        %v7538 = vunpack.c.l.b16 %v7506
        %v7539 = vunpack.c.l.b16 %v7507
        %v7540 = vunpack.c.l.b16 %v7508
        %v7541 = vunpack.c.l.b16 %v7509
        %v7542 = vunpack.c.l.b16 %v7510
        %v7543 = vpack.c.b16 %v7528, %v7527
        %v7544 = vpack.c.b16 %v7530, %v7529
        %v7545 = vpack.c.b16 %v7532, %v7531
        %v7546 = vpack.c.b16 %v7534, %v7533
        %v7547 = vpack.c.b16 %v7536, %v7535
        %v7548 = vpack.c.b16 %v7538, %v7537
        %v7549 = vpack.c.b16 %v7540, %v7539
        %v7550 = vpack.c.b16 %v7542, %v7541
        %7559 = vmatprep.subr.bf16.mxu0 0
        %7560 = vmatpush1.bf16.msra.mxu0 %v7550
        %7561 = vmatprep.subr.bf16.mxu0 0
        %7562 = vmatpush1.bf16.msra.mxu0 %v7549
        %7563 = vmatprep.subr.bf16.mxu0 0
        %7564 = vmatpush1.bf16.msra.mxu0 %v7548
        %7565 = vmatprep.subr.bf16.mxu0 0
        %7566 = vmatpush1.bf16.msra.mxu0 %v7547
        %7567 = vmatprep.subr.bf16.mxu0 0
        %7568 = vmatpush1.bf16.msra.mxu0 %v7546
        %7569 = vmatprep.subr.bf16.mxu0 0
        %7570 = vmatpush1.bf16.msra.mxu0 %v7545
        %7571 = vmatprep.subr.bf16.mxu0 0
        %7572 = vmatpush1.bf16.msra.mxu0 %v7544
        %7573 = vmatprep.subr.bf16.mxu0 0
        %7574 = vmatpush1.bf16.msra.mxu0 %v7543
        %7575 = vmatprep.subr.bf16.mxu0 0
        %7576 = vmatpush2.bf16.msra.mxu0 0
        %7577 = vmatprep.subr.bf16.mxu0 0
        %7578 = vmatpush2.bf16.msra.mxu0 0
        %7579 = vmatprep.subr.bf16.mxu0 0
        %7580 = vmatpush2.bf16.msra.mxu0 0
        %7581 = vmatprep.subr.bf16.mxu0 0
        %7582 = vmatpush2.bf16.msra.mxu0 0
        %7583 = vmatprep.subr.bf16.mxu0 0
        %7584 = vmatpush2.bf16.msra.mxu0 0
        %7585 = vmatprep.subr.bf16.mxu0 0
        %7586 = vmatpush2.bf16.msra.mxu0 0
        %7587 = vmatprep.subr.bf16.mxu0 0
        %7588 = vmatpush2.bf16.msra.mxu0 0
        %7589 = vmatprep.subr.bf16.mxu0 0
        %7590 = vmatpush2.bf16.msra.mxu0 0
        %7591 = vmatprep.mubr.bf16.mxu0 0
        %7592 = vmatmul.mubr.bf16.gmra.mxu0 %v7493
        %v7593 = vpop.f32.mrf.mxu0
        %v7594 = vadd.f32 0.0, %v7593
        %v7595 = vpop.f32.mrf.mxu0
        %v7596 = vpop.f32.mrf.mxu0
        %v7597 = vpop.f32.mrf.mxu0
        %7598 = vdwg.mxu0
        %v7599 = vadd.f32 %v7491, %v7594
        %v7600 = vld [vmem:[#allocation3 + $0x6] sm:$0x3f]
        %v7601 = vpack.c.bf16 %v7600, %v7600
        %s7602 = scalar_lea.vmem [#allocation8], 384
        %v7603 = vld [vmem:[%s7602] sm:$0xf]
        %v7604 = vld [vmem:[%s7602 + $0x4] sm:$0xf]
        %v7605 = vld [vmem:[%s7602 + $0x8] sm:$0xf]
        %v7606 = vld [vmem:[%s7602 + $0xc] sm:$0xf]
        %v7607 = vld [vmem:[%s7602 + $0x10] sm:$0xf]
        %v7608 = vld [vmem:[%s7602 + $0x14] sm:$0xf]
        %v7609 = vld [vmem:[%s7602 + $0x18] sm:$0xf]
        %v7610 = vld [vmem:[%s7602 + $0x1c] sm:$0xf]
        %v7611 = vld [vmem:[%s7602 + $0x20] sm:$0xf]
        %v7612 = vld [vmem:[%s7602 + $0x24] sm:$0xf]
        %v7613 = vld [vmem:[%s7602 + $0x28] sm:$0xf]
        %v7614 = vld [vmem:[%s7602 + $0x2c] sm:$0xf]
        %v7615 = vld [vmem:[%s7602 + $0x30] sm:$0xf]
        %v7616 = vld [vmem:[%s7602 + $0x34] sm:$0xf]
        %v7617 = vld [vmem:[%s7602 + $0x38] sm:$0xf]
        %v7618 = vld [vmem:[%s7602 + $0x3c] sm:$0xf]
        %v7635 = vunpack.c.l.b16 %v7603
        %v7636 = vunpack.c.l.b16 %v7604
        %v7637 = vunpack.c.l.b16 %v7605
        %v7638 = vunpack.c.l.b16 %v7606
        %v7639 = vunpack.c.l.b16 %v7607
        %v7640 = vunpack.c.l.b16 %v7608
        %v7641 = vunpack.c.l.b16 %v7609
        %v7642 = vunpack.c.l.b16 %v7610
        %v7643 = vunpack.c.l.b16 %v7611
        %v7644 = vunpack.c.l.b16 %v7612
        %v7645 = vunpack.c.l.b16 %v7613
        %v7646 = vunpack.c.l.b16 %v7614
        %v7647 = vunpack.c.l.b16 %v7615
        %v7648 = vunpack.c.l.b16 %v7616
        %v7649 = vunpack.c.l.b16 %v7617
        %v7650 = vunpack.c.l.b16 %v7618
        %v7651 = vpack.c.b16 %v7636, %v7635
        %v7652 = vpack.c.b16 %v7638, %v7637
        %v7653 = vpack.c.b16 %v7640, %v7639
        %v7654 = vpack.c.b16 %v7642, %v7641
        %v7655 = vpack.c.b16 %v7644, %v7643
        %v7656 = vpack.c.b16 %v7646, %v7645
        %v7657 = vpack.c.b16 %v7648, %v7647
        %v7658 = vpack.c.b16 %v7650, %v7649
        %7667 = vmatprep.subr.bf16.mxu0 0
        %7668 = vmatpush1.bf16.msra.mxu0 %v7658
        %7669 = vmatprep.subr.bf16.mxu0 0
        %7670 = vmatpush1.bf16.msra.mxu0 %v7657
        %7671 = vmatprep.subr.bf16.mxu0 0
        %7672 = vmatpush1.bf16.msra.mxu0 %v7656
        %7673 = vmatprep.subr.bf16.mxu0 0
        %7674 = vmatpush1.bf16.msra.mxu0 %v7655
        %7675 = vmatprep.subr.bf16.mxu0 0
        %7676 = vmatpush1.bf16.msra.mxu0 %v7654
        %7677 = vmatprep.subr.bf16.mxu0 0
        %7678 = vmatpush1.bf16.msra.mxu0 %v7653
        %7679 = vmatprep.subr.bf16.mxu0 0
        %7680 = vmatpush1.bf16.msra.mxu0 %v7652
        %7681 = vmatprep.subr.bf16.mxu0 0
        %7682 = vmatpush1.bf16.msra.mxu0 %v7651
        %7683 = vmatprep.subr.bf16.mxu0 0
        %7684 = vmatpush2.bf16.msra.mxu0 0
        %7685 = vmatprep.subr.bf16.mxu0 0
        %7686 = vmatpush2.bf16.msra.mxu0 0
        %7687 = vmatprep.subr.bf16.mxu0 0
        %7688 = vmatpush2.bf16.msra.mxu0 0
        %7689 = vmatprep.subr.bf16.mxu0 0
        %7690 = vmatpush2.bf16.msra.mxu0 0
        %7691 = vmatprep.subr.bf16.mxu0 0
        %7692 = vmatpush2.bf16.msra.mxu0 0
        %7693 = vmatprep.subr.bf16.mxu0 0
        %7694 = vmatpush2.bf16.msra.mxu0 0
        %7695 = vmatprep.subr.bf16.mxu0 0
        %7696 = vmatpush2.bf16.msra.mxu0 0
        %7697 = vmatprep.subr.bf16.mxu0 0
        %7698 = vmatpush2.bf16.msra.mxu0 0
        %7699 = vmatprep.mubr.bf16.mxu0 0
        %7700 = vmatmul.mubr.bf16.gmra.mxu0 %v7601
        %v7701 = vpop.f32.mrf.mxu0
        %v7702 = vadd.f32 0.0, %v7701
        %v7703 = vpop.f32.mrf.mxu0
        %v7704 = vpop.f32.mrf.mxu0
        %v7705 = vpop.f32.mrf.mxu0
        %7706 = vdwg.mxu0
        %v7707 = vadd.f32 %v7599, %v7702
        %v7708 = vld [vmem:[#allocation3 + $0x7] sm:$0x3f]
        %v7709 = vpack.c.bf16 %v7708, %v7708
        %s7710 = scalar_lea.vmem [#allocation8], 448
        %v7711 = vld [vmem:[%s7710] sm:$0xf]
        %v7712 = vld [vmem:[%s7710 + $0x4] sm:$0xf]
        %v7713 = vld [vmem:[%s7710 + $0x8] sm:$0xf]
        %v7714 = vld [vmem:[%s7710 + $0xc] sm:$0xf]
        %v7715 = vld [vmem:[%s7710 + $0x10] sm:$0xf]
        %v7716 = vld [vmem:[%s7710 + $0x14] sm:$0xf]
        %v7717 = vld [vmem:[%s7710 + $0x18] sm:$0xf]
        %v7718 = vld [vmem:[%s7710 + $0x1c] sm:$0xf]
        %v7719 = vld [vmem:[%s7710 + $0x20] sm:$0xf]
        %v7720 = vld [vmem:[%s7710 + $0x24] sm:$0xf]
        %v7721 = vld [vmem:[%s7710 + $0x28] sm:$0xf]
        %v7722 = vld [vmem:[%s7710 + $0x2c] sm:$0xf]
        %v7723 = vld [vmem:[%s7710 + $0x30] sm:$0xf]
        %v7724 = vld [vmem:[%s7710 + $0x34] sm:$0xf]
        %v7725 = vld [vmem:[%s7710 + $0x38] sm:$0xf]
        %v7726 = vld [vmem:[%s7710 + $0x3c] sm:$0xf]
        %v7743 = vunpack.c.l.b16 %v7711
        %v7744 = vunpack.c.l.b16 %v7712
        %v7745 = vunpack.c.l.b16 %v7713
        %v7746 = vunpack.c.l.b16 %v7714
        %v7747 = vunpack.c.l.b16 %v7715
        %v7748 = vunpack.c.l.b16 %v7716
        %v7749 = vunpack.c.l.b16 %v7717
        %v7750 = vunpack.c.l.b16 %v7718
        %v7751 = vunpack.c.l.b16 %v7719
        %v7752 = vunpack.c.l.b16 %v7720
        %v7753 = vunpack.c.l.b16 %v7721
        %v7754 = vunpack.c.l.b16 %v7722
        %v7755 = vunpack.c.l.b16 %v7723
        %v7756 = vunpack.c.l.b16 %v7724
        %v7757 = vunpack.c.l.b16 %v7725
        %v7758 = vunpack.c.l.b16 %v7726
        %v7759 = vpack.c.b16 %v7744, %v7743
        %v7760 = vpack.c.b16 %v7746, %v7745
        %v7761 = vpack.c.b16 %v7748, %v7747
        %v7762 = vpack.c.b16 %v7750, %v7749
        %v7763 = vpack.c.b16 %v7752, %v7751
        %v7764 = vpack.c.b16 %v7754, %v7753
        %v7765 = vpack.c.b16 %v7756, %v7755
        %v7766 = vpack.c.b16 %v7758, %v7757
        %7775 = vmatprep.subr.bf16.mxu0 0
        %7776 = vmatpush1.bf16.msra.mxu0 %v7766
        %7777 = vmatprep.subr.bf16.mxu0 0
        %7778 = vmatpush1.bf16.msra.mxu0 %v7765
        %7779 = vmatprep.subr.bf16.mxu0 0
        %7780 = vmatpush1.bf16.msra.mxu0 %v7764
        %7781 = vmatprep.subr.bf16.mxu0 0
        %7782 = vmatpush1.bf16.msra.mxu0 %v7763
        %7783 = vmatprep.subr.bf16.mxu0 0
        %7784 = vmatpush1.bf16.msra.mxu0 %v7762
        %7785 = vmatprep.subr.bf16.mxu0 0
        %7786 = vmatpush1.bf16.msra.mxu0 %v7761
        %7787 = vmatprep.subr.bf16.mxu0 0
        %7788 = vmatpush1.bf16.msra.mxu0 %v7760
        %7789 = vmatprep.subr.bf16.mxu0 0
        %7790 = vmatpush1.bf16.msra.mxu0 %v7759
        %7791 = vmatprep.subr.bf16.mxu0 0
        %7792 = vmatpush2.bf16.msra.mxu0 0
        %7793 = vmatprep.subr.bf16.mxu0 0
        %7794 = vmatpush2.bf16.msra.mxu0 0
        %7795 = vmatprep.subr.bf16.mxu0 0
        %7796 = vmatpush2.bf16.msra.mxu0 0
        %7797 = vmatprep.subr.bf16.mxu0 0
        %7798 = vmatpush2.bf16.msra.mxu0 0
        %7799 = vmatprep.subr.bf16.mxu0 0
        %7800 = vmatpush2.bf16.msra.mxu0 0
        %7801 = vmatprep.subr.bf16.mxu0 0
        %7802 = vmatpush2.bf16.msra.mxu0 0
        %7803 = vmatprep.subr.bf16.mxu0 0
        %7804 = vmatpush2.bf16.msra.mxu0 0
        %7805 = vmatprep.subr.bf16.mxu0 0
        %7806 = vmatpush2.bf16.msra.mxu0 0
        %7807 = vmatprep.mubr.bf16.mxu0 0
        %7808 = vmatmul.mubr.bf16.gmra.mxu0 %v7709
        %v7809 = vpop.f32.mrf.mxu0
        %v7810 = vadd.f32 0.0, %v7809
        %v7811 = vpop.f32.mrf.mxu0
        %v7812 = vpop.f32.mrf.mxu0
        %v7813 = vpop.f32.mrf.mxu0
        %7814 = vdwg.mxu0
        %v7815 = vadd.f32 %v7707, %v7810
        %v7816 = vld [vmem:[%s12] sm:$0x1]
        %v7818 = vlaneseq
        %v7819 = vshrl.u32 %v7818, 7
        %v7820 = vsub.s32 0, %v7819
        %v7821 = vrot.slane %v7816, %v7820
        %v7823 = vmul.f32 %v7815, %v7821
        %v7824 = vld [vmem:[%s13] sm:$0x1]
        %v7826 = vlaneseq
        %v7827 = vshrl.u32 %v7826, 7
        %v7828 = vsub.s32 0, %v7827
        %v7829 = vrot.slane %v7824, %v7828
        %v7831 = vadd.f32 %v7823, %v7829
        %v7832 = vmax.f32 %v7831, 0.0
        %7833 = vst [vmem:[#allocation3 + $0x3] sm:$0x3f] %v7832
        %v7834 = vld [vmem:[#allocation3] sm:$0x3f]
        %v7835 = vpack.c.bf16 %v7834, %v7834
        %s7836 = scalar_lea.vmem [#allocation8], 512
        %v7837 = vld [vmem:[%s7836] sm:$0xf]
        %v7838 = vld [vmem:[%s7836 + $0x4] sm:$0xf]
        %v7839 = vld [vmem:[%s7836 + $0x8] sm:$0xf]
        %v7840 = vld [vmem:[%s7836 + $0xc] sm:$0xf]
        %v7841 = vld [vmem:[%s7836 + $0x10] sm:$0xf]
        %v7842 = vld [vmem:[%s7836 + $0x14] sm:$0xf]
        %v7843 = vld [vmem:[%s7836 + $0x18] sm:$0xf]
        %v7844 = vld [vmem:[%s7836 + $0x1c] sm:$0xf]
        %v7845 = vld [vmem:[%s7836 + $0x20] sm:$0xf]
        %v7846 = vld [vmem:[%s7836 + $0x24] sm:$0xf]
        %v7847 = vld [vmem:[%s7836 + $0x28] sm:$0xf]
        %v7848 = vld [vmem:[%s7836 + $0x2c] sm:$0xf]
        %v7849 = vld [vmem:[%s7836 + $0x30] sm:$0xf]
        %v7850 = vld [vmem:[%s7836 + $0x34] sm:$0xf]
        %v7851 = vld [vmem:[%s7836 + $0x38] sm:$0xf]
        %v7852 = vld [vmem:[%s7836 + $0x3c] sm:$0xf]
        %v7853 = vld [vmem:[#allocation3 + $0x1] sm:$0x3f]
        %v7854 = vpack.c.bf16 %v7853, %v7853
        %s7855 = scalar_lea.vmem [#allocation8], 576
        %v7856 = vld [vmem:[%s7855] sm:$0xf]
        %v7857 = vld [vmem:[%s7855 + $0x4] sm:$0xf]
        %v7858 = vld [vmem:[%s7855 + $0x8] sm:$0xf]
        %v7859 = vld [vmem:[%s7855 + $0xc] sm:$0xf]
        %v7860 = vld [vmem:[%s7855 + $0x10] sm:$0xf]
        %v7861 = vld [vmem:[%s7855 + $0x14] sm:$0xf]
        %v7862 = vld [vmem:[%s7855 + $0x18] sm:$0xf]
        %v7863 = vld [vmem:[%s7855 + $0x1c] sm:$0xf]
        %v7864 = vld [vmem:[%s7855 + $0x20] sm:$0xf]
        %v7865 = vld [vmem:[%s7855 + $0x24] sm:$0xf]
        %v7866 = vld [vmem:[%s7855 + $0x28] sm:$0xf]
        %v7867 = vld [vmem:[%s7855 + $0x2c] sm:$0xf]
        %v7868 = vld [vmem:[%s7855 + $0x30] sm:$0xf]
        %v7869 = vld [vmem:[%s7855 + $0x34] sm:$0xf]
        %v7870 = vld [vmem:[%s7855 + $0x38] sm:$0xf]
        %v7871 = vld [vmem:[%s7855 + $0x3c] sm:$0xf]
        %v7888 = vunpack.c.l.b16 %v7856
        %v7889 = vunpack.c.l.b16 %v7857
        %v7890 = vunpack.c.l.b16 %v7858
        %v7891 = vunpack.c.l.b16 %v7859
        %v7892 = vunpack.c.l.b16 %v7860
        %v7893 = vunpack.c.l.b16 %v7861
        %v7894 = vunpack.c.l.b16 %v7862
        %v7895 = vunpack.c.l.b16 %v7863
        %v7896 = vunpack.c.l.b16 %v7864
        %v7897 = vunpack.c.l.b16 %v7865
        %v7898 = vunpack.c.l.b16 %v7866
        %v7899 = vunpack.c.l.b16 %v7867
        %v7900 = vunpack.c.l.b16 %v7868
        %v7901 = vunpack.c.l.b16 %v7869
        %v7902 = vunpack.c.l.b16 %v7870
        %v7903 = vunpack.c.l.b16 %v7871
        %v7904 = vpack.c.b16 %v7889, %v7888
        %v7905 = vpack.c.b16 %v7891, %v7890
        %v7906 = vpack.c.b16 %v7893, %v7892
        %v7907 = vpack.c.b16 %v7895, %v7894
        %v7908 = vpack.c.b16 %v7897, %v7896
        %v7909 = vpack.c.b16 %v7899, %v7898
        %v7910 = vpack.c.b16 %v7901, %v7900
        %v7911 = vpack.c.b16 %v7903, %v7902
        %7920 = vmatprep.subr.bf16.mxu0 0
        %7921 = vmatpush1.bf16.msra.mxu0 %v7911
        %7922 = vmatprep.subr.bf16.mxu0 0
        %7923 = vmatpush1.bf16.msra.mxu0 %v7910
        %7924 = vmatprep.subr.bf16.mxu0 0
        %7925 = vmatpush1.bf16.msra.mxu0 %v7909
        %7926 = vmatprep.subr.bf16.mxu0 0
        %7927 = vmatpush1.bf16.msra.mxu0 %v7908
        %7928 = vmatprep.subr.bf16.mxu0 0
        %7929 = vmatpush1.bf16.msra.mxu0 %v7907
        %7930 = vmatprep.subr.bf16.mxu0 0
        %7931 = vmatpush1.bf16.msra.mxu0 %v7906
        %7932 = vmatprep.subr.bf16.mxu0 0
        %7933 = vmatpush1.bf16.msra.mxu0 %v7905
        %7934 = vmatprep.subr.bf16.mxu0 0
        %7935 = vmatpush1.bf16.msra.mxu0 %v7904
        %7936 = vmatprep.subr.bf16.mxu0 0
        %7937 = vmatpush2.bf16.msra.mxu0 0
        %7938 = vmatprep.subr.bf16.mxu0 0
        %7939 = vmatpush2.bf16.msra.mxu0 0
        %7940 = vmatprep.subr.bf16.mxu0 0
        %7941 = vmatpush2.bf16.msra.mxu0 0
        %7942 = vmatprep.subr.bf16.mxu0 0
        %7943 = vmatpush2.bf16.msra.mxu0 0
        %7944 = vmatprep.subr.bf16.mxu0 0
        %7945 = vmatpush2.bf16.msra.mxu0 0
        %7946 = vmatprep.subr.bf16.mxu0 0
        %7947 = vmatpush2.bf16.msra.mxu0 0
        %7948 = vmatprep.subr.bf16.mxu0 0
        %7949 = vmatpush2.bf16.msra.mxu0 0
        %7950 = vmatprep.subr.bf16.mxu0 0
        %7951 = vmatpush2.bf16.msra.mxu0 0
        %7952 = vmatprep.mubr.bf16.mxu0 0
        %7953 = vmatmul.mubr.bf16.gmra.mxu0 %v7854
        %v7954 = vpop.f32.mrf.mxu0
        %v7955 = vadd.f32 0.0, %v7954
        %v7956 = vpop.f32.mrf.mxu0
        %v7957 = vpop.f32.mrf.mxu0
        %v7958 = vpop.f32.mrf.mxu0
        %7959 = vdwg.mxu0
        %v7976 = vunpack.c.l.b16 %v7837
        %v7977 = vunpack.c.l.b16 %v7838
        %v7978 = vunpack.c.l.b16 %v7839
        %v7979 = vunpack.c.l.b16 %v7840
        %v7980 = vunpack.c.l.b16 %v7841
        %v7981 = vunpack.c.l.b16 %v7842
        %v7982 = vunpack.c.l.b16 %v7843
        %v7983 = vunpack.c.l.b16 %v7844
        %v7984 = vunpack.c.l.b16 %v7845
        %v7985 = vunpack.c.l.b16 %v7846
        %v7986 = vunpack.c.l.b16 %v7847
        %v7987 = vunpack.c.l.b16 %v7848
        %v7988 = vunpack.c.l.b16 %v7849
        %v7989 = vunpack.c.l.b16 %v7850
        %v7990 = vunpack.c.l.b16 %v7851
        %v7991 = vunpack.c.l.b16 %v7852
        %v7992 = vpack.c.b16 %v7977, %v7976
        %v7993 = vpack.c.b16 %v7979, %v7978
        %v7994 = vpack.c.b16 %v7981, %v7980
        %v7995 = vpack.c.b16 %v7983, %v7982
        %v7996 = vpack.c.b16 %v7985, %v7984
        %v7997 = vpack.c.b16 %v7987, %v7986
        %v7998 = vpack.c.b16 %v7989, %v7988
        %v7999 = vpack.c.b16 %v7991, %v7990
        %8008 = vmatprep.subr.bf16.mxu0 0
        %8009 = vmatpush1.bf16.msra.mxu0 %v7999
        %8010 = vmatprep.subr.bf16.mxu0 0
        %8011 = vmatpush1.bf16.msra.mxu0 %v7998
        %8012 = vmatprep.subr.bf16.mxu0 0
        %8013 = vmatpush1.bf16.msra.mxu0 %v7997
        %8014 = vmatprep.subr.bf16.mxu0 0
        %8015 = vmatpush1.bf16.msra.mxu0 %v7996
        %8016 = vmatprep.subr.bf16.mxu0 0
        %8017 = vmatpush1.bf16.msra.mxu0 %v7995
        %8018 = vmatprep.subr.bf16.mxu0 0
        %8019 = vmatpush1.bf16.msra.mxu0 %v7994
        %8020 = vmatprep.subr.bf16.mxu0 0
        %8021 = vmatpush1.bf16.msra.mxu0 %v7993
        %8022 = vmatprep.subr.bf16.mxu0 0
        %8023 = vmatpush1.bf16.msra.mxu0 %v7992
        %8024 = vmatprep.subr.bf16.mxu0 0
        %8025 = vmatpush2.bf16.msra.mxu0 0
        %8026 = vmatprep.subr.bf16.mxu0 0
        %8027 = vmatpush2.bf16.msra.mxu0 0
        %8028 = vmatprep.subr.bf16.mxu0 0
        %8029 = vmatpush2.bf16.msra.mxu0 0
        %8030 = vmatprep.subr.bf16.mxu0 0
        %8031 = vmatpush2.bf16.msra.mxu0 0
        %8032 = vmatprep.subr.bf16.mxu0 0
        %8033 = vmatpush2.bf16.msra.mxu0 0
        %8034 = vmatprep.subr.bf16.mxu0 0
        %8035 = vmatpush2.bf16.msra.mxu0 0
        %8036 = vmatprep.subr.bf16.mxu0 0
        %8037 = vmatpush2.bf16.msra.mxu0 0
        %8038 = vmatprep.subr.bf16.mxu0 0
        %8039 = vmatpush2.bf16.msra.mxu0 0
        %8040 = vmatprep.mubr.bf16.mxu0 0
        %8041 = vmatmul.mubr.bf16.gmra.mxu0 %v7835
        %v8042 = vpop.f32.mrf.mxu0
        %v8043 = vadd.f32 %v7955, %v8042
        %v8044 = vpop.f32.mrf.mxu0
        %v8045 = vpop.f32.mrf.mxu0
        %v8046 = vpop.f32.mrf.mxu0
        %8047 = vdwg.mxu0
        %v8048 = vld [vmem:[#allocation3 + $0x2] sm:$0x3f]
        %v8049 = vpack.c.bf16 %v8048, %v8048
        %s8050 = scalar_lea.vmem [#allocation8], 640
        %v8051 = vld [vmem:[%s8050] sm:$0xf]
        %v8052 = vld [vmem:[%s8050 + $0x4] sm:$0xf]
        %v8053 = vld [vmem:[%s8050 + $0x8] sm:$0xf]
        %v8054 = vld [vmem:[%s8050 + $0xc] sm:$0xf]
        %v8055 = vld [vmem:[%s8050 + $0x10] sm:$0xf]
        %v8056 = vld [vmem:[%s8050 + $0x14] sm:$0xf]
        %v8057 = vld [vmem:[%s8050 + $0x18] sm:$0xf]
        %v8058 = vld [vmem:[%s8050 + $0x1c] sm:$0xf]
        %v8059 = vld [vmem:[%s8050 + $0x20] sm:$0xf]
        %v8060 = vld [vmem:[%s8050 + $0x24] sm:$0xf]
        %v8061 = vld [vmem:[%s8050 + $0x28] sm:$0xf]
        %v8062 = vld [vmem:[%s8050 + $0x2c] sm:$0xf]
        %v8063 = vld [vmem:[%s8050 + $0x30] sm:$0xf]
        %v8064 = vld [vmem:[%s8050 + $0x34] sm:$0xf]
        %v8065 = vld [vmem:[%s8050 + $0x38] sm:$0xf]
        %v8066 = vld [vmem:[%s8050 + $0x3c] sm:$0xf]
        %v8083 = vunpack.c.l.b16 %v8051
        %v8084 = vunpack.c.l.b16 %v8052
        %v8085 = vunpack.c.l.b16 %v8053
        %v8086 = vunpack.c.l.b16 %v8054
        %v8087 = vunpack.c.l.b16 %v8055
        %v8088 = vunpack.c.l.b16 %v8056
        %v8089 = vunpack.c.l.b16 %v8057
        %v8090 = vunpack.c.l.b16 %v8058
        %v8091 = vunpack.c.l.b16 %v8059
        %v8092 = vunpack.c.l.b16 %v8060
        %v8093 = vunpack.c.l.b16 %v8061
        %v8094 = vunpack.c.l.b16 %v8062
        %v8095 = vunpack.c.l.b16 %v8063
        %v8096 = vunpack.c.l.b16 %v8064
        %v8097 = vunpack.c.l.b16 %v8065
        %v8098 = vunpack.c.l.b16 %v8066
        %v8099 = vpack.c.b16 %v8084, %v8083
        %v8100 = vpack.c.b16 %v8086, %v8085
        %v8101 = vpack.c.b16 %v8088, %v8087
        %v8102 = vpack.c.b16 %v8090, %v8089
        %v8103 = vpack.c.b16 %v8092, %v8091
        %v8104 = vpack.c.b16 %v8094, %v8093
        %v8105 = vpack.c.b16 %v8096, %v8095
        %v8106 = vpack.c.b16 %v8098, %v8097
        %8115 = vmatprep.subr.bf16.mxu0 0
        %8116 = vmatpush1.bf16.msra.mxu0 %v8106
        %8117 = vmatprep.subr.bf16.mxu0 0
        %8118 = vmatpush1.bf16.msra.mxu0 %v8105
        %8119 = vmatprep.subr.bf16.mxu0 0
        %8120 = vmatpush1.bf16.msra.mxu0 %v8104
        %8121 = vmatprep.subr.bf16.mxu0 0
        %8122 = vmatpush1.bf16.msra.mxu0 %v8103
        %8123 = vmatprep.subr.bf16.mxu0 0
        %8124 = vmatpush1.bf16.msra.mxu0 %v8102
        %8125 = vmatprep.subr.bf16.mxu0 0
        %8126 = vmatpush1.bf16.msra.mxu0 %v8101
        %8127 = vmatprep.subr.bf16.mxu0 0
        %8128 = vmatpush1.bf16.msra.mxu0 %v8100
        %8129 = vmatprep.subr.bf16.mxu0 0
        %8130 = vmatpush1.bf16.msra.mxu0 %v8099
        %8131 = vmatprep.subr.bf16.mxu0 0
        %8132 = vmatpush2.bf16.msra.mxu0 0
        %8133 = vmatprep.subr.bf16.mxu0 0
        %8134 = vmatpush2.bf16.msra.mxu0 0
        %8135 = vmatprep.subr.bf16.mxu0 0
        %8136 = vmatpush2.bf16.msra.mxu0 0
        %8137 = vmatprep.subr.bf16.mxu0 0
        %8138 = vmatpush2.bf16.msra.mxu0 0
        %8139 = vmatprep.subr.bf16.mxu0 0
        %8140 = vmatpush2.bf16.msra.mxu0 0
        %8141 = vmatprep.subr.bf16.mxu0 0
        %8142 = vmatpush2.bf16.msra.mxu0 0
        %8143 = vmatprep.subr.bf16.mxu0 0
        %8144 = vmatpush2.bf16.msra.mxu0 0
        %8145 = vmatprep.subr.bf16.mxu0 0
        %8146 = vmatpush2.bf16.msra.mxu0 0
        %8147 = vmatprep.mubr.bf16.mxu0 0
        %8148 = vmatmul.mubr.bf16.gmra.mxu0 %v8049
        %v8149 = vpop.f32.mrf.mxu0
        %v8150 = vadd.f32 0.0, %v8149
        %v8151 = vpop.f32.mrf.mxu0
        %v8152 = vpop.f32.mrf.mxu0
        %v8153 = vpop.f32.mrf.mxu0
        %8154 = vdwg.mxu0
        %v8155 = vadd.f32 %v8043, %v8150
        %v8156 = vld [vmem:[#allocation3 + $0x3] sm:$0x3f]
        %v8157 = vpack.c.bf16 %v8156, %v8156
        %s8158 = scalar_lea.vmem [#allocation8], 704
        %v8159 = vld [vmem:[%s8158] sm:$0xf]
        %v8160 = vld [vmem:[%s8158 + $0x4] sm:$0xf]
        %v8161 = vld [vmem:[%s8158 + $0x8] sm:$0xf]
        %v8162 = vld [vmem:[%s8158 + $0xc] sm:$0xf]
        %v8163 = vld [vmem:[%s8158 + $0x10] sm:$0xf]
        %v8164 = vld [vmem:[%s8158 + $0x14] sm:$0xf]
        %v8165 = vld [vmem:[%s8158 + $0x18] sm:$0xf]
        %v8166 = vld [vmem:[%s8158 + $0x1c] sm:$0xf]
        %v8167 = vld [vmem:[%s8158 + $0x20] sm:$0xf]
        %v8168 = vld [vmem:[%s8158 + $0x24] sm:$0xf]
        %v8169 = vld [vmem:[%s8158 + $0x28] sm:$0xf]
        %v8170 = vld [vmem:[%s8158 + $0x2c] sm:$0xf]
        %v8171 = vld [vmem:[%s8158 + $0x30] sm:$0xf]
        %v8172 = vld [vmem:[%s8158 + $0x34] sm:$0xf]
        %v8173 = vld [vmem:[%s8158 + $0x38] sm:$0xf]
        %v8174 = vld [vmem:[%s8158 + $0x3c] sm:$0xf]
        %v8191 = vunpack.c.l.b16 %v8159
        %v8192 = vunpack.c.l.b16 %v8160
        %v8193 = vunpack.c.l.b16 %v8161
        %v8194 = vunpack.c.l.b16 %v8162
        %v8195 = vunpack.c.l.b16 %v8163
        %v8196 = vunpack.c.l.b16 %v8164
        %v8197 = vunpack.c.l.b16 %v8165
        %v8198 = vunpack.c.l.b16 %v8166
        %v8199 = vunpack.c.l.b16 %v8167
        %v8200 = vunpack.c.l.b16 %v8168
        %v8201 = vunpack.c.l.b16 %v8169
        %v8202 = vunpack.c.l.b16 %v8170
        %v8203 = vunpack.c.l.b16 %v8171
        %v8204 = vunpack.c.l.b16 %v8172
        %v8205 = vunpack.c.l.b16 %v8173
        %v8206 = vunpack.c.l.b16 %v8174
        %v8207 = vpack.c.b16 %v8192, %v8191
        %v8208 = vpack.c.b16 %v8194, %v8193
        %v8209 = vpack.c.b16 %v8196, %v8195
        %v8210 = vpack.c.b16 %v8198, %v8197
        %v8211 = vpack.c.b16 %v8200, %v8199
        %v8212 = vpack.c.b16 %v8202, %v8201
        %v8213 = vpack.c.b16 %v8204, %v8203
        %v8214 = vpack.c.b16 %v8206, %v8205
        %8223 = vmatprep.subr.bf16.mxu0 0
        %8224 = vmatpush1.bf16.msra.mxu0 %v8214
        %8225 = vmatprep.subr.bf16.mxu0 0
        %8226 = vmatpush1.bf16.msra.mxu0 %v8213
        %8227 = vmatprep.subr.bf16.mxu0 0
        %8228 = vmatpush1.bf16.msra.mxu0 %v8212
        %8229 = vmatprep.subr.bf16.mxu0 0
        %8230 = vmatpush1.bf16.msra.mxu0 %v8211
        %8231 = vmatprep.subr.bf16.mxu0 0
        %8232 = vmatpush1.bf16.msra.mxu0 %v8210
        %8233 = vmatprep.subr.bf16.mxu0 0
        %8234 = vmatpush1.bf16.msra.mxu0 %v8209
        %8235 = vmatprep.subr.bf16.mxu0 0
        %8236 = vmatpush1.bf16.msra.mxu0 %v8208
        %8237 = vmatprep.subr.bf16.mxu0 0
        %8238 = vmatpush1.bf16.msra.mxu0 %v8207
        %8239 = vmatprep.subr.bf16.mxu0 0
        %8240 = vmatpush2.bf16.msra.mxu0 0
        %8241 = vmatprep.subr.bf16.mxu0 0
        %8242 = vmatpush2.bf16.msra.mxu0 0
        %8243 = vmatprep.subr.bf16.mxu0 0
        %8244 = vmatpush2.bf16.msra.mxu0 0
        %8245 = vmatprep.subr.bf16.mxu0 0
        %8246 = vmatpush2.bf16.msra.mxu0 0
        %8247 = vmatprep.subr.bf16.mxu0 0
        %8248 = vmatpush2.bf16.msra.mxu0 0
        %8249 = vmatprep.subr.bf16.mxu0 0
        %8250 = vmatpush2.bf16.msra.mxu0 0
        %8251 = vmatprep.subr.bf16.mxu0 0
        %8252 = vmatpush2.bf16.msra.mxu0 0
        %8253 = vmatprep.subr.bf16.mxu0 0
        %8254 = vmatpush2.bf16.msra.mxu0 0
        %8255 = vmatprep.mubr.bf16.mxu0 0
        %8256 = vmatmul.mubr.bf16.gmra.mxu0 %v8157
        %v8257 = vpop.f32.mrf.mxu0
        %v8258 = vadd.f32 0.0, %v8257
        %v8259 = vpop.f32.mrf.mxu0
        %v8260 = vpop.f32.mrf.mxu0
        %v8261 = vpop.f32.mrf.mxu0
        %8262 = vdwg.mxu0
        %v8263 = vadd.f32 %v8155, %v8258
        %v8264 = vld [vmem:[#allocation3 + $0x4] sm:$0x3f]
        %v8265 = vpack.c.bf16 %v8264, %v8264
        %s8266 = scalar_lea.vmem [#allocation8], 768
        %v8267 = vld [vmem:[%s8266] sm:$0xf]
        %v8268 = vld [vmem:[%s8266 + $0x4] sm:$0xf]
        %v8269 = vld [vmem:[%s8266 + $0x8] sm:$0xf]
        %v8270 = vld [vmem:[%s8266 + $0xc] sm:$0xf]
        %v8271 = vld [vmem:[%s8266 + $0x10] sm:$0xf]
        %v8272 = vld [vmem:[%s8266 + $0x14] sm:$0xf]
        %v8273 = vld [vmem:[%s8266 + $0x18] sm:$0xf]
        %v8274 = vld [vmem:[%s8266 + $0x1c] sm:$0xf]
        %v8275 = vld [vmem:[%s8266 + $0x20] sm:$0xf]
        %v8276 = vld [vmem:[%s8266 + $0x24] sm:$0xf]
        %v8277 = vld [vmem:[%s8266 + $0x28] sm:$0xf]
        %v8278 = vld [vmem:[%s8266 + $0x2c] sm:$0xf]
        %v8279 = vld [vmem:[%s8266 + $0x30] sm:$0xf]
        %v8280 = vld [vmem:[%s8266 + $0x34] sm:$0xf]
        %v8281 = vld [vmem:[%s8266 + $0x38] sm:$0xf]
        %v8282 = vld [vmem:[%s8266 + $0x3c] sm:$0xf]
        %v8299 = vunpack.c.l.b16 %v8267
        %v8300 = vunpack.c.l.b16 %v8268
        %v8301 = vunpack.c.l.b16 %v8269
        %v8302 = vunpack.c.l.b16 %v8270
        %v8303 = vunpack.c.l.b16 %v8271
        %v8304 = vunpack.c.l.b16 %v8272
        %v8305 = vunpack.c.l.b16 %v8273
        %v8306 = vunpack.c.l.b16 %v8274
        %v8307 = vunpack.c.l.b16 %v8275
        %v8308 = vunpack.c.l.b16 %v8276
        %v8309 = vunpack.c.l.b16 %v8277
        %v8310 = vunpack.c.l.b16 %v8278
        %v8311 = vunpack.c.l.b16 %v8279
        %v8312 = vunpack.c.l.b16 %v8280
        %v8313 = vunpack.c.l.b16 %v8281
        %v8314 = vunpack.c.l.b16 %v8282
        %v8315 = vpack.c.b16 %v8300, %v8299
        %v8316 = vpack.c.b16 %v8302, %v8301
        %v8317 = vpack.c.b16 %v8304, %v8303
        %v8318 = vpack.c.b16 %v8306, %v8305
        %v8319 = vpack.c.b16 %v8308, %v8307
        %v8320 = vpack.c.b16 %v8310, %v8309
        %v8321 = vpack.c.b16 %v8312, %v8311
        %v8322 = vpack.c.b16 %v8314, %v8313
        %8331 = vmatprep.subr.bf16.mxu0 0
        %8332 = vmatpush1.bf16.msra.mxu0 %v8322
        %8333 = vmatprep.subr.bf16.mxu0 0
        %8334 = vmatpush1.bf16.msra.mxu0 %v8321
        %8335 = vmatprep.subr.bf16.mxu0 0
        %8336 = vmatpush1.bf16.msra.mxu0 %v8320
        %8337 = vmatprep.subr.bf16.mxu0 0
        %8338 = vmatpush1.bf16.msra.mxu0 %v8319
        %8339 = vmatprep.subr.bf16.mxu0 0
        %8340 = vmatpush1.bf16.msra.mxu0 %v8318
        %8341 = vmatprep.subr.bf16.mxu0 0
        %8342 = vmatpush1.bf16.msra.mxu0 %v8317
        %8343 = vmatprep.subr.bf16.mxu0 0
        %8344 = vmatpush1.bf16.msra.mxu0 %v8316
        %8345 = vmatprep.subr.bf16.mxu0 0
        %8346 = vmatpush1.bf16.msra.mxu0 %v8315
        %8347 = vmatprep.subr.bf16.mxu0 0
        %8348 = vmatpush2.bf16.msra.mxu0 0
        %8349 = vmatprep.subr.bf16.mxu0 0
        %8350 = vmatpush2.bf16.msra.mxu0 0
        %8351 = vmatprep.subr.bf16.mxu0 0
        %8352 = vmatpush2.bf16.msra.mxu0 0
        %8353 = vmatprep.subr.bf16.mxu0 0
        %8354 = vmatpush2.bf16.msra.mxu0 0
        %8355 = vmatprep.subr.bf16.mxu0 0
        %8356 = vmatpush2.bf16.msra.mxu0 0
        %8357 = vmatprep.subr.bf16.mxu0 0
        %8358 = vmatpush2.bf16.msra.mxu0 0
        %8359 = vmatprep.subr.bf16.mxu0 0
        %8360 = vmatpush2.bf16.msra.mxu0 0
        %8361 = vmatprep.subr.bf16.mxu0 0
        %8362 = vmatpush2.bf16.msra.mxu0 0
        %8363 = vmatprep.mubr.bf16.mxu0 0
        %8364 = vmatmul.mubr.bf16.gmra.mxu0 %v8265
        %v8365 = vpop.f32.mrf.mxu0
        %v8366 = vadd.f32 0.0, %v8365
        %v8367 = vpop.f32.mrf.mxu0
        %v8368 = vpop.f32.mrf.mxu0
        %v8369 = vpop.f32.mrf.mxu0
        %8370 = vdwg.mxu0
        %v8371 = vadd.f32 %v8263, %v8366
        %v8372 = vld [vmem:[#allocation3 + $0x5] sm:$0x3f]
        %v8373 = vpack.c.bf16 %v8372, %v8372
        %s8374 = scalar_lea.vmem [#allocation8], 832
        %v8375 = vld [vmem:[%s8374] sm:$0xf]
        %v8376 = vld [vmem:[%s8374 + $0x4] sm:$0xf]
        %v8377 = vld [vmem:[%s8374 + $0x8] sm:$0xf]
        %v8378 = vld [vmem:[%s8374 + $0xc] sm:$0xf]
        %v8379 = vld [vmem:[%s8374 + $0x10] sm:$0xf]
        %v8380 = vld [vmem:[%s8374 + $0x14] sm:$0xf]
        %v8381 = vld [vmem:[%s8374 + $0x18] sm:$0xf]
        %v8382 = vld [vmem:[%s8374 + $0x1c] sm:$0xf]
        %v8383 = vld [vmem:[%s8374 + $0x20] sm:$0xf]
        %v8384 = vld [vmem:[%s8374 + $0x24] sm:$0xf]
        %v8385 = vld [vmem:[%s8374 + $0x28] sm:$0xf]
        %v8386 = vld [vmem:[%s8374 + $0x2c] sm:$0xf]
        %v8387 = vld [vmem:[%s8374 + $0x30] sm:$0xf]
        %v8388 = vld [vmem:[%s8374 + $0x34] sm:$0xf]
        %v8389 = vld [vmem:[%s8374 + $0x38] sm:$0xf]
        %v8390 = vld [vmem:[%s8374 + $0x3c] sm:$0xf]
        %v8407 = vunpack.c.l.b16 %v8375
        %v8408 = vunpack.c.l.b16 %v8376
        %v8409 = vunpack.c.l.b16 %v8377
        %v8410 = vunpack.c.l.b16 %v8378
        %v8411 = vunpack.c.l.b16 %v8379
        %v8412 = vunpack.c.l.b16 %v8380
        %v8413 = vunpack.c.l.b16 %v8381
        %v8414 = vunpack.c.l.b16 %v8382
        %v8415 = vunpack.c.l.b16 %v8383
        %v8416 = vunpack.c.l.b16 %v8384
        %v8417 = vunpack.c.l.b16 %v8385
        %v8418 = vunpack.c.l.b16 %v8386
        %v8419 = vunpack.c.l.b16 %v8387
        %v8420 = vunpack.c.l.b16 %v8388
        %v8421 = vunpack.c.l.b16 %v8389
        %v8422 = vunpack.c.l.b16 %v8390
        %v8423 = vpack.c.b16 %v8408, %v8407
        %v8424 = vpack.c.b16 %v8410, %v8409
        %v8425 = vpack.c.b16 %v8412, %v8411
        %v8426 = vpack.c.b16 %v8414, %v8413
        %v8427 = vpack.c.b16 %v8416, %v8415
        %v8428 = vpack.c.b16 %v8418, %v8417
        %v8429 = vpack.c.b16 %v8420, %v8419
        %v8430 = vpack.c.b16 %v8422, %v8421
        %8439 = vmatprep.subr.bf16.mxu0 0
        %8440 = vmatpush1.bf16.msra.mxu0 %v8430
        %8441 = vmatprep.subr.bf16.mxu0 0
        %8442 = vmatpush1.bf16.msra.mxu0 %v8429
        %8443 = vmatprep.subr.bf16.mxu0 0
        %8444 = vmatpush1.bf16.msra.mxu0 %v8428
        %8445 = vmatprep.subr.bf16.mxu0 0
        %8446 = vmatpush1.bf16.msra.mxu0 %v8427
        %8447 = vmatprep.subr.bf16.mxu0 0
        %8448 = vmatpush1.bf16.msra.mxu0 %v8426
        %8449 = vmatprep.subr.bf16.mxu0 0
        %8450 = vmatpush1.bf16.msra.mxu0 %v8425
        %8451 = vmatprep.subr.bf16.mxu0 0
        %8452 = vmatpush1.bf16.msra.mxu0 %v8424
        %8453 = vmatprep.subr.bf16.mxu0 0
        %8454 = vmatpush1.bf16.msra.mxu0 %v8423
        %8455 = vmatprep.subr.bf16.mxu0 0
        %8456 = vmatpush2.bf16.msra.mxu0 0
        %8457 = vmatprep.subr.bf16.mxu0 0
        %8458 = vmatpush2.bf16.msra.mxu0 0
        %8459 = vmatprep.subr.bf16.mxu0 0
        %8460 = vmatpush2.bf16.msra.mxu0 0
        %8461 = vmatprep.subr.bf16.mxu0 0
        %8462 = vmatpush2.bf16.msra.mxu0 0
        %8463 = vmatprep.subr.bf16.mxu0 0
        %8464 = vmatpush2.bf16.msra.mxu0 0
        %8465 = vmatprep.subr.bf16.mxu0 0
        %8466 = vmatpush2.bf16.msra.mxu0 0
        %8467 = vmatprep.subr.bf16.mxu0 0
        %8468 = vmatpush2.bf16.msra.mxu0 0
        %8469 = vmatprep.subr.bf16.mxu0 0
        %8470 = vmatpush2.bf16.msra.mxu0 0
        %8471 = vmatprep.mubr.bf16.mxu0 0
        %8472 = vmatmul.mubr.bf16.gmra.mxu0 %v8373
        %v8473 = vpop.f32.mrf.mxu0
        %v8474 = vadd.f32 0.0, %v8473
        %v8475 = vpop.f32.mrf.mxu0
        %v8476 = vpop.f32.mrf.mxu0
        %v8477 = vpop.f32.mrf.mxu0
        %8478 = vdwg.mxu0
        %v8479 = vadd.f32 %v8371, %v8474
        %v8480 = vld [vmem:[#allocation3 + $0x6] sm:$0x3f]
        %v8481 = vpack.c.bf16 %v8480, %v8480
        %s8482 = scalar_lea.vmem [#allocation8], 896
        %v8483 = vld [vmem:[%s8482] sm:$0xf]
        %v8484 = vld [vmem:[%s8482 + $0x4] sm:$0xf]
        %v8485 = vld [vmem:[%s8482 + $0x8] sm:$0xf]
        %v8486 = vld [vmem:[%s8482 + $0xc] sm:$0xf]
        %v8487 = vld [vmem:[%s8482 + $0x10] sm:$0xf]
        %v8488 = vld [vmem:[%s8482 + $0x14] sm:$0xf]
        %v8489 = vld [vmem:[%s8482 + $0x18] sm:$0xf]
        %v8490 = vld [vmem:[%s8482 + $0x1c] sm:$0xf]
        %v8491 = vld [vmem:[%s8482 + $0x20] sm:$0xf]
        %v8492 = vld [vmem:[%s8482 + $0x24] sm:$0xf]
        %v8493 = vld [vmem:[%s8482 + $0x28] sm:$0xf]
        %v8494 = vld [vmem:[%s8482 + $0x2c] sm:$0xf]
        %v8495 = vld [vmem:[%s8482 + $0x30] sm:$0xf]
        %v8496 = vld [vmem:[%s8482 + $0x34] sm:$0xf]
        %v8497 = vld [vmem:[%s8482 + $0x38] sm:$0xf]
        %v8498 = vld [vmem:[%s8482 + $0x3c] sm:$0xf]
        %v8515 = vunpack.c.l.b16 %v8483
        %v8516 = vunpack.c.l.b16 %v8484
        %v8517 = vunpack.c.l.b16 %v8485
        %v8518 = vunpack.c.l.b16 %v8486
        %v8519 = vunpack.c.l.b16 %v8487
        %v8520 = vunpack.c.l.b16 %v8488
        %v8521 = vunpack.c.l.b16 %v8489
        %v8522 = vunpack.c.l.b16 %v8490
        %v8523 = vunpack.c.l.b16 %v8491
        %v8524 = vunpack.c.l.b16 %v8492
        %v8525 = vunpack.c.l.b16 %v8493
        %v8526 = vunpack.c.l.b16 %v8494
        %v8527 = vunpack.c.l.b16 %v8495
        %v8528 = vunpack.c.l.b16 %v8496
        %v8529 = vunpack.c.l.b16 %v8497
        %v8530 = vunpack.c.l.b16 %v8498
        %v8531 = vpack.c.b16 %v8516, %v8515
        %v8532 = vpack.c.b16 %v8518, %v8517
        %v8533 = vpack.c.b16 %v8520, %v8519
        %v8534 = vpack.c.b16 %v8522, %v8521
        %v8535 = vpack.c.b16 %v8524, %v8523
        %v8536 = vpack.c.b16 %v8526, %v8525
        %v8537 = vpack.c.b16 %v8528, %v8527
        %v8538 = vpack.c.b16 %v8530, %v8529
        %8547 = vmatprep.subr.bf16.mxu0 0
        %8548 = vmatpush1.bf16.msra.mxu0 %v8538
        %8549 = vmatprep.subr.bf16.mxu0 0
        %8550 = vmatpush1.bf16.msra.mxu0 %v8537
        %8551 = vmatprep.subr.bf16.mxu0 0
        %8552 = vmatpush1.bf16.msra.mxu0 %v8536
        %8553 = vmatprep.subr.bf16.mxu0 0
        %8554 = vmatpush1.bf16.msra.mxu0 %v8535
        %8555 = vmatprep.subr.bf16.mxu0 0
        %8556 = vmatpush1.bf16.msra.mxu0 %v8534
        %8557 = vmatprep.subr.bf16.mxu0 0
        %8558 = vmatpush1.bf16.msra.mxu0 %v8533
        %8559 = vmatprep.subr.bf16.mxu0 0
        %8560 = vmatpush1.bf16.msra.mxu0 %v8532
        %8561 = vmatprep.subr.bf16.mxu0 0
        %8562 = vmatpush1.bf16.msra.mxu0 %v8531
        %8563 = vmatprep.subr.bf16.mxu0 0
        %8564 = vmatpush2.bf16.msra.mxu0 0
        %8565 = vmatprep.subr.bf16.mxu0 0
        %8566 = vmatpush2.bf16.msra.mxu0 0
        %8567 = vmatprep.subr.bf16.mxu0 0
        %8568 = vmatpush2.bf16.msra.mxu0 0
        %8569 = vmatprep.subr.bf16.mxu0 0
        %8570 = vmatpush2.bf16.msra.mxu0 0
        %8571 = vmatprep.subr.bf16.mxu0 0
        %8572 = vmatpush2.bf16.msra.mxu0 0
        %8573 = vmatprep.subr.bf16.mxu0 0
        %8574 = vmatpush2.bf16.msra.mxu0 0
        %8575 = vmatprep.subr.bf16.mxu0 0
        %8576 = vmatpush2.bf16.msra.mxu0 0
        %8577 = vmatprep.subr.bf16.mxu0 0
        %8578 = vmatpush2.bf16.msra.mxu0 0
        %8579 = vmatprep.mubr.bf16.mxu0 0
        %8580 = vmatmul.mubr.bf16.gmra.mxu0 %v8481
        %v8581 = vpop.f32.mrf.mxu0
        %v8582 = vadd.f32 0.0, %v8581
        %v8583 = vpop.f32.mrf.mxu0
        %v8584 = vpop.f32.mrf.mxu0
        %v8585 = vpop.f32.mrf.mxu0
        %8586 = vdwg.mxu0
        %v8587 = vadd.f32 %v8479, %v8582
        %v8588 = vld [vmem:[#allocation3 + $0x7] sm:$0x3f]
        %v8589 = vpack.c.bf16 %v8588, %v8588
        %s8590 = scalar_lea.vmem [#allocation8], 960
        %v8591 = vld [vmem:[%s8590] sm:$0xf]
        %v8592 = vld [vmem:[%s8590 + $0x4] sm:$0xf]
        %v8593 = vld [vmem:[%s8590 + $0x8] sm:$0xf]
        %v8594 = vld [vmem:[%s8590 + $0xc] sm:$0xf]
        %v8595 = vld [vmem:[%s8590 + $0x10] sm:$0xf]
        %v8596 = vld [vmem:[%s8590 + $0x14] sm:$0xf]
        %v8597 = vld [vmem:[%s8590 + $0x18] sm:$0xf]
        %v8598 = vld [vmem:[%s8590 + $0x1c] sm:$0xf]
        %v8599 = vld [vmem:[%s8590 + $0x20] sm:$0xf]
        %v8600 = vld [vmem:[%s8590 + $0x24] sm:$0xf]
        %v8601 = vld [vmem:[%s8590 + $0x28] sm:$0xf]
        %v8602 = vld [vmem:[%s8590 + $0x2c] sm:$0xf]
        %v8603 = vld [vmem:[%s8590 + $0x30] sm:$0xf]
        %v8604 = vld [vmem:[%s8590 + $0x34] sm:$0xf]
        %v8605 = vld [vmem:[%s8590 + $0x38] sm:$0xf]
        %v8606 = vld [vmem:[%s8590 + $0x3c] sm:$0xf]
        %v8623 = vunpack.c.l.b16 %v8591
        %v8624 = vunpack.c.l.b16 %v8592
        %v8625 = vunpack.c.l.b16 %v8593
        %v8626 = vunpack.c.l.b16 %v8594
        %v8627 = vunpack.c.l.b16 %v8595
        %v8628 = vunpack.c.l.b16 %v8596
        %v8629 = vunpack.c.l.b16 %v8597
        %v8630 = vunpack.c.l.b16 %v8598
        %v8631 = vunpack.c.l.b16 %v8599
        %v8632 = vunpack.c.l.b16 %v8600
        %v8633 = vunpack.c.l.b16 %v8601
        %v8634 = vunpack.c.l.b16 %v8602
        %v8635 = vunpack.c.l.b16 %v8603
        %v8636 = vunpack.c.l.b16 %v8604
        %v8637 = vunpack.c.l.b16 %v8605
        %v8638 = vunpack.c.l.b16 %v8606
        %v8639 = vpack.c.b16 %v8624, %v8623
        %v8640 = vpack.c.b16 %v8626, %v8625
        %v8641 = vpack.c.b16 %v8628, %v8627
        %v8642 = vpack.c.b16 %v8630, %v8629
        %v8643 = vpack.c.b16 %v8632, %v8631
        %v8644 = vpack.c.b16 %v8634, %v8633
        %v8645 = vpack.c.b16 %v8636, %v8635
        %v8646 = vpack.c.b16 %v8638, %v8637
        %8655 = vmatprep.subr.bf16.mxu0 0
        %8656 = vmatpush1.bf16.msra.mxu0 %v8646
        %8657 = vmatprep.subr.bf16.mxu0 0
        %8658 = vmatpush1.bf16.msra.mxu0 %v8645
        %8659 = vmatprep.subr.bf16.mxu0 0
        %8660 = vmatpush1.bf16.msra.mxu0 %v8644
        %8661 = vmatprep.subr.bf16.mxu0 0
        %8662 = vmatpush1.bf16.msra.mxu0 %v8643
        %8663 = vmatprep.subr.bf16.mxu0 0
        %8664 = vmatpush1.bf16.msra.mxu0 %v8642
        %8665 = vmatprep.subr.bf16.mxu0 0
        %8666 = vmatpush1.bf16.msra.mxu0 %v8641
        %8667 = vmatprep.subr.bf16.mxu0 0
        %8668 = vmatpush1.bf16.msra.mxu0 %v8640
        %8669 = vmatprep.subr.bf16.mxu0 0
        %8670 = vmatpush1.bf16.msra.mxu0 %v8639
        %8671 = vmatprep.subr.bf16.mxu0 0
        %8672 = vmatpush2.bf16.msra.mxu0 0
        %8673 = vmatprep.subr.bf16.mxu0 0
        %8674 = vmatpush2.bf16.msra.mxu0 0
        %8675 = vmatprep.subr.bf16.mxu0 0
        %8676 = vmatpush2.bf16.msra.mxu0 0
        %8677 = vmatprep.subr.bf16.mxu0 0
        %8678 = vmatpush2.bf16.msra.mxu0 0
        %8679 = vmatprep.subr.bf16.mxu0 0
        %8680 = vmatpush2.bf16.msra.mxu0 0
        %8681 = vmatprep.subr.bf16.mxu0 0
        %8682 = vmatpush2.bf16.msra.mxu0 0
        %8683 = vmatprep.subr.bf16.mxu0 0
        %8684 = vmatpush2.bf16.msra.mxu0 0
        %8685 = vmatprep.subr.bf16.mxu0 0
        %8686 = vmatpush2.bf16.msra.mxu0 0
        %8687 = vmatprep.mubr.bf16.mxu0 0
        %8688 = vmatmul.mubr.bf16.gmra.mxu0 %v8589
        %v8689 = vpop.f32.mrf.mxu0
        %v8690 = vadd.f32 0.0, %v8689
        %v8691 = vpop.f32.mrf.mxu0
        %v8692 = vpop.f32.mrf.mxu0
        %v8693 = vpop.f32.mrf.mxu0
        %8694 = vdwg.mxu0
        %v8695 = vadd.f32 %v8587, %v8690
        %s8696 = scalar_lea.vmem %s12, 1
        %v8697 = vld [vmem:[%s8696] sm:$0x1]
        %v8699 = vlaneseq
        %v8700 = vshrl.u32 %v8699, 7
        %v8701 = vsub.s32 0, %v8700
        %v8702 = vrot.slane %v8697, %v8701
        %v8704 = vmul.f32 %v8695, %v8702
        %s8705 = scalar_lea.vmem %s13, 1
        %v8706 = vld [vmem:[%s8705] sm:$0x1]
        %v8708 = vlaneseq
        %v8709 = vshrl.u32 %v8708, 7
        %v8710 = vsub.s32 0, %v8709
        %v8711 = vrot.slane %v8706, %v8710
        %v8713 = vadd.f32 %v8704, %v8711
        %v8714 = vmax.f32 %v8713, 0.0
        %8715 = vst [vmem:[#allocation3 + $0x3] sm:$0x3f] %v8714
        %v8716 = vld [vmem:[#allocation3] sm:$0x3f]
        %v8717 = vpack.c.bf16 %v8716, %v8716
        %s8718 = scalar_lea.vmem [#allocation8], 1024
        %v8719 = vld [vmem:[%s8718] sm:$0xf]
        %v8720 = vld [vmem:[%s8718 + $0x4] sm:$0xf]
        %v8721 = vld [vmem:[%s8718 + $0x8] sm:$0xf]
        %v8722 = vld [vmem:[%s8718 + $0xc] sm:$0xf]
        %v8723 = vld [vmem:[%s8718 + $0x10] sm:$0xf]
        %v8724 = vld [vmem:[%s8718 + $0x14] sm:$0xf]
        %v8725 = vld [vmem:[%s8718 + $0x18] sm:$0xf]
        %v8726 = vld [vmem:[%s8718 + $0x1c] sm:$0xf]
        %v8727 = vld [vmem:[%s8718 + $0x20] sm:$0xf]
        %v8728 = vld [vmem:[%s8718 + $0x24] sm:$0xf]
        %v8729 = vld [vmem:[%s8718 + $0x28] sm:$0xf]
        %v8730 = vld [vmem:[%s8718 + $0x2c] sm:$0xf]
        %v8731 = vld [vmem:[%s8718 + $0x30] sm:$0xf]
        %v8732 = vld [vmem:[%s8718 + $0x34] sm:$0xf]
        %v8733 = vld [vmem:[%s8718 + $0x38] sm:$0xf]
        %v8734 = vld [vmem:[%s8718 + $0x3c] sm:$0xf]
        %v8735 = vld [vmem:[#allocation3 + $0x1] sm:$0x3f]
        %v8736 = vpack.c.bf16 %v8735, %v8735
        %s8737 = scalar_lea.vmem [#allocation8], 1088
        %v8738 = vld [vmem:[%s8737] sm:$0xf]
        %v8739 = vld [vmem:[%s8737 + $0x4] sm:$0xf]
        %v8740 = vld [vmem:[%s8737 + $0x8] sm:$0xf]
        %v8741 = vld [vmem:[%s8737 + $0xc] sm:$0xf]
        %v8742 = vld [vmem:[%s8737 + $0x10] sm:$0xf]
        %v8743 = vld [vmem:[%s8737 + $0x14] sm:$0xf]
        %v8744 = vld [vmem:[%s8737 + $0x18] sm:$0xf]
        %v8745 = vld [vmem:[%s8737 + $0x1c] sm:$0xf]
        %v8746 = vld [vmem:[%s8737 + $0x20] sm:$0xf]
        %v8747 = vld [vmem:[%s8737 + $0x24] sm:$0xf]
        %v8748 = vld [vmem:[%s8737 + $0x28] sm:$0xf]
        %v8749 = vld [vmem:[%s8737 + $0x2c] sm:$0xf]
        %v8750 = vld [vmem:[%s8737 + $0x30] sm:$0xf]
        %v8751 = vld [vmem:[%s8737 + $0x34] sm:$0xf]
        %v8752 = vld [vmem:[%s8737 + $0x38] sm:$0xf]
        %v8753 = vld [vmem:[%s8737 + $0x3c] sm:$0xf]
        %v8770 = vunpack.c.l.b16 %v8738
        %v8771 = vunpack.c.l.b16 %v8739
        %v8772 = vunpack.c.l.b16 %v8740
        %v8773 = vunpack.c.l.b16 %v8741
        %v8774 = vunpack.c.l.b16 %v8742
        %v8775 = vunpack.c.l.b16 %v8743
        %v8776 = vunpack.c.l.b16 %v8744
        %v8777 = vunpack.c.l.b16 %v8745
        %v8778 = vunpack.c.l.b16 %v8746
        %v8779 = vunpack.c.l.b16 %v8747
        %v8780 = vunpack.c.l.b16 %v8748
        %v8781 = vunpack.c.l.b16 %v8749
        %v8782 = vunpack.c.l.b16 %v8750
        %v8783 = vunpack.c.l.b16 %v8751
        %v8784 = vunpack.c.l.b16 %v8752
        %v8785 = vunpack.c.l.b16 %v8753
        %v8786 = vpack.c.b16 %v8771, %v8770
        %v8787 = vpack.c.b16 %v8773, %v8772
        %v8788 = vpack.c.b16 %v8775, %v8774
        %v8789 = vpack.c.b16 %v8777, %v8776
        %v8790 = vpack.c.b16 %v8779, %v8778
        %v8791 = vpack.c.b16 %v8781, %v8780
        %v8792 = vpack.c.b16 %v8783, %v8782
        %v8793 = vpack.c.b16 %v8785, %v8784
        %8802 = vmatprep.subr.bf16.mxu0 0
        %8803 = vmatpush1.bf16.msra.mxu0 %v8793
        %8804 = vmatprep.subr.bf16.mxu0 0
        %8805 = vmatpush1.bf16.msra.mxu0 %v8792
        %8806 = vmatprep.subr.bf16.mxu0 0
        %8807 = vmatpush1.bf16.msra.mxu0 %v8791
        %8808 = vmatprep.subr.bf16.mxu0 0
        %8809 = vmatpush1.bf16.msra.mxu0 %v8790
        %8810 = vmatprep.subr.bf16.mxu0 0
        %8811 = vmatpush1.bf16.msra.mxu0 %v8789
        %8812 = vmatprep.subr.bf16.mxu0 0
        %8813 = vmatpush1.bf16.msra.mxu0 %v8788
        %8814 = vmatprep.subr.bf16.mxu0 0
        %8815 = vmatpush1.bf16.msra.mxu0 %v8787
        %8816 = vmatprep.subr.bf16.mxu0 0
        %8817 = vmatpush1.bf16.msra.mxu0 %v8786
        %8818 = vmatprep.subr.bf16.mxu0 0
        %8819 = vmatpush2.bf16.msra.mxu0 0
        %8820 = vmatprep.subr.bf16.mxu0 0
        %8821 = vmatpush2.bf16.msra.mxu0 0
        %8822 = vmatprep.subr.bf16.mxu0 0
        %8823 = vmatpush2.bf16.msra.mxu0 0
        %8824 = vmatprep.subr.bf16.mxu0 0
        %8825 = vmatpush2.bf16.msra.mxu0 0
        %8826 = vmatprep.subr.bf16.mxu0 0
        %8827 = vmatpush2.bf16.msra.mxu0 0
        %8828 = vmatprep.subr.bf16.mxu0 0
        %8829 = vmatpush2.bf16.msra.mxu0 0
        %8830 = vmatprep.subr.bf16.mxu0 0
        %8831 = vmatpush2.bf16.msra.mxu0 0
        %8832 = vmatprep.subr.bf16.mxu0 0
        %8833 = vmatpush2.bf16.msra.mxu0 0
        %8834 = vmatprep.mubr.bf16.mxu0 0
        %8835 = vmatmul.mubr.bf16.gmra.mxu0 %v8736
        %v8836 = vpop.f32.mrf.mxu0
        %v8837 = vadd.f32 0.0, %v8836
        %v8838 = vpop.f32.mrf.mxu0
        %v8839 = vpop.f32.mrf.mxu0
        %v8840 = vpop.f32.mrf.mxu0
        %8841 = vdwg.mxu0
        %v8858 = vunpack.c.l.b16 %v8719
        %v8859 = vunpack.c.l.b16 %v8720
        %v8860 = vunpack.c.l.b16 %v8721
        %v8861 = vunpack.c.l.b16 %v8722
        %v8862 = vunpack.c.l.b16 %v8723
        %v8863 = vunpack.c.l.b16 %v8724
        %v8864 = vunpack.c.l.b16 %v8725
        %v8865 = vunpack.c.l.b16 %v8726
        %v8866 = vunpack.c.l.b16 %v8727
        %v8867 = vunpack.c.l.b16 %v8728
        %v8868 = vunpack.c.l.b16 %v8729
        %v8869 = vunpack.c.l.b16 %v8730
        %v8870 = vunpack.c.l.b16 %v8731
        %v8871 = vunpack.c.l.b16 %v8732
        %v8872 = vunpack.c.l.b16 %v8733
        %v8873 = vunpack.c.l.b16 %v8734
        %v8874 = vpack.c.b16 %v8859, %v8858
        %v8875 = vpack.c.b16 %v8861, %v8860
        %v8876 = vpack.c.b16 %v8863, %v8862
        %v8877 = vpack.c.b16 %v8865, %v8864
        %v8878 = vpack.c.b16 %v8867, %v8866
        %v8879 = vpack.c.b16 %v8869, %v8868
        %v8880 = vpack.c.b16 %v8871, %v8870
        %v8881 = vpack.c.b16 %v8873, %v8872
        %8890 = vmatprep.subr.bf16.mxu0 0
        %8891 = vmatpush1.bf16.msra.mxu0 %v8881
        %8892 = vmatprep.subr.bf16.mxu0 0
        %8893 = vmatpush1.bf16.msra.mxu0 %v8880
        %8894 = vmatprep.subr.bf16.mxu0 0
        %8895 = vmatpush1.bf16.msra.mxu0 %v8879
        %8896 = vmatprep.subr.bf16.mxu0 0
        %8897 = vmatpush1.bf16.msra.mxu0 %v8878
        %8898 = vmatprep.subr.bf16.mxu0 0
        %8899 = vmatpush1.bf16.msra.mxu0 %v8877
        %8900 = vmatprep.subr.bf16.mxu0 0
        %8901 = vmatpush1.bf16.msra.mxu0 %v8876
        %8902 = vmatprep.subr.bf16.mxu0 0
        %8903 = vmatpush1.bf16.msra.mxu0 %v8875
        %8904 = vmatprep.subr.bf16.mxu0 0
        %8905 = vmatpush1.bf16.msra.mxu0 %v8874
        %8906 = vmatprep.subr.bf16.mxu0 0
        %8907 = vmatpush2.bf16.msra.mxu0 0
        %8908 = vmatprep.subr.bf16.mxu0 0
        %8909 = vmatpush2.bf16.msra.mxu0 0
        %8910 = vmatprep.subr.bf16.mxu0 0
        %8911 = vmatpush2.bf16.msra.mxu0 0
        %8912 = vmatprep.subr.bf16.mxu0 0
        %8913 = vmatpush2.bf16.msra.mxu0 0
        %8914 = vmatprep.subr.bf16.mxu0 0
        %8915 = vmatpush2.bf16.msra.mxu0 0
        %8916 = vmatprep.subr.bf16.mxu0 0
        %8917 = vmatpush2.bf16.msra.mxu0 0
        %8918 = vmatprep.subr.bf16.mxu0 0
        %8919 = vmatpush2.bf16.msra.mxu0 0
        %8920 = vmatprep.subr.bf16.mxu0 0
        %8921 = vmatpush2.bf16.msra.mxu0 0
        %8922 = vmatprep.mubr.bf16.mxu0 0
        %8923 = vmatmul.mubr.bf16.gmra.mxu0 %v8717
        %v8924 = vpop.f32.mrf.mxu0
        %v8925 = vadd.f32 %v8837, %v8924
        %v8926 = vpop.f32.mrf.mxu0
        %v8927 = vpop.f32.mrf.mxu0
        %v8928 = vpop.f32.mrf.mxu0
        %8929 = vdwg.mxu0
        %v8930 = vld [vmem:[#allocation3 + $0x2] sm:$0x3f]
        %v8931 = vpack.c.bf16 %v8930, %v8930
        %s8932 = scalar_lea.vmem [#allocation8], 1152
        %v8933 = vld [vmem:[%s8932] sm:$0xf]
        %v8934 = vld [vmem:[%s8932 + $0x4] sm:$0xf]
        %v8935 = vld [vmem:[%s8932 + $0x8] sm:$0xf]
        %v8936 = vld [vmem:[%s8932 + $0xc] sm:$0xf]
        %v8937 = vld [vmem:[%s8932 + $0x10] sm:$0xf]
        %v8938 = vld [vmem:[%s8932 + $0x14] sm:$0xf]
        %v8939 = vld [vmem:[%s8932 + $0x18] sm:$0xf]
        %v8940 = vld [vmem:[%s8932 + $0x1c] sm:$0xf]
        %v8941 = vld [vmem:[%s8932 + $0x20] sm:$0xf]
        %v8942 = vld [vmem:[%s8932 + $0x24] sm:$0xf]
        %v8943 = vld [vmem:[%s8932 + $0x28] sm:$0xf]
        %v8944 = vld [vmem:[%s8932 + $0x2c] sm:$0xf]
        %v8945 = vld [vmem:[%s8932 + $0x30] sm:$0xf]
        %v8946 = vld [vmem:[%s8932 + $0x34] sm:$0xf]
        %v8947 = vld [vmem:[%s8932 + $0x38] sm:$0xf]
        %v8948 = vld [vmem:[%s8932 + $0x3c] sm:$0xf]
        %v8965 = vunpack.c.l.b16 %v8933
        %v8966 = vunpack.c.l.b16 %v8934
        %v8967 = vunpack.c.l.b16 %v8935
        %v8968 = vunpack.c.l.b16 %v8936
        %v8969 = vunpack.c.l.b16 %v8937
        %v8970 = vunpack.c.l.b16 %v8938
        %v8971 = vunpack.c.l.b16 %v8939
        %v8972 = vunpack.c.l.b16 %v8940
        %v8973 = vunpack.c.l.b16 %v8941
        %v8974 = vunpack.c.l.b16 %v8942
        %v8975 = vunpack.c.l.b16 %v8943
        %v8976 = vunpack.c.l.b16 %v8944
        %v8977 = vunpack.c.l.b16 %v8945
        %v8978 = vunpack.c.l.b16 %v8946
        %v8979 = vunpack.c.l.b16 %v8947
        %v8980 = vunpack.c.l.b16 %v8948
        %v8981 = vpack.c.b16 %v8966, %v8965
        %v8982 = vpack.c.b16 %v8968, %v8967
        %v8983 = vpack.c.b16 %v8970, %v8969
        %v8984 = vpack.c.b16 %v8972, %v8971
        %v8985 = vpack.c.b16 %v8974, %v8973
        %v8986 = vpack.c.b16 %v8976, %v8975
        %v8987 = vpack.c.b16 %v8978, %v8977
        %v8988 = vpack.c.b16 %v8980, %v8979
        %8997 = vmatprep.subr.bf16.mxu0 0
        %8998 = vmatpush1.bf16.msra.mxu0 %v8988
        %8999 = vmatprep.subr.bf16.mxu0 0
        %9000 = vmatpush1.bf16.msra.mxu0 %v8987
        %9001 = vmatprep.subr.bf16.mxu0 0
        %9002 = vmatpush1.bf16.msra.mxu0 %v8986
        %9003 = vmatprep.subr.bf16.mxu0 0
        %9004 = vmatpush1.bf16.msra.mxu0 %v8985
        %9005 = vmatprep.subr.bf16.mxu0 0
        %9006 = vmatpush1.bf16.msra.mxu0 %v8984
        %9007 = vmatprep.subr.bf16.mxu0 0
        %9008 = vmatpush1.bf16.msra.mxu0 %v8983
        %9009 = vmatprep.subr.bf16.mxu0 0
        %9010 = vmatpush1.bf16.msra.mxu0 %v8982
        %9011 = vmatprep.subr.bf16.mxu0 0
        %9012 = vmatpush1.bf16.msra.mxu0 %v8981
        %9013 = vmatprep.subr.bf16.mxu0 0
        %9014 = vmatpush2.bf16.msra.mxu0 0
        %9015 = vmatprep.subr.bf16.mxu0 0
        %9016 = vmatpush2.bf16.msra.mxu0 0
        %9017 = vmatprep.subr.bf16.mxu0 0
        %9018 = vmatpush2.bf16.msra.mxu0 0
        %9019 = vmatprep.subr.bf16.mxu0 0
        %9020 = vmatpush2.bf16.msra.mxu0 0
        %9021 = vmatprep.subr.bf16.mxu0 0
        %9022 = vmatpush2.bf16.msra.mxu0 0
        %9023 = vmatprep.subr.bf16.mxu0 0
        %9024 = vmatpush2.bf16.msra.mxu0 0
        %9025 = vmatprep.subr.bf16.mxu0 0
        %9026 = vmatpush2.bf16.msra.mxu0 0
        %9027 = vmatprep.subr.bf16.mxu0 0
        %9028 = vmatpush2.bf16.msra.mxu0 0
        %9029 = vmatprep.mubr.bf16.mxu0 0
        %9030 = vmatmul.mubr.bf16.gmra.mxu0 %v8931
        %v9031 = vpop.f32.mrf.mxu0
        %v9032 = vadd.f32 0.0, %v9031
        %v9033 = vpop.f32.mrf.mxu0
        %v9034 = vpop.f32.mrf.mxu0
        %v9035 = vpop.f32.mrf.mxu0
        %9036 = vdwg.mxu0
        %v9037 = vadd.f32 %v8925, %v9032
        %v9038 = vld [vmem:[#allocation3 + $0x3] sm:$0x3f]
        %v9039 = vpack.c.bf16 %v9038, %v9038
        %s9040 = scalar_lea.vmem [#allocation8], 1216
        %v9041 = vld [vmem:[%s9040] sm:$0xf]
        %v9042 = vld [vmem:[%s9040 + $0x4] sm:$0xf]
        %v9043 = vld [vmem:[%s9040 + $0x8] sm:$0xf]
        %v9044 = vld [vmem:[%s9040 + $0xc] sm:$0xf]
        %v9045 = vld [vmem:[%s9040 + $0x10] sm:$0xf]
        %v9046 = vld [vmem:[%s9040 + $0x14] sm:$0xf]
        %v9047 = vld [vmem:[%s9040 + $0x18] sm:$0xf]
        %v9048 = vld [vmem:[%s9040 + $0x1c] sm:$0xf]
        %v9049 = vld [vmem:[%s9040 + $0x20] sm:$0xf]
        %v9050 = vld [vmem:[%s9040 + $0x24] sm:$0xf]
        %v9051 = vld [vmem:[%s9040 + $0x28] sm:$0xf]
        %v9052 = vld [vmem:[%s9040 + $0x2c] sm:$0xf]
        %v9053 = vld [vmem:[%s9040 + $0x30] sm:$0xf]
        %v9054 = vld [vmem:[%s9040 + $0x34] sm:$0xf]
        %v9055 = vld [vmem:[%s9040 + $0x38] sm:$0xf]
        %v9056 = vld [vmem:[%s9040 + $0x3c] sm:$0xf]
        %v9073 = vunpack.c.l.b16 %v9041
        %v9074 = vunpack.c.l.b16 %v9042
        %v9075 = vunpack.c.l.b16 %v9043
        %v9076 = vunpack.c.l.b16 %v9044
        %v9077 = vunpack.c.l.b16 %v9045
        %v9078 = vunpack.c.l.b16 %v9046
        %v9079 = vunpack.c.l.b16 %v9047
        %v9080 = vunpack.c.l.b16 %v9048
        %v9081 = vunpack.c.l.b16 %v9049
        %v9082 = vunpack.c.l.b16 %v9050
        %v9083 = vunpack.c.l.b16 %v9051
        %v9084 = vunpack.c.l.b16 %v9052
        %v9085 = vunpack.c.l.b16 %v9053
        %v9086 = vunpack.c.l.b16 %v9054
        %v9087 = vunpack.c.l.b16 %v9055
        %v9088 = vunpack.c.l.b16 %v9056
        %v9089 = vpack.c.b16 %v9074, %v9073
        %v9090 = vpack.c.b16 %v9076, %v9075
        %v9091 = vpack.c.b16 %v9078, %v9077
        %v9092 = vpack.c.b16 %v9080, %v9079
        %v9093 = vpack.c.b16 %v9082, %v9081
        %v9094 = vpack.c.b16 %v9084, %v9083
        %v9095 = vpack.c.b16 %v9086, %v9085
        %v9096 = vpack.c.b16 %v9088, %v9087
        %9105 = vmatprep.subr.bf16.mxu0 0
        %9106 = vmatpush1.bf16.msra.mxu0 %v9096
        %9107 = vmatprep.subr.bf16.mxu0 0
        %9108 = vmatpush1.bf16.msra.mxu0 %v9095
        %9109 = vmatprep.subr.bf16.mxu0 0
        %9110 = vmatpush1.bf16.msra.mxu0 %v9094
        %9111 = vmatprep.subr.bf16.mxu0 0
        %9112 = vmatpush1.bf16.msra.mxu0 %v9093
        %9113 = vmatprep.subr.bf16.mxu0 0
        %9114 = vmatpush1.bf16.msra.mxu0 %v9092
        %9115 = vmatprep.subr.bf16.mxu0 0
        %9116 = vmatpush1.bf16.msra.mxu0 %v9091
        %9117 = vmatprep.subr.bf16.mxu0 0
        %9118 = vmatpush1.bf16.msra.mxu0 %v9090
        %9119 = vmatprep.subr.bf16.mxu0 0
        %9120 = vmatpush1.bf16.msra.mxu0 %v9089
        %9121 = vmatprep.subr.bf16.mxu0 0
        %9122 = vmatpush2.bf16.msra.mxu0 0
        %9123 = vmatprep.subr.bf16.mxu0 0
        %9124 = vmatpush2.bf16.msra.mxu0 0
        %9125 = vmatprep.subr.bf16.mxu0 0
        %9126 = vmatpush2.bf16.msra.mxu0 0
        %9127 = vmatprep.subr.bf16.mxu0 0
        %9128 = vmatpush2.bf16.msra.mxu0 0
        %9129 = vmatprep.subr.bf16.mxu0 0
        %9130 = vmatpush2.bf16.msra.mxu0 0
        %9131 = vmatprep.subr.bf16.mxu0 0
        %9132 = vmatpush2.bf16.msra.mxu0 0
        %9133 = vmatprep.subr.bf16.mxu0 0
        %9134 = vmatpush2.bf16.msra.mxu0 0
        %9135 = vmatprep.subr.bf16.mxu0 0
        %9136 = vmatpush2.bf16.msra.mxu0 0
        %9137 = vmatprep.mubr.bf16.mxu0 0
        %9138 = vmatmul.mubr.bf16.gmra.mxu0 %v9039
        %v9139 = vpop.f32.mrf.mxu0
        %v9140 = vadd.f32 0.0, %v9139
        %v9141 = vpop.f32.mrf.mxu0
        %v9142 = vpop.f32.mrf.mxu0
        %v9143 = vpop.f32.mrf.mxu0
        %9144 = vdwg.mxu0
        %v9145 = vadd.f32 %v9037, %v9140
        %v9146 = vld [vmem:[#allocation3 + $0x4] sm:$0x3f]
        %v9147 = vpack.c.bf16 %v9146, %v9146
        %s9148 = scalar_lea.vmem [#allocation8], 1280
        %v9149 = vld [vmem:[%s9148] sm:$0xf]
        %v9150 = vld [vmem:[%s9148 + $0x4] sm:$0xf]
        %v9151 = vld [vmem:[%s9148 + $0x8] sm:$0xf]
        %v9152 = vld [vmem:[%s9148 + $0xc] sm:$0xf]
        %v9153 = vld [vmem:[%s9148 + $0x10] sm:$0xf]
        %v9154 = vld [vmem:[%s9148 + $0x14] sm:$0xf]
        %v9155 = vld [vmem:[%s9148 + $0x18] sm:$0xf]
        %v9156 = vld [vmem:[%s9148 + $0x1c] sm:$0xf]
        %v9157 = vld [vmem:[%s9148 + $0x20] sm:$0xf]
        %v9158 = vld [vmem:[%s9148 + $0x24] sm:$0xf]
        %v9159 = vld [vmem:[%s9148 + $0x28] sm:$0xf]
        %v9160 = vld [vmem:[%s9148 + $0x2c] sm:$0xf]
        %v9161 = vld [vmem:[%s9148 + $0x30] sm:$0xf]
        %v9162 = vld [vmem:[%s9148 + $0x34] sm:$0xf]
        %v9163 = vld [vmem:[%s9148 + $0x38] sm:$0xf]
        %v9164 = vld [vmem:[%s9148 + $0x3c] sm:$0xf]
        %v9181 = vunpack.c.l.b16 %v9149
        %v9182 = vunpack.c.l.b16 %v9150
        %v9183 = vunpack.c.l.b16 %v9151
        %v9184 = vunpack.c.l.b16 %v9152
        %v9185 = vunpack.c.l.b16 %v9153
        %v9186 = vunpack.c.l.b16 %v9154
        %v9187 = vunpack.c.l.b16 %v9155
        %v9188 = vunpack.c.l.b16 %v9156
        %v9189 = vunpack.c.l.b16 %v9157
        %v9190 = vunpack.c.l.b16 %v9158
        %v9191 = vunpack.c.l.b16 %v9159
        %v9192 = vunpack.c.l.b16 %v9160
        %v9193 = vunpack.c.l.b16 %v9161
        %v9194 = vunpack.c.l.b16 %v9162
        %v9195 = vunpack.c.l.b16 %v9163
        %v9196 = vunpack.c.l.b16 %v9164
        %v9197 = vpack.c.b16 %v9182, %v9181
        %v9198 = vpack.c.b16 %v9184, %v9183
        %v9199 = vpack.c.b16 %v9186, %v9185
        %v9200 = vpack.c.b16 %v9188, %v9187
        %v9201 = vpack.c.b16 %v9190, %v9189
        %v9202 = vpack.c.b16 %v9192, %v9191
        %v9203 = vpack.c.b16 %v9194, %v9193
        %v9204 = vpack.c.b16 %v9196, %v9195
        %9213 = vmatprep.subr.bf16.mxu0 0
        %9214 = vmatpush1.bf16.msra.mxu0 %v9204
        %9215 = vmatprep.subr.bf16.mxu0 0
        %9216 = vmatpush1.bf16.msra.mxu0 %v9203
        %9217 = vmatprep.subr.bf16.mxu0 0
        %9218 = vmatpush1.bf16.msra.mxu0 %v9202
        %9219 = vmatprep.subr.bf16.mxu0 0
        %9220 = vmatpush1.bf16.msra.mxu0 %v9201
        %9221 = vmatprep.subr.bf16.mxu0 0
        %9222 = vmatpush1.bf16.msra.mxu0 %v9200
        %9223 = vmatprep.subr.bf16.mxu0 0
        %9224 = vmatpush1.bf16.msra.mxu0 %v9199
        %9225 = vmatprep.subr.bf16.mxu0 0
        %9226 = vmatpush1.bf16.msra.mxu0 %v9198
        %9227 = vmatprep.subr.bf16.mxu0 0
        %9228 = vmatpush1.bf16.msra.mxu0 %v9197
        %9229 = vmatprep.subr.bf16.mxu0 0
        %9230 = vmatpush2.bf16.msra.mxu0 0
        %9231 = vmatprep.subr.bf16.mxu0 0
        %9232 = vmatpush2.bf16.msra.mxu0 0
        %9233 = vmatprep.subr.bf16.mxu0 0
        %9234 = vmatpush2.bf16.msra.mxu0 0
        %9235 = vmatprep.subr.bf16.mxu0 0
        %9236 = vmatpush2.bf16.msra.mxu0 0
        %9237 = vmatprep.subr.bf16.mxu0 0
        %9238 = vmatpush2.bf16.msra.mxu0 0
        %9239 = vmatprep.subr.bf16.mxu0 0
        %9240 = vmatpush2.bf16.msra.mxu0 0
        %9241 = vmatprep.subr.bf16.mxu0 0
        %9242 = vmatpush2.bf16.msra.mxu0 0
        %9243 = vmatprep.subr.bf16.mxu0 0
        %9244 = vmatpush2.bf16.msra.mxu0 0
        %9245 = vmatprep.mubr.bf16.mxu0 0
        %9246 = vmatmul.mubr.bf16.gmra.mxu0 %v9147
        %v9247 = vpop.f32.mrf.mxu0
        %v9248 = vadd.f32 0.0, %v9247
        %v9249 = vpop.f32.mrf.mxu0
        %v9250 = vpop.f32.mrf.mxu0
        %v9251 = vpop.f32.mrf.mxu0
        %9252 = vdwg.mxu0
        %v9253 = vadd.f32 %v9145, %v9248
        %v9254 = vld [vmem:[#allocation3 + $0x5] sm:$0x3f]
        %v9255 = vpack.c.bf16 %v9254, %v9254
        %s9256 = scalar_lea.vmem [#allocation8], 1344
        %v9257 = vld [vmem:[%s9256] sm:$0xf]
        %v9258 = vld [vmem:[%s9256 + $0x4] sm:$0xf]
        %v9259 = vld [vmem:[%s9256 + $0x8] sm:$0xf]
        %v9260 = vld [vmem:[%s9256 + $0xc] sm:$0xf]
        %v9261 = vld [vmem:[%s9256 + $0x10] sm:$0xf]
        %v9262 = vld [vmem:[%s9256 + $0x14] sm:$0xf]
        %v9263 = vld [vmem:[%s9256 + $0x18] sm:$0xf]
        %v9264 = vld [vmem:[%s9256 + $0x1c] sm:$0xf]
        %v9265 = vld [vmem:[%s9256 + $0x20] sm:$0xf]
        %v9266 = vld [vmem:[%s9256 + $0x24] sm:$0xf]
        %v9267 = vld [vmem:[%s9256 + $0x28] sm:$0xf]
        %v9268 = vld [vmem:[%s9256 + $0x2c] sm:$0xf]
        %v9269 = vld [vmem:[%s9256 + $0x30] sm:$0xf]
        %v9270 = vld [vmem:[%s9256 + $0x34] sm:$0xf]
        %v9271 = vld [vmem:[%s9256 + $0x38] sm:$0xf]
        %v9272 = vld [vmem:[%s9256 + $0x3c] sm:$0xf]
        %v9289 = vunpack.c.l.b16 %v9257
        %v9290 = vunpack.c.l.b16 %v9258
        %v9291 = vunpack.c.l.b16 %v9259
        %v9292 = vunpack.c.l.b16 %v9260
        %v9293 = vunpack.c.l.b16 %v9261
        %v9294 = vunpack.c.l.b16 %v9262
        %v9295 = vunpack.c.l.b16 %v9263
        %v9296 = vunpack.c.l.b16 %v9264
        %v9297 = vunpack.c.l.b16 %v9265
        %v9298 = vunpack.c.l.b16 %v9266
        %v9299 = vunpack.c.l.b16 %v9267
        %v9300 = vunpack.c.l.b16 %v9268
        %v9301 = vunpack.c.l.b16 %v9269
        %v9302 = vunpack.c.l.b16 %v9270
        %v9303 = vunpack.c.l.b16 %v9271
        %v9304 = vunpack.c.l.b16 %v9272
        %v9305 = vpack.c.b16 %v9290, %v9289
        %v9306 = vpack.c.b16 %v9292, %v9291
        %v9307 = vpack.c.b16 %v9294, %v9293
        %v9308 = vpack.c.b16 %v9296, %v9295
        %v9309 = vpack.c.b16 %v9298, %v9297
        %v9310 = vpack.c.b16 %v9300, %v9299
        %v9311 = vpack.c.b16 %v9302, %v9301
        %v9312 = vpack.c.b16 %v9304, %v9303
        %9321 = vmatprep.subr.bf16.mxu0 0
        %9322 = vmatpush1.bf16.msra.mxu0 %v9312
        %9323 = vmatprep.subr.bf16.mxu0 0
        %9324 = vmatpush1.bf16.msra.mxu0 %v9311
        %9325 = vmatprep.subr.bf16.mxu0 0
        %9326 = vmatpush1.bf16.msra.mxu0 %v9310
        %9327 = vmatprep.subr.bf16.mxu0 0
        %9328 = vmatpush1.bf16.msra.mxu0 %v9309
        %9329 = vmatprep.subr.bf16.mxu0 0
        %9330 = vmatpush1.bf16.msra.mxu0 %v9308
        %9331 = vmatprep.subr.bf16.mxu0 0
        %9332 = vmatpush1.bf16.msra.mxu0 %v9307
        %9333 = vmatprep.subr.bf16.mxu0 0
        %9334 = vmatpush1.bf16.msra.mxu0 %v9306
        %9335 = vmatprep.subr.bf16.mxu0 0
        %9336 = vmatpush1.bf16.msra.mxu0 %v9305
        %9337 = vmatprep.subr.bf16.mxu0 0
        %9338 = vmatpush2.bf16.msra.mxu0 0
        %9339 = vmatprep.subr.bf16.mxu0 0
        %9340 = vmatpush2.bf16.msra.mxu0 0
        %9341 = vmatprep.subr.bf16.mxu0 0
        %9342 = vmatpush2.bf16.msra.mxu0 0
        %9343 = vmatprep.subr.bf16.mxu0 0
        %9344 = vmatpush2.bf16.msra.mxu0 0
        %9345 = vmatprep.subr.bf16.mxu0 0
        %9346 = vmatpush2.bf16.msra.mxu0 0
        %9347 = vmatprep.subr.bf16.mxu0 0
        %9348 = vmatpush2.bf16.msra.mxu0 0
        %9349 = vmatprep.subr.bf16.mxu0 0
        %9350 = vmatpush2.bf16.msra.mxu0 0
        %9351 = vmatprep.subr.bf16.mxu0 0
        %9352 = vmatpush2.bf16.msra.mxu0 0
        %9353 = vmatprep.mubr.bf16.mxu0 0
        %9354 = vmatmul.mubr.bf16.gmra.mxu0 %v9255
        %v9355 = vpop.f32.mrf.mxu0
        %v9356 = vadd.f32 0.0, %v9355
        %v9357 = vpop.f32.mrf.mxu0
        %v9358 = vpop.f32.mrf.mxu0
        %v9359 = vpop.f32.mrf.mxu0
        %9360 = vdwg.mxu0
        %v9361 = vadd.f32 %v9253, %v9356
        %v9362 = vld [vmem:[#allocation3 + $0x6] sm:$0x3f]
        %v9363 = vpack.c.bf16 %v9362, %v9362
        %s9364 = scalar_lea.vmem [#allocation8], 1408
        %v9365 = vld [vmem:[%s9364] sm:$0xf]
        %v9366 = vld [vmem:[%s9364 + $0x4] sm:$0xf]
        %v9367 = vld [vmem:[%s9364 + $0x8] sm:$0xf]
        %v9368 = vld [vmem:[%s9364 + $0xc] sm:$0xf]
        %v9369 = vld [vmem:[%s9364 + $0x10] sm:$0xf]
        %v9370 = vld [vmem:[%s9364 + $0x14] sm:$0xf]
        %v9371 = vld [vmem:[%s9364 + $0x18] sm:$0xf]
        %v9372 = vld [vmem:[%s9364 + $0x1c] sm:$0xf]
        %v9373 = vld [vmem:[%s9364 + $0x20] sm:$0xf]
        %v9374 = vld [vmem:[%s9364 + $0x24] sm:$0xf]
        %v9375 = vld [vmem:[%s9364 + $0x28] sm:$0xf]
        %v9376 = vld [vmem:[%s9364 + $0x2c] sm:$0xf]
        %v9377 = vld [vmem:[%s9364 + $0x30] sm:$0xf]
        %v9378 = vld [vmem:[%s9364 + $0x34] sm:$0xf]
        %v9379 = vld [vmem:[%s9364 + $0x38] sm:$0xf]
        %v9380 = vld [vmem:[%s9364 + $0x3c] sm:$0xf]
        %v9397 = vunpack.c.l.b16 %v9365
        %v9398 = vunpack.c.l.b16 %v9366
        %v9399 = vunpack.c.l.b16 %v9367
        %v9400 = vunpack.c.l.b16 %v9368
        %v9401 = vunpack.c.l.b16 %v9369
        %v9402 = vunpack.c.l.b16 %v9370
        %v9403 = vunpack.c.l.b16 %v9371
        %v9404 = vunpack.c.l.b16 %v9372
        %v9405 = vunpack.c.l.b16 %v9373
        %v9406 = vunpack.c.l.b16 %v9374
        %v9407 = vunpack.c.l.b16 %v9375
        %v9408 = vunpack.c.l.b16 %v9376
        %v9409 = vunpack.c.l.b16 %v9377
        %v9410 = vunpack.c.l.b16 %v9378
        %v9411 = vunpack.c.l.b16 %v9379
        %v9412 = vunpack.c.l.b16 %v9380
        %v9413 = vpack.c.b16 %v9398, %v9397
        %v9414 = vpack.c.b16 %v9400, %v9399
        %v9415 = vpack.c.b16 %v9402, %v9401
        %v9416 = vpack.c.b16 %v9404, %v9403
        %v9417 = vpack.c.b16 %v9406, %v9405
        %v9418 = vpack.c.b16 %v9408, %v9407
        %v9419 = vpack.c.b16 %v9410, %v9409
        %v9420 = vpack.c.b16 %v9412, %v9411
        %9429 = vmatprep.subr.bf16.mxu0 0
        %9430 = vmatpush1.bf16.msra.mxu0 %v9420
        %9431 = vmatprep.subr.bf16.mxu0 0
        %9432 = vmatpush1.bf16.msra.mxu0 %v9419
        %9433 = vmatprep.subr.bf16.mxu0 0
        %9434 = vmatpush1.bf16.msra.mxu0 %v9418
        %9435 = vmatprep.subr.bf16.mxu0 0
        %9436 = vmatpush1.bf16.msra.mxu0 %v9417
        %9437 = vmatprep.subr.bf16.mxu0 0
        %9438 = vmatpush1.bf16.msra.mxu0 %v9416
        %9439 = vmatprep.subr.bf16.mxu0 0
        %9440 = vmatpush1.bf16.msra.mxu0 %v9415
        %9441 = vmatprep.subr.bf16.mxu0 0
        %9442 = vmatpush1.bf16.msra.mxu0 %v9414
        %9443 = vmatprep.subr.bf16.mxu0 0
        %9444 = vmatpush1.bf16.msra.mxu0 %v9413
        %9445 = vmatprep.subr.bf16.mxu0 0
        %9446 = vmatpush2.bf16.msra.mxu0 0
        %9447 = vmatprep.subr.bf16.mxu0 0
        %9448 = vmatpush2.bf16.msra.mxu0 0
        %9449 = vmatprep.subr.bf16.mxu0 0
        %9450 = vmatpush2.bf16.msra.mxu0 0
        %9451 = vmatprep.subr.bf16.mxu0 0
        %9452 = vmatpush2.bf16.msra.mxu0 0
        %9453 = vmatprep.subr.bf16.mxu0 0
        %9454 = vmatpush2.bf16.msra.mxu0 0
        %9455 = vmatprep.subr.bf16.mxu0 0
        %9456 = vmatpush2.bf16.msra.mxu0 0
        %9457 = vmatprep.subr.bf16.mxu0 0
        %9458 = vmatpush2.bf16.msra.mxu0 0
        %9459 = vmatprep.subr.bf16.mxu0 0
        %9460 = vmatpush2.bf16.msra.mxu0 0
        %9461 = vmatprep.mubr.bf16.mxu0 0
        %9462 = vmatmul.mubr.bf16.gmra.mxu0 %v9363
        %v9463 = vpop.f32.mrf.mxu0
        %v9464 = vadd.f32 0.0, %v9463
        %v9465 = vpop.f32.mrf.mxu0
        %v9466 = vpop.f32.mrf.mxu0
        %v9467 = vpop.f32.mrf.mxu0
        %9468 = vdwg.mxu0
        %v9469 = vadd.f32 %v9361, %v9464
        %v9470 = vld [vmem:[#allocation3 + $0x7] sm:$0x3f]
        %v9471 = vpack.c.bf16 %v9470, %v9470
        %s9472 = scalar_lea.vmem [#allocation8], 1472
        %v9473 = vld [vmem:[%s9472] sm:$0xf]
        %v9474 = vld [vmem:[%s9472 + $0x4] sm:$0xf]
        %v9475 = vld [vmem:[%s9472 + $0x8] sm:$0xf]
        %v9476 = vld [vmem:[%s9472 + $0xc] sm:$0xf]
        %v9477 = vld [vmem:[%s9472 + $0x10] sm:$0xf]
        %v9478 = vld [vmem:[%s9472 + $0x14] sm:$0xf]
        %v9479 = vld [vmem:[%s9472 + $0x18] sm:$0xf]
        %v9480 = vld [vmem:[%s9472 + $0x1c] sm:$0xf]
        %v9481 = vld [vmem:[%s9472 + $0x20] sm:$0xf]
        %v9482 = vld [vmem:[%s9472 + $0x24] sm:$0xf]
        %v9483 = vld [vmem:[%s9472 + $0x28] sm:$0xf]
        %v9484 = vld [vmem:[%s9472 + $0x2c] sm:$0xf]
        %v9485 = vld [vmem:[%s9472 + $0x30] sm:$0xf]
        %v9486 = vld [vmem:[%s9472 + $0x34] sm:$0xf]
        %v9487 = vld [vmem:[%s9472 + $0x38] sm:$0xf]
        %v9488 = vld [vmem:[%s9472 + $0x3c] sm:$0xf]
        %v9505 = vunpack.c.l.b16 %v9473
        %v9506 = vunpack.c.l.b16 %v9474
        %v9507 = vunpack.c.l.b16 %v9475
        %v9508 = vunpack.c.l.b16 %v9476
        %v9509 = vunpack.c.l.b16 %v9477
        %v9510 = vunpack.c.l.b16 %v9478
        %v9511 = vunpack.c.l.b16 %v9479
        %v9512 = vunpack.c.l.b16 %v9480
        %v9513 = vunpack.c.l.b16 %v9481
        %v9514 = vunpack.c.l.b16 %v9482
        %v9515 = vunpack.c.l.b16 %v9483
        %v9516 = vunpack.c.l.b16 %v9484
        %v9517 = vunpack.c.l.b16 %v9485
        %v9518 = vunpack.c.l.b16 %v9486
        %v9519 = vunpack.c.l.b16 %v9487
        %v9520 = vunpack.c.l.b16 %v9488
        %v9521 = vpack.c.b16 %v9506, %v9505
        %v9522 = vpack.c.b16 %v9508, %v9507
        %v9523 = vpack.c.b16 %v9510, %v9509
        %v9524 = vpack.c.b16 %v9512, %v9511
        %v9525 = vpack.c.b16 %v9514, %v9513
        %v9526 = vpack.c.b16 %v9516, %v9515
        %v9527 = vpack.c.b16 %v9518, %v9517
        %v9528 = vpack.c.b16 %v9520, %v9519
        %9537 = vmatprep.subr.bf16.mxu0 0
        %9538 = vmatpush1.bf16.msra.mxu0 %v9528
        %9539 = vmatprep.subr.bf16.mxu0 0
        %9540 = vmatpush1.bf16.msra.mxu0 %v9527
        %9541 = vmatprep.subr.bf16.mxu0 0
        %9542 = vmatpush1.bf16.msra.mxu0 %v9526
        %9543 = vmatprep.subr.bf16.mxu0 0
        %9544 = vmatpush1.bf16.msra.mxu0 %v9525
        %9545 = vmatprep.subr.bf16.mxu0 0
        %9546 = vmatpush1.bf16.msra.mxu0 %v9524
        %9547 = vmatprep.subr.bf16.mxu0 0
        %9548 = vmatpush1.bf16.msra.mxu0 %v9523
        %9549 = vmatprep.subr.bf16.mxu0 0
        %9550 = vmatpush1.bf16.msra.mxu0 %v9522
        %9551 = vmatprep.subr.bf16.mxu0 0
        %9552 = vmatpush1.bf16.msra.mxu0 %v9521
        %9553 = vmatprep.subr.bf16.mxu0 0
        %9554 = vmatpush2.bf16.msra.mxu0 0
        %9555 = vmatprep.subr.bf16.mxu0 0
        %9556 = vmatpush2.bf16.msra.mxu0 0
        %9557 = vmatprep.subr.bf16.mxu0 0
        %9558 = vmatpush2.bf16.msra.mxu0 0
        %9559 = vmatprep.subr.bf16.mxu0 0
        %9560 = vmatpush2.bf16.msra.mxu0 0
        %9561 = vmatprep.subr.bf16.mxu0 0
        %9562 = vmatpush2.bf16.msra.mxu0 0
        %9563 = vmatprep.subr.bf16.mxu0 0
        %9564 = vmatpush2.bf16.msra.mxu0 0
        %9565 = vmatprep.subr.bf16.mxu0 0
        %9566 = vmatpush2.bf16.msra.mxu0 0
        %9567 = vmatprep.subr.bf16.mxu0 0
        %9568 = vmatpush2.bf16.msra.mxu0 0
        %9569 = vmatprep.mubr.bf16.mxu0 0
        %9570 = vmatmul.mubr.bf16.gmra.mxu0 %v9471
        %v9571 = vpop.f32.mrf.mxu0
        %v9572 = vadd.f32 0.0, %v9571
        %v9573 = vpop.f32.mrf.mxu0
        %v9574 = vpop.f32.mrf.mxu0
        %v9575 = vpop.f32.mrf.mxu0
        %9576 = vdwg.mxu0
        %v9577 = vadd.f32 %v9469, %v9572
        %s9578 = scalar_lea.vmem %s12, 2
        %v9579 = vld [vmem:[%s9578] sm:$0x1]
        %v9581 = vlaneseq
        %v9582 = vshrl.u32 %v9581, 7
        %v9583 = vsub.s32 0, %v9582
        %v9584 = vrot.slane %v9579, %v9583
        %v9586 = vmul.f32 %v9577, %v9584
        %s9587 = scalar_lea.vmem %s13, 2
        %v9588 = vld [vmem:[%s9587] sm:$0x1]
        %v9590 = vlaneseq
        %v9591 = vshrl.u32 %v9590, 7
        %v9592 = vsub.s32 0, %v9591
        %v9593 = vrot.slane %v9588, %v9592
        %v9595 = vadd.f32 %v9586, %v9593
        %v9596 = vmax.f32 %v9595, 0.0
        %9597 = vst [vmem:[#allocation2] sm:$0x3f] %v9596
        %v9598 = vld [vmem:[#allocation2] ss:$2 sm:$0x7]
        %v9599 = vld [vmem:[%s2987] ss:$2 sm:$0x7]
        %v9600 = vmax.f32 %v9598, %v9599
        %v9602 = vrot.slane %v9600, 7
        %v9604 = vrot.slane %v9600, 6
        %v9606 = vrot.slane %v9600, 5
        %v9608 = vrot.slane %v9600, 4
        %vm9610 = vcmask 1040384
        %v9611 = vsel %vm9610, %v9600, %v9602
        %vm9612 = vcmask 1041408
        %v9613 = vsel %vm9612, %v9611, %v9604
        %vm9614 = vcmask 1042432
        %v9615 = vsel %vm9614, %v9613, %v9604
        %v9616 = vsel %vm841, %v9615, %v9606
        %vm9617 = vcmask 1044480
        %v9618 = vsel %vm9617, %v9616, %v9606
        %vm9619 = vcmask 1045504
        %v9620 = vsel %vm9619, %v9618, %v9608
        %v9621 = vpack.c.bf16 %v6172, %v6172
        %v9622 = vld [vmem:[#allocation9] sm:$0xf]
        %v9623 = vld [vmem:[#allocation9 + $0x4] sm:$0xf]
        %v9624 = vld [vmem:[#allocation9 + $0x8] sm:$0xf]
        %v9625 = vld [vmem:[#allocation9 + $0xc] sm:$0xf]
        %v9626 = vld [vmem:[#allocation9 + $0x10] sm:$0xf]
        %v9627 = vld [vmem:[#allocation9 + $0x14] sm:$0xf]
        %v9628 = vld [vmem:[#allocation9 + $0x18] sm:$0xf]
        %v9629 = vld [vmem:[#allocation9 + $0x1c] sm:$0xf]
        %v9630 = vld [vmem:[#allocation9 + $0x20] sm:$0xf]
        %v9631 = vld [vmem:[#allocation9 + $0x24] sm:$0xf]
        %v9632 = vld [vmem:[#allocation9 + $0x28] sm:$0xf]
        %v9633 = vld [vmem:[#allocation9 + $0x2c] sm:$0xf]
        %v9634 = vld [vmem:[#allocation9 + $0x30] sm:$0xf]
        %v9635 = vld [vmem:[#allocation9 + $0x34] sm:$0xf]
        %v9636 = vld [vmem:[#allocation9 + $0x38] sm:$0xf]
        %v9637 = vld [vmem:[#allocation9 + $0x3c] sm:$0xf]
        %v9638 = vpack.c.bf16 %v9620, %v9620
        %s9639 = scalar_lea.vmem [#allocation9], 64
        %v9640 = vld [vmem:[%s9639] sm:$0xf]
        %v9641 = vld [vmem:[%s9639 + $0x4] sm:$0xf]
        %v9642 = vld [vmem:[%s9639 + $0x8] sm:$0xf]
        %v9643 = vld [vmem:[%s9639 + $0xc] sm:$0xf]
        %v9644 = vld [vmem:[%s9639 + $0x10] sm:$0xf]
        %v9645 = vld [vmem:[%s9639 + $0x14] sm:$0xf]
        %v9646 = vld [vmem:[%s9639 + $0x18] sm:$0xf]
        %v9647 = vld [vmem:[%s9639 + $0x1c] sm:$0xf]
        %v9648 = vld [vmem:[%s9639 + $0x20] sm:$0xf]
        %v9649 = vld [vmem:[%s9639 + $0x24] sm:$0xf]
        %v9650 = vld [vmem:[%s9639 + $0x28] sm:$0xf]
        %v9651 = vld [vmem:[%s9639 + $0x2c] sm:$0xf]
        %v9652 = vld [vmem:[%s9639 + $0x30] sm:$0xf]
        %v9653 = vld [vmem:[%s9639 + $0x34] sm:$0xf]
        %v9654 = vld [vmem:[%s9639 + $0x38] sm:$0xf]
        %v9655 = vld [vmem:[%s9639 + $0x3c] sm:$0xf]
        %v9672 = vunpack.c.l.b16 %v9640
        %v9673 = vunpack.c.l.b16 %v9641
        %v9674 = vunpack.c.l.b16 %v9642
        %v9675 = vunpack.c.l.b16 %v9643
        %v9676 = vunpack.c.l.b16 %v9644
        %v9677 = vunpack.c.l.b16 %v9645
        %v9678 = vunpack.c.l.b16 %v9646
        %v9679 = vunpack.c.l.b16 %v9647
        %v9680 = vunpack.c.l.b16 %v9648
        %v9681 = vunpack.c.l.b16 %v9649
        %v9682 = vunpack.c.l.b16 %v9650
        %v9683 = vunpack.c.l.b16 %v9651
        %v9684 = vunpack.c.l.b16 %v9652
        %v9685 = vunpack.c.l.b16 %v9653
        %v9686 = vunpack.c.l.b16 %v9654
        %v9687 = vunpack.c.l.b16 %v9655
        %v9688 = vpack.c.b16 %v9673, %v9672
        %v9689 = vpack.c.b16 %v9675, %v9674
        %v9690 = vpack.c.b16 %v9677, %v9676
        %v9691 = vpack.c.b16 %v9679, %v9678
        %v9692 = vpack.c.b16 %v9681, %v9680
        %v9693 = vpack.c.b16 %v9683, %v9682
        %v9694 = vpack.c.b16 %v9685, %v9684
        %v9695 = vpack.c.b16 %v9687, %v9686
        %9704 = vmatprep.subr.bf16.mxu0 0
        %9705 = vmatpush1.bf16.msra.mxu0 %v9695
        %9706 = vmatprep.subr.bf16.mxu0 0
        %9707 = vmatpush1.bf16.msra.mxu0 %v9694
        %9708 = vmatprep.subr.bf16.mxu0 0
        %9709 = vmatpush1.bf16.msra.mxu0 %v9693
        %9710 = vmatprep.subr.bf16.mxu0 0
        %9711 = vmatpush1.bf16.msra.mxu0 %v9692
        %9712 = vmatprep.subr.bf16.mxu0 0
        %9713 = vmatpush1.bf16.msra.mxu0 %v9691
        %9714 = vmatprep.subr.bf16.mxu0 0
        %9715 = vmatpush1.bf16.msra.mxu0 %v9690
        %9716 = vmatprep.subr.bf16.mxu0 0
        %9717 = vmatpush1.bf16.msra.mxu0 %v9689
        %9718 = vmatprep.subr.bf16.mxu0 0
        %9719 = vmatpush1.bf16.msra.mxu0 %v9688
        %9720 = vmatprep.subr.bf16.mxu0 0
        %9721 = vmatpush2.bf16.msra.mxu0 0
        %9722 = vmatprep.subr.bf16.mxu0 0
        %9723 = vmatpush2.bf16.msra.mxu0 0
        %9724 = vmatprep.subr.bf16.mxu0 0
        %9725 = vmatpush2.bf16.msra.mxu0 0
        %9726 = vmatprep.subr.bf16.mxu0 0
        %9727 = vmatpush2.bf16.msra.mxu0 0
        %9728 = vmatprep.subr.bf16.mxu0 0
        %9729 = vmatpush2.bf16.msra.mxu0 0
        %9730 = vmatprep.subr.bf16.mxu0 0
        %9731 = vmatpush2.bf16.msra.mxu0 0
        %9732 = vmatprep.subr.bf16.mxu0 0
        %9733 = vmatpush2.bf16.msra.mxu0 0
        %9734 = vmatprep.subr.bf16.mxu0 0
        %9735 = vmatpush2.bf16.msra.mxu0 0
        %9736 = vmatprep.mubr.bf16.mxu0 0
        %9737 = vmatmul.mubr.bf16.gmra.mxu0 %v9638
        %v9738 = vpop.f32.mrf.mxu0
        %v9739 = vadd.f32 0.0, %v9738
        %v9740 = vpop.f32.mrf.mxu0
        %v9741 = vpop.f32.mrf.mxu0
        %v9742 = vpop.f32.mrf.mxu0
        %9743 = vdwg.mxu0
        %v9760 = vunpack.c.l.b16 %v9622
        %v9761 = vunpack.c.l.b16 %v9623
        %v9762 = vunpack.c.l.b16 %v9624
        %v9763 = vunpack.c.l.b16 %v9625
        %v9764 = vunpack.c.l.b16 %v9626
        %v9765 = vunpack.c.l.b16 %v9627
        %v9766 = vunpack.c.l.b16 %v9628
        %v9767 = vunpack.c.l.b16 %v9629
        %v9768 = vunpack.c.l.b16 %v9630
        %v9769 = vunpack.c.l.b16 %v9631
        %v9770 = vunpack.c.l.b16 %v9632
        %v9771 = vunpack.c.l.b16 %v9633
        %v9772 = vunpack.c.l.b16 %v9634
        %v9773 = vunpack.c.l.b16 %v9635
        %v9774 = vunpack.c.l.b16 %v9636
        %v9775 = vunpack.c.l.b16 %v9637
        %v9776 = vpack.c.b16 %v9761, %v9760
        %v9777 = vpack.c.b16 %v9763, %v9762
        %v9778 = vpack.c.b16 %v9765, %v9764
        %v9779 = vpack.c.b16 %v9767, %v9766
        %v9780 = vpack.c.b16 %v9769, %v9768
        %v9781 = vpack.c.b16 %v9771, %v9770
        %v9782 = vpack.c.b16 %v9773, %v9772
        %v9783 = vpack.c.b16 %v9775, %v9774
        %9792 = vmatprep.subr.bf16.mxu0 0
        %9793 = vmatpush1.bf16.msra.mxu0 %v9783
        %9794 = vmatprep.subr.bf16.mxu0 0
        %9795 = vmatpush1.bf16.msra.mxu0 %v9782
        %9796 = vmatprep.subr.bf16.mxu0 0
        %9797 = vmatpush1.bf16.msra.mxu0 %v9781
        %9798 = vmatprep.subr.bf16.mxu0 0
        %9799 = vmatpush1.bf16.msra.mxu0 %v9780
        %9800 = vmatprep.subr.bf16.mxu0 0
        %9801 = vmatpush1.bf16.msra.mxu0 %v9779
        %9802 = vmatprep.subr.bf16.mxu0 0
        %9803 = vmatpush1.bf16.msra.mxu0 %v9778
        %9804 = vmatprep.subr.bf16.mxu0 0
        %9805 = vmatpush1.bf16.msra.mxu0 %v9777
        %9806 = vmatprep.subr.bf16.mxu0 0
        %9807 = vmatpush1.bf16.msra.mxu0 %v9776
        %9808 = vmatprep.subr.bf16.mxu0 0
        %9809 = vmatpush2.bf16.msra.mxu0 0
        %9810 = vmatprep.subr.bf16.mxu0 0
        %9811 = vmatpush2.bf16.msra.mxu0 0
        %9812 = vmatprep.subr.bf16.mxu0 0
        %9813 = vmatpush2.bf16.msra.mxu0 0
        %9814 = vmatprep.subr.bf16.mxu0 0
        %9815 = vmatpush2.bf16.msra.mxu0 0
        %9816 = vmatprep.subr.bf16.mxu0 0
        %9817 = vmatpush2.bf16.msra.mxu0 0
        %9818 = vmatprep.subr.bf16.mxu0 0
        %9819 = vmatpush2.bf16.msra.mxu0 0
        %9820 = vmatprep.subr.bf16.mxu0 0
        %9821 = vmatpush2.bf16.msra.mxu0 0
        %9822 = vmatprep.subr.bf16.mxu0 0
        %9823 = vmatpush2.bf16.msra.mxu0 0
        %9824 = vmatprep.mubr.bf16.mxu0 0
        %9825 = vmatmul.mubr.bf16.gmra.mxu0 %v9621
        %v9826 = vpop.f32.mrf.mxu0
        %v9827 = vadd.f32 %v9739, %v9826
        %v9828 = vpop.f32.mrf.mxu0
        %v9829 = vpop.f32.mrf.mxu0
        %v9830 = vpop.f32.mrf.mxu0
        %9831 = vdwg.mxu0
        %v9832 = vld [vmem:[%s15] sm:$0x1]
        %v9834 = vlaneseq
        %v9835 = vshrl.u32 %v9834, 7
        %v9836 = vsub.s32 0, %v9835
        %v9837 = vrot.slane %v9832, %v9836
        %v9839 = vadd.f32 %v9827, %v9837
        %v9840 = vpack.c.bf16 %v9839, %v9839
        %v9841 = vld [vmem:[#allocation11] sm:$0xf]
        %v9842 = vld [vmem:[#allocation11 + $0x4] sm:$0xf]
        %v9843 = vld [vmem:[#allocation11 + $0x8] sm:$0xf]
        %v9844 = vld [vmem:[#allocation11 + $0xc] sm:$0xf]
        %v9845 = vld [vmem:[#allocation11 + $0x10] sm:$0xf]
        %v9846 = vld [vmem:[#allocation11 + $0x14] sm:$0xf]
        %v9847 = vld [vmem:[#allocation11 + $0x18] sm:$0xf]
        %v9848 = vld [vmem:[#allocation11 + $0x1c] sm:$0xf]
        %v9849 = vld [vmem:[#allocation11 + $0x20] sm:$0xf]
        %v9850 = vld [vmem:[#allocation11 + $0x24] sm:$0xf]
        %v9851 = vld [vmem:[#allocation11 + $0x28] sm:$0xf]
        %v9852 = vld [vmem:[#allocation11 + $0x2c] sm:$0xf]
        %v9853 = vld [vmem:[#allocation11 + $0x30] sm:$0xf]
        %v9854 = vld [vmem:[#allocation11 + $0x34] sm:$0xf]
        %v9855 = vld [vmem:[#allocation11 + $0x38] sm:$0xf]
        %v9856 = vld [vmem:[#allocation11 + $0x3c] sm:$0xf]
        %v9873 = vunpack.c.l.b16 %v9841
        %v9874 = vunpack.c.l.b16 %v9842
        %v9875 = vunpack.c.l.b16 %v9843
        %v9876 = vunpack.c.l.b16 %v9844
        %v9877 = vunpack.c.l.b16 %v9845
        %v9878 = vunpack.c.l.b16 %v9846
        %v9879 = vunpack.c.l.b16 %v9847
        %v9880 = vunpack.c.l.b16 %v9848
        %v9881 = vunpack.c.l.b16 %v9849
        %v9882 = vunpack.c.l.b16 %v9850
        %v9883 = vunpack.c.l.b16 %v9851
        %v9884 = vunpack.c.l.b16 %v9852
        %v9885 = vunpack.c.l.b16 %v9853
        %v9886 = vunpack.c.l.b16 %v9854
        %v9887 = vunpack.c.l.b16 %v9855
        %v9888 = vunpack.c.l.b16 %v9856
        %v9889 = vpack.c.b16 %v9874, %v9873
        %v9890 = vpack.c.b16 %v9876, %v9875
        %v9891 = vpack.c.b16 %v9878, %v9877
        %v9892 = vpack.c.b16 %v9880, %v9879
        %v9893 = vpack.c.b16 %v9882, %v9881
        %v9894 = vpack.c.b16 %v9884, %v9883
        %v9895 = vpack.c.b16 %v9886, %v9885
        %v9896 = vpack.c.b16 %v9888, %v9887
        %9905 = vmatprep.subr.bf16.mxu0 0
        %9906 = vmatpush1.bf16.msra.mxu0 %v9896
        %9907 = vmatprep.subr.bf16.mxu0 0
        %9908 = vmatpush1.bf16.msra.mxu0 %v9895
        %9909 = vmatprep.subr.bf16.mxu0 0
        %9910 = vmatpush1.bf16.msra.mxu0 %v9894
        %9911 = vmatprep.subr.bf16.mxu0 0
        %9912 = vmatpush1.bf16.msra.mxu0 %v9893
        %9913 = vmatprep.subr.bf16.mxu0 0
        %9914 = vmatpush1.bf16.msra.mxu0 %v9892
        %9915 = vmatprep.subr.bf16.mxu0 0
        %9916 = vmatpush1.bf16.msra.mxu0 %v9891
        %9917 = vmatprep.subr.bf16.mxu0 0
        %9918 = vmatpush1.bf16.msra.mxu0 %v9890
        %9919 = vmatprep.subr.bf16.mxu0 0
        %9920 = vmatpush1.bf16.msra.mxu0 %v9889
        %9921 = vmatprep.subr.bf16.mxu0 0
        %9922 = vmatpush2.bf16.msra.mxu0 0
        %9923 = vmatprep.subr.bf16.mxu0 0
        %9924 = vmatpush2.bf16.msra.mxu0 0
        %9925 = vmatprep.subr.bf16.mxu0 0
        %9926 = vmatpush2.bf16.msra.mxu0 0
        %9927 = vmatprep.subr.bf16.mxu0 0
        %9928 = vmatpush2.bf16.msra.mxu0 0
        %9929 = vmatprep.subr.bf16.mxu0 0
        %9930 = vmatpush2.bf16.msra.mxu0 0
        %9931 = vmatprep.subr.bf16.mxu0 0
        %9932 = vmatpush2.bf16.msra.mxu0 0
        %9933 = vmatprep.subr.bf16.mxu0 0
        %9934 = vmatpush2.bf16.msra.mxu0 0
        %9935 = vmatprep.subr.bf16.mxu0 0
        %9936 = vmatpush2.bf16.msra.mxu0 0
        %9937 = vmatprep.mubr.bf16.mxu0 0
        %9938 = vmatmul.mubr.bf16.gmra.mxu0 %v9840
        %v9939 = vpop.f32.mrf.mxu0
        %v9940 = vadd.f32 0.0, %v9939
        %v9941 = vpop.f32.mrf.mxu0
        %v9942 = vpop.f32.mrf.mxu0
        %v9943 = vpop.f32.mrf.mxu0
        %9944 = vdwg.mxu0
        %s9945 = scalar_lea.vmem [#allocation11], 64
        %v9946 = vld [vmem:[%s9945] sm:$0xf]
        %v9947 = vld [vmem:[%s9945 + $0x4] sm:$0xf]
        %v9948 = vld [vmem:[%s9945 + $0x8] sm:$0xf]
        %v9949 = vld [vmem:[%s9945 + $0xc] sm:$0xf]
        %v9950 = vld [vmem:[%s9945 + $0x10] sm:$0xf]
        %v9951 = vld [vmem:[%s9945 + $0x14] sm:$0xf]
        %v9952 = vld [vmem:[%s9945 + $0x18] sm:$0xf]
        %v9953 = vld [vmem:[%s9945 + $0x1c] sm:$0xf]
        %v9954 = vld [vmem:[%s9945 + $0x20] sm:$0xf]
        %v9955 = vld [vmem:[%s9945 + $0x24] sm:$0xf]
        %v9956 = vld [vmem:[%s9945 + $0x28] sm:$0xf]
        %v9957 = vld [vmem:[%s9945 + $0x2c] sm:$0xf]
        %v9958 = vld [vmem:[%s9945 + $0x30] sm:$0xf]
        %v9959 = vld [vmem:[%s9945 + $0x34] sm:$0xf]
        %v9960 = vld [vmem:[%s9945 + $0x38] sm:$0xf]
        %v9961 = vld [vmem:[%s9945 + $0x3c] sm:$0xf]
        %s9962 = scalar_lea.vmem [#allocation11], 128
        %v9963 = vld [vmem:[%s9962] sm:$0xf]
        %v9964 = vld [vmem:[%s9962 + $0x4] sm:$0xf]
        %v9965 = vld [vmem:[%s9962 + $0x8] sm:$0xf]
        %v9966 = vld [vmem:[%s9962 + $0xc] sm:$0xf]
        %v9967 = vld [vmem:[%s9962 + $0x10] sm:$0xf]
        %v9968 = vld [vmem:[%s9962 + $0x14] sm:$0xf]
        %v9969 = vld [vmem:[%s9962 + $0x18] sm:$0xf]
        %v9970 = vld [vmem:[%s9962 + $0x1c] sm:$0xf]
        %v9971 = vld [vmem:[%s9962 + $0x20] sm:$0xf]
        %v9972 = vld [vmem:[%s9962 + $0x24] sm:$0xf]
        %v9973 = vld [vmem:[%s9962 + $0x28] sm:$0xf]
        %v9974 = vld [vmem:[%s9962 + $0x2c] sm:$0xf]
        %v9975 = vld [vmem:[%s9962 + $0x30] sm:$0xf]
        %v9976 = vld [vmem:[%s9962 + $0x34] sm:$0xf]
        %v9977 = vld [vmem:[%s9962 + $0x38] sm:$0xf]
        %v9978 = vld [vmem:[%s9962 + $0x3c] sm:$0xf]
        %v9995 = vunpack.c.l.b16 %v9963
        %v9996 = vunpack.c.l.b16 %v9964
        %v9997 = vunpack.c.l.b16 %v9965
        %v9998 = vunpack.c.l.b16 %v9966
        %v9999 = vunpack.c.l.b16 %v9967
        %v10000 = vunpack.c.l.b16 %v9968
        %v10001 = vunpack.c.l.b16 %v9969
        %v10002 = vunpack.c.l.b16 %v9970
        %v10003 = vunpack.c.l.b16 %v9971
        %v10004 = vunpack.c.l.b16 %v9972
        %v10005 = vunpack.c.l.b16 %v9973
        %v10006 = vunpack.c.l.b16 %v9974
        %v10007 = vunpack.c.l.b16 %v9975
        %v10008 = vunpack.c.l.b16 %v9976
        %v10009 = vunpack.c.l.b16 %v9977
        %v10010 = vunpack.c.l.b16 %v9978
        %v10011 = vpack.c.b16 %v9996, %v9995
        %v10012 = vpack.c.b16 %v9998, %v9997
        %v10013 = vpack.c.b16 %v10000, %v9999
        %v10014 = vpack.c.b16 %v10002, %v10001
        %v10015 = vpack.c.b16 %v10004, %v10003
        %v10016 = vpack.c.b16 %v10006, %v10005
        %v10017 = vpack.c.b16 %v10008, %v10007
        %v10018 = vpack.c.b16 %v10010, %v10009
        %10027 = vmatprep.subr.bf16.mxu0 0
        %10028 = vmatpush1.bf16.msra.mxu0 %v10018
        %10029 = vmatprep.subr.bf16.mxu0 0
        %10030 = vmatpush1.bf16.msra.mxu0 %v10017
        %10031 = vmatprep.subr.bf16.mxu0 0
        %10032 = vmatpush1.bf16.msra.mxu0 %v10016
        %10033 = vmatprep.subr.bf16.mxu0 0
        %10034 = vmatpush1.bf16.msra.mxu0 %v10015
        %10035 = vmatprep.subr.bf16.mxu0 0
        %10036 = vmatpush1.bf16.msra.mxu0 %v10014
        %10037 = vmatprep.subr.bf16.mxu0 0
        %10038 = vmatpush1.bf16.msra.mxu0 %v10013
        %10039 = vmatprep.subr.bf16.mxu0 0
        %10040 = vmatpush1.bf16.msra.mxu0 %v10012
        %10041 = vmatprep.subr.bf16.mxu0 0
        %10042 = vmatpush1.bf16.msra.mxu0 %v10011
        %10043 = vmatprep.subr.bf16.mxu0 0
        %10044 = vmatpush2.bf16.msra.mxu0 0
        %10045 = vmatprep.subr.bf16.mxu0 0
        %10046 = vmatpush2.bf16.msra.mxu0 0
        %10047 = vmatprep.subr.bf16.mxu0 0
        %10048 = vmatpush2.bf16.msra.mxu0 0
        %10049 = vmatprep.subr.bf16.mxu0 0
        %10050 = vmatpush2.bf16.msra.mxu0 0
        %10051 = vmatprep.subr.bf16.mxu0 0
        %10052 = vmatpush2.bf16.msra.mxu0 0
        %10053 = vmatprep.subr.bf16.mxu0 0
        %10054 = vmatpush2.bf16.msra.mxu0 0
        %10055 = vmatprep.subr.bf16.mxu0 0
        %10056 = vmatpush2.bf16.msra.mxu0 0
        %10057 = vmatprep.subr.bf16.mxu0 0
        %10058 = vmatpush2.bf16.msra.mxu0 0
        %10059 = vmatprep.mubr.bf16.mxu0 0
        %10060 = vmatmul.mubr.bf16.gmra.mxu0 %v9840
        %v10061 = vpop.f32.mrf.mxu0
        %v10062 = vadd.f32 0.0, %v10061
        %v10063 = vpop.f32.mrf.mxu0
        %v10064 = vpop.f32.mrf.mxu0
        %v10065 = vpop.f32.mrf.mxu0
        %10066 = vdwg.mxu0
        %v10067 = vld [vmem:[%s17] sm:$0x1]
        %v10069 = vlaneseq
        %v10070 = vshrl.u32 %v10069, 7
        %v10071 = vsub.s32 0, %v10070
        %v10072 = vrot.slane %v10067, %v10071
        %v10090 = vunpack.c.l.b16 %v9946
        %v10091 = vunpack.c.l.b16 %v9947
        %v10092 = vunpack.c.l.b16 %v9948
        %v10093 = vunpack.c.l.b16 %v9949
        %v10094 = vunpack.c.l.b16 %v9950
        %v10095 = vunpack.c.l.b16 %v9951
        %v10096 = vunpack.c.l.b16 %v9952
        %v10097 = vunpack.c.l.b16 %v9953
        %v10098 = vunpack.c.l.b16 %v9954
        %v10099 = vunpack.c.l.b16 %v9955
        %v10100 = vunpack.c.l.b16 %v9956
        %v10101 = vunpack.c.l.b16 %v9957
        %v10102 = vunpack.c.l.b16 %v9958
        %v10103 = vunpack.c.l.b16 %v9959
        %v10104 = vunpack.c.l.b16 %v9960
        %v10105 = vunpack.c.l.b16 %v9961
        %v10106 = vpack.c.b16 %v10091, %v10090
        %v10107 = vpack.c.b16 %v10093, %v10092
        %v10108 = vpack.c.b16 %v10095, %v10094
        %v10109 = vpack.c.b16 %v10097, %v10096
        %v10110 = vpack.c.b16 %v10099, %v10098
        %v10111 = vpack.c.b16 %v10101, %v10100
        %v10112 = vpack.c.b16 %v10103, %v10102
        %v10113 = vpack.c.b16 %v10105, %v10104
        %10122 = vmatprep.subr.bf16.mxu0 0
        %10123 = vmatpush1.bf16.msra.mxu0 %v10113
        %10124 = vmatprep.subr.bf16.mxu0 0
        %10125 = vmatpush1.bf16.msra.mxu0 %v10112
        %10126 = vmatprep.subr.bf16.mxu0 0
        %10127 = vmatpush1.bf16.msra.mxu0 %v10111
        %10128 = vmatprep.subr.bf16.mxu0 0
        %10129 = vmatpush1.bf16.msra.mxu0 %v10110
        %10130 = vmatprep.subr.bf16.mxu0 0
        %10131 = vmatpush1.bf16.msra.mxu0 %v10109
        %10132 = vmatprep.subr.bf16.mxu0 0
        %10133 = vmatpush1.bf16.msra.mxu0 %v10108
        %10134 = vmatprep.subr.bf16.mxu0 0
        %10135 = vmatpush1.bf16.msra.mxu0 %v10107
        %10136 = vmatprep.subr.bf16.mxu0 0
        %10137 = vmatpush1.bf16.msra.mxu0 %v10106
        %10138 = vmatprep.subr.bf16.mxu0 0
        %10139 = vmatpush2.bf16.msra.mxu0 0
        %10140 = vmatprep.subr.bf16.mxu0 0
        %10141 = vmatpush2.bf16.msra.mxu0 0
        %10142 = vmatprep.subr.bf16.mxu0 0
        %10143 = vmatpush2.bf16.msra.mxu0 0
        %10144 = vmatprep.subr.bf16.mxu0 0
        %10145 = vmatpush2.bf16.msra.mxu0 0
        %10146 = vmatprep.subr.bf16.mxu0 0
        %10147 = vmatpush2.bf16.msra.mxu0 0
        %10148 = vmatprep.subr.bf16.mxu0 0
        %10149 = vmatpush2.bf16.msra.mxu0 0
        %10150 = vmatprep.subr.bf16.mxu0 0
        %10151 = vmatpush2.bf16.msra.mxu0 0
        %10152 = vmatprep.subr.bf16.mxu0 0
        %10153 = vmatpush2.bf16.msra.mxu0 0
        %10154 = vmatprep.mubr.bf16.mxu0 0
        %10155 = vmatmul.mubr.bf16.gmra.mxu0 %v9840
        %v10156 = vpop.f32.mrf.mxu0
        %v10157 = vadd.f32 %v10072, %v10156
        %v10158 = vpop.f32.mrf.mxu0
        %v10159 = vpop.f32.mrf.mxu0
        %v10160 = vpop.f32.mrf.mxu0
        %10161 = vdwg.mxu0
        %v10163 = vrot.slane %v9940, 7
        %v10165 = vsel %vm9610, 0.0, %v10163
        %v10166 = vadd.f32 %v10157, %v10165
        %v10168 = vrot.slane %v10062, 1
        %v10170 = vsel %vm9619, %v10168, 0.0
        %v10171 = vadd.f32 %v10166, %v10170
        %v10172 = vpack.c.bf16 %v10171, %v10171
        %v10173 = vld [vmem:[%s18] sm:$0xf]
        %v10174 = vld [vmem:[%s18 + $0x4] sm:$0xf]
        %v10175 = vld [vmem:[%s18 + $0x8] sm:$0xf]
        %v10176 = vld [vmem:[%s18 + $0xc] sm:$0xf]
        %v10177 = vld [vmem:[%s18 + $0x10] sm:$0xf]
        %v10178 = vld [vmem:[%s18 + $0x14] sm:$0xf]
        %v10179 = vld [vmem:[%s18 + $0x18] sm:$0xf]
        %v10180 = vld [vmem:[%s18 + $0x1c] sm:$0xf]
        %v10181 = vld [vmem:[%s18 + $0x20] sm:$0xf]
        %v10182 = vld [vmem:[%s18 + $0x24] sm:$0xf]
        %v10183 = vld [vmem:[%s18 + $0x28] sm:$0xf]
        %v10184 = vld [vmem:[%s18 + $0x2c] sm:$0xf]
        %v10185 = vld [vmem:[%s18 + $0x30] sm:$0xf]
        %v10186 = vld [vmem:[%s18 + $0x34] sm:$0xf]
        %v10187 = vld [vmem:[%s18 + $0x38] sm:$0xf]
        %v10188 = vld [vmem:[%s18 + $0x3c] sm:$0xf]
        %v10189 = vld [vmem:[%s19] sm:$0x1]
        %v10191 = vlaneseq
        %v10192 = vshrl.u32 %v10191, 7
        %v10193 = vsub.s32 0, %v10192
        %v10194 = vrot.slane %v10189, %v10193
        %v10212 = vunpack.c.l.b16 %v10173
        %v10213 = vunpack.c.l.b16 %v10174
        %v10214 = vunpack.c.l.b16 %v10175
        %v10215 = vunpack.c.l.b16 %v10176
        %v10216 = vunpack.c.l.b16 %v10177
        %v10217 = vunpack.c.l.b16 %v10178
        %v10218 = vunpack.c.l.b16 %v10179
        %v10219 = vunpack.c.l.b16 %v10180
        %v10220 = vunpack.c.l.b16 %v10181
        %v10221 = vunpack.c.l.b16 %v10182
        %v10222 = vunpack.c.l.b16 %v10183
        %v10223 = vunpack.c.l.b16 %v10184
        %v10224 = vunpack.c.l.b16 %v10185
        %v10225 = vunpack.c.l.b16 %v10186
        %v10226 = vunpack.c.l.b16 %v10187
        %v10227 = vunpack.c.l.b16 %v10188
        %v10228 = vpack.c.b16 %v10213, %v10212
        %v10229 = vpack.c.b16 %v10215, %v10214
        %v10230 = vpack.c.b16 %v10217, %v10216
        %v10231 = vpack.c.b16 %v10219, %v10218
        %v10232 = vpack.c.b16 %v10221, %v10220
        %v10233 = vpack.c.b16 %v10223, %v10222
        %v10234 = vpack.c.b16 %v10225, %v10224
        %v10235 = vpack.c.b16 %v10227, %v10226
        %10244 = vmatprep.subr.bf16.mxu0 0
        %10245 = vmatpush1.bf16.msra.mxu0 %v10235
        %10246 = vmatprep.subr.bf16.mxu0 0
        %10247 = vmatpush1.bf16.msra.mxu0 %v10234
        %10248 = vmatprep.subr.bf16.mxu0 0
        %10249 = vmatpush1.bf16.msra.mxu0 %v10233
        %10250 = vmatprep.subr.bf16.mxu0 0
        %10251 = vmatpush1.bf16.msra.mxu0 %v10232
        %10252 = vmatprep.subr.bf16.mxu0 0
        %10253 = vmatpush1.bf16.msra.mxu0 %v10231
        %10254 = vmatprep.subr.bf16.mxu0 0
        %10255 = vmatpush1.bf16.msra.mxu0 %v10230
        %10256 = vmatprep.subr.bf16.mxu0 0
        %10257 = vmatpush1.bf16.msra.mxu0 %v10229
        %10258 = vmatprep.subr.bf16.mxu0 0
        %10259 = vmatpush1.bf16.msra.mxu0 %v10228
        %10260 = vmatprep.subr.bf16.mxu0 0
        %10261 = vmatpush2.bf16.msra.mxu0 0
        %10262 = vmatprep.subr.bf16.mxu0 0
        %10263 = vmatpush2.bf16.msra.mxu0 0
        %10264 = vmatprep.subr.bf16.mxu0 0
        %10265 = vmatpush2.bf16.msra.mxu0 0
        %10266 = vmatprep.subr.bf16.mxu0 0
        %10267 = vmatpush2.bf16.msra.mxu0 0
        %10268 = vmatprep.subr.bf16.mxu0 0
        %10269 = vmatpush2.bf16.msra.mxu0 0
        %10270 = vmatprep.subr.bf16.mxu0 0
        %10271 = vmatpush2.bf16.msra.mxu0 0
        %10272 = vmatprep.subr.bf16.mxu0 0
        %10273 = vmatpush2.bf16.msra.mxu0 0
        %10274 = vmatprep.subr.bf16.mxu0 0
        %10275 = vmatpush2.bf16.msra.mxu0 0
        %10276 = vmatprep.mubr.bf16.mxu0 0
        %10277 = vmatmul.mubr.bf16.gmra.mxu0 %v10172
        %v10278 = vpop.f32.mrf.mxu0
        %v10279 = vadd.f32 %v10194, %v10278
        %v10280 = vpop.f32.mrf.mxu0
        %v10281 = vpop.f32.mrf.mxu0
        %v10282 = vpop.f32.mrf.mxu0
        %10283 = vdwg.mxu0
        %10284 = vst [vmem:[%s720] sm:$0x7f] %v10279
        %p10285 = scmp.lt.s32.totalorder %s34, 1
        %s10286 = scalar_select %p10285, %s34, 1
        %s10287 = smul.addr %s10286, 8
        %s10288 = scalar_lea.vmem %s20, %s10287
        // Predicated region
        $region121: #{deepsleepnet_feature.1} parent=99 // pred_check
          %p10289 = pneg %p482
        $region122: #{deepsleepnet_feature.1} parent=99 // pred_check_branch
          %10291 = sbr.rel (%p10289) target = $region124
        $region123: #{deepsleepnet_feature.1} parent=99 // pred_region
          _
        $region124: #{deepsleepnet_feature.1} parent=99 // pred_fallthru
          _
      $region100: #{deepsleepnet_feature.1} parent=5 // pred_fallthru
        _
      %p10292 = scmp.le.s32.totalorder 2, %s29
      // Predicated region
      $region125: #{deepsleepnet_feature.1} parent=5 // pred_check
        %p10293 = pneg %p10292
      $region126: #{deepsleepnet_feature.1} parent=5 // pred_check_branch
        %10295 = sbr.rel (%p10293) target = $region128
      $region127: #{deepsleepnet_feature.1} parent=5 // pred_region
        %s10296 = ssub.s32 %s29, 2
        // Predicated region
        $region129: #{deepsleepnet_feature.1} parent=127 // pred_check
          %p10297 = pneg %p488
        $region130: #{deepsleepnet_feature.1} parent=127 // pred_check_branch
          %10299 = sbr.rel (%p10297) target = $region132
        $region131: #{deepsleepnet_feature.1} parent=127 // pred_region
          %p10300 = scmp.lt.s32.totalorder %s35, 1
          %s10301 = scalar_select %p10300, %s35, 1
          %s10302 = smul.addr %s10301, 8
          %s10303 = scalar_lea.vmem %s20, %s10302
        $region132: #{deepsleepnet_feature.1} parent=127 // pred_fallthru
          _
      $region128: #{deepsleepnet_feature.1} parent=5 // pred_fallthru
        _
    $region6: #{deepsleepnet_feature.1} parent=1 // loop_footer
      %s33 = sadd.s32 1, %s29
    $region7: #{deepsleepnet_feature.1} parent=1 // loop_footer_branch
      %28 = sbr.rel target = $region3
    $region8: #{deepsleepnet_feature.1} parent=1 // loop_exit
      _
    %10304 = vsyncpa [#allocation5], 1
    %s10305 = scalar_lea.sflag [#allocation5], 1
    %10306 = vsyncpa %s10305, 1
    %10307 = vsyncpa [#allocation7], 1
    %10308 = vsyncpa [#allocation10], 1

</llo_original>
